<compile_context>
chip_gen: v5e
topology: v5e:2x2
jax: 0.10.0
libtpu: 0.0.40
codegen_flags: <defaults>
</compile_context>

<pallas_src>
import functools
import math

import jax
import jax.numpy as jnp
from jax.experimental import pallas as pl
from jax.experimental.pallas import tpu as pltpu

_LANE = 128
_BN_EPS = 1e-5


def _rup(x, m):
    return ((x + m - 1) // m) * m


# ---------------------------------------------------------------------------
# Fused matmul (+ train-mode BatchNorm / bias, + ReLU) kernel
# ---------------------------------------------------------------------------
def _matmul_fused_kernel(*refs, m_valid, epilogue, relu):
    """out = epilogue(A @ W).  epilogue in {'bn', 'bias', 'none'}."""
    if epilogue == 'bn':
        a_ref, w_ref, g_ref, b_ref, o_ref = refs
    elif epilogue == 'bias':
        a_ref, w_ref, g_ref, o_ref = refs
    else:
        a_ref, w_ref, o_ref = refs

    acc = jnp.dot(a_ref[...], w_ref[...], preferred_element_type=jnp.float32)

    if epilogue == 'bn':
        # Train-mode BatchNorm: biased batch statistics over the rows.  Zero
        # padded rows contribute 0 to both sums; divide by the real row count.
        inv_m = 1.0 / m_valid
        mean = jnp.sum(acc, axis=0, keepdims=True) * inv_m
        var = jnp.sum(acc * acc, axis=0, keepdims=True) * inv_m - mean * mean
        var = jnp.maximum(var, 0.0)
        scale = g_ref[...] * jax.lax.rsqrt(var + _BN_EPS)
        bias = b_ref[...] - mean * scale
        y = acc * scale + bias
    elif epilogue == 'bias':
        y = acc + g_ref[...]
    else:
        y = acc
    if relu:
        y = jnp.maximum(y, 0.0)
    o_ref[...] = y.astype(o_ref.dtype)


def matmul_fused(a, w, aux, *, epilogue, relu, m_valid=None):
    """(M, K) @ (K, Np) with fused epilogue.  Np must be a multiple of 128.

    aux = (gamma, beta) for 'bn', (bias,) for 'bias', () for 'none'; each is a
    (1, Np) float32 vector.  Rows are padded to a multiple of 8 internally;
    BN statistics divide by m_valid (the real row count).
    """
    M, K = a.shape
    Kw, Np = w.shape
    assert K == Kw and Np % _LANE == 0
    if m_valid is None:
        m_valid = M
    Mp = _rup(max(M, 8), 8)
    if Mp != M:
        a = jnp.zeros((Mp, K), a.dtype).at[:M].set(a)
    tn = 256 if Np % 256 == 0 else _LANE       # wider tiles for the 1280-wide head

    in_specs = [pl.BlockSpec((Mp, K), lambda j: (0, 0)),
                pl.BlockSpec((K, tn), lambda j: (0, j))]
    in_specs += [pl.BlockSpec((1, tn), lambda j: (0, j)) for _ in aux]

    out = pl.pallas_call(
        functools.partial(_matmul_fused_kernel, m_valid=float(m_valid),
                          epilogue=epilogue, relu=relu),
        out_shape=jax.ShapeDtypeStruct((Mp, Np), a.dtype),
        grid_spec=pltpu.PrefetchScalarGridSpec(
            num_scalar_prefetch=0,
            grid=(Np // tn,),
            in_specs=in_specs,
            out_specs=pl.BlockSpec((Mp, tn), lambda j: (0, j)),
        ),
        compiler_params=pltpu.CompilerParams(
            dimension_semantics=("parallel",)),
    )(a, w, *aux)
    return out if Mp == M else out[:M]


# ---------------------------------------------------------------------------
# Fused depthwise 3x3 conv (+ BatchNorm + ReLU) kernels
# ---------------------------------------------------------------------------
def _tree_sum(vals):
    while len(vals) > 1:
        nxt = [vals[k] + vals[k + 1] for k in range(0, len(vals) - 1, 2)]
        if len(vals) % 2:
            nxt.append(vals[-1])
        vals = nxt
    return vals[0]


def _dw_bn_store(acc, g_ref, b_ref, o_ref, relu):
    N, Ho, Wo, Cp = o_ref.shape
    inv_m = 1.0 / float(N * Ho * Wo)
    s1 = acc.sum(axis=0, keepdims=True).sum(axis=1, keepdims=True).sum(
        axis=2, keepdims=True)
    s2 = (acc * acc).sum(axis=0, keepdims=True).sum(axis=1, keepdims=True).sum(
        axis=2, keepdims=True)
    mean = s1 * inv_m
    var = jnp.maximum(s2 * inv_m - mean * mean, 0.0)
    scale = g_ref[...].reshape(1, 1, 1, Cp) * jax.lax.rsqrt(var + _BN_EPS)
    bias = b_ref[...].reshape(1, 1, 1, Cp) - mean * scale
    y = acc * scale + bias
    if relu:
        y = jnp.maximum(y, 0.0)
    o_ref[...] = y.astype(o_ref.dtype)


def _dwconv_s1_kernel(x_ref, w_ref, g_ref, b_ref, o_ref, *, relu):
    """Stride-1 3x3 depthwise conv on a spatially padded NHWC block."""
    _, Ho, Wo, _ = o_ref.shape
    w = w_ref[...].astype(jnp.float32)               # (9, Cp), loaded once
    taps = []
    for i in range(3):
        for j in range(3):
            t = x_ref[:, i:i + Ho, j:j + Wo, :]
            taps.append(t.astype(jnp.float32) * w[i * 3 + j])
    _dw_bn_store(_tree_sum(taps), g_ref, b_ref, o_ref, relu)


def _dwconv_s2_kernel(x00_ref, x01_ref, x10_ref, x11_ref, w_ref, g_ref, b_ref,
                      o_ref, *, relu):
    """Stride-2 3x3 depthwise conv on polyphase (space-to-depth) inputs; all
    in-kernel reads are contiguous static slices."""
    _, Ho, Wo, _ = o_ref.shape
    phases = ((x00_ref, x01_ref), (x10_ref, x11_ref))
    w = w_ref[...].astype(jnp.float32)
    taps = []
    for i in range(3):
        for j in range(3):
            ph = phases[i % 2][j % 2]
            t = ph[:, i // 2:i // 2 + Ho, j // 2:j // 2 + Wo, :]
            taps.append(t.astype(jnp.float32) * w[i * 3 + j])
    _dw_bn_store(_tree_sum(taps), g_ref, b_ref, o_ref, relu)


def dwconv_bn(x, p, *, stride, relu):
    """3x3 depthwise conv (pad=1) + train-mode BatchNorm + optional ReLU."""
    N, H, W, Cp = x.shape
    Ho = (H + 2 - 3) // stride + 1
    Wo = (W + 2 - 3) // stride + 1
    xp = jnp.pad(x, ((0, 0), (1, 1), (1, 1), (0, 0)))

    common_specs = [pl.BlockSpec((9, Cp), lambda i: (0, 0)),
                    pl.BlockSpec((1, Cp), lambda i: (0, 0)),
                    pl.BlockSpec((1, Cp), lambda i: (0, 0))]
    if stride == 1:
        kernel = functools.partial(_dwconv_s1_kernel, relu=relu)
        operands = (xp,)
        in_specs = [pl.BlockSpec(xp.shape, lambda i: (0, 0, 0, 0))]
    else:
        kernel = functools.partial(_dwconv_s2_kernel, relu=relu)
        operands = tuple(xp[:, di::2, dj::2, :]
                         for di in range(2) for dj in range(2))
        in_specs = [pl.BlockSpec(ph.shape, lambda i: (0, 0, 0, 0))
                    for ph in operands]
    in_specs += common_specs

    return pl.pallas_call(
        kernel,
        out_shape=jax.ShapeDtypeStruct((N, Ho, Wo, Cp), x.dtype),
        grid_spec=pltpu.PrefetchScalarGridSpec(
            num_scalar_prefetch=0,
            grid=(1,),
            in_specs=in_specs,
            out_specs=pl.BlockSpec((N, Ho, Wo, Cp), lambda i: (0, 0, 0, 0)),
        ),
        compiler_params=pltpu.CompilerParams(
            dimension_semantics=("arbitrary",)),
    )(*operands, p['w'], p['gamma'], p['beta'])


# ---------------------------------------------------------------------------
# Fused SE gate kernel: sigmoid(relu(y @ W1) @ W2)
# ---------------------------------------------------------------------------
def _se_kernel(y_ref, w1_ref, w2_ref, o_ref):
    h = jnp.dot(y_ref[...], w1_ref[...], preferred_element_type=jnp.float32)
    h = jnp.maximum(h, 0.0).astype(w2_ref.dtype)
    g = jnp.dot(h, w2_ref[...], preferred_element_type=jnp.float32)
    o_ref[...] = 1.0 / (1.0 + jnp.exp(-g))


def se_layer(x, p):
    N, H, W, Cp = x.shape
    w1, w2 = p['w1'], p['w2']
    y = jnp.mean(x.astype(jnp.float32), axis=(1, 2))          # (N, Cp) avg pool
    rows = _rup(max(N, 8), 8)
    y8 = jnp.zeros((rows, Cp), jnp.bfloat16).at[:N].set(y.astype(jnp.bfloat16))
    gate = pl.pallas_call(
        _se_kernel,
        out_shape=jax.ShapeDtypeStruct((rows, Cp), jnp.float32),
        grid_spec=pltpu.PrefetchScalarGridSpec(
            num_scalar_prefetch=0,
            grid=(1,),
            in_specs=[pl.BlockSpec((rows, Cp), lambda i: (0, 0)),
                      pl.BlockSpec(w1.shape, lambda i: (0, 0)),
                      pl.BlockSpec(w2.shape, lambda i: (0, 0))],
            out_specs=pl.BlockSpec((rows, Cp), lambda i: (0, 0)),
        ),
        compiler_params=pltpu.CompilerParams(
            dimension_semantics=("arbitrary",)),
    )(y8, w1, w2)
    # Padded gate lanes are sigmoid(0)=0.5 but x is exactly 0 there, so padded
    # output lanes stay 0.
    return x * gate[:N, None, None, :].astype(x.dtype)


# ---------------------------------------------------------------------------
# Module composition (all activations NHWC, channels padded to 128 lanes)
# ---------------------------------------------------------------------------
def conv1x1_bn(x, p, relu):
    N, H, W, Cp = x.shape
    out = matmul_fused(x.reshape(N * H * W, Cp), p['w'],
                       (p['gamma'], p['beta']), epilogue='bn', relu=relu)
    return out.reshape(N, H, W, out.shape[-1])


def ghost_module(x, p, relu):
    # primary 1x1 conv + BN(+ReLU), then depthwise 3x3 "cheap" conv + BN(+ReLU).
    # torch.cat([primary, cheap], dim=C)[:, :oup] is realised as a lane-offset
    # concat of the two channel-padded tensors (padded lanes are zero).
    prim = conv1x1_bn(x, p['primary'], relu=relu)
    cheap = dwconv_bn(prim, p['cheap'], stride=1, relu=relu)
    Cp = prim.shape[-1]
    init_ch, oup = p['init_ch'], p['oup']
    assert Cp >= oup
    out = jnp.concatenate([prim[..., :init_ch], cheap[..., :Cp - init_ch]],
                          axis=-1)
    if oup < 2 * init_ch:            # odd oup: drop the last cheap channel
        out = out * (jnp.arange(Cp) < oup).astype(out.dtype)
    return out


def dwsep_conv(x, p, stride):
    x = dwconv_bn(x, p['dw'], stride=stride, relu=True)
    return conv1x1_bn(x, p['pw'], relu=True)


def ghost_bottleneck(x, p):
    stride = p['stride']
    out = ghost_module(x, p['gm1'], relu=True)
    if stride > 1:
        out = dwsep_conv(out, p['dwsep'], stride)
    if p['use_se']:
        out = se_layer(out, p['se'])
    out = ghost_module(out, p['gm2'], relu=False)
    if p['use_shortcut']:
        return out + x
    sc = dwsep_conv(x, p['sc_dwsep'], stride)
    sc = conv1x1_bn(sc, p['sc_pw'], relu=False)
    return out + sc


def initial_conv(x, p):
    # 3x3 stride-2 stem with Cin=3: the im2col tensor is ~13 KB, so a
    # wrapper-side gather is negligible; every other conv avoids im2col.
    N, H, W, Cin = x.shape
    xp = jnp.pad(x, ((0, 0), (1, 1), (1, 1), (0, 0)))
    Ho = (H + 2 - 3) // 2 + 1
    Wo = (W + 2 - 3) // 2 + 1
    taps = []
    for i in range(3):
        for j in range(3):
            taps.append(xp[:, i:i + (Ho - 1) * 2 + 1:2,
                           j:j + (Wo - 1) * 2 + 1:2, :])
    cols = jnp.concatenate(taps, axis=-1).reshape(N * Ho * Wo, 9 * Cin)
    cols = jnp.pad(cols, ((0, 0), (0, p['w'].shape[0] - 9 * Cin)))
    out = matmul_fused(cols, p['w'], (p['gamma'], p['beta']),
                       epilogue='bn', relu=True)
    return out.reshape(N, Ho, Wo, out.shape[-1])


def ghostnet_forward(x_nchw, params, num_classes):
    x = jnp.transpose(x_nchw, (0, 2, 3, 1)).astype(jnp.bfloat16)  # NCHW -> NHWC
    x = initial_conv(x, params['init'])
    for p in params['blocks']:
        x = ghost_bottleneck(x, p)
    x = conv1x1_bn(x, params['final'], relu=True)
    x = jnp.mean(x.astype(jnp.float32), axis=(1, 2))              # AdaptiveAvgPool2d(1)
    x = matmul_fused(x.astype(jnp.bfloat16), params['fc1_w'],
                     (params['bn1d_gamma'], params['bn1d_beta']),
                     epilogue='bn', relu=True, m_valid=x.shape[0])
    # TODO(synk): nn.Dropout(0.2) is stochastic in train mode; treated as identity.
    x = matmul_fused(x, params['fc2_w'], (params['fc2_b'],),
                     epilogue='bias', relu=False)
    return x[:, :num_classes].astype(jnp.float32)


# ---------------------------------------------------------------------------
# Deterministic parameter construction (pre-padded to the persistent layout)
# ---------------------------------------------------------------------------
def make_divisible(v, divisor, min_value=None):
    if min_value is None:
        min_value = divisor
    new_v = max(min_value, int(v + divisor / 2) // divisor * divisor)
    if new_v < 0.9 * v:
        new_v += divisor
    return new_v


class ParamGen:
    def __init__(self, key):
        self.key = key

    def _next(self):
        self.key, sub = jax.random.split(self.key)
        return sub

    def conv(self, kh, kw, cin, cout):
        std = math.sqrt(2.0 / (cout * kh * kw))      # kaiming_normal_ fan_out
        return std * jax.random.normal(self._next(), (kh, kw, cin, cout),
                                       dtype=jnp.float32)

    def dwconv(self, k, c):
        std = math.sqrt(2.0 / (k * k))               # fan_out / groups
        return std * jax.random.normal(self._next(), (k, k, c),
                                       dtype=jnp.float32)

    def linear(self, cin, cout):
        return 0.01 * jax.random.normal(self._next(), (cin, cout),
                                        dtype=jnp.float32)


def _pad_matrix(w, rows, cols, dtype=jnp.bfloat16):
    r, c = w.shape
    return jnp.zeros((rows, cols), dtype).at[:r, :c].set(w.astype(dtype))


def _bn_params(c):
    cp = _rup(c, _LANE)
    return {'gamma': jnp.ones((1, cp), jnp.float32),
            'beta': jnp.zeros((1, cp), jnp.float32)}


def _conv1x1_params(gen, cin, cout):
    w = gen.conv(1, 1, cin, cout).reshape(cin, cout)
    return {'w': _pad_matrix(w, _rup(cin, _LANE), _rup(cout, _LANE)),
            **_bn_params(cout)}


def _dw_params(gen, c):
    w = gen.dwconv(3, c).reshape(9, c)
    cp = _rup(c, _LANE)
    return {'w': jnp.zeros((9, cp), jnp.float32).at[:, :c].set(w),
            **_bn_params(c)}


def _ghost_module_params(gen, cin, cout):
    init_ch = math.ceil(cout / 2)
    return {'oup': cout, 'init_ch': init_ch,
            'primary': _conv1x1_params(gen, cin, init_ch),
            'cheap': _dw_params(gen, init_ch)}


def _dwsep_params(gen, cin, cout):
    return {'dw': _dw_params(gen, cin), 'pw': _conv1x1_params(gen, cin, cout)}


def _bottleneck_params(gen, cin, hidden, cout, stride, use_se):
    p = {'gm1': _ghost_module_params(gen, cin, hidden),
         'gm2': _ghost_module_params(gen, hidden, cout),
         'stride': stride, 'use_se': use_se,
         'use_shortcut': (stride == 1 and cin == cout)}
    if stride > 1:
        p['dwsep'] = _dwsep_params(gen, hidden, hidden)
    if use_se:
        red = hidden // 4
        hp, rp = _rup(hidden, _LANE), _rup(red, _LANE)
        p['se'] = {'w1': _pad_matrix(gen.linear(hidden, red), hp, rp),
                   'w2': _pad_matrix(gen.linear(red, hidden), rp, hp)}
    if not p['use_shortcut']:
        p['sc_dwsep'] = _dwsep_params(gen, cin, cin)
        p['sc_pw'] = _conv1x1_params(gen, cin, cout)
    return p


def init_ghostnet_params(cfgs, num_classes=10, width_mult=1.0, seed=0):
    gen = ParamGen(jax.random.PRNGKey(seed))
    params = {}
    init_ch = make_divisible(16 * width_mult, 4)
    w0 = gen.conv(3, 3, 3, init_ch).reshape(9 * 3, init_ch)
    params['init'] = {'w': _pad_matrix(w0, _LANE, _rup(init_ch, _LANE)),
                      **_bn_params(init_ch)}
    in_ch = init_ch
    blocks = []
    exp_size = 16
    for k, exp_size, c, use_se, s in cfgs:
        out_ch = make_divisible(c * width_mult, 4)
        hid = make_divisible(exp_size * width_mult, 4)
        # NOTE: the reference GhostBottleneck ignores its kernel_size arg.
        blocks.append(_bottleneck_params(gen, in_ch, hid, out_ch, s,
                                         bool(use_se)))
        in_ch = out_ch
    params['blocks'] = blocks
    final_ch = make_divisible(exp_size * width_mult, 4)
    params['final'] = _conv1x1_params(gen, in_ch, final_ch)
    params['fc1_w'] = _pad_matrix(gen.linear(final_ch, 1280),
                                  _rup(final_ch, _LANE), 1280)
    params['bn1d_gamma'] = jnp.ones((1, 1280), jnp.float32)
    params['bn1d_beta'] = jnp.zeros((1, 1280), jnp.float32)
    params['fc2_w'] = _pad_matrix(gen.linear(1280, num_classes),
                                  1280, _rup(num_classes, _LANE))
    params['fc2_b'] = jnp.zeros((1, _rup(num_classes, _LANE)), jnp.float32)
    return params


# ---------------------------------------------------------------------------
if __name__ == "__main__":
    # small GhostNet config: (kernel, exp_size, out_channels, use_se, stride)
    cfgs = [
        [3, 16, 16, 0, 1],
        [3, 48, 24, 0, 2],
        [5, 72, 40, 1, 2],
    ]
    num_classes = 10

    params = init_ghostnet_params(cfgs, num_classes=num_classes,
                                  width_mult=1.0, seed=0)

    x = jax.random.normal(jax.random.PRNGKey(0), (2, 3, 16, 16),
                          dtype=jnp.float32)                      # NCHW input

    fwd = jax.jit(lambda inp: ghostnet_forward(inp, params, num_classes))
    logits = jax.block_until_ready(fwd(x))
    assert logits.shape == (2, num_classes), logits.shape
    assert bool(jnp.all(jnp.isfinite(logits)))
    print("KERNEL_OK")
</pallas_src>

<mosaic_0001>
module attributes {stable_mosaic.version = 11 : i64} {
  func.func @_matmul_fused_kernel(%arg0: i32, %arg1: memref<128x128xbf16, #tpu.memory_space<vmem>>, %arg2: memref<128x128xbf16, #tpu.memory_space<vmem>>, %arg3: memref<1x128xf32, #tpu.memory_space<vmem>>, %arg4: memref<1x128xf32, #tpu.memory_space<vmem>>, %arg5: memref<128x128xbf16, #tpu.memory_space<vmem>>) attributes {dimension_semantics = [#tpu.dimension_semantics<parallel>], iteration_bounds = array<i64: 1>, scalar_prefetch = 0 : i64, scratch_operands = 0 : i64, tpu.core_type = #tpu.core_type<tc>, window_params = [{pipeline_mode = #tpu.pipeline_mode<synchronous>, transform_indices = @transform_0, window_bounds = array<i64: 128, 128>}, {transform_indices = @transform_1, window_bounds = array<i64: 128, 128>}, {transform_indices = @transform_2, window_bounds = array<i64: 1, 128>}, {transform_indices = @transform_3, window_bounds = array<i64: 1, 128>}, {transform_indices = @transform_4, window_bounds = array<i64: 128, 128>}]} {
    %c0 = arith.constant 0 : index
    %c0_0 = arith.constant 0 : index
    %0 = vector.load %arg1[%c0, %c0_0] : memref<128x128xbf16, #tpu.memory_space<vmem>>, vector<128x128xbf16>
    %c0_1 = arith.constant 0 : index
    %c0_2 = arith.constant 0 : index
    %1 = vector.load %arg2[%c0_1, %c0_2] : memref<128x128xbf16, #tpu.memory_space<vmem>>, vector<128x128xbf16>
    %cst = arith.constant dense<0.000000e+00> : vector<128x128xf32>
    %2 = tpu.matmul %0, %1, %cst {dimension_numbers = #tpu.dot_dimension_numbers<[1], [0], [0], [1], [0, 0, 1, 1], [], []>} : vector<128x128xbf16>, vector<128x128xbf16>, vector<128x128xf32> -> vector<128x128xf32>
    %cst_3 = arith.constant dense<0.000000e+00> : vector<128xf32>
    %3 = vector.multi_reduction <add>, %2, %cst_3 [0] : vector<128x128xf32> to vector<128xf32>
    %4 = vector.shape_cast %3 : vector<128xf32> to vector<1x128xf32>
    %cst_4 = arith.constant 7.812500e-03 : f32
    %5 = vector.broadcast %cst_4 : f32 to vector<1x128xf32>
    %6 = arith.mulf %4, %5 : vector<1x128xf32>
    %7 = arith.mulf %2, %2 : vector<128x128xf32>
    %cst_5 = arith.constant dense<0.000000e+00> : vector<128xf32>
    %8 = vector.multi_reduction <add>, %7, %cst_5 [0] : vector<128x128xf32> to vector<128xf32>
    %9 = vector.shape_cast %8 : vector<128xf32> to vector<1x128xf32>
    %cst_6 = arith.constant 7.812500e-03 : f32
    %10 = vector.broadcast %cst_6 : f32 to vector<1x128xf32>
    %11 = arith.mulf %9, %10 : vector<1x128xf32>
    %12 = arith.mulf %6, %6 : vector<1x128xf32>
    %13 = arith.subf %11, %12 : vector<1x128xf32>
    %cst_7 = arith.constant 0.000000e+00 : f32
    %14 = vector.broadcast %cst_7 : f32 to vector<1x128xf32>
    %15 = arith.maximumf %13, %14 : vector<1x128xf32>
    %c0_8 = arith.constant 0 : index
    %c0_9 = arith.constant 0 : index
    %16 = vector.load %arg3[%c0_8, %c0_9] : memref<1x128xf32, #tpu.memory_space<vmem>>, vector<1x128xf32>
    %cst_10 = arith.constant 9.99999974E-6 : f32
    %17 = vector.broadcast %cst_10 : f32 to vector<1x128xf32>
    %18 = arith.addf %15, %17 : vector<1x128xf32>
    %19 = math.rsqrt %18 : vector<1x128xf32>
    %20 = arith.mulf %16, %19 : vector<1x128xf32>
    %c0_11 = arith.constant 0 : index
    %c0_12 = arith.constant 0 : index
    %21 = vector.load %arg4[%c0_11, %c0_12] : memref<1x128xf32, #tpu.memory_space<vmem>>, vector<1x128xf32>
    %22 = arith.mulf %6, %20 : vector<1x128xf32>
    %23 = arith.subf %21, %22 : vector<1x128xf32>
    %24 = vector.broadcast %20 : vector<1x128xf32> to vector<128x128xf32>
    %25 = arith.mulf %2, %24 : vector<128x128xf32>
    %26 = vector.broadcast %23 : vector<1x128xf32> to vector<128x128xf32>
    %27 = arith.addf %25, %26 : vector<128x128xf32>
    %cst_13 = arith.constant 0.000000e+00 : f32
    %28 = vector.broadcast %cst_13 : f32 to vector<128x128xf32>
    %29 = arith.maximumf %27, %28 : vector<128x128xf32>
    %30 = arith.truncf %29 : vector<128x128xf32> to vector<128x128xbf16>
    %c0_14 = arith.constant 0 : index
    %c0_15 = arith.constant 0 : index
    %31 = vector.load %arg5[%c0_14, %c0_15] : memref<128x128xbf16, #tpu.memory_space<vmem>>, vector<128x128xbf16>
    tpu.vector_store %arg5[%c0_14, %c0_15], %30 {strides = array<i32>} : memref<128x128xbf16, #tpu.memory_space<vmem>>, vector<128x128xbf16>,
    return
  }
  func.func @transform_0(%arg0: i32) -> (i32, i32) {
    %c0_i32 = arith.constant 0 : i32
    %c0_i32_0 = arith.constant 0 : i32
    %c0_i32_1 = arith.constant 0 : i32
    return %c0_i32, %c0_i32_0 : i32, i32
  }
  func.func @transform_1(%arg0: i32) -> (i32, i32) {
    %c0_i32 = arith.constant 0 : i32
    %c0_i32_0 = arith.constant 0 : i32
    return %c0_i32, %arg0 : i32, i32
  }
  func.func @transform_2(%arg0: i32) -> (i32, i32) {
    %c0_i32 = arith.constant 0 : i32
    %c0_i32_0 = arith.constant 0 : i32
    return %c0_i32, %arg0 : i32, i32
  }
  func.func @transform_3(%arg0: i32) -> (i32, i32) {
    %c0_i32 = arith.constant 0 : i32
    %c0_i32_0 = arith.constant 0 : i32
    return %c0_i32, %arg0 : i32, i32
  }
  func.func @transform_4(%arg0: i32) -> (i32, i32) {
    %c0_i32 = arith.constant 0 : i32
    %c0_i32_0 = arith.constant 0 : i32
    return %c0_i32, %arg0 : i32, i32
  }
}

module attributes {stable_mosaic.version = 11 : i64} {
  func.func @_dwconv_s1_kernel(%arg0: i32, %arg1: memref<2x10x10x128xbf16, #tpu.memory_space<vmem>>, %arg2: memref<9x128xf32, #tpu.memory_space<vmem>>, %arg3: memref<1x128xf32, #tpu.memory_space<vmem>>, %arg4: memref<1x128xf32, #tpu.memory_space<vmem>>, %arg5: memref<2x8x8x128xbf16, #tpu.memory_space<vmem>>) attributes {dimension_semantics = [#tpu.dimension_semantics<arbitrary>], iteration_bounds = array<i64: 1>, scalar_prefetch = 0 : i64, scratch_operands = 0 : i64, tpu.core_type = #tpu.core_type<tc>, window_params = [{pipeline_mode = #tpu.pipeline_mode<synchronous>, transform_indices = @transform_0, window_bounds = array<i64: 2, 10, 10, 128>}, {pipeline_mode = #tpu.pipeline_mode<synchronous>, transform_indices = @transform_1, window_bounds = array<i64: 9, 128>}, {pipeline_mode = #tpu.pipeline_mode<synchronous>, transform_indices = @transform_2, window_bounds = array<i64: 1, 128>}, {pipeline_mode = #tpu.pipeline_mode<synchronous>, transform_indices = @transform_3, window_bounds = array<i64: 1, 128>}, {pipeline_mode = #tpu.pipeline_mode<synchronous>, transform_indices = @transform_4, window_bounds = array<i64: 2, 8, 8, 128>}]} {
    %c0 = arith.constant 0 : index
    %c0_0 = arith.constant 0 : index
    %0 = vector.load %arg2[%c0, %c0_0] : memref<9x128xf32, #tpu.memory_space<vmem>>, vector<9x128xf32>
    %c0_1 = arith.constant 0 : index
    %c0_2 = arith.constant 0 : index
    %c0_3 = arith.constant 0 : index
    %c0_4 = arith.constant 0 : index
    %1 = vector.load %arg1[%c0_1, %c0_2, %c0_3, %c0_4] : memref<2x10x10x128xbf16, #tpu.memory_space<vmem>>, vector<2x8x8x128xbf16>
    %2 = arith.extf %1 : vector<2x8x8x128xbf16> to vector<2x8x8x128xf32>
    %3 = vector.extract_strided_slice %0 {offsets = [0, 0], sizes = [1, 128], strides = [1, 1]} : vector<9x128xf32> to vector<1x128xf32>
    %4 = vector.shape_cast %3 : vector<1x128xf32> to vector<128xf32>
    %5 = vector.shape_cast %4 : vector<128xf32> to vector<1x1x1x128xf32>
    %6 = vector.broadcast %5 : vector<1x1x1x128xf32> to vector<2x8x8x128xf32>
    %7 = arith.mulf %2, %6 : vector<2x8x8x128xf32>
    %c0_5 = arith.constant 0 : index
    %c0_6 = arith.constant 0 : index
    %c1 = arith.constant 1 : index
    %c0_7 = arith.constant 0 : index
    %8 = vector.load %arg1[%c0_5, %c0_6, %c1, %c0_7] : memref<2x10x10x128xbf16, #tpu.memory_space<vmem>>, vector<2x8x8x128xbf16>
    %9 = arith.extf %8 : vector<2x8x8x128xbf16> to vector<2x8x8x128xf32>
    %10 = vector.extract_strided_slice %0 {offsets = [1, 0], sizes = [1, 128], strides = [1, 1]} : vector<9x128xf32> to vector<1x128xf32>
    %11 = vector.shape_cast %10 : vector<1x128xf32> to vector<128xf32>
    %12 = vector.shape_cast %11 : vector<128xf32> to vector<1x1x1x128xf32>
    %13 = vector.broadcast %12 : vector<1x1x1x128xf32> to vector<2x8x8x128xf32>
    %14 = arith.mulf %9, %13 : vector<2x8x8x128xf32>
    %c0_8 = arith.constant 0 : index
    %c0_9 = arith.constant 0 : index
    %c2 = arith.constant 2 : index
    %c0_10 = arith.constant 0 : index
    %15 = vector.load %arg1[%c0_8, %c0_9, %c2, %c0_10] : memref<2x10x10x128xbf16, #tpu.memory_space<vmem>>, vector<2x8x8x128xbf16>
    %16 = arith.extf %15 : vector<2x8x8x128xbf16> to vector<2x8x8x128xf32>
    %17 = vector.extract_strided_slice %0 {offsets = [2, 0], sizes = [1, 128], strides = [1, 1]} : vector<9x128xf32> to vector<1x128xf32>
    %18 = vector.shape_cast %17 : vector<1x128xf32> to vector<128xf32>
    %19 = vector.shape_cast %18 : vector<128xf32> to vector<1x1x1x128xf32>
    %20 = vector.broadcast %19 : vector<1x1x1x128xf32> to vector<2x8x8x128xf32>
    %21 = arith.mulf %16, %20 : vector<2x8x8x128xf32>
    %c0_11 = arith.constant 0 : index
    %c1_12 = arith.constant 1 : index
    %c0_13 = arith.constant 0 : index
    %c0_14 = arith.constant 0 : index
    %22 = vector.load %arg1[%c0_11, %c1_12, %c0_13, %c0_14] : memref<2x10x10x128xbf16, #tpu.memory_space<vmem>>, vector<2x8x8x128xbf16>
    %23 = arith.extf %22 : vector<2x8x8x128xbf16> to vector<2x8x8x128xf32>
    %24 = vector.extract_strided_slice %0 {offsets = [3, 0], sizes = [1, 128], strides = [1, 1]} : vector<9x128xf32> to vector<1x128xf32>
    %25 = vector.shape_cast %24 : vector<1x128xf32> to vector<128xf32>
    %26 = vector.shape_cast %25 : vector<128xf32> to vector<1x1x1x128xf32>
    %27 = vector.broadcast %26 : vector<1x1x1x128xf32> to vector<2x8x8x128xf32>
    %28 = arith.mulf %23, %27 : vector<2x8x8x128xf32>
    %c0_15 = arith.constant 0 : index
    %c1_16 = arith.constant 1 : index
    %c1_17 = arith.constant 1 : index
    %c0_18 = arith.constant 0 : index
    %29 = vector.load %arg1[%c0_15, %c1_16, %c1_17, %c0_18] : memref<2x10x10x128xbf16, #tpu.memory_space<vmem>>, vector<2x8x8x128xbf16>
    %30 = arith.extf %29 : vector<2x8x8x128xbf16> to vector<2x8x8x128xf32>
    %31 = vector.extract_strided_slice %0 {offsets = [4, 0], sizes = [1, 128], strides = [1, 1]} : vector<9x128xf32> to vector<1x128xf32>
    %32 = vector.shape_cast %31 : vector<1x128xf32> to vector<128xf32>
    %33 = vector.shape_cast %32 : vector<128xf32> to vector<1x1x1x128xf32>
    %34 = vector.broadcast %33 : vector<1x1x1x128xf32> to vector<2x8x8x128xf32>
    %35 = arith.mulf %30, %34 : vector<2x8x8x128xf32>
    %c0_19 = arith.constant 0 : index
    %c1_20 = arith.constant 1 : index
    %c2_21 = arith.constant 2 : index
    %c0_22 = arith.constant 0 : index
    %36 = vector.load %arg1[%c0_19, %c1_20, %c2_21, %c0_22] : memref<2x10x10x128xbf16, #tpu.memory_space<vmem>>, vector<2x8x8x128xbf16>
    %37 = arith.extf %36 : vector<2x8x8x128xbf16> to vector<2x8x8x128xf32>
    %38 = vector.extract_strided_slice %0 {offsets = [5, 0], sizes = [1, 128], strides = [1, 1]} : vector<9x128xf32> to vector<1x128xf32>
    %39 = vector.shape_cast %38 : vector<1x128xf32> to vector<128xf32>
    %40 = vector.shape_cast %39 : vector<128xf32> to vector<1x1x1x128xf32>
    %41 = vector.broadcast %40 : vector<1x1x1x128xf32> to vector<2x8x8x128xf32>
    %42 = arith.mulf %37, %41 : vector<2x8x8x128xf32>
    %c0_23 = arith.constant 0 : index
    %c2_24 = arith.constant 2 : index
    %c0_25 = arith.constant 0 : index
    %c0_26 = arith.constant 0 : index
    %43 = vector.load %arg1[%c0_23, %c2_24, %c0_25, %c0_26] : memref<2x10x10x128xbf16, #tpu.memory_space<vmem>>, vector<2x8x8x128xbf16>
    %44 = arith.extf %43 : vector<2x8x8x128xbf16> to vector<2x8x8x128xf32>
    %45 = vector.extract_strided_slice %0 {offsets = [6, 0], sizes = [1, 128], strides = [1, 1]} : vector<9x128xf32> to vector<1x128xf32>
    %46 = vector.shape_cast %45 : vector<1x128xf32> to vector<128xf32>
    %47 = vector.shape_cast %46 : vector<128xf32> to vector<1x1x1x128xf32>
    %48 = vector.broadcast %47 : vector<1x1x1x128xf32> to vector<2x8x8x128xf32>
    %49 = arith.mulf %44, %48 : vector<2x8x8x128xf32>
    %c0_27 = arith.constant 0 : index
    %c2_28 = arith.constant 2 : index
    %c1_29 = arith.constant 1 : index
    %c0_30 = arith.constant 0 : index
    %50 = vector.load %arg1[%c0_27, %c2_28, %c1_29, %c0_30] : memref<2x10x10x128xbf16, #tpu.memory_space<vmem>>, vector<2x8x8x128xbf16>
    %51 = arith.extf %50 : vector<2x8x8x128xbf16> to vector<2x8x8x128xf32>
    %52 = vector.extract_strided_slice %0 {offsets = [7, 0], sizes = [1, 128], strides = [1, 1]} : vector<9x128xf32> to vector<1x128xf32>
    %53 = vector.shape_cast %52 : vector<1x128xf32> to vector<128xf32>
    %54 = vector.shape_cast %53 : vector<128xf32> to vector<1x1x1x128xf32>
    %55 = vector.broadcast %54 : vector<1x1x1x128xf32> to vector<2x8x8x128xf32>
    %56 = arith.mulf %51, %55 : vector<2x8x8x128xf32>
    %c0_31 = arith.constant 0 : index
    %c2_32 = arith.constant 2 : index
    %c2_33 = arith.constant 2 : index
    %c0_34 = arith.constant 0 : index
    %57 = vector.load %arg1[%c0_31, %c2_32, %c2_33, %c0_34] : memref<2x10x10x128xbf16, #tpu.memory_space<vmem>>, vector<2x8x8x128xbf16>
    %58 = arith.extf %57 : vector<2x8x8x128xbf16> to vector<2x8x8x128xf32>
    %59 = vector.extract_strided_slice %0 {offsets = [8, 0], sizes = [1, 128], strides = [1, 1]} : vector<9x128xf32> to vector<1x128xf32>
    %60 = vector.shape_cast %59 : vector<1x128xf32> to vector<128xf32>
    %61 = vector.shape_cast %60 : vector<128xf32> to vector<1x1x1x128xf32>
    %62 = vector.broadcast %61 : vector<1x1x1x128xf32> to vector<2x8x8x128xf32>
    %63 = arith.mulf %58, %62 : vector<2x8x8x128xf32>
    %64 = arith.addf %7, %14 : vector<2x8x8x128xf32>
    %65 = arith.addf %21, %28 : vector<2x8x8x128xf32>
    %66 = arith.addf %35, %42 : vector<2x8x8x128xf32>
    %67 = arith.addf %49, %56 : vector<2x8x8x128xf32>
    %68 = arith.addf %64, %65 : vector<2x8x8x128xf32>
    %69 = arith.addf %66, %67 : vector<2x8x8x128xf32>
    %70 = arith.addf %68, %69 : vector<2x8x8x128xf32>
    %71 = arith.addf %70, %63 : vector<2x8x8x128xf32>
    %cst = arith.constant dense<0.000000e+00> : vector<8x8x128xf32>
    %72 = vector.multi_reduction <add>, %71, %cst [0] : vector<2x8x8x128xf32> to vector<8x8x128xf32>
    %73 = vector.shape_cast %72 : vector<8x8x128xf32> to vector<1x8x8x128xf32>
    %cst_35 = arith.constant dense<0.000000e+00> : vector<1x8x128xf32>
    %74 = vector.multi_reduction <add>, %73, %cst_35 [1] : vector<1x8x8x128xf32> to vector<1x8x128xf32>
    %75 = vector.shape_cast %74 : vector<1x8x128xf32> to vector<1x1x8x128xf32>
    %cst_36 = arith.constant dense<0.000000e+00> : vector<1x1x128xf32>
    %76 = vector.multi_reduction <add>, %75, %cst_36 [2] : vector<1x1x8x128xf32> to vector<1x1x128xf32>
    %77 = vector.shape_cast %76 : vector<1x1x128xf32> to vector<1x1x1x128xf32>
    %78 = arith.mulf %71, %71 : vector<2x8x8x128xf32>
    %cst_37 = arith.constant dense<0.000000e+00> : vector<8x8x128xf32>
    %79 = vector.multi_reduction <add>, %78, %cst_37 [0] : vector<2x8x8x128xf32> to vector<8x8x128xf32>
    %80 = vector.shape_cast %79 : vector<8x8x128xf32> to vector<1x8x8x128xf32>
    %cst_38 = arith.constant dense<0.000000e+00> : vector<1x8x128xf32>
    %81 = vector.multi_reduction <add>, %80, %cst_38 [1] : vector<1x8x8x128xf32> to vector<1x8x128xf32>
    %82 = vector.shape_cast %81 : vector<1x8x128xf32> to vector<1x1x8x128xf32>
    %cst_39 = arith.constant dense<0.000000e+00> : vector<1x1x128xf32>
    %83 = vector.multi_reduction <add>, %82, %cst_39 [2] : vector<1x1x8x128xf32> to vector<1x1x128xf32>
    %84 = vector.shape_cast %83 : vector<1x1x128xf32> to vector<1x1x1x128xf32>
    %cst_40 = arith.constant 7.812500e-03 : f32
    %85 = vector.broadcast %cst_40 : f32 to vector<1x1x1x128xf32>
    %86 = arith.mulf %77, %85 : vector<1x1x1x128xf32>
    %cst_41 = arith.constant 7.812500e-03 : f32
    %87 = vector.broadcast %cst_41 : f32 to vector<1x1x1x128xf32>
    %88 = arith.mulf %84, %87 : vector<1x1x1x128xf32>
    %89 = arith.mulf %86, %86 : vector<1x1x1x128xf32>
    %90 = arith.subf %88, %89 : vector<1x1x1x128xf32>
    %cst_42 = arith.constant 0.000000e+00 : f32
    %91 = vector.broadcast %cst_42 : f32 to vector<1x1x1x128xf32>
    %92 = arith.maximumf %90, %91 : vector<1x1x1x128xf32>
    %c0_43 = arith.constant 0 : index
    %c0_44 = arith.constant 0 : index
    %93 = vector.load %arg3[%c0_43, %c0_44] : memref<1x128xf32, #tpu.memory_space<vmem>>, vector<1x128xf32>
    %94 = vector.shape_cast %93 : vector<1x128xf32> to vector<1x1x1x128xf32>
    %cst_45 = arith.constant 9.99999974E-6 : f32
    %95 = vector.broadcast %cst_45 : f32 to vector<1x1x1x128xf32>
    %96 = arith.addf %92, %95 : vector<1x1x1x128xf32>
    %97 = math.rsqrt %96 : vector<1x1x1x128xf32>
    %98 = arith.mulf %94, %97 : vector<1x1x1x128xf32>
    %c0_46 = arith.constant 0 : index
    %c0_47 = arith.constant 0 : index
    %99 = vector.load %arg4[%c0_46, %c0_47] : memref<1x128xf32, #tpu.memory_space<vmem>>, vector<1x128xf32>
    %100 = vector.shape_cast %99 : vector<1x128xf32> to vector<1x1x1x128xf32>
    %101 = arith.mulf %86, %98 : vector<1x1x1x128xf32>
    %102 = arith.subf %100, %101 : vector<1x1x1x128xf32>
    %103 = vector.broadcast %98 : vector<1x1x1x128xf32> to vector<2x8x8x128xf32>
    %104 = arith.mulf %71, %103 : vector<2x8x8x128xf32>
    %105 = vector.broadcast %102 : vector<1x1x1x128xf32> to vector<2x8x8x128xf32>
    %106 = arith.addf %104, %105 : vector<2x8x8x128xf32>
    %cst_48 = arith.constant 0.000000e+00 : f32
    %107 = vector.broadcast %cst_48 : f32 to vector<2x8x8x128xf32>
    %108 = arith.maximumf %106, %107 : vector<2x8x8x128xf32>
    %109 = arith.truncf %108 : vector<2x8x8x128xf32> to vector<2x8x8x128xbf16>
    %c0_49 = arith.constant 0 : index
    %c0_50 = arith.constant 0 : index
    %c0_51 = arith.constant 0 : index
    %c0_52 = arith.constant 0 : index
    %110 = vector.load %arg5[%c0_49, %c0_50, %c0_51, %c0_52] : memref<2x8x8x128xbf16, #tpu.memory_space<vmem>>, vector<2x8x8x128xbf16>
    tpu.vector_store %arg5[%c0_49, %c0_50, %c0_51, %c0_52], %109 {strides = array<i32>} : memref<2x8x8x128xbf16, #tpu.memory_space<vmem>>, vector<2x8x8x128xbf16>,
    return
  }
  func.func @transform_0(%arg0: i32) -> (i32, i32, i32, i32) {
    %c0_i32 = arith.constant 0 : i32
    %c0_i32_0 = arith.constant 0 : i32
    %c0_i32_1 = arith.constant 0 : i32
    %c0_i32_2 = arith.constant 0 : i32
    %c0_i32_3 = arith.constant 0 : i32
    return %c0_i32, %c0_i32_0, %c0_i32_1, %c0_i32_2 : i32, i32, i32, i32
  }
  func.func @transform_1(%arg0: i32) -> (i32, i32) {
    %c0_i32 = arith.constant 0 : i32
    %c0_i32_0 = arith.constant 0 : i32
    %c0_i32_1 = arith.constant 0 : i32
    return %c0_i32, %c0_i32_0 : i32, i32
  }
  func.func @transform_2(%arg0: i32) -> (i32, i32) {
    %c0_i32 = arith.constant 0 : i32
    %c0_i32_0 = arith.constant 0 : i32
    %c0_i32_1 = arith.constant 0 : i32
    return %c0_i32, %c0_i32_0 : i32, i32
  }
  func.func @transform_3(%arg0: i32) -> (i32, i32) {
    %c0_i32 = arith.constant 0 : i32
    %c0_i32_0 = arith.constant 0 : i32
    %c0_i32_1 = arith.constant 0 : i32
    return %c0_i32, %c0_i32_0 : i32, i32
  }
  func.func @transform_4(%arg0: i32) -> (i32, i32, i32, i32) {
    %c0_i32 = arith.constant 0 : i32
    %c0_i32_0 = arith.constant 0 : i32
    %c0_i32_1 = arith.constant 0 : i32
    %c0_i32_2 = arith.constant 0 : i32
    %c0_i32_3 = arith.constant 0 : i32
    return %c0_i32, %c0_i32_0, %c0_i32_1, %c0_i32_2 : i32, i32, i32, i32
  }
}

module attributes {stable_mosaic.version = 11 : i64} {
  func.func @_matmul_fused_kernel(%arg0: i32, %arg1: memref<128x128xbf16, #tpu.memory_space<vmem>>, %arg2: memref<128x128xbf16, #tpu.memory_space<vmem>>, %arg3: memref<1x128xf32, #tpu.memory_space<vmem>>, %arg4: memref<1x128xf32, #tpu.memory_space<vmem>>, %arg5: memref<128x128xbf16, #tpu.memory_space<vmem>>) attributes {dimension_semantics = [#tpu.dimension_semantics<parallel>], iteration_bounds = array<i64: 1>, scalar_prefetch = 0 : i64, scratch_operands = 0 : i64, tpu.core_type = #tpu.core_type<tc>, window_params = [{pipeline_mode = #tpu.pipeline_mode<synchronous>, transform_indices = @transform_0, window_bounds = array<i64: 128, 128>}, {transform_indices = @transform_1, window_bounds = array<i64: 128, 128>}, {transform_indices = @transform_2, window_bounds = array<i64: 1, 128>}, {transform_indices = @transform_3, window_bounds = array<i64: 1, 128>}, {transform_indices = @transform_4, window_bounds = array<i64: 128, 128>}]} {
    %c0 = arith.constant 0 : index
    %c0_0 = arith.constant 0 : index
    %0 = vector.load %arg1[%c0, %c0_0] : memref<128x128xbf16, #tpu.memory_space<vmem>>, vector<128x128xbf16>
    %c0_1 = arith.constant 0 : index
    %c0_2 = arith.constant 0 : index
    %1 = vector.load %arg2[%c0_1, %c0_2] : memref<128x128xbf16, #tpu.memory_space<vmem>>, vector<128x128xbf16>
    %cst = arith.constant dense<0.000000e+00> : vector<128x128xf32>
    %2 = tpu.matmul %0, %1, %cst {dimension_numbers = #tpu.dot_dimension_numbers<[1], [0], [0], [1], [0, 0, 1, 1], [], []>} : vector<128x128xbf16>, vector<128x128xbf16>, vector<128x128xf32> -> vector<128x128xf32>
    %cst_3 = arith.constant dense<0.000000e+00> : vector<128xf32>
    %3 = vector.multi_reduction <add>, %2, %cst_3 [0] : vector<128x128xf32> to vector<128xf32>
    %4 = vector.shape_cast %3 : vector<128xf32> to vector<1x128xf32>
    %cst_4 = arith.constant 7.812500e-03 : f32
    %5 = vector.broadcast %cst_4 : f32 to vector<1x128xf32>
    %6 = arith.mulf %4, %5 : vector<1x128xf32>
    %7 = arith.mulf %2, %2 : vector<128x128xf32>
    %cst_5 = arith.constant dense<0.000000e+00> : vector<128xf32>
    %8 = vector.multi_reduction <add>, %7, %cst_5 [0] : vector<128x128xf32> to vector<128xf32>
    %9 = vector.shape_cast %8 : vector<128xf32> to vector<1x128xf32>
    %cst_6 = arith.constant 7.812500e-03 : f32
    %10 = vector.broadcast %cst_6 : f32 to vector<1x128xf32>
    %11 = arith.mulf %9, %10 : vector<1x128xf32>
    %12 = arith.mulf %6, %6 : vector<1x128xf32>
    %13 = arith.subf %11, %12 : vector<1x128xf32>
    %cst_7 = arith.constant 0.000000e+00 : f32
    %14 = vector.broadcast %cst_7 : f32 to vector<1x128xf32>
    %15 = arith.maximumf %13, %14 : vector<1x128xf32>
    %c0_8 = arith.constant 0 : index
    %c0_9 = arith.constant 0 : index
    %16 = vector.load %arg3[%c0_8, %c0_9] : memref<1x128xf32, #tpu.memory_space<vmem>>, vector<1x128xf32>
    %cst_10 = arith.constant 9.99999974E-6 : f32
    %17 = vector.broadcast %cst_10 : f32 to vector<1x128xf32>
    %18 = arith.addf %15, %17 : vector<1x128xf32>
    %19 = math.rsqrt %18 : vector<1x128xf32>
    %20 = arith.mulf %16, %19 : vector<1x128xf32>
    %c0_11 = arith.constant 0 : index
    %c0_12 = arith.constant 0 : index
    %21 = vector.load %arg4[%c0_11, %c0_12] : memref<1x128xf32, #tpu.memory_space<vmem>>, vector<1x128xf32>
    %22 = arith.mulf %6, %20 : vector<1x128xf32>
    %23 = arith.subf %21, %22 : vector<1x128xf32>
    %24 = vector.broadcast %20 : vector<1x128xf32> to vector<128x128xf32>
    %25 = arith.mulf %2, %24 : vector<128x128xf32>
    %26 = vector.broadcast %23 : vector<1x128xf32> to vector<128x128xf32>
    %27 = arith.addf %25, %26 : vector<128x128xf32>
    %28 = arith.truncf %27 : vector<128x128xf32> to vector<128x128xbf16>
    %c0_13 = arith.constant 0 : index
    %c0_14 = arith.constant 0 : index
    %29 = vector.load %arg5[%c0_13, %c0_14] : memref<128x128xbf16, #tpu.memory_space<vmem>>, vector<128x128xbf16>
    tpu.vector_store %arg5[%c0_13, %c0_14], %28 {strides = array<i32>} : memref<128x128xbf16, #tpu.memory_space<vmem>>, vector<128x128xbf16>,
    return
  }
  func.func @transform_0(%arg0: i32) -> (i32, i32) {
    %c0_i32 = arith.constant 0 : i32
    %c0_i32_0 = arith.constant 0 : i32
    %c0_i32_1 = arith.constant 0 : i32
    return %c0_i32, %c0_i32_0 : i32, i32
  }
  func.func @transform_1(%arg0: i32) -> (i32, i32) {
    %c0_i32 = arith.constant 0 : i32
    %c0_i32_0 = arith.constant 0 : i32
    return %c0_i32, %arg0 : i32, i32
  }
  func.func @transform_2(%arg0: i32) -> (i32, i32) {
    %c0_i32 = arith.constant 0 : i32
    %c0_i32_0 = arith.constant 0 : i32
    return %c0_i32, %arg0 : i32, i32
  }
  func.func @transform_3(%arg0: i32) -> (i32, i32) {
    %c0_i32 = arith.constant 0 : i32
    %c0_i32_0 = arith.constant 0 : i32
    return %c0_i32, %arg0 : i32, i32
  }
  func.func @transform_4(%arg0: i32) -> (i32, i32) {
    %c0_i32 = arith.constant 0 : i32
    %c0_i32_0 = arith.constant 0 : i32
    return %c0_i32, %arg0 : i32, i32
  }
}

module attributes {stable_mosaic.version = 11 : i64} {
  func.func @_dwconv_s1_kernel(%arg0: i32, %arg1: memref<2x10x10x128xbf16, #tpu.memory_space<vmem>>, %arg2: memref<9x128xf32, #tpu.memory_space<vmem>>, %arg3: memref<1x128xf32, #tpu.memory_space<vmem>>, %arg4: memref<1x128xf32, #tpu.memory_space<vmem>>, %arg5: memref<2x8x8x128xbf16, #tpu.memory_space<vmem>>) attributes {dimension_semantics = [#tpu.dimension_semantics<arbitrary>], iteration_bounds = array<i64: 1>, scalar_prefetch = 0 : i64, scratch_operands = 0 : i64, tpu.core_type = #tpu.core_type<tc>, window_params = [{pipeline_mode = #tpu.pipeline_mode<synchronous>, transform_indices = @transform_0, window_bounds = array<i64: 2, 10, 10, 128>}, {pipeline_mode = #tpu.pipeline_mode<synchronous>, transform_indices = @transform_1, window_bounds = array<i64: 9, 128>}, {pipeline_mode = #tpu.pipeline_mode<synchronous>, transform_indices = @transform_2, window_bounds = array<i64: 1, 128>}, {pipeline_mode = #tpu.pipeline_mode<synchronous>, transform_indices = @transform_3, window_bounds = array<i64: 1, 128>}, {pipeline_mode = #tpu.pipeline_mode<synchronous>, transform_indices = @transform_4, window_bounds = array<i64: 2, 8, 8, 128>}]} {
    %c0 = arith.constant 0 : index
    %c0_0 = arith.constant 0 : index
    %0 = vector.load %arg2[%c0, %c0_0] : memref<9x128xf32, #tpu.memory_space<vmem>>, vector<9x128xf32>
    %c0_1 = arith.constant 0 : index
    %c0_2 = arith.constant 0 : index
    %c0_3 = arith.constant 0 : index
    %c0_4 = arith.constant 0 : index
    %1 = vector.load %arg1[%c0_1, %c0_2, %c0_3, %c0_4] : memref<2x10x10x128xbf16, #tpu.memory_space<vmem>>, vector<2x8x8x128xbf16>
    %2 = arith.extf %1 : vector<2x8x8x128xbf16> to vector<2x8x8x128xf32>
    %3 = vector.extract_strided_slice %0 {offsets = [0, 0], sizes = [1, 128], strides = [1, 1]} : vector<9x128xf32> to vector<1x128xf32>
    %4 = vector.shape_cast %3 : vector<1x128xf32> to vector<128xf32>
    %5 = vector.shape_cast %4 : vector<128xf32> to vector<1x1x1x128xf32>
    %6 = vector.broadcast %5 : vector<1x1x1x128xf32> to vector<2x8x8x128xf32>
    %7 = arith.mulf %2, %6 : vector<2x8x8x128xf32>
    %c0_5 = arith.constant 0 : index
    %c0_6 = arith.constant 0 : index
    %c1 = arith.constant 1 : index
    %c0_7 = arith.constant 0 : index
    %8 = vector.load %arg1[%c0_5, %c0_6, %c1, %c0_7] : memref<2x10x10x128xbf16, #tpu.memory_space<vmem>>, vector<2x8x8x128xbf16>
    %9 = arith.extf %8 : vector<2x8x8x128xbf16> to vector<2x8x8x128xf32>
    %10 = vector.extract_strided_slice %0 {offsets = [1, 0], sizes = [1, 128], strides = [1, 1]} : vector<9x128xf32> to vector<1x128xf32>
    %11 = vector.shape_cast %10 : vector<1x128xf32> to vector<128xf32>
    %12 = vector.shape_cast %11 : vector<128xf32> to vector<1x1x1x128xf32>
    %13 = vector.broadcast %12 : vector<1x1x1x128xf32> to vector<2x8x8x128xf32>
    %14 = arith.mulf %9, %13 : vector<2x8x8x128xf32>
    %c0_8 = arith.constant 0 : index
    %c0_9 = arith.constant 0 : index
    %c2 = arith.constant 2 : index
    %c0_10 = arith.constant 0 : index
    %15 = vector.load %arg1[%c0_8, %c0_9, %c2, %c0_10] : memref<2x10x10x128xbf16, #tpu.memory_space<vmem>>, vector<2x8x8x128xbf16>
    %16 = arith.extf %15 : vector<2x8x8x128xbf16> to vector<2x8x8x128xf32>
    %17 = vector.extract_strided_slice %0 {offsets = [2, 0], sizes = [1, 128], strides = [1, 1]} : vector<9x128xf32> to vector<1x128xf32>
    %18 = vector.shape_cast %17 : vector<1x128xf32> to vector<128xf32>
    %19 = vector.shape_cast %18 : vector<128xf32> to vector<1x1x1x128xf32>
    %20 = vector.broadcast %19 : vector<1x1x1x128xf32> to vector<2x8x8x128xf32>
    %21 = arith.mulf %16, %20 : vector<2x8x8x128xf32>
    %c0_11 = arith.constant 0 : index
    %c1_12 = arith.constant 1 : index
    %c0_13 = arith.constant 0 : index
    %c0_14 = arith.constant 0 : index
    %22 = vector.load %arg1[%c0_11, %c1_12, %c0_13, %c0_14] : memref<2x10x10x128xbf16, #tpu.memory_space<vmem>>, vector<2x8x8x128xbf16>
    %23 = arith.extf %22 : vector<2x8x8x128xbf16> to vector<2x8x8x128xf32>
    %24 = vector.extract_strided_slice %0 {offsets = [3, 0], sizes = [1, 128], strides = [1, 1]} : vector<9x128xf32> to vector<1x128xf32>
    %25 = vector.shape_cast %24 : vector<1x128xf32> to vector<128xf32>
    %26 = vector.shape_cast %25 : vector<128xf32> to vector<1x1x1x128xf32>
    %27 = vector.broadcast %26 : vector<1x1x1x128xf32> to vector<2x8x8x128xf32>
    %28 = arith.mulf %23, %27 : vector<2x8x8x128xf32>
    %c0_15 = arith.constant 0 : index
    %c1_16 = arith.constant 1 : index
    %c1_17 = arith.constant 1 : index
    %c0_18 = arith.constant 0 : index
    %29 = vector.load %arg1[%c0_15, %c1_16, %c1_17, %c0_18] : memref<2x10x10x128xbf16, #tpu.memory_space<vmem>>, vector<2x8x8x128xbf16>
    %30 = arith.extf %29 : vector<2x8x8x128xbf16> to vector<2x8x8x128xf32>
    %31 = vector.extract_strided_slice %0 {offsets = [4, 0], sizes = [1, 128], strides = [1, 1]} : vector<9x128xf32> to vector<1x128xf32>
    %32 = vector.shape_cast %31 : vector<1x128xf32> to vector<128xf32>
    %33 = vector.shape_cast %32 : vector<128xf32> to vector<1x1x1x128xf32>
    %34 = vector.broadcast %33 : vector<1x1x1x128xf32> to vector<2x8x8x128xf32>
    %35 = arith.mulf %30, %34 : vector<2x8x8x128xf32>
    %c0_19 = arith.constant 0 : index
    %c1_20 = arith.constant 1 : index
    %c2_21 = arith.constant 2 : index
    %c0_22 = arith.constant 0 : index
    %36 = vector.load %arg1[%c0_19, %c1_20, %c2_21, %c0_22] : memref<2x10x10x128xbf16, #tpu.memory_space<vmem>>, vector<2x8x8x128xbf16>
    %37 = arith.extf %36 : vector<2x8x8x128xbf16> to vector<2x8x8x128xf32>
    %38 = vector.extract_strided_slice %0 {offsets = [5, 0], sizes = [1, 128], strides = [1, 1]} : vector<9x128xf32> to vector<1x128xf32>
    %39 = vector.shape_cast %38 : vector<1x128xf32> to vector<128xf32>
    %40 = vector.shape_cast %39 : vector<128xf32> to vector<1x1x1x128xf32>
    %41 = vector.broadcast %40 : vector<1x1x1x128xf32> to vector<2x8x8x128xf32>
    %42 = arith.mulf %37, %41 : vector<2x8x8x128xf32>
    %c0_23 = arith.constant 0 : index
    %c2_24 = arith.constant 2 : index
    %c0_25 = arith.constant 0 : index
    %c0_26 = arith.constant 0 : index
    %43 = vector.load %arg1[%c0_23, %c2_24, %c0_25, %c0_26] : memref<2x10x10x128xbf16, #tpu.memory_space<vmem>>, vector<2x8x8x128xbf16>
    %44 = arith.extf %43 : vector<2x8x8x128xbf16> to vector<2x8x8x128xf32>
    %45 = vector.extract_strided_slice %0 {offsets = [6, 0], sizes = [1, 128], strides = [1, 1]} : vector<9x128xf32> to vector<1x128xf32>
    %46 = vector.shape_cast %45 : vector<1x128xf32> to vector<128xf32>
    %47 = vector.shape_cast %46 : vector<128xf32> to vector<1x1x1x128xf32>
    %48 = vector.broadcast %47 : vector<1x1x1x128xf32> to vector<2x8x8x128xf32>
    %49 = arith.mulf %44, %48 : vector<2x8x8x128xf32>
    %c0_27 = arith.constant 0 : index
    %c2_28 = arith.constant 2 : index
    %c1_29 = arith.constant 1 : index
    %c0_30 = arith.constant 0 : index
    %50 = vector.load %arg1[%c0_27, %c2_28, %c1_29, %c0_30] : memref<2x10x10x128xbf16, #tpu.memory_space<vmem>>, vector<2x8x8x128xbf16>
    %51 = arith.extf %50 : vector<2x8x8x128xbf16> to vector<2x8x8x128xf32>
    %52 = vector.extract_strided_slice %0 {offsets = [7, 0], sizes = [1, 128], strides = [1, 1]} : vector<9x128xf32> to vector<1x128xf32>
    %53 = vector.shape_cast %52 : vector<1x128xf32> to vector<128xf32>
    %54 = vector.shape_cast %53 : vector<128xf32> to vector<1x1x1x128xf32>
    %55 = vector.broadcast %54 : vector<1x1x1x128xf32> to vector<2x8x8x128xf32>
    %56 = arith.mulf %51, %55 : vector<2x8x8x128xf32>
    %c0_31 = arith.constant 0 : index
    %c2_32 = arith.constant 2 : index
    %c2_33 = arith.constant 2 : index
    %c0_34 = arith.constant 0 : index
    %57 = vector.load %arg1[%c0_31, %c2_32, %c2_33, %c0_34] : memref<2x10x10x128xbf16, #tpu.memory_space<vmem>>, vector<2x8x8x128xbf16>
    %58 = arith.extf %57 : vector<2x8x8x128xbf16> to vector<2x8x8x128xf32>
    %59 = vector.extract_strided_slice %0 {offsets = [8, 0], sizes = [1, 128], strides = [1, 1]} : vector<9x128xf32> to vector<1x128xf32>
    %60 = vector.shape_cast %59 : vector<1x128xf32> to vector<128xf32>
    %61 = vector.shape_cast %60 : vector<128xf32> to vector<1x1x1x128xf32>
    %62 = vector.broadcast %61 : vector<1x1x1x128xf32> to vector<2x8x8x128xf32>
    %63 = arith.mulf %58, %62 : vector<2x8x8x128xf32>
    %64 = arith.addf %7, %14 : vector<2x8x8x128xf32>
    %65 = arith.addf %21, %28 : vector<2x8x8x128xf32>
    %66 = arith.addf %35, %42 : vector<2x8x8x128xf32>
    %67 = arith.addf %49, %56 : vector<2x8x8x128xf32>
    %68 = arith.addf %64, %65 : vector<2x8x8x128xf32>
    %69 = arith.addf %66, %67 : vector<2x8x8x128xf32>
    %70 = arith.addf %68, %69 : vector<2x8x8x128xf32>
    %71 = arith.addf %70, %63 : vector<2x8x8x128xf32>
    %cst = arith.constant dense<0.000000e+00> : vector<8x8x128xf32>
    %72 = vector.multi_reduction <add>, %71, %cst [0] : vector<2x8x8x128xf32> to vector<8x8x128xf32>
    %73 = vector.shape_cast %72 : vector<8x8x128xf32> to vector<1x8x8x128xf32>
    %cst_35 = arith.constant dense<0.000000e+00> : vector<1x8x128xf32>
    %74 = vector.multi_reduction <add>, %73, %cst_35 [1] : vector<1x8x8x128xf32> to vector<1x8x128xf32>
    %75 = vector.shape_cast %74 : vector<1x8x128xf32> to vector<1x1x8x128xf32>
    %cst_36 = arith.constant dense<0.000000e+00> : vector<1x1x128xf32>
    %76 = vector.multi_reduction <add>, %75, %cst_36 [2] : vector<1x1x8x128xf32> to vector<1x1x128xf32>
    %77 = vector.shape_cast %76 : vector<1x1x128xf32> to vector<1x1x1x128xf32>
    %78 = arith.mulf %71, %71 : vector<2x8x8x128xf32>
    %cst_37 = arith.constant dense<0.000000e+00> : vector<8x8x128xf32>
    %79 = vector.multi_reduction <add>, %78, %cst_37 [0] : vector<2x8x8x128xf32> to vector<8x8x128xf32>
    %80 = vector.shape_cast %79 : vector<8x8x128xf32> to vector<1x8x8x128xf32>
    %cst_38 = arith.constant dense<0.000000e+00> : vector<1x8x128xf32>
    %81 = vector.multi_reduction <add>, %80, %cst_38 [1] : vector<1x8x8x128xf32> to vector<1x8x128xf32>
    %82 = vector.shape_cast %81 : vector<1x8x128xf32> to vector<1x1x8x128xf32>
    %cst_39 = arith.constant dense<0.000000e+00> : vector<1x1x128xf32>
    %83 = vector.multi_reduction <add>, %82, %cst_39 [2] : vector<1x1x8x128xf32> to vector<1x1x128xf32>
    %84 = vector.shape_cast %83 : vector<1x1x128xf32> to vector<1x1x1x128xf32>
    %cst_40 = arith.constant 7.812500e-03 : f32
    %85 = vector.broadcast %cst_40 : f32 to vector<1x1x1x128xf32>
    %86 = arith.mulf %77, %85 : vector<1x1x1x128xf32>
    %cst_41 = arith.constant 7.812500e-03 : f32
    %87 = vector.broadcast %cst_41 : f32 to vector<1x1x1x128xf32>
    %88 = arith.mulf %84, %87 : vector<1x1x1x128xf32>
    %89 = arith.mulf %86, %86 : vector<1x1x1x128xf32>
    %90 = arith.subf %88, %89 : vector<1x1x1x128xf32>
    %cst_42 = arith.constant 0.000000e+00 : f32
    %91 = vector.broadcast %cst_42 : f32 to vector<1x1x1x128xf32>
    %92 = arith.maximumf %90, %91 : vector<1x1x1x128xf32>
    %c0_43 = arith.constant 0 : index
    %c0_44 = arith.constant 0 : index
    %93 = vector.load %arg3[%c0_43, %c0_44] : memref<1x128xf32, #tpu.memory_space<vmem>>, vector<1x128xf32>
    %94 = vector.shape_cast %93 : vector<1x128xf32> to vector<1x1x1x128xf32>
    %cst_45 = arith.constant 9.99999974E-6 : f32
    %95 = vector.broadcast %cst_45 : f32 to vector<1x1x1x128xf32>
    %96 = arith.addf %92, %95 : vector<1x1x1x128xf32>
    %97 = math.rsqrt %96 : vector<1x1x1x128xf32>
    %98 = arith.mulf %94, %97 : vector<1x1x1x128xf32>
    %c0_46 = arith.constant 0 : index
    %c0_47 = arith.constant 0 : index
    %99 = vector.load %arg4[%c0_46, %c0_47] : memref<1x128xf32, #tpu.memory_space<vmem>>, vector<1x128xf32>
    %100 = vector.shape_cast %99 : vector<1x128xf32> to vector<1x1x1x128xf32>
    %101 = arith.mulf %86, %98 : vector<1x1x1x128xf32>
    %102 = arith.subf %100, %101 : vector<1x1x1x128xf32>
    %103 = vector.broadcast %98 : vector<1x1x1x128xf32> to vector<2x8x8x128xf32>
    %104 = arith.mulf %71, %103 : vector<2x8x8x128xf32>
    %105 = vector.broadcast %102 : vector<1x1x1x128xf32> to vector<2x8x8x128xf32>
    %106 = arith.addf %104, %105 : vector<2x8x8x128xf32>
    %107 = arith.truncf %106 : vector<2x8x8x128xf32> to vector<2x8x8x128xbf16>
    %c0_48 = arith.constant 0 : index
    %c0_49 = arith.constant 0 : index
    %c0_50 = arith.constant 0 : index
    %c0_51 = arith.constant 0 : index
    %108 = vector.load %arg5[%c0_48, %c0_49, %c0_50, %c0_51] : memref<2x8x8x128xbf16, #tpu.memory_space<vmem>>, vector<2x8x8x128xbf16>
    tpu.vector_store %arg5[%c0_48, %c0_49, %c0_50, %c0_51], %107 {strides = array<i32>} : memref<2x8x8x128xbf16, #tpu.memory_space<vmem>>, vector<2x8x8x128xbf16>,
    return
  }
  func.func @transform_0(%arg0: i32) -> (i32, i32, i32, i32) {
    %c0_i32 = arith.constant 0 : i32
    %c0_i32_0 = arith.constant 0 : i32
    %c0_i32_1 = arith.constant 0 : i32
    %c0_i32_2 = arith.constant 0 : i32
    %c0_i32_3 = arith.constant 0 : i32
    return %c0_i32, %c0_i32_0, %c0_i32_1, %c0_i32_2 : i32, i32, i32, i32
  }
  func.func @transform_1(%arg0: i32) -> (i32, i32) {
    %c0_i32 = arith.constant 0 : i32
    %c0_i32_0 = arith.constant 0 : i32
    %c0_i32_1 = arith.constant 0 : i32
    return %c0_i32, %c0_i32_0 : i32, i32
  }
  func.func @transform_2(%arg0: i32) -> (i32, i32) {
    %c0_i32 = arith.constant 0 : i32
    %c0_i32_0 = arith.constant 0 : i32
    %c0_i32_1 = arith.constant 0 : i32
    return %c0_i32, %c0_i32_0 : i32, i32
  }
  func.func @transform_3(%arg0: i32) -> (i32, i32) {
    %c0_i32 = arith.constant 0 : i32
    %c0_i32_0 = arith.constant 0 : i32
    %c0_i32_1 = arith.constant 0 : i32
    return %c0_i32, %c0_i32_0 : i32, i32
  }
  func.func @transform_4(%arg0: i32) -> (i32, i32, i32, i32) {
    %c0_i32 = arith.constant 0 : i32
    %c0_i32_0 = arith.constant 0 : i32
    %c0_i32_1 = arith.constant 0 : i32
    %c0_i32_2 = arith.constant 0 : i32
    %c0_i32_3 = arith.constant 0 : i32
    return %c0_i32, %c0_i32_0, %c0_i32_1, %c0_i32_2 : i32, i32, i32, i32
  }
}

module attributes {stable_mosaic.version = 11 : i64} {
  func.func @_matmul_fused_kernel(%arg0: i32, %arg1: memref<32x128xbf16, #tpu.memory_space<vmem>>, %arg2: memref<128x128xbf16, #tpu.memory_space<vmem>>, %arg3: memref<1x128xf32, #tpu.memory_space<vmem>>, %arg4: memref<1x128xf32, #tpu.memory_space<vmem>>, %arg5: memref<32x128xbf16, #tpu.memory_space<vmem>>) attributes {dimension_semantics = [#tpu.dimension_semantics<parallel>], iteration_bounds = array<i64: 1>, scalar_prefetch = 0 : i64, scratch_operands = 0 : i64, tpu.core_type = #tpu.core_type<tc>, window_params = [{pipeline_mode = #tpu.pipeline_mode<synchronous>, transform_indices = @transform_0, window_bounds = array<i64: 32, 128>}, {transform_indices = @transform_1, window_bounds = array<i64: 128, 128>}, {transform_indices = @transform_2, window_bounds = array<i64: 1, 128>}, {transform_indices = @transform_3, window_bounds = array<i64: 1, 128>}, {transform_indices = @transform_4, window_bounds = array<i64: 32, 128>}]} {
    %c0 = arith.constant 0 : index
    %c0_0 = arith.constant 0 : index
    %0 = vector.load %arg1[%c0, %c0_0] : memref<32x128xbf16, #tpu.memory_space<vmem>>, vector<32x128xbf16>
    %c0_1 = arith.constant 0 : index
    %c0_2 = arith.constant 0 : index
    %1 = vector.load %arg2[%c0_1, %c0_2] : memref<128x128xbf16, #tpu.memory_space<vmem>>, vector<128x128xbf16>
    %cst = arith.constant dense<0.000000e+00> : vector<32x128xf32>
    %2 = tpu.matmul %0, %1, %cst {dimension_numbers = #tpu.dot_dimension_numbers<[1], [0], [0], [1], [0, 0, 1, 1], [], []>} : vector<32x128xbf16>, vector<128x128xbf16>, vector<32x128xf32> -> vector<32x128xf32>
    %cst_3 = arith.constant dense<0.000000e+00> : vector<128xf32>
    %3 = vector.multi_reduction <add>, %2, %cst_3 [0] : vector<32x128xf32> to vector<128xf32>
    %4 = vector.shape_cast %3 : vector<128xf32> to vector<1x128xf32>
    %cst_4 = arith.constant 3.125000e-02 : f32
    %5 = vector.broadcast %cst_4 : f32 to vector<1x128xf32>
    %6 = arith.mulf %4, %5 : vector<1x128xf32>
    %7 = arith.mulf %2, %2 : vector<32x128xf32>
    %cst_5 = arith.constant dense<0.000000e+00> : vector<128xf32>
    %8 = vector.multi_reduction <add>, %7, %cst_5 [0] : vector<32x128xf32> to vector<128xf32>
    %9 = vector.shape_cast %8 : vector<128xf32> to vector<1x128xf32>
    %cst_6 = arith.constant 3.125000e-02 : f32
    %10 = vector.broadcast %cst_6 : f32 to vector<1x128xf32>
    %11 = arith.mulf %9, %10 : vector<1x128xf32>
    %12 = arith.mulf %6, %6 : vector<1x128xf32>
    %13 = arith.subf %11, %12 : vector<1x128xf32>
    %cst_7 = arith.constant 0.000000e+00 : f32
    %14 = vector.broadcast %cst_7 : f32 to vector<1x128xf32>
    %15 = arith.maximumf %13, %14 : vector<1x128xf32>
    %c0_8 = arith.constant 0 : index
    %c0_9 = arith.constant 0 : index
    %16 = vector.load %arg3[%c0_8, %c0_9] : memref<1x128xf32, #tpu.memory_space<vmem>>, vector<1x128xf32>
    %cst_10 = arith.constant 9.99999974E-6 : f32
    %17 = vector.broadcast %cst_10 : f32 to vector<1x128xf32>
    %18 = arith.addf %15, %17 : vector<1x128xf32>
    %19 = math.rsqrt %18 : vector<1x128xf32>
    %20 = arith.mulf %16, %19 : vector<1x128xf32>
    %c0_11 = arith.constant 0 : index
    %c0_12 = arith.constant 0 : index
    %21 = vector.load %arg4[%c0_11, %c0_12] : memref<1x128xf32, #tpu.memory_space<vmem>>, vector<1x128xf32>
    %22 = arith.mulf %6, %20 : vector<1x128xf32>
    %23 = arith.subf %21, %22 : vector<1x128xf32>
    %24 = vector.broadcast %20 : vector<1x128xf32> to vector<32x128xf32>
    %25 = arith.mulf %2, %24 : vector<32x128xf32>
    %26 = vector.broadcast %23 : vector<1x128xf32> to vector<32x128xf32>
    %27 = arith.addf %25, %26 : vector<32x128xf32>
    %cst_13 = arith.constant 0.000000e+00 : f32
    %28 = vector.broadcast %cst_13 : f32 to vector<32x128xf32>
    %29 = arith.maximumf %27, %28 : vector<32x128xf32>
    %30 = arith.truncf %29 : vector<32x128xf32> to vector<32x128xbf16>
    %c0_14 = arith.constant 0 : index
    %c0_15 = arith.constant 0 : index
    %31 = vector.load %arg5[%c0_14, %c0_15] : memref<32x128xbf16, #tpu.memory_space<vmem>>, vector<32x128xbf16>
    tpu.vector_store %arg5[%c0_14, %c0_15], %30 {strides = array<i32>} : memref<32x128xbf16, #tpu.memory_space<vmem>>, vector<32x128xbf16>,
    return
  }
  func.func @transform_0(%arg0: i32) -> (i32, i32) {
    %c0_i32 = arith.constant 0 : i32
    %c0_i32_0 = arith.constant 0 : i32
    %c0_i32_1 = arith.constant 0 : i32
    return %c0_i32, %c0_i32_0 : i32, i32
  }
  func.func @transform_1(%arg0: i32) -> (i32, i32) {
    %c0_i32 = arith.constant 0 : i32
    %c0_i32_0 = arith.constant 0 : i32
    return %c0_i32, %arg0 : i32, i32
  }
  func.func @transform_2(%arg0: i32) -> (i32, i32) {
    %c0_i32 = arith.constant 0 : i32
    %c0_i32_0 = arith.constant 0 : i32
    return %c0_i32, %arg0 : i32, i32
  }
  func.func @transform_3(%arg0: i32) -> (i32, i32) {
    %c0_i32 = arith.constant 0 : i32
    %c0_i32_0 = arith.constant 0 : i32
    return %c0_i32, %arg0 : i32, i32
  }
  func.func @transform_4(%arg0: i32) -> (i32, i32) {
    %c0_i32 = arith.constant 0 : i32
    %c0_i32_0 = arith.constant 0 : i32
    return %c0_i32, %arg0 : i32, i32
  }
}

module attributes {stable_mosaic.version = 11 : i64} {
  func.func @_dwconv_s2_kernel(%arg0: i32, %arg1: memref<2x5x5x128xbf16, #tpu.memory_space<vmem>>, %arg2: memref<2x5x5x128xbf16, #tpu.memory_space<vmem>>, %arg3: memref<2x5x5x128xbf16, #tpu.memory_space<vmem>>, %arg4: memref<2x5x5x128xbf16, #tpu.memory_space<vmem>>, %arg5: memref<9x128xf32, #tpu.memory_space<vmem>>, %arg6: memref<1x128xf32, #tpu.memory_space<vmem>>, %arg7: memref<1x128xf32, #tpu.memory_space<vmem>>, %arg8: memref<2x4x4x128xbf16, #tpu.memory_space<vmem>>) attributes {dimension_semantics = [#tpu.dimension_semantics<arbitrary>], iteration_bounds = array<i64: 1>, scalar_prefetch = 0 : i64, scratch_operands = 0 : i64, tpu.core_type = #tpu.core_type<tc>, window_params = [{pipeline_mode = #tpu.pipeline_mode<synchronous>, transform_indices = @transform_0, window_bounds = array<i64: 2, 5, 5, 128>}, {pipeline_mode = #tpu.pipeline_mode<synchronous>, transform_indices = @transform_1, window_bounds = array<i64: 2, 5, 5, 128>}, {pipeline_mode = #tpu.pipeline_mode<synchronous>, transform_indices = @transform_2, window_bounds = array<i64: 2, 5, 5, 128>}, {pipeline_mode = #tpu.pipeline_mode<synchronous>, transform_indices = @transform_3, window_bounds = array<i64: 2, 5, 5, 128>}, {pipeline_mode = #tpu.pipeline_mode<synchronous>, transform_indices = @transform_4, window_bounds = array<i64: 9, 128>}, {pipeline_mode = #tpu.pipeline_mode<synchronous>, transform_indices = @transform_5, window_bounds = array<i64: 1, 128>}, {pipeline_mode = #tpu.pipeline_mode<synchronous>, transform_indices = @transform_6, window_bounds = array<i64: 1, 128>}, {pipeline_mode = #tpu.pipeline_mode<synchronous>, transform_indices = @transform_7, window_bounds = array<i64: 2, 4, 4, 128>}]} {
    %c0 = arith.constant 0 : index
    %c0_0 = arith.constant 0 : index
    %0 = vector.load %arg5[%c0, %c0_0] : memref<9x128xf32, #tpu.memory_space<vmem>>, vector<9x128xf32>
    %c0_1 = arith.constant 0 : index
    %c0_2 = arith.constant 0 : index
    %c0_3 = arith.constant 0 : index
    %c0_4 = arith.constant 0 : index
    %1 = vector.load %arg1[%c0_1, %c0_2, %c0_3, %c0_4] : memref<2x5x5x128xbf16, #tpu.memory_space<vmem>>, vector<2x4x4x128xbf16>
    %2 = arith.extf %1 : vector<2x4x4x128xbf16> to vector<2x4x4x128xf32>
    %3 = vector.extract_strided_slice %0 {offsets = [0, 0], sizes = [1, 128], strides = [1, 1]} : vector<9x128xf32> to vector<1x128xf32>
    %4 = vector.shape_cast %3 : vector<1x128xf32> to vector<128xf32>
    %5 = vector.shape_cast %4 : vector<128xf32> to vector<1x1x1x128xf32>
    %6 = vector.broadcast %5 : vector<1x1x1x128xf32> to vector<2x4x4x128xf32>
    %7 = arith.mulf %2, %6 : vector<2x4x4x128xf32>
    %c0_5 = arith.constant 0 : index
    %c0_6 = arith.constant 0 : index
    %c0_7 = arith.constant 0 : index
    %c0_8 = arith.constant 0 : index
    %8 = vector.load %arg2[%c0_5, %c0_6, %c0_7, %c0_8] : memref<2x5x5x128xbf16, #tpu.memory_space<vmem>>, vector<2x4x4x128xbf16>
    %9 = arith.extf %8 : vector<2x4x4x128xbf16> to vector<2x4x4x128xf32>
    %10 = vector.extract_strided_slice %0 {offsets = [1, 0], sizes = [1, 128], strides = [1, 1]} : vector<9x128xf32> to vector<1x128xf32>
    %11 = vector.shape_cast %10 : vector<1x128xf32> to vector<128xf32>
    %12 = vector.shape_cast %11 : vector<128xf32> to vector<1x1x1x128xf32>
    %13 = vector.broadcast %12 : vector<1x1x1x128xf32> to vector<2x4x4x128xf32>
    %14 = arith.mulf %9, %13 : vector<2x4x4x128xf32>
    %c0_9 = arith.constant 0 : index
    %c0_10 = arith.constant 0 : index
    %c1 = arith.constant 1 : index
    %c0_11 = arith.constant 0 : index
    %15 = vector.load %arg1[%c0_9, %c0_10, %c1, %c0_11] : memref<2x5x5x128xbf16, #tpu.memory_space<vmem>>, vector<2x4x4x128xbf16>
    %16 = arith.extf %15 : vector<2x4x4x128xbf16> to vector<2x4x4x128xf32>
    %17 = vector.extract_strided_slice %0 {offsets = [2, 0], sizes = [1, 128], strides = [1, 1]} : vector<9x128xf32> to vector<1x128xf32>
    %18 = vector.shape_cast %17 : vector<1x128xf32> to vector<128xf32>
    %19 = vector.shape_cast %18 : vector<128xf32> to vector<1x1x1x128xf32>
    %20 = vector.broadcast %19 : vector<1x1x1x128xf32> to vector<2x4x4x128xf32>
    %21 = arith.mulf %16, %20 : vector<2x4x4x128xf32>
    %c0_12 = arith.constant 0 : index
    %c0_13 = arith.constant 0 : index
    %c0_14 = arith.constant 0 : index
    %c0_15 = arith.constant 0 : index
    %22 = vector.load %arg3[%c0_12, %c0_13, %c0_14, %c0_15] : memref<2x5x5x128xbf16, #tpu.memory_space<vmem>>, vector<2x4x4x128xbf16>
    %23 = arith.extf %22 : vector<2x4x4x128xbf16> to vector<2x4x4x128xf32>
    %24 = vector.extract_strided_slice %0 {offsets = [3, 0], sizes = [1, 128], strides = [1, 1]} : vector<9x128xf32> to vector<1x128xf32>
    %25 = vector.shape_cast %24 : vector<1x128xf32> to vector<128xf32>
    %26 = vector.shape_cast %25 : vector<128xf32> to vector<1x1x1x128xf32>
    %27 = vector.broadcast %26 : vector<1x1x1x128xf32> to vector<2x4x4x128xf32>
    %28 = arith.mulf %23, %27 : vector<2x4x4x128xf32>
    %c0_16 = arith.constant 0 : index
    %c0_17 = arith.constant 0 : index
    %c0_18 = arith.constant 0 : index
    %c0_19 = arith.constant 0 : index
    %29 = vector.load %arg4[%c0_16, %c0_17, %c0_18, %c0_19] : memref<2x5x5x128xbf16, #tpu.memory_space<vmem>>, vector<2x4x4x128xbf16>
    %30 = arith.extf %29 : vector<2x4x4x128xbf16> to vector<2x4x4x128xf32>
    %31 = vector.extract_strided_slice %0 {offsets = [4, 0], sizes = [1, 128], strides = [1, 1]} : vector<9x128xf32> to vector<1x128xf32>
    %32 = vector.shape_cast %31 : vector<1x128xf32> to vector<128xf32>
    %33 = vector.shape_cast %32 : vector<128xf32> to vector<1x1x1x128xf32>
    %34 = vector.broadcast %33 : vector<1x1x1x128xf32> to vector<2x4x4x128xf32>
    %35 = arith.mulf %30, %34 : vector<2x4x4x128xf32>
    %c0_20 = arith.constant 0 : index
    %c0_21 = arith.constant 0 : index
    %c1_22 = arith.constant 1 : index
    %c0_23 = arith.constant 0 : index
    %36 = vector.load %arg3[%c0_20, %c0_21, %c1_22, %c0_23] : memref<2x5x5x128xbf16, #tpu.memory_space<vmem>>, vector<2x4x4x128xbf16>
    %37 = arith.extf %36 : vector<2x4x4x128xbf16> to vector<2x4x4x128xf32>
    %38 = vector.extract_strided_slice %0 {offsets = [5, 0], sizes = [1, 128], strides = [1, 1]} : vector<9x128xf32> to vector<1x128xf32>
    %39 = vector.shape_cast %38 : vector<1x128xf32> to vector<128xf32>
    %40 = vector.shape_cast %39 : vector<128xf32> to vector<1x1x1x128xf32>
    %41 = vector.broadcast %40 : vector<1x1x1x128xf32> to vector<2x4x4x128xf32>
    %42 = arith.mulf %37, %41 : vector<2x4x4x128xf32>
    %c0_24 = arith.constant 0 : index
    %c1_25 = arith.constant 1 : index
    %c0_26 = arith.constant 0 : index
    %c0_27 = arith.constant 0 : index
    %43 = vector.load %arg1[%c0_24, %c1_25, %c0_26, %c0_27] : memref<2x5x5x128xbf16, #tpu.memory_space<vmem>>, vector<2x4x4x128xbf16>
    %44 = arith.extf %43 : vector<2x4x4x128xbf16> to vector<2x4x4x128xf32>
    %45 = vector.extract_strided_slice %0 {offsets = [6, 0], sizes = [1, 128], strides = [1, 1]} : vector<9x128xf32> to vector<1x128xf32>
    %46 = vector.shape_cast %45 : vector<1x128xf32> to vector<128xf32>
    %47 = vector.shape_cast %46 : vector<128xf32> to vector<1x1x1x128xf32>
    %48 = vector.broadcast %47 : vector<1x1x1x128xf32> to vector<2x4x4x128xf32>
    %49 = arith.mulf %44, %48 : vector<2x4x4x128xf32>
    %c0_28 = arith.constant 0 : index
    %c1_29 = arith.constant 1 : index
    %c0_30 = arith.constant 0 : index
    %c0_31 = arith.constant 0 : index
    %50 = vector.load %arg2[%c0_28, %c1_29, %c0_30, %c0_31] : memref<2x5x5x128xbf16, #tpu.memory_space<vmem>>, vector<2x4x4x128xbf16>
    %51 = arith.extf %50 : vector<2x4x4x128xbf16> to vector<2x4x4x128xf32>
    %52 = vector.extract_strided_slice %0 {offsets = [7, 0], sizes = [1, 128], strides = [1, 1]} : vector<9x128xf32> to vector<1x128xf32>
    %53 = vector.shape_cast %52 : vector<1x128xf32> to vector<128xf32>
    %54 = vector.shape_cast %53 : vector<128xf32> to vector<1x1x1x128xf32>
    %55 = vector.broadcast %54 : vector<1x1x1x128xf32> to vector<2x4x4x128xf32>
    %56 = arith.mulf %51, %55 : vector<2x4x4x128xf32>
    %c0_32 = arith.constant 0 : index
    %c1_33 = arith.constant 1 : index
    %c1_34 = arith.constant 1 : index
    %c0_35 = arith.constant 0 : index
    %57 = vector.load %arg1[%c0_32, %c1_33, %c1_34, %c0_35] : memref<2x5x5x128xbf16, #tpu.memory_space<vmem>>, vector<2x4x4x128xbf16>
    %58 = arith.extf %57 : vector<2x4x4x128xbf16> to vector<2x4x4x128xf32>
    %59 = vector.extract_strided_slice %0 {offsets = [8, 0], sizes = [1, 128], strides = [1, 1]} : vector<9x128xf32> to vector<1x128xf32>
    %60 = vector.shape_cast %59 : vector<1x128xf32> to vector<128xf32>
    %61 = vector.shape_cast %60 : vector<128xf32> to vector<1x1x1x128xf32>
    %62 = vector.broadcast %61 : vector<1x1x1x128xf32> to vector<2x4x4x128xf32>
    %63 = arith.mulf %58, %62 : vector<2x4x4x128xf32>
    %64 = arith.addf %7, %14 : vector<2x4x4x128xf32>
    %65 = arith.addf %21, %28 : vector<2x4x4x128xf32>
    %66 = arith.addf %35, %42 : vector<2x4x4x128xf32>
    %67 = arith.addf %49, %56 : vector<2x4x4x128xf32>
    %68 = arith.addf %64, %65 : vector<2x4x4x128xf32>
    %69 = arith.addf %66, %67 : vector<2x4x4x128xf32>
    %70 = arith.addf %68, %69 : vector<2x4x4x128xf32>
    %71 = arith.addf %70, %63 : vector<2x4x4x128xf32>
    %cst = arith.constant dense<0.000000e+00> : vector<4x4x128xf32>
    %72 = vector.multi_reduction <add>, %71, %cst [0] : vector<2x4x4x128xf32> to vector<4x4x128xf32>
    %73 = vector.shape_cast %72 : vector<4x4x128xf32> to vector<1x4x4x128xf32>
    %cst_36 = arith.constant dense<0.000000e+00> : vector<1x4x128xf32>
    %74 = vector.multi_reduction <add>, %73, %cst_36 [1] : vector<1x4x4x128xf32> to vector<1x4x128xf32>
    %75 = vector.shape_cast %74 : vector<1x4x128xf32> to vector<1x1x4x128xf32>
    %cst_37 = arith.constant dense<0.000000e+00> : vector<1x1x128xf32>
    %76 = vector.multi_reduction <add>, %75, %cst_37 [2] : vector<1x1x4x128xf32> to vector<1x1x128xf32>
    %77 = vector.shape_cast %76 : vector<1x1x128xf32> to vector<1x1x1x128xf32>
    %78 = arith.mulf %71, %71 : vector<2x4x4x128xf32>
    %cst_38 = arith.constant dense<0.000000e+00> : vector<4x4x128xf32>
    %79 = vector.multi_reduction <add>, %78, %cst_38 [0] : vector<2x4x4x128xf32> to vector<4x4x128xf32>
    %80 = vector.shape_cast %79 : vector<4x4x128xf32> to vector<1x4x4x128xf32>
    %cst_39 = arith.constant dense<0.000000e+00> : vector<1x4x128xf32>
    %81 = vector.multi_reduction <add>, %80, %cst_39 [1] : vector<1x4x4x128xf32> to vector<1x4x128xf32>
    %82 = vector.shape_cast %81 : vector<1x4x128xf32> to vector<1x1x4x128xf32>
    %cst_40 = arith.constant dense<0.000000e+00> : vector<1x1x128xf32>
    %83 = vector.multi_reduction <add>, %82, %cst_40 [2] : vector<1x1x4x128xf32> to vector<1x1x128xf32>
    %84 = vector.shape_cast %83 : vector<1x1x128xf32> to vector<1x1x1x128xf32>
    %cst_41 = arith.constant 3.125000e-02 : f32
    %85 = vector.broadcast %cst_41 : f32 to vector<1x1x1x128xf32>
    %86 = arith.mulf %77, %85 : vector<1x1x1x128xf32>
    %cst_42 = arith.constant 3.125000e-02 : f32
    %87 = vector.broadcast %cst_42 : f32 to vector<1x1x1x128xf32>
    %88 = arith.mulf %84, %87 : vector<1x1x1x128xf32>
    %89 = arith.mulf %86, %86 : vector<1x1x1x128xf32>
    %90 = arith.subf %88, %89 : vector<1x1x1x128xf32>
    %cst_43 = arith.constant 0.000000e+00 : f32
    %91 = vector.broadcast %cst_43 : f32 to vector<1x1x1x128xf32>
    %92 = arith.maximumf %90, %91 : vector<1x1x1x128xf32>
    %c0_44 = arith.constant 0 : index
    %c0_45 = arith.constant 0 : index
    %93 = vector.load %arg6[%c0_44, %c0_45] : memref<1x128xf32, #tpu.memory_space<vmem>>, vector<1x128xf32>
    %94 = vector.shape_cast %93 : vector<1x128xf32> to vector<1x1x1x128xf32>
    %cst_46 = arith.constant 9.99999974E-6 : f32
    %95 = vector.broadcast %cst_46 : f32 to vector<1x1x1x128xf32>
    %96 = arith.addf %92, %95 : vector<1x1x1x128xf32>
    %97 = math.rsqrt %96 : vector<1x1x1x128xf32>
    %98 = arith.mulf %94, %97 : vector<1x1x1x128xf32>
    %c0_47 = arith.constant 0 : index
    %c0_48 = arith.constant 0 : index
    %99 = vector.load %arg7[%c0_47, %c0_48] : memref<1x128xf32, #tpu.memory_space<vmem>>, vector<1x128xf32>
    %100 = vector.shape_cast %99 : vector<1x128xf32> to vector<1x1x1x128xf32>
    %101 = arith.mulf %86, %98 : vector<1x1x1x128xf32>
    %102 = arith.subf %100, %101 : vector<1x1x1x128xf32>
    %103 = vector.broadcast %98 : vector<1x1x1x128xf32> to vector<2x4x4x128xf32>
    %104 = arith.mulf %71, %103 : vector<2x4x4x128xf32>
    %105 = vector.broadcast %102 : vector<1x1x1x128xf32> to vector<2x4x4x128xf32>
    %106 = arith.addf %104, %105 : vector<2x4x4x128xf32>
    %cst_49 = arith.constant 0.000000e+00 : f32
    %107 = vector.broadcast %cst_49 : f32 to vector<2x4x4x128xf32>
    %108 = arith.maximumf %106, %107 : vector<2x4x4x128xf32>
    %109 = arith.truncf %108 : vector<2x4x4x128xf32> to vector<2x4x4x128xbf16>
    %c0_50 = arith.constant 0 : index
    %c0_51 = arith.constant 0 : index
    %c0_52 = arith.constant 0 : index
    %c0_53 = arith.constant 0 : index
    %110 = vector.load %arg8[%c0_50, %c0_51, %c0_52, %c0_53] : memref<2x4x4x128xbf16, #tpu.memory_space<vmem>>, vector<2x4x4x128xbf16>
    tpu.vector_store %arg8[%c0_50, %c0_51, %c0_52, %c0_53], %109 {strides = array<i32>} : memref<2x4x4x128xbf16, #tpu.memory_space<vmem>>, vector<2x4x4x128xbf16>,
    return
  }
  func.func @transform_0(%arg0: i32) -> (i32, i32, i32, i32) {
    %c0_i32 = arith.constant 0 : i32
    %c0_i32_0 = arith.constant 0 : i32
    %c0_i32_1 = arith.constant 0 : i32
    %c0_i32_2 = arith.constant 0 : i32
    %c0_i32_3 = arith.constant 0 : i32
    return %c0_i32, %c0_i32_0, %c0_i32_1, %c0_i32_2 : i32, i32, i32, i32
  }
  func.func @transform_1(%arg0: i32) -> (i32, i32, i32, i32) {
    %c0_i32 = arith.constant 0 : i32
    %c0_i32_0 = arith.constant 0 : i32
    %c0_i32_1 = arith.constant 0 : i32
    %c0_i32_2 = arith.constant 0 : i32
    %c0_i32_3 = arith.constant 0 : i32
    return %c0_i32, %c0_i32_0, %c0_i32_1, %c0_i32_2 : i32, i32, i32, i32
  }
  func.func @transform_2(%arg0: i32) -> (i32, i32, i32, i32) {
    %c0_i32 = arith.constant 0 : i32
    %c0_i32_0 = arith.constant 0 : i32
    %c0_i32_1 = arith.constant 0 : i32
    %c0_i32_2 = arith.constant 0 : i32
    %c0_i32_3 = arith.constant 0 : i32
    return %c0_i32, %c0_i32_0, %c0_i32_1, %c0_i32_2 : i32, i32, i32, i32
  }
  func.func @transform_3(%arg0: i32) -> (i32, i32, i32, i32) {
    %c0_i32 = arith.constant 0 : i32
    %c0_i32_0 = arith.constant 0 : i32
    %c0_i32_1 = arith.constant 0 : i32
    %c0_i32_2 = arith.constant 0 : i32
    %c0_i32_3 = arith.constant 0 : i32
    return %c0_i32, %c0_i32_0, %c0_i32_1, %c0_i32_2 : i32, i32, i32, i32
  }
  func.func @transform_4(%arg0: i32) -> (i32, i32) {
    %c0_i32 = arith.constant 0 : i32
    %c0_i32_0 = arith.constant 0 : i32
    %c0_i32_1 = arith.constant 0 : i32
    return %c0_i32, %c0_i32_0 : i32, i32
  }
  func.func @transform_5(%arg0: i32) -> (i32, i32) {
    %c0_i32 = arith.constant 0 : i32
    %c0_i32_0 = arith.constant 0 : i32
    %c0_i32_1 = arith.constant 0 : i32
    return %c0_i32, %c0_i32_0 : i32, i32
  }
  func.func @transform_6(%arg0: i32) -> (i32, i32) {
    %c0_i32 = arith.constant 0 : i32
    %c0_i32_0 = arith.constant 0 : i32
    %c0_i32_1 = arith.constant 0 : i32
    return %c0_i32, %c0_i32_0 : i32, i32
  }
  func.func @transform_7(%arg0: i32) -> (i32, i32, i32, i32) {
    %c0_i32 = arith.constant 0 : i32
    %c0_i32_0 = arith.constant 0 : i32
    %c0_i32_1 = arith.constant 0 : i32
    %c0_i32_2 = arith.constant 0 : i32
    %c0_i32_3 = arith.constant 0 : i32
    return %c0_i32, %c0_i32_0, %c0_i32_1, %c0_i32_2 : i32, i32, i32, i32
  }
}

module attributes {stable_mosaic.version = 11 : i64} {
  func.func @_matmul_fused_kernel(%arg0: i32, %arg1: memref<32x128xbf16, #tpu.memory_space<vmem>>, %arg2: memref<128x128xbf16, #tpu.memory_space<vmem>>, %arg3: memref<1x128xf32, #tpu.memory_space<vmem>>, %arg4: memref<1x128xf32, #tpu.memory_space<vmem>>, %arg5: memref<32x128xbf16, #tpu.memory_space<vmem>>) attributes {dimension_semantics = [#tpu.dimension_semantics<parallel>], iteration_bounds = array<i64: 1>, scalar_prefetch = 0 : i64, scratch_operands = 0 : i64, tpu.core_type = #tpu.core_type<tc>, window_params = [{pipeline_mode = #tpu.pipeline_mode<synchronous>, transform_indices = @transform_0, window_bounds = array<i64: 32, 128>}, {transform_indices = @transform_1, window_bounds = array<i64: 128, 128>}, {transform_indices = @transform_2, window_bounds = array<i64: 1, 128>}, {transform_indices = @transform_3, window_bounds = array<i64: 1, 128>}, {transform_indices = @transform_4, window_bounds = array<i64: 32, 128>}]} {
    %c0 = arith.constant 0 : index
    %c0_0 = arith.constant 0 : index
    %0 = vector.load %arg1[%c0, %c0_0] : memref<32x128xbf16, #tpu.memory_space<vmem>>, vector<32x128xbf16>
    %c0_1 = arith.constant 0 : index
    %c0_2 = arith.constant 0 : index
    %1 = vector.load %arg2[%c0_1, %c0_2] : memref<128x128xbf16, #tpu.memory_space<vmem>>, vector<128x128xbf16>
    %cst = arith.constant dense<0.000000e+00> : vector<32x128xf32>
    %2 = tpu.matmul %0, %1, %cst {dimension_numbers = #tpu.dot_dimension_numbers<[1], [0], [0], [1], [0, 0, 1, 1], [], []>} : vector<32x128xbf16>, vector<128x128xbf16>, vector<32x128xf32> -> vector<32x128xf32>
    %cst_3 = arith.constant dense<0.000000e+00> : vector<128xf32>
    %3 = vector.multi_reduction <add>, %2, %cst_3 [0] : vector<32x128xf32> to vector<128xf32>
    %4 = vector.shape_cast %3 : vector<128xf32> to vector<1x128xf32>
    %cst_4 = arith.constant 3.125000e-02 : f32
    %5 = vector.broadcast %cst_4 : f32 to vector<1x128xf32>
    %6 = arith.mulf %4, %5 : vector<1x128xf32>
    %7 = arith.mulf %2, %2 : vector<32x128xf32>
    %cst_5 = arith.constant dense<0.000000e+00> : vector<128xf32>
    %8 = vector.multi_reduction <add>, %7, %cst_5 [0] : vector<32x128xf32> to vector<128xf32>
    %9 = vector.shape_cast %8 : vector<128xf32> to vector<1x128xf32>
    %cst_6 = arith.constant 3.125000e-02 : f32
    %10 = vector.broadcast %cst_6 : f32 to vector<1x128xf32>
    %11 = arith.mulf %9, %10 : vector<1x128xf32>
    %12 = arith.mulf %6, %6 : vector<1x128xf32>
    %13 = arith.subf %11, %12 : vector<1x128xf32>
    %cst_7 = arith.constant 0.000000e+00 : f32
    %14 = vector.broadcast %cst_7 : f32 to vector<1x128xf32>
    %15 = arith.maximumf %13, %14 : vector<1x128xf32>
    %c0_8 = arith.constant 0 : index
    %c0_9 = arith.constant 0 : index
    %16 = vector.load %arg3[%c0_8, %c0_9] : memref<1x128xf32, #tpu.memory_space<vmem>>, vector<1x128xf32>
    %cst_10 = arith.constant 9.99999974E-6 : f32
    %17 = vector.broadcast %cst_10 : f32 to vector<1x128xf32>
    %18 = arith.addf %15, %17 : vector<1x128xf32>
    %19 = math.rsqrt %18 : vector<1x128xf32>
    %20 = arith.mulf %16, %19 : vector<1x128xf32>
    %c0_11 = arith.constant 0 : index
    %c0_12 = arith.constant 0 : index
    %21 = vector.load %arg4[%c0_11, %c0_12] : memref<1x128xf32, #tpu.memory_space<vmem>>, vector<1x128xf32>
    %22 = arith.mulf %6, %20 : vector<1x128xf32>
    %23 = arith.subf %21, %22 : vector<1x128xf32>
    %24 = vector.broadcast %20 : vector<1x128xf32> to vector<32x128xf32>
    %25 = arith.mulf %2, %24 : vector<32x128xf32>
    %26 = vector.broadcast %23 : vector<1x128xf32> to vector<32x128xf32>
    %27 = arith.addf %25, %26 : vector<32x128xf32>
    %28 = arith.truncf %27 : vector<32x128xf32> to vector<32x128xbf16>
    %c0_13 = arith.constant 0 : index
    %c0_14 = arith.constant 0 : index
    %29 = vector.load %arg5[%c0_13, %c0_14] : memref<32x128xbf16, #tpu.memory_space<vmem>>, vector<32x128xbf16>
    tpu.vector_store %arg5[%c0_13, %c0_14], %28 {strides = array<i32>} : memref<32x128xbf16, #tpu.memory_space<vmem>>, vector<32x128xbf16>,
    return
  }
  func.func @transform_0(%arg0: i32) -> (i32, i32) {
    %c0_i32 = arith.constant 0 : i32
    %c0_i32_0 = arith.constant 0 : i32
    %c0_i32_1 = arith.constant 0 : i32
    return %c0_i32, %c0_i32_0 : i32, i32
  }
  func.func @transform_1(%arg0: i32) -> (i32, i32) {
    %c0_i32 = arith.constant 0 : i32
    %c0_i32_0 = arith.constant 0 : i32
    return %c0_i32, %arg0 : i32, i32
  }
  func.func @transform_2(%arg0: i32) -> (i32, i32) {
    %c0_i32 = arith.constant 0 : i32
    %c0_i32_0 = arith.constant 0 : i32
    return %c0_i32, %arg0 : i32, i32
  }
  func.func @transform_3(%arg0: i32) -> (i32, i32) {
    %c0_i32 = arith.constant 0 : i32
    %c0_i32_0 = arith.constant 0 : i32
    return %c0_i32, %arg0 : i32, i32
  }
  func.func @transform_4(%arg0: i32) -> (i32, i32) {
    %c0_i32 = arith.constant 0 : i32
    %c0_i32_0 = arith.constant 0 : i32
    return %c0_i32, %arg0 : i32, i32
  }
}

module attributes {stable_mosaic.version = 11 : i64} {
  func.func @_dwconv_s1_kernel(%arg0: i32, %arg1: memref<2x6x6x128xbf16, #tpu.memory_space<vmem>>, %arg2: memref<9x128xf32, #tpu.memory_space<vmem>>, %arg3: memref<1x128xf32, #tpu.memory_space<vmem>>, %arg4: memref<1x128xf32, #tpu.memory_space<vmem>>, %arg5: memref<2x4x4x128xbf16, #tpu.memory_space<vmem>>) attributes {dimension_semantics = [#tpu.dimension_semantics<arbitrary>], iteration_bounds = array<i64: 1>, scalar_prefetch = 0 : i64, scratch_operands = 0 : i64, tpu.core_type = #tpu.core_type<tc>, window_params = [{pipeline_mode = #tpu.pipeline_mode<synchronous>, transform_indices = @transform_0, window_bounds = array<i64: 2, 6, 6, 128>}, {pipeline_mode = #tpu.pipeline_mode<synchronous>, transform_indices = @transform_1, window_bounds = array<i64: 9, 128>}, {pipeline_mode = #tpu.pipeline_mode<synchronous>, transform_indices = @transform_2, window_bounds = array<i64: 1, 128>}, {pipeline_mode = #tpu.pipeline_mode<synchronous>, transform_indices = @transform_3, window_bounds = array<i64: 1, 128>}, {pipeline_mode = #tpu.pipeline_mode<synchronous>, transform_indices = @transform_4, window_bounds = array<i64: 2, 4, 4, 128>}]} {
    %c0 = arith.constant 0 : index
    %c0_0 = arith.constant 0 : index
    %0 = vector.load %arg2[%c0, %c0_0] : memref<9x128xf32, #tpu.memory_space<vmem>>, vector<9x128xf32>
    %c0_1 = arith.constant 0 : index
    %c0_2 = arith.constant 0 : index
    %c0_3 = arith.constant 0 : index
    %c0_4 = arith.constant 0 : index
    %1 = vector.load %arg1[%c0_1, %c0_2, %c0_3, %c0_4] : memref<2x6x6x128xbf16, #tpu.memory_space<vmem>>, vector<2x4x4x128xbf16>
    %2 = arith.extf %1 : vector<2x4x4x128xbf16> to vector<2x4x4x128xf32>
    %3 = vector.extract_strided_slice %0 {offsets = [0, 0], sizes = [1, 128], strides = [1, 1]} : vector<9x128xf32> to vector<1x128xf32>
    %4 = vector.shape_cast %3 : vector<1x128xf32> to vector<128xf32>
    %5 = vector.shape_cast %4 : vector<128xf32> to vector<1x1x1x128xf32>
    %6 = vector.broadcast %5 : vector<1x1x1x128xf32> to vector<2x4x4x128xf32>
    %7 = arith.mulf %2, %6 : vector<2x4x4x128xf32>
    %c0_5 = arith.constant 0 : index
    %c0_6 = arith.constant 0 : index
    %c1 = arith.constant 1 : index
    %c0_7 = arith.constant 0 : index
    %8 = vector.load %arg1[%c0_5, %c0_6, %c1, %c0_7] : memref<2x6x6x128xbf16, #tpu.memory_space<vmem>>, vector<2x4x4x128xbf16>
    %9 = arith.extf %8 : vector<2x4x4x128xbf16> to vector<2x4x4x128xf32>
    %10 = vector.extract_strided_slice %0 {offsets = [1, 0], sizes = [1, 128], strides = [1, 1]} : vector<9x128xf32> to vector<1x128xf32>
    %11 = vector.shape_cast %10 : vector<1x128xf32> to vector<128xf32>
    %12 = vector.shape_cast %11 : vector<128xf32> to vector<1x1x1x128xf32>
    %13 = vector.broadcast %12 : vector<1x1x1x128xf32> to vector<2x4x4x128xf32>
    %14 = arith.mulf %9, %13 : vector<2x4x4x128xf32>
    %c0_8 = arith.constant 0 : index
    %c0_9 = arith.constant 0 : index
    %c2 = arith.constant 2 : index
    %c0_10 = arith.constant 0 : index
    %15 = vector.load %arg1[%c0_8, %c0_9, %c2, %c0_10] : memref<2x6x6x128xbf16, #tpu.memory_space<vmem>>, vector<2x4x4x128xbf16>
    %16 = arith.extf %15 : vector<2x4x4x128xbf16> to vector<2x4x4x128xf32>
    %17 = vector.extract_strided_slice %0 {offsets = [2, 0], sizes = [1, 128], strides = [1, 1]} : vector<9x128xf32> to vector<1x128xf32>
    %18 = vector.shape_cast %17 : vector<1x128xf32> to vector<128xf32>
    %19 = vector.shape_cast %18 : vector<128xf32> to vector<1x1x1x128xf32>
    %20 = vector.broadcast %19 : vector<1x1x1x128xf32> to vector<2x4x4x128xf32>
    %21 = arith.mulf %16, %20 : vector<2x4x4x128xf32>
    %c0_11 = arith.constant 0 : index
    %c1_12 = arith.constant 1 : index
    %c0_13 = arith.constant 0 : index
    %c0_14 = arith.constant 0 : index
    %22 = vector.load %arg1[%c0_11, %c1_12, %c0_13, %c0_14] : memref<2x6x6x128xbf16, #tpu.memory_space<vmem>>, vector<2x4x4x128xbf16>
    %23 = arith.extf %22 : vector<2x4x4x128xbf16> to vector<2x4x4x128xf32>
    %24 = vector.extract_strided_slice %0 {offsets = [3, 0], sizes = [1, 128], strides = [1, 1]} : vector<9x128xf32> to vector<1x128xf32>
    %25 = vector.shape_cast %24 : vector<1x128xf32> to vector<128xf32>
    %26 = vector.shape_cast %25 : vector<128xf32> to vector<1x1x1x128xf32>
    %27 = vector.broadcast %26 : vector<1x1x1x128xf32> to vector<2x4x4x128xf32>
    %28 = arith.mulf %23, %27 : vector<2x4x4x128xf32>
    %c0_15 = arith.constant 0 : index
    %c1_16 = arith.constant 1 : index
    %c1_17 = arith.constant 1 : index
    %c0_18 = arith.constant 0 : index
    %29 = vector.load %arg1[%c0_15, %c1_16, %c1_17, %c0_18] : memref<2x6x6x128xbf16, #tpu.memory_space<vmem>>, vector<2x4x4x128xbf16>
    %30 = arith.extf %29 : vector<2x4x4x128xbf16> to vector<2x4x4x128xf32>
    %31 = vector.extract_strided_slice %0 {offsets = [4, 0], sizes = [1, 128], strides = [1, 1]} : vector<9x128xf32> to vector<1x128xf32>
    %32 = vector.shape_cast %31 : vector<1x128xf32> to vector<128xf32>
    %33 = vector.shape_cast %32 : vector<128xf32> to vector<1x1x1x128xf32>
    %34 = vector.broadcast %33 : vector<1x1x1x128xf32> to vector<2x4x4x128xf32>
    %35 = arith.mulf %30, %34 : vector<2x4x4x128xf32>
    %c0_19 = arith.constant 0 : index
    %c1_20 = arith.constant 1 : index
    %c2_21 = arith.constant 2 : index
    %c0_22 = arith.constant 0 : index
    %36 = vector.load %arg1[%c0_19, %c1_20, %c2_21, %c0_22] : memref<2x6x6x128xbf16, #tpu.memory_space<vmem>>, vector<2x4x4x128xbf16>
    %37 = arith.extf %36 : vector<2x4x4x128xbf16> to vector<2x4x4x128xf32>
    %38 = vector.extract_strided_slice %0 {offsets = [5, 0], sizes = [1, 128], strides = [1, 1]} : vector<9x128xf32> to vector<1x128xf32>
    %39 = vector.shape_cast %38 : vector<1x128xf32> to vector<128xf32>
    %40 = vector.shape_cast %39 : vector<128xf32> to vector<1x1x1x128xf32>
    %41 = vector.broadcast %40 : vector<1x1x1x128xf32> to vector<2x4x4x128xf32>
    %42 = arith.mulf %37, %41 : vector<2x4x4x128xf32>
    %c0_23 = arith.constant 0 : index
    %c2_24 = arith.constant 2 : index
    %c0_25 = arith.constant 0 : index
    %c0_26 = arith.constant 0 : index
    %43 = vector.load %arg1[%c0_23, %c2_24, %c0_25, %c0_26] : memref<2x6x6x128xbf16, #tpu.memory_space<vmem>>, vector<2x4x4x128xbf16>
    %44 = arith.extf %43 : vector<2x4x4x128xbf16> to vector<2x4x4x128xf32>
    %45 = vector.extract_strided_slice %0 {offsets = [6, 0], sizes = [1, 128], strides = [1, 1]} : vector<9x128xf32> to vector<1x128xf32>
    %46 = vector.shape_cast %45 : vector<1x128xf32> to vector<128xf32>
    %47 = vector.shape_cast %46 : vector<128xf32> to vector<1x1x1x128xf32>
    %48 = vector.broadcast %47 : vector<1x1x1x128xf32> to vector<2x4x4x128xf32>
    %49 = arith.mulf %44, %48 : vector<2x4x4x128xf32>
    %c0_27 = arith.constant 0 : index
    %c2_28 = arith.constant 2 : index
    %c1_29 = arith.constant 1 : index
    %c0_30 = arith.constant 0 : index
    %50 = vector.load %arg1[%c0_27, %c2_28, %c1_29, %c0_30] : memref<2x6x6x128xbf16, #tpu.memory_space<vmem>>, vector<2x4x4x128xbf16>
    %51 = arith.extf %50 : vector<2x4x4x128xbf16> to vector<2x4x4x128xf32>
    %52 = vector.extract_strided_slice %0 {offsets = [7, 0], sizes = [1, 128], strides = [1, 1]} : vector<9x128xf32> to vector<1x128xf32>
    %53 = vector.shape_cast %52 : vector<1x128xf32> to vector<128xf32>
    %54 = vector.shape_cast %53 : vector<128xf32> to vector<1x1x1x128xf32>
    %55 = vector.broadcast %54 : vector<1x1x1x128xf32> to vector<2x4x4x128xf32>
    %56 = arith.mulf %51, %55 : vector<2x4x4x128xf32>
    %c0_31 = arith.constant 0 : index
    %c2_32 = arith.constant 2 : index
    %c2_33 = arith.constant 2 : index
    %c0_34 = arith.constant 0 : index
    %57 = vector.load %arg1[%c0_31, %c2_32, %c2_33, %c0_34] : memref<2x6x6x128xbf16, #tpu.memory_space<vmem>>, vector<2x4x4x128xbf16>
    %58 = arith.extf %57 : vector<2x4x4x128xbf16> to vector<2x4x4x128xf32>
    %59 = vector.extract_strided_slice %0 {offsets = [8, 0], sizes = [1, 128], strides = [1, 1]} : vector<9x128xf32> to vector<1x128xf32>
    %60 = vector.shape_cast %59 : vector<1x128xf32> to vector<128xf32>
    %61 = vector.shape_cast %60 : vector<128xf32> to vector<1x1x1x128xf32>
    %62 = vector.broadcast %61 : vector<1x1x1x128xf32> to vector<2x4x4x128xf32>
    %63 = arith.mulf %58, %62 : vector<2x4x4x128xf32>
    %64 = arith.addf %7, %14 : vector<2x4x4x128xf32>
    %65 = arith.addf %21, %28 : vector<2x4x4x128xf32>
    %66 = arith.addf %35, %42 : vector<2x4x4x128xf32>
    %67 = arith.addf %49, %56 : vector<2x4x4x128xf32>
    %68 = arith.addf %64, %65 : vector<2x4x4x128xf32>
    %69 = arith.addf %66, %67 : vector<2x4x4x128xf32>
    %70 = arith.addf %68, %69 : vector<2x4x4x128xf32>
    %71 = arith.addf %70, %63 : vector<2x4x4x128xf32>
    %cst = arith.constant dense<0.000000e+00> : vector<4x4x128xf32>
    %72 = vector.multi_reduction <add>, %71, %cst [0] : vector<2x4x4x128xf32> to vector<4x4x128xf32>
    %73 = vector.shape_cast %72 : vector<4x4x128xf32> to vector<1x4x4x128xf32>
    %cst_35 = arith.constant dense<0.000000e+00> : vector<1x4x128xf32>
    %74 = vector.multi_reduction <add>, %73, %cst_35 [1] : vector<1x4x4x128xf32> to vector<1x4x128xf32>
    %75 = vector.shape_cast %74 : vector<1x4x128xf32> to vector<1x1x4x128xf32>
    %cst_36 = arith.constant dense<0.000000e+00> : vector<1x1x128xf32>
    %76 = vector.multi_reduction <add>, %75, %cst_36 [2] : vector<1x1x4x128xf32> to vector<1x1x128xf32>
    %77 = vector.shape_cast %76 : vector<1x1x128xf32> to vector<1x1x1x128xf32>
    %78 = arith.mulf %71, %71 : vector<2x4x4x128xf32>
    %cst_37 = arith.constant dense<0.000000e+00> : vector<4x4x128xf32>
    %79 = vector.multi_reduction <add>, %78, %cst_37 [0] : vector<2x4x4x128xf32> to vector<4x4x128xf32>
    %80 = vector.shape_cast %79 : vector<4x4x128xf32> to vector<1x4x4x128xf32>
    %cst_38 = arith.constant dense<0.000000e+00> : vector<1x4x128xf32>
    %81 = vector.multi_reduction <add>, %80, %cst_38 [1] : vector<1x4x4x128xf32> to vector<1x4x128xf32>
    %82 = vector.shape_cast %81 : vector<1x4x128xf32> to vector<1x1x4x128xf32>
    %cst_39 = arith.constant dense<0.000000e+00> : vector<1x1x128xf32>
    %83 = vector.multi_reduction <add>, %82, %cst_39 [2] : vector<1x1x4x128xf32> to vector<1x1x128xf32>
    %84 = vector.shape_cast %83 : vector<1x1x128xf32> to vector<1x1x1x128xf32>
    %cst_40 = arith.constant 3.125000e-02 : f32
    %85 = vector.broadcast %cst_40 : f32 to vector<1x1x1x128xf32>
    %86 = arith.mulf %77, %85 : vector<1x1x1x128xf32>
    %cst_41 = arith.constant 3.125000e-02 : f32
    %87 = vector.broadcast %cst_41 : f32 to vector<1x1x1x128xf32>
    %88 = arith.mulf %84, %87 : vector<1x1x1x128xf32>
    %89 = arith.mulf %86, %86 : vector<1x1x1x128xf32>
    %90 = arith.subf %88, %89 : vector<1x1x1x128xf32>
    %cst_42 = arith.constant 0.000000e+00 : f32
    %91 = vector.broadcast %cst_42 : f32 to vector<1x1x1x128xf32>
    %92 = arith.maximumf %90, %91 : vector<1x1x1x128xf32>
    %c0_43 = arith.constant 0 : index
    %c0_44 = arith.constant 0 : index
    %93 = vector.load %arg3[%c0_43, %c0_44] : memref<1x128xf32, #tpu.memory_space<vmem>>, vector<1x128xf32>
    %94 = vector.shape_cast %93 : vector<1x128xf32> to vector<1x1x1x128xf32>
    %cst_45 = arith.constant 9.99999974E-6 : f32
    %95 = vector.broadcast %cst_45 : f32 to vector<1x1x1x128xf32>
    %96 = arith.addf %92, %95 : vector<1x1x1x128xf32>
    %97 = math.rsqrt %96 : vector<1x1x1x128xf32>
    %98 = arith.mulf %94, %97 : vector<1x1x1x128xf32>
    %c0_46 = arith.constant 0 : index
    %c0_47 = arith.constant 0 : index
    %99 = vector.load %arg4[%c0_46, %c0_47] : memref<1x128xf32, #tpu.memory_space<vmem>>, vector<1x128xf32>
    %100 = vector.shape_cast %99 : vector<1x128xf32> to vector<1x1x1x128xf32>
    %101 = arith.mulf %86, %98 : vector<1x1x1x128xf32>
    %102 = arith.subf %100, %101 : vector<1x1x1x128xf32>
    %103 = vector.broadcast %98 : vector<1x1x1x128xf32> to vector<2x4x4x128xf32>
    %104 = arith.mulf %71, %103 : vector<2x4x4x128xf32>
    %105 = vector.broadcast %102 : vector<1x1x1x128xf32> to vector<2x4x4x128xf32>
    %106 = arith.addf %104, %105 : vector<2x4x4x128xf32>
    %107 = arith.truncf %106 : vector<2x4x4x128xf32> to vector<2x4x4x128xbf16>
    %c0_48 = arith.constant 0 : index
    %c0_49 = arith.constant 0 : index
    %c0_50 = arith.constant 0 : index
    %c0_51 = arith.constant 0 : index
    %108 = vector.load %arg5[%c0_48, %c0_49, %c0_50, %c0_51] : memref<2x4x4x128xbf16, #tpu.memory_space<vmem>>, vector<2x4x4x128xbf16>
    tpu.vector_store %arg5[%c0_48, %c0_49, %c0_50, %c0_51], %107 {strides = array<i32>} : memref<2x4x4x128xbf16, #tpu.memory_space<vmem>>, vector<2x4x4x128xbf16>,
    return
  }
  func.func @transform_0(%arg0: i32) -> (i32, i32, i32, i32) {
    %c0_i32 = arith.constant 0 : i32
    %c0_i32_0 = arith.constant 0 : i32
    %c0_i32_1 = arith.constant 0 : i32
    %c0_i32_2 = arith.constant 0 : i32
    %c0_i32_3 = arith.constant 0 : i32
    return %c0_i32, %c0_i32_0, %c0_i32_1, %c0_i32_2 : i32, i32, i32, i32
  }
  func.func @transform_1(%arg0: i32) -> (i32, i32) {
    %c0_i32 = arith.constant 0 : i32
    %c0_i32_0 = arith.constant 0 : i32
    %c0_i32_1 = arith.constant 0 : i32
    return %c0_i32, %c0_i32_0 : i32, i32
  }
  func.func @transform_2(%arg0: i32) -> (i32, i32) {
    %c0_i32 = arith.constant 0 : i32
    %c0_i32_0 = arith.constant 0 : i32
    %c0_i32_1 = arith.constant 0 : i32
    return %c0_i32, %c0_i32_0 : i32, i32
  }
  func.func @transform_3(%arg0: i32) -> (i32, i32) {
    %c0_i32 = arith.constant 0 : i32
    %c0_i32_0 = arith.constant 0 : i32
    %c0_i32_1 = arith.constant 0 : i32
    return %c0_i32, %c0_i32_0 : i32, i32
  }
  func.func @transform_4(%arg0: i32) -> (i32, i32, i32, i32) {
    %c0_i32 = arith.constant 0 : i32
    %c0_i32_0 = arith.constant 0 : i32
    %c0_i32_1 = arith.constant 0 : i32
    %c0_i32_2 = arith.constant 0 : i32
    %c0_i32_3 = arith.constant 0 : i32
    return %c0_i32, %c0_i32_0, %c0_i32_1, %c0_i32_2 : i32, i32, i32, i32
  }
}

module attributes {stable_mosaic.version = 11 : i64} {
  func.func @_dwconv_s1_kernel(%arg0: i32, %arg1: memref<2x6x6x128xbf16, #tpu.memory_space<vmem>>, %arg2: memref<9x128xf32, #tpu.memory_space<vmem>>, %arg3: memref<1x128xf32, #tpu.memory_space<vmem>>, %arg4: memref<1x128xf32, #tpu.memory_space<vmem>>, %arg5: memref<2x4x4x128xbf16, #tpu.memory_space<vmem>>) attributes {dimension_semantics = [#tpu.dimension_semantics<arbitrary>], iteration_bounds = array<i64: 1>, scalar_prefetch = 0 : i64, scratch_operands = 0 : i64, tpu.core_type = #tpu.core_type<tc>, window_params = [{pipeline_mode = #tpu.pipeline_mode<synchronous>, transform_indices = @transform_0, window_bounds = array<i64: 2, 6, 6, 128>}, {pipeline_mode = #tpu.pipeline_mode<synchronous>, transform_indices = @transform_1, window_bounds = array<i64: 9, 128>}, {pipeline_mode = #tpu.pipeline_mode<synchronous>, transform_indices = @transform_2, window_bounds = array<i64: 1, 128>}, {pipeline_mode = #tpu.pipeline_mode<synchronous>, transform_indices = @transform_3, window_bounds = array<i64: 1, 128>}, {pipeline_mode = #tpu.pipeline_mode<synchronous>, transform_indices = @transform_4, window_bounds = array<i64: 2, 4, 4, 128>}]} {
    %c0 = arith.constant 0 : index
    %c0_0 = arith.constant 0 : index
    %0 = vector.load %arg2[%c0, %c0_0] : memref<9x128xf32, #tpu.memory_space<vmem>>, vector<9x128xf32>
    %c0_1 = arith.constant 0 : index
    %c0_2 = arith.constant 0 : index
    %c0_3 = arith.constant 0 : index
    %c0_4 = arith.constant 0 : index
    %1 = vector.load %arg1[%c0_1, %c0_2, %c0_3, %c0_4] : memref<2x6x6x128xbf16, #tpu.memory_space<vmem>>, vector<2x4x4x128xbf16>
    %2 = arith.extf %1 : vector<2x4x4x128xbf16> to vector<2x4x4x128xf32>
    %3 = vector.extract_strided_slice %0 {offsets = [0, 0], sizes = [1, 128], strides = [1, 1]} : vector<9x128xf32> to vector<1x128xf32>
    %4 = vector.shape_cast %3 : vector<1x128xf32> to vector<128xf32>
    %5 = vector.shape_cast %4 : vector<128xf32> to vector<1x1x1x128xf32>
    %6 = vector.broadcast %5 : vector<1x1x1x128xf32> to vector<2x4x4x128xf32>
    %7 = arith.mulf %2, %6 : vector<2x4x4x128xf32>
    %c0_5 = arith.constant 0 : index
    %c0_6 = arith.constant 0 : index
    %c1 = arith.constant 1 : index
    %c0_7 = arith.constant 0 : index
    %8 = vector.load %arg1[%c0_5, %c0_6, %c1, %c0_7] : memref<2x6x6x128xbf16, #tpu.memory_space<vmem>>, vector<2x4x4x128xbf16>
    %9 = arith.extf %8 : vector<2x4x4x128xbf16> to vector<2x4x4x128xf32>
    %10 = vector.extract_strided_slice %0 {offsets = [1, 0], sizes = [1, 128], strides = [1, 1]} : vector<9x128xf32> to vector<1x128xf32>
    %11 = vector.shape_cast %10 : vector<1x128xf32> to vector<128xf32>
    %12 = vector.shape_cast %11 : vector<128xf32> to vector<1x1x1x128xf32>
    %13 = vector.broadcast %12 : vector<1x1x1x128xf32> to vector<2x4x4x128xf32>
    %14 = arith.mulf %9, %13 : vector<2x4x4x128xf32>
    %c0_8 = arith.constant 0 : index
    %c0_9 = arith.constant 0 : index
    %c2 = arith.constant 2 : index
    %c0_10 = arith.constant 0 : index
    %15 = vector.load %arg1[%c0_8, %c0_9, %c2, %c0_10] : memref<2x6x6x128xbf16, #tpu.memory_space<vmem>>, vector<2x4x4x128xbf16>
    %16 = arith.extf %15 : vector<2x4x4x128xbf16> to vector<2x4x4x128xf32>
    %17 = vector.extract_strided_slice %0 {offsets = [2, 0], sizes = [1, 128], strides = [1, 1]} : vector<9x128xf32> to vector<1x128xf32>
    %18 = vector.shape_cast %17 : vector<1x128xf32> to vector<128xf32>
    %19 = vector.shape_cast %18 : vector<128xf32> to vector<1x1x1x128xf32>
    %20 = vector.broadcast %19 : vector<1x1x1x128xf32> to vector<2x4x4x128xf32>
    %21 = arith.mulf %16, %20 : vector<2x4x4x128xf32>
    %c0_11 = arith.constant 0 : index
    %c1_12 = arith.constant 1 : index
    %c0_13 = arith.constant 0 : index
    %c0_14 = arith.constant 0 : index
    %22 = vector.load %arg1[%c0_11, %c1_12, %c0_13, %c0_14] : memref<2x6x6x128xbf16, #tpu.memory_space<vmem>>, vector<2x4x4x128xbf16>
    %23 = arith.extf %22 : vector<2x4x4x128xbf16> to vector<2x4x4x128xf32>
    %24 = vector.extract_strided_slice %0 {offsets = [3, 0], sizes = [1, 128], strides = [1, 1]} : vector<9x128xf32> to vector<1x128xf32>
    %25 = vector.shape_cast %24 : vector<1x128xf32> to vector<128xf32>
    %26 = vector.shape_cast %25 : vector<128xf32> to vector<1x1x1x128xf32>
    %27 = vector.broadcast %26 : vector<1x1x1x128xf32> to vector<2x4x4x128xf32>
    %28 = arith.mulf %23, %27 : vector<2x4x4x128xf32>
    %c0_15 = arith.constant 0 : index
    %c1_16 = arith.constant 1 : index
    %c1_17 = arith.constant 1 : index
    %c0_18 = arith.constant 0 : index
    %29 = vector.load %arg1[%c0_15, %c1_16, %c1_17, %c0_18] : memref<2x6x6x128xbf16, #tpu.memory_space<vmem>>, vector<2x4x4x128xbf16>
    %30 = arith.extf %29 : vector<2x4x4x128xbf16> to vector<2x4x4x128xf32>
    %31 = vector.extract_strided_slice %0 {offsets = [4, 0], sizes = [1, 128], strides = [1, 1]} : vector<9x128xf32> to vector<1x128xf32>
    %32 = vector.shape_cast %31 : vector<1x128xf32> to vector<128xf32>
    %33 = vector.shape_cast %32 : vector<128xf32> to vector<1x1x1x128xf32>
    %34 = vector.broadcast %33 : vector<1x1x1x128xf32> to vector<2x4x4x128xf32>
    %35 = arith.mulf %30, %34 : vector<2x4x4x128xf32>
    %c0_19 = arith.constant 0 : index
    %c1_20 = arith.constant 1 : index
    %c2_21 = arith.constant 2 : index
    %c0_22 = arith.constant 0 : index
    %36 = vector.load %arg1[%c0_19, %c1_20, %c2_21, %c0_22] : memref<2x6x6x128xbf16, #tpu.memory_space<vmem>>, vector<2x4x4x128xbf16>
    %37 = arith.extf %36 : vector<2x4x4x128xbf16> to vector<2x4x4x128xf32>
    %38 = vector.extract_strided_slice %0 {offsets = [5, 0], sizes = [1, 128], strides = [1, 1]} : vector<9x128xf32> to vector<1x128xf32>
    %39 = vector.shape_cast %38 : vector<1x128xf32> to vector<128xf32>
    %40 = vector.shape_cast %39 : vector<128xf32> to vector<1x1x1x128xf32>
    %41 = vector.broadcast %40 : vector<1x1x1x128xf32> to vector<2x4x4x128xf32>
    %42 = arith.mulf %37, %41 : vector<2x4x4x128xf32>
    %c0_23 = arith.constant 0 : index
    %c2_24 = arith.constant 2 : index
    %c0_25 = arith.constant 0 : index
    %c0_26 = arith.constant 0 : index
    %43 = vector.load %arg1[%c0_23, %c2_24, %c0_25, %c0_26] : memref<2x6x6x128xbf16, #tpu.memory_space<vmem>>, vector<2x4x4x128xbf16>
    %44 = arith.extf %43 : vector<2x4x4x128xbf16> to vector<2x4x4x128xf32>
    %45 = vector.extract_strided_slice %0 {offsets = [6, 0], sizes = [1, 128], strides = [1, 1]} : vector<9x128xf32> to vector<1x128xf32>
    %46 = vector.shape_cast %45 : vector<1x128xf32> to vector<128xf32>
    %47 = vector.shape_cast %46 : vector<128xf32> to vector<1x1x1x128xf32>
    %48 = vector.broadcast %47 : vector<1x1x1x128xf32> to vector<2x4x4x128xf32>
    %49 = arith.mulf %44, %48 : vector<2x4x4x128xf32>
    %c0_27 = arith.constant 0 : index
    %c2_28 = arith.constant 2 : index
    %c1_29 = arith.constant 1 : index
    %c0_30 = arith.constant 0 : index
    %50 = vector.load %arg1[%c0_27, %c2_28, %c1_29, %c0_30] : memref<2x6x6x128xbf16, #tpu.memory_space<vmem>>, vector<2x4x4x128xbf16>
    %51 = arith.extf %50 : vector<2x4x4x128xbf16> to vector<2x4x4x128xf32>
    %52 = vector.extract_strided_slice %0 {offsets = [7, 0], sizes = [1, 128], strides = [1, 1]} : vector<9x128xf32> to vector<1x128xf32>
    %53 = vector.shape_cast %52 : vector<1x128xf32> to vector<128xf32>
    %54 = vector.shape_cast %53 : vector<128xf32> to vector<1x1x1x128xf32>
    %55 = vector.broadcast %54 : vector<1x1x1x128xf32> to vector<2x4x4x128xf32>
    %56 = arith.mulf %51, %55 : vector<2x4x4x128xf32>
    %c0_31 = arith.constant 0 : index
    %c2_32 = arith.constant 2 : index
    %c2_33 = arith.constant 2 : index
    %c0_34 = arith.constant 0 : index
    %57 = vector.load %arg1[%c0_31, %c2_32, %c2_33, %c0_34] : memref<2x6x6x128xbf16, #tpu.memory_space<vmem>>, vector<2x4x4x128xbf16>
    %58 = arith.extf %57 : vector<2x4x4x128xbf16> to vector<2x4x4x128xf32>
    %59 = vector.extract_strided_slice %0 {offsets = [8, 0], sizes = [1, 128], strides = [1, 1]} : vector<9x128xf32> to vector<1x128xf32>
    %60 = vector.shape_cast %59 : vector<1x128xf32> to vector<128xf32>
    %61 = vector.shape_cast %60 : vector<128xf32> to vector<1x1x1x128xf32>
    %62 = vector.broadcast %61 : vector<1x1x1x128xf32> to vector<2x4x4x128xf32>
    %63 = arith.mulf %58, %62 : vector<2x4x4x128xf32>
    %64 = arith.addf %7, %14 : vector<2x4x4x128xf32>
    %65 = arith.addf %21, %28 : vector<2x4x4x128xf32>
    %66 = arith.addf %35, %42 : vector<2x4x4x128xf32>
    %67 = arith.addf %49, %56 : vector<2x4x4x128xf32>
    %68 = arith.addf %64, %65 : vector<2x4x4x128xf32>
    %69 = arith.addf %66, %67 : vector<2x4x4x128xf32>
    %70 = arith.addf %68, %69 : vector<2x4x4x128xf32>
    %71 = arith.addf %70, %63 : vector<2x4x4x128xf32>
    %cst = arith.constant dense<0.000000e+00> : vector<4x4x128xf32>
    %72 = vector.multi_reduction <add>, %71, %cst [0] : vector<2x4x4x128xf32> to vector<4x4x128xf32>
    %73 = vector.shape_cast %72 : vector<4x4x128xf32> to vector<1x4x4x128xf32>
    %cst_35 = arith.constant dense<0.000000e+00> : vector<1x4x128xf32>
    %74 = vector.multi_reduction <add>, %73, %cst_35 [1] : vector<1x4x4x128xf32> to vector<1x4x128xf32>
    %75 = vector.shape_cast %74 : vector<1x4x128xf32> to vector<1x1x4x128xf32>
    %cst_36 = arith.constant dense<0.000000e+00> : vector<1x1x128xf32>
    %76 = vector.multi_reduction <add>, %75, %cst_36 [2] : vector<1x1x4x128xf32> to vector<1x1x128xf32>
    %77 = vector.shape_cast %76 : vector<1x1x128xf32> to vector<1x1x1x128xf32>
    %78 = arith.mulf %71, %71 : vector<2x4x4x128xf32>
    %cst_37 = arith.constant dense<0.000000e+00> : vector<4x4x128xf32>
    %79 = vector.multi_reduction <add>, %78, %cst_37 [0] : vector<2x4x4x128xf32> to vector<4x4x128xf32>
    %80 = vector.shape_cast %79 : vector<4x4x128xf32> to vector<1x4x4x128xf32>
    %cst_38 = arith.constant dense<0.000000e+00> : vector<1x4x128xf32>
    %81 = vector.multi_reduction <add>, %80, %cst_38 [1] : vector<1x4x4x128xf32> to vector<1x4x128xf32>
    %82 = vector.shape_cast %81 : vector<1x4x128xf32> to vector<1x1x4x128xf32>
    %cst_39 = arith.constant dense<0.000000e+00> : vector<1x1x128xf32>
    %83 = vector.multi_reduction <add>, %82, %cst_39 [2] : vector<1x1x4x128xf32> to vector<1x1x128xf32>
    %84 = vector.shape_cast %83 : vector<1x1x128xf32> to vector<1x1x1x128xf32>
    %cst_40 = arith.constant 3.125000e-02 : f32
    %85 = vector.broadcast %cst_40 : f32 to vector<1x1x1x128xf32>
    %86 = arith.mulf %77, %85 : vector<1x1x1x128xf32>
    %cst_41 = arith.constant 3.125000e-02 : f32
    %87 = vector.broadcast %cst_41 : f32 to vector<1x1x1x128xf32>
    %88 = arith.mulf %84, %87 : vector<1x1x1x128xf32>
    %89 = arith.mulf %86, %86 : vector<1x1x1x128xf32>
    %90 = arith.subf %88, %89 : vector<1x1x1x128xf32>
    %cst_42 = arith.constant 0.000000e+00 : f32
    %91 = vector.broadcast %cst_42 : f32 to vector<1x1x1x128xf32>
    %92 = arith.maximumf %90, %91 : vector<1x1x1x128xf32>
    %c0_43 = arith.constant 0 : index
    %c0_44 = arith.constant 0 : index
    %93 = vector.load %arg3[%c0_43, %c0_44] : memref<1x128xf32, #tpu.memory_space<vmem>>, vector<1x128xf32>
    %94 = vector.shape_cast %93 : vector<1x128xf32> to vector<1x1x1x128xf32>
    %cst_45 = arith.constant 9.99999974E-6 : f32
    %95 = vector.broadcast %cst_45 : f32 to vector<1x1x1x128xf32>
    %96 = arith.addf %92, %95 : vector<1x1x1x128xf32>
    %97 = math.rsqrt %96 : vector<1x1x1x128xf32>
    %98 = arith.mulf %94, %97 : vector<1x1x1x128xf32>
    %c0_46 = arith.constant 0 : index
    %c0_47 = arith.constant 0 : index
    %99 = vector.load %arg4[%c0_46, %c0_47] : memref<1x128xf32, #tpu.memory_space<vmem>>, vector<1x128xf32>
    %100 = vector.shape_cast %99 : vector<1x128xf32> to vector<1x1x1x128xf32>
    %101 = arith.mulf %86, %98 : vector<1x1x1x128xf32>
    %102 = arith.subf %100, %101 : vector<1x1x1x128xf32>
    %103 = vector.broadcast %98 : vector<1x1x1x128xf32> to vector<2x4x4x128xf32>
    %104 = arith.mulf %71, %103 : vector<2x4x4x128xf32>
    %105 = vector.broadcast %102 : vector<1x1x1x128xf32> to vector<2x4x4x128xf32>
    %106 = arith.addf %104, %105 : vector<2x4x4x128xf32>
    %cst_48 = arith.constant 0.000000e+00 : f32
    %107 = vector.broadcast %cst_48 : f32 to vector<2x4x4x128xf32>
    %108 = arith.maximumf %106, %107 : vector<2x4x4x128xf32>
    %109 = arith.truncf %108 : vector<2x4x4x128xf32> to vector<2x4x4x128xbf16>
    %c0_49 = arith.constant 0 : index
    %c0_50 = arith.constant 0 : index
    %c0_51 = arith.constant 0 : index
    %c0_52 = arith.constant 0 : index
    %110 = vector.load %arg5[%c0_49, %c0_50, %c0_51, %c0_52] : memref<2x4x4x128xbf16, #tpu.memory_space<vmem>>, vector<2x4x4x128xbf16>
    tpu.vector_store %arg5[%c0_49, %c0_50, %c0_51, %c0_52], %109 {strides = array<i32>} : memref<2x4x4x128xbf16, #tpu.memory_space<vmem>>, vector<2x4x4x128xbf16>,
    return
  }
  func.func @transform_0(%arg0: i32) -> (i32, i32, i32, i32) {
    %c0_i32 = arith.constant 0 : i32
    %c0_i32_0 = arith.constant 0 : i32
    %c0_i32_1 = arith.constant 0 : i32
    %c0_i32_2 = arith.constant 0 : i32
    %c0_i32_3 = arith.constant 0 : i32
    return %c0_i32, %c0_i32_0, %c0_i32_1, %c0_i32_2 : i32, i32, i32, i32
  }
  func.func @transform_1(%arg0: i32) -> (i32, i32) {
    %c0_i32 = arith.constant 0 : i32
    %c0_i32_0 = arith.constant 0 : i32
    %c0_i32_1 = arith.constant 0 : i32
    return %c0_i32, %c0_i32_0 : i32, i32
  }
  func.func @transform_2(%arg0: i32) -> (i32, i32) {
    %c0_i32 = arith.constant 0 : i32
    %c0_i32_0 = arith.constant 0 : i32
    %c0_i32_1 = arith.constant 0 : i32
    return %c0_i32, %c0_i32_0 : i32, i32
  }
  func.func @transform_3(%arg0: i32) -> (i32, i32) {
    %c0_i32 = arith.constant 0 : i32
    %c0_i32_0 = arith.constant 0 : i32
    %c0_i32_1 = arith.constant 0 : i32
    return %c0_i32, %c0_i32_0 : i32, i32
  }
  func.func @transform_4(%arg0: i32) -> (i32, i32, i32, i32) {
    %c0_i32 = arith.constant 0 : i32
    %c0_i32_0 = arith.constant 0 : i32
    %c0_i32_1 = arith.constant 0 : i32
    %c0_i32_2 = arith.constant 0 : i32
    %c0_i32_3 = arith.constant 0 : i32
    return %c0_i32, %c0_i32_0, %c0_i32_1, %c0_i32_2 : i32, i32, i32, i32
  }
}

module attributes {stable_mosaic.version = 11 : i64} {
  func.func @_dwconv_s2_kernel(%arg0: i32, %arg1: memref<2x3x3x128xbf16, #tpu.memory_space<vmem>>, %arg2: memref<2x3x3x128xbf16, #tpu.memory_space<vmem>>, %arg3: memref<2x3x3x128xbf16, #tpu.memory_space<vmem>>, %arg4: memref<2x3x3x128xbf16, #tpu.memory_space<vmem>>, %arg5: memref<9x128xf32, #tpu.memory_space<vmem>>, %arg6: memref<1x128xf32, #tpu.memory_space<vmem>>, %arg7: memref<1x128xf32, #tpu.memory_space<vmem>>, %arg8: memref<2x2x2x128xbf16, #tpu.memory_space<vmem>>) attributes {dimension_semantics = [#tpu.dimension_semantics<arbitrary>], iteration_bounds = array<i64: 1>, scalar_prefetch = 0 : i64, scratch_operands = 0 : i64, tpu.core_type = #tpu.core_type<tc>, window_params = [{pipeline_mode = #tpu.pipeline_mode<synchronous>, transform_indices = @transform_0, window_bounds = array<i64: 2, 3, 3, 128>}, {pipeline_mode = #tpu.pipeline_mode<synchronous>, transform_indices = @transform_1, window_bounds = array<i64: 2, 3, 3, 128>}, {pipeline_mode = #tpu.pipeline_mode<synchronous>, transform_indices = @transform_2, window_bounds = array<i64: 2, 3, 3, 128>}, {pipeline_mode = #tpu.pipeline_mode<synchronous>, transform_indices = @transform_3, window_bounds = array<i64: 2, 3, 3, 128>}, {pipeline_mode = #tpu.pipeline_mode<synchronous>, transform_indices = @transform_4, window_bounds = array<i64: 9, 128>}, {pipeline_mode = #tpu.pipeline_mode<synchronous>, transform_indices = @transform_5, window_bounds = array<i64: 1, 128>}, {pipeline_mode = #tpu.pipeline_mode<synchronous>, transform_indices = @transform_6, window_bounds = array<i64: 1, 128>}, {pipeline_mode = #tpu.pipeline_mode<synchronous>, transform_indices = @transform_7, window_bounds = array<i64: 2, 2, 2, 128>}]} {
    %c0 = arith.constant 0 : index
    %c0_0 = arith.constant 0 : index
    %0 = vector.load %arg5[%c0, %c0_0] : memref<9x128xf32, #tpu.memory_space<vmem>>, vector<9x128xf32>
    %c0_1 = arith.constant 0 : index
    %c0_2 = arith.constant 0 : index
    %c0_3 = arith.constant 0 : index
    %c0_4 = arith.constant 0 : index
    %1 = vector.load %arg1[%c0_1, %c0_2, %c0_3, %c0_4] : memref<2x3x3x128xbf16, #tpu.memory_space<vmem>>, vector<2x2x2x128xbf16>
    %2 = arith.extf %1 : vector<2x2x2x128xbf16> to vector<2x2x2x128xf32>
    %3 = vector.extract_strided_slice %0 {offsets = [0, 0], sizes = [1, 128], strides = [1, 1]} : vector<9x128xf32> to vector<1x128xf32>
    %4 = vector.shape_cast %3 : vector<1x128xf32> to vector<128xf32>
    %5 = vector.shape_cast %4 : vector<128xf32> to vector<1x1x1x128xf32>
    %6 = vector.broadcast %5 : vector<1x1x1x128xf32> to vector<2x2x2x128xf32>
    %7 = arith.mulf %2, %6 : vector<2x2x2x128xf32>
    %c0_5 = arith.constant 0 : index
    %c0_6 = arith.constant 0 : index
    %c0_7 = arith.constant 0 : index
    %c0_8 = arith.constant 0 : index
    %8 = vector.load %arg2[%c0_5, %c0_6, %c0_7, %c0_8] : memref<2x3x3x128xbf16, #tpu.memory_space<vmem>>, vector<2x2x2x128xbf16>
    %9 = arith.extf %8 : vector<2x2x2x128xbf16> to vector<2x2x2x128xf32>
    %10 = vector.extract_strided_slice %0 {offsets = [1, 0], sizes = [1, 128], strides = [1, 1]} : vector<9x128xf32> to vector<1x128xf32>
    %11 = vector.shape_cast %10 : vector<1x128xf32> to vector<128xf32>
    %12 = vector.shape_cast %11 : vector<128xf32> to vector<1x1x1x128xf32>
    %13 = vector.broadcast %12 : vector<1x1x1x128xf32> to vector<2x2x2x128xf32>
    %14 = arith.mulf %9, %13 : vector<2x2x2x128xf32>
    %c0_9 = arith.constant 0 : index
    %c0_10 = arith.constant 0 : index
    %c1 = arith.constant 1 : index
    %c0_11 = arith.constant 0 : index
    %15 = vector.load %arg1[%c0_9, %c0_10, %c1, %c0_11] : memref<2x3x3x128xbf16, #tpu.memory_space<vmem>>, vector<2x2x2x128xbf16>
    %16 = arith.extf %15 : vector<2x2x2x128xbf16> to vector<2x2x2x128xf32>
    %17 = vector.extract_strided_slice %0 {offsets = [2, 0], sizes = [1, 128], strides = [1, 1]} : vector<9x128xf32> to vector<1x128xf32>
    %18 = vector.shape_cast %17 : vector<1x128xf32> to vector<128xf32>
    %19 = vector.shape_cast %18 : vector<128xf32> to vector<1x1x1x128xf32>
    %20 = vector.broadcast %19 : vector<1x1x1x128xf32> to vector<2x2x2x128xf32>
    %21 = arith.mulf %16, %20 : vector<2x2x2x128xf32>
    %c0_12 = arith.constant 0 : index
    %c0_13 = arith.constant 0 : index
    %c0_14 = arith.constant 0 : index
    %c0_15 = arith.constant 0 : index
    %22 = vector.load %arg3[%c0_12, %c0_13, %c0_14, %c0_15] : memref<2x3x3x128xbf16, #tpu.memory_space<vmem>>, vector<2x2x2x128xbf16>
    %23 = arith.extf %22 : vector<2x2x2x128xbf16> to vector<2x2x2x128xf32>
    %24 = vector.extract_strided_slice %0 {offsets = [3, 0], sizes = [1, 128], strides = [1, 1]} : vector<9x128xf32> to vector<1x128xf32>
    %25 = vector.shape_cast %24 : vector<1x128xf32> to vector<128xf32>
    %26 = vector.shape_cast %25 : vector<128xf32> to vector<1x1x1x128xf32>
    %27 = vector.broadcast %26 : vector<1x1x1x128xf32> to vector<2x2x2x128xf32>
    %28 = arith.mulf %23, %27 : vector<2x2x2x128xf32>
    %c0_16 = arith.constant 0 : index
    %c0_17 = arith.constant 0 : index
    %c0_18 = arith.constant 0 : index
    %c0_19 = arith.constant 0 : index
    %29 = vector.load %arg4[%c0_16, %c0_17, %c0_18, %c0_19] : memref<2x3x3x128xbf16, #tpu.memory_space<vmem>>, vector<2x2x2x128xbf16>
    %30 = arith.extf %29 : vector<2x2x2x128xbf16> to vector<2x2x2x128xf32>
    %31 = vector.extract_strided_slice %0 {offsets = [4, 0], sizes = [1, 128], strides = [1, 1]} : vector<9x128xf32> to vector<1x128xf32>
    %32 = vector.shape_cast %31 : vector<1x128xf32> to vector<128xf32>
    %33 = vector.shape_cast %32 : vector<128xf32> to vector<1x1x1x128xf32>
    %34 = vector.broadcast %33 : vector<1x1x1x128xf32> to vector<2x2x2x128xf32>
    %35 = arith.mulf %30, %34 : vector<2x2x2x128xf32>
    %c0_20 = arith.constant 0 : index
    %c0_21 = arith.constant 0 : index
    %c1_22 = arith.constant 1 : index
    %c0_23 = arith.constant 0 : index
    %36 = vector.load %arg3[%c0_20, %c0_21, %c1_22, %c0_23] : memref<2x3x3x128xbf16, #tpu.memory_space<vmem>>, vector<2x2x2x128xbf16>
    %37 = arith.extf %36 : vector<2x2x2x128xbf16> to vector<2x2x2x128xf32>
    %38 = vector.extract_strided_slice %0 {offsets = [5, 0], sizes = [1, 128], strides = [1, 1]} : vector<9x128xf32> to vector<1x128xf32>
    %39 = vector.shape_cast %38 : vector<1x128xf32> to vector<128xf32>
    %40 = vector.shape_cast %39 : vector<128xf32> to vector<1x1x1x128xf32>
    %41 = vector.broadcast %40 : vector<1x1x1x128xf32> to vector<2x2x2x128xf32>
    %42 = arith.mulf %37, %41 : vector<2x2x2x128xf32>
    %c0_24 = arith.constant 0 : index
    %c1_25 = arith.constant 1 : index
    %c0_26 = arith.constant 0 : index
    %c0_27 = arith.constant 0 : index
    %43 = vector.load %arg1[%c0_24, %c1_25, %c0_26, %c0_27] : memref<2x3x3x128xbf16, #tpu.memory_space<vmem>>, vector<2x2x2x128xbf16>
    %44 = arith.extf %43 : vector<2x2x2x128xbf16> to vector<2x2x2x128xf32>
    %45 = vector.extract_strided_slice %0 {offsets = [6, 0], sizes = [1, 128], strides = [1, 1]} : vector<9x128xf32> to vector<1x128xf32>
    %46 = vector.shape_cast %45 : vector<1x128xf32> to vector<128xf32>
    %47 = vector.shape_cast %46 : vector<128xf32> to vector<1x1x1x128xf32>
    %48 = vector.broadcast %47 : vector<1x1x1x128xf32> to vector<2x2x2x128xf32>
    %49 = arith.mulf %44, %48 : vector<2x2x2x128xf32>
    %c0_28 = arith.constant 0 : index
    %c1_29 = arith.constant 1 : index
    %c0_30 = arith.constant 0 : index
    %c0_31 = arith.constant 0 : index
    %50 = vector.load %arg2[%c0_28, %c1_29, %c0_30, %c0_31] : memref<2x3x3x128xbf16, #tpu.memory_space<vmem>>, vector<2x2x2x128xbf16>
    %51 = arith.extf %50 : vector<2x2x2x128xbf16> to vector<2x2x2x128xf32>
    %52 = vector.extract_strided_slice %0 {offsets = [7, 0], sizes = [1, 128], strides = [1, 1]} : vector<9x128xf32> to vector<1x128xf32>
    %53 = vector.shape_cast %52 : vector<1x128xf32> to vector<128xf32>
    %54 = vector.shape_cast %53 : vector<128xf32> to vector<1x1x1x128xf32>
    %55 = vector.broadcast %54 : vector<1x1x1x128xf32> to vector<2x2x2x128xf32>
    %56 = arith.mulf %51, %55 : vector<2x2x2x128xf32>
    %c0_32 = arith.constant 0 : index
    %c1_33 = arith.constant 1 : index
    %c1_34 = arith.constant 1 : index
    %c0_35 = arith.constant 0 : index
    %57 = vector.load %arg1[%c0_32, %c1_33, %c1_34, %c0_35] : memref<2x3x3x128xbf16, #tpu.memory_space<vmem>>, vector<2x2x2x128xbf16>
    %58 = arith.extf %57 : vector<2x2x2x128xbf16> to vector<2x2x2x128xf32>
    %59 = vector.extract_strided_slice %0 {offsets = [8, 0], sizes = [1, 128], strides = [1, 1]} : vector<9x128xf32> to vector<1x128xf32>
    %60 = vector.shape_cast %59 : vector<1x128xf32> to vector<128xf32>
    %61 = vector.shape_cast %60 : vector<128xf32> to vector<1x1x1x128xf32>
    %62 = vector.broadcast %61 : vector<1x1x1x128xf32> to vector<2x2x2x128xf32>
    %63 = arith.mulf %58, %62 : vector<2x2x2x128xf32>
    %64 = arith.addf %7, %14 : vector<2x2x2x128xf32>
    %65 = arith.addf %21, %28 : vector<2x2x2x128xf32>
    %66 = arith.addf %35, %42 : vector<2x2x2x128xf32>
    %67 = arith.addf %49, %56 : vector<2x2x2x128xf32>
    %68 = arith.addf %64, %65 : vector<2x2x2x128xf32>
    %69 = arith.addf %66, %67 : vector<2x2x2x128xf32>
    %70 = arith.addf %68, %69 : vector<2x2x2x128xf32>
    %71 = arith.addf %70, %63 : vector<2x2x2x128xf32>
    %cst = arith.constant dense<0.000000e+00> : vector<2x2x128xf32>
    %72 = vector.multi_reduction <add>, %71, %cst [0] : vector<2x2x2x128xf32> to vector<2x2x128xf32>
    %73 = vector.shape_cast %72 : vector<2x2x128xf32> to vector<1x2x2x128xf32>
    %cst_36 = arith.constant dense<0.000000e+00> : vector<1x2x128xf32>
    %74 = vector.multi_reduction <add>, %73, %cst_36 [1] : vector<1x2x2x128xf32> to vector<1x2x128xf32>
    %75 = vector.shape_cast %74 : vector<1x2x128xf32> to vector<1x1x2x128xf32>
    %cst_37 = arith.constant dense<0.000000e+00> : vector<1x1x128xf32>
    %76 = vector.multi_reduction <add>, %75, %cst_37 [2] : vector<1x1x2x128xf32> to vector<1x1x128xf32>
    %77 = vector.shape_cast %76 : vector<1x1x128xf32> to vector<1x1x1x128xf32>
    %78 = arith.mulf %71, %71 : vector<2x2x2x128xf32>
    %cst_38 = arith.constant dense<0.000000e+00> : vector<2x2x128xf32>
    %79 = vector.multi_reduction <add>, %78, %cst_38 [0] : vector<2x2x2x128xf32> to vector<2x2x128xf32>
    %80 = vector.shape_cast %79 : vector<2x2x128xf32> to vector<1x2x2x128xf32>
    %cst_39 = arith.constant dense<0.000000e+00> : vector<1x2x128xf32>
    %81 = vector.multi_reduction <add>, %80, %cst_39 [1] : vector<1x2x2x128xf32> to vector<1x2x128xf32>
    %82 = vector.shape_cast %81 : vector<1x2x128xf32> to vector<1x1x2x128xf32>
    %cst_40 = arith.constant dense<0.000000e+00> : vector<1x1x128xf32>
    %83 = vector.multi_reduction <add>, %82, %cst_40 [2] : vector<1x1x2x128xf32> to vector<1x1x128xf32>
    %84 = vector.shape_cast %83 : vector<1x1x128xf32> to vector<1x1x1x128xf32>
    %cst_41 = arith.constant 1.250000e-01 : f32
    %85 = vector.broadcast %cst_41 : f32 to vector<1x1x1x128xf32>
    %86 = arith.mulf %77, %85 : vector<1x1x1x128xf32>
    %cst_42 = arith.constant 1.250000e-01 : f32
    %87 = vector.broadcast %cst_42 : f32 to vector<1x1x1x128xf32>
    %88 = arith.mulf %84, %87 : vector<1x1x1x128xf32>
    %89 = arith.mulf %86, %86 : vector<1x1x1x128xf32>
    %90 = arith.subf %88, %89 : vector<1x1x1x128xf32>
    %cst_43 = arith.constant 0.000000e+00 : f32
    %91 = vector.broadcast %cst_43 : f32 to vector<1x1x1x128xf32>
    %92 = arith.maximumf %90, %91 : vector<1x1x1x128xf32>
    %c0_44 = arith.constant 0 : index
    %c0_45 = arith.constant 0 : index
    %93 = vector.load %arg6[%c0_44, %c0_45] : memref<1x128xf32, #tpu.memory_space<vmem>>, vector<1x128xf32>
    %94 = vector.shape_cast %93 : vector<1x128xf32> to vector<1x1x1x128xf32>
    %cst_46 = arith.constant 9.99999974E-6 : f32
    %95 = vector.broadcast %cst_46 : f32 to vector<1x1x1x128xf32>
    %96 = arith.addf %92, %95 : vector<1x1x1x128xf32>
    %97 = math.rsqrt %96 : vector<1x1x1x128xf32>
    %98 = arith.mulf %94, %97 : vector<1x1x1x128xf32>
    %c0_47 = arith.constant 0 : index
    %c0_48 = arith.constant 0 : index
    %99 = vector.load %arg7[%c0_47, %c0_48] : memref<1x128xf32, #tpu.memory_space<vmem>>, vector<1x128xf32>
    %100 = vector.shape_cast %99 : vector<1x128xf32> to vector<1x1x1x128xf32>
    %101 = arith.mulf %86, %98 : vector<1x1x1x128xf32>
    %102 = arith.subf %100, %101 : vector<1x1x1x128xf32>
    %103 = vector.broadcast %98 : vector<1x1x1x128xf32> to vector<2x2x2x128xf32>
    %104 = arith.mulf %71, %103 : vector<2x2x2x128xf32>
    %105 = vector.broadcast %102 : vector<1x1x1x128xf32> to vector<2x2x2x128xf32>
    %106 = arith.addf %104, %105 : vector<2x2x2x128xf32>
    %cst_49 = arith.constant 0.000000e+00 : f32
    %107 = vector.broadcast %cst_49 : f32 to vector<2x2x2x128xf32>
    %108 = arith.maximumf %106, %107 : vector<2x2x2x128xf32>
    %109 = arith.truncf %108 : vector<2x2x2x128xf32> to vector<2x2x2x128xbf16>
    %c0_50 = arith.constant 0 : index
    %c0_51 = arith.constant 0 : index
    %c0_52 = arith.constant 0 : index
    %c0_53 = arith.constant 0 : index
    %110 = vector.load %arg8[%c0_50, %c0_51, %c0_52, %c0_53] : memref<2x2x2x128xbf16, #tpu.memory_space<vmem>>, vector<2x2x2x128xbf16>
    tpu.vector_store %arg8[%c0_50, %c0_51, %c0_52, %c0_53], %109 {strides = array<i32>} : memref<2x2x2x128xbf16, #tpu.memory_space<vmem>>, vector<2x2x2x128xbf16>,
    return
  }
  func.func @transform_0(%arg0: i32) -> (i32, i32, i32, i32) {
    %c0_i32 = arith.constant 0 : i32
    %c0_i32_0 = arith.constant 0 : i32
    %c0_i32_1 = arith.constant 0 : i32
    %c0_i32_2 = arith.constant 0 : i32
    %c0_i32_3 = arith.constant 0 : i32
    return %c0_i32, %c0_i32_0, %c0_i32_1, %c0_i32_2 : i32, i32, i32, i32
  }
  func.func @transform_1(%arg0: i32) -> (i32, i32, i32, i32) {
    %c0_i32 = arith.constant 0 : i32
    %c0_i32_0 = arith.constant 0 : i32
    %c0_i32_1 = arith.constant 0 : i32
    %c0_i32_2 = arith.constant 0 : i32
    %c0_i32_3 = arith.constant 0 : i32
    return %c0_i32, %c0_i32_0, %c0_i32_1, %c0_i32_2 : i32, i32, i32, i32
  }
  func.func @transform_2(%arg0: i32) -> (i32, i32, i32, i32) {
    %c0_i32 = arith.constant 0 : i32
    %c0_i32_0 = arith.constant 0 : i32
    %c0_i32_1 = arith.constant 0 : i32
    %c0_i32_2 = arith.constant 0 : i32
    %c0_i32_3 = arith.constant 0 : i32
    return %c0_i32, %c0_i32_0, %c0_i32_1, %c0_i32_2 : i32, i32, i32, i32
  }
  func.func @transform_3(%arg0: i32) -> (i32, i32, i32, i32) {
    %c0_i32 = arith.constant 0 : i32
    %c0_i32_0 = arith.constant 0 : i32
    %c0_i32_1 = arith.constant 0 : i32
    %c0_i32_2 = arith.constant 0 : i32
    %c0_i32_3 = arith.constant 0 : i32
    return %c0_i32, %c0_i32_0, %c0_i32_1, %c0_i32_2 : i32, i32, i32, i32
  }
  func.func @transform_4(%arg0: i32) -> (i32, i32) {
    %c0_i32 = arith.constant 0 : i32
    %c0_i32_0 = arith.constant 0 : i32
    %c0_i32_1 = arith.constant 0 : i32
    return %c0_i32, %c0_i32_0 : i32, i32
  }
  func.func @transform_5(%arg0: i32) -> (i32, i32) {
    %c0_i32 = arith.constant 0 : i32
    %c0_i32_0 = arith.constant 0 : i32
    %c0_i32_1 = arith.constant 0 : i32
    return %c0_i32, %c0_i32_0 : i32, i32
  }
  func.func @transform_6(%arg0: i32) -> (i32, i32) {
    %c0_i32 = arith.constant 0 : i32
    %c0_i32_0 = arith.constant 0 : i32
    %c0_i32_1 = arith.constant 0 : i32
    return %c0_i32, %c0_i32_0 : i32, i32
  }
  func.func @transform_7(%arg0: i32) -> (i32, i32, i32, i32) {
    %c0_i32 = arith.constant 0 : i32
    %c0_i32_0 = arith.constant 0 : i32
    %c0_i32_1 = arith.constant 0 : i32
    %c0_i32_2 = arith.constant 0 : i32
    %c0_i32_3 = arith.constant 0 : i32
    return %c0_i32, %c0_i32_0, %c0_i32_1, %c0_i32_2 : i32, i32, i32, i32
  }
}

module attributes {stable_mosaic.version = 11 : i64} {
  func.func @_matmul_fused_kernel(%arg0: i32, %arg1: memref<8x128xbf16, #tpu.memory_space<vmem>>, %arg2: memref<128x128xbf16, #tpu.memory_space<vmem>>, %arg3: memref<1x128xf32, #tpu.memory_space<vmem>>, %arg4: memref<1x128xf32, #tpu.memory_space<vmem>>, %arg5: memref<8x128xbf16, #tpu.memory_space<vmem>>) attributes {dimension_semantics = [#tpu.dimension_semantics<parallel>], iteration_bounds = array<i64: 1>, scalar_prefetch = 0 : i64, scratch_operands = 0 : i64, tpu.core_type = #tpu.core_type<tc>, window_params = [{pipeline_mode = #tpu.pipeline_mode<synchronous>, transform_indices = @transform_0, window_bounds = array<i64: 8, 128>}, {transform_indices = @transform_1, window_bounds = array<i64: 128, 128>}, {transform_indices = @transform_2, window_bounds = array<i64: 1, 128>}, {transform_indices = @transform_3, window_bounds = array<i64: 1, 128>}, {transform_indices = @transform_4, window_bounds = array<i64: 8, 128>}]} {
    %c0 = arith.constant 0 : index
    %c0_0 = arith.constant 0 : index
    %0 = vector.load %arg1[%c0, %c0_0] : memref<8x128xbf16, #tpu.memory_space<vmem>>, vector<8x128xbf16>
    %c0_1 = arith.constant 0 : index
    %c0_2 = arith.constant 0 : index
    %1 = vector.load %arg2[%c0_1, %c0_2] : memref<128x128xbf16, #tpu.memory_space<vmem>>, vector<128x128xbf16>
    %cst = arith.constant dense<0.000000e+00> : vector<8x128xf32>
    %2 = tpu.matmul %0, %1, %cst {dimension_numbers = #tpu.dot_dimension_numbers<[1], [0], [0], [1], [0, 0, 1, 1], [], []>} : vector<8x128xbf16>, vector<128x128xbf16>, vector<8x128xf32> -> vector<8x128xf32>
    %cst_3 = arith.constant dense<0.000000e+00> : vector<128xf32>
    %3 = vector.multi_reduction <add>, %2, %cst_3 [0] : vector<8x128xf32> to vector<128xf32>
    %4 = vector.shape_cast %3 : vector<128xf32> to vector<1x128xf32>
    %cst_4 = arith.constant 1.250000e-01 : f32
    %5 = vector.broadcast %cst_4 : f32 to vector<1x128xf32>
    %6 = arith.mulf %4, %5 : vector<1x128xf32>
    %7 = arith.mulf %2, %2 : vector<8x128xf32>
    %cst_5 = arith.constant dense<0.000000e+00> : vector<128xf32>
    %8 = vector.multi_reduction <add>, %7, %cst_5 [0] : vector<8x128xf32> to vector<128xf32>
    %9 = vector.shape_cast %8 : vector<128xf32> to vector<1x128xf32>
    %cst_6 = arith.constant 1.250000e-01 : f32
    %10 = vector.broadcast %cst_6 : f32 to vector<1x128xf32>
    %11 = arith.mulf %9, %10 : vector<1x128xf32>
    %12 = arith.mulf %6, %6 : vector<1x128xf32>
    %13 = arith.subf %11, %12 : vector<1x128xf32>
    %cst_7 = arith.constant 0.000000e+00 : f32
    %14 = vector.broadcast %cst_7 : f32 to vector<1x128xf32>
    %15 = arith.maximumf %13, %14 : vector<1x128xf32>
    %c0_8 = arith.constant 0 : index
    %c0_9 = arith.constant 0 : index
    %16 = vector.load %arg3[%c0_8, %c0_9] : memref<1x128xf32, #tpu.memory_space<vmem>>, vector<1x128xf32>
    %cst_10 = arith.constant 9.99999974E-6 : f32
    %17 = vector.broadcast %cst_10 : f32 to vector<1x128xf32>
    %18 = arith.addf %15, %17 : vector<1x128xf32>
    %19 = math.rsqrt %18 : vector<1x128xf32>
    %20 = arith.mulf %16, %19 : vector<1x128xf32>
    %c0_11 = arith.constant 0 : index
    %c0_12 = arith.constant 0 : index
    %21 = vector.load %arg4[%c0_11, %c0_12] : memref<1x128xf32, #tpu.memory_space<vmem>>, vector<1x128xf32>
    %22 = arith.mulf %6, %20 : vector<1x128xf32>
    %23 = arith.subf %21, %22 : vector<1x128xf32>
    %24 = vector.broadcast %20 : vector<1x128xf32> to vector<8x128xf32>
    %25 = arith.mulf %2, %24 : vector<8x128xf32>
    %26 = vector.broadcast %23 : vector<1x128xf32> to vector<8x128xf32>
    %27 = arith.addf %25, %26 : vector<8x128xf32>
    %cst_13 = arith.constant 0.000000e+00 : f32
    %28 = vector.broadcast %cst_13 : f32 to vector<8x128xf32>
    %29 = arith.maximumf %27, %28 : vector<8x128xf32>
    %30 = arith.truncf %29 : vector<8x128xf32> to vector<8x128xbf16>
    %c0_14 = arith.constant 0 : index
    %c0_15 = arith.constant 0 : index
    %31 = vector.load %arg5[%c0_14, %c0_15] : memref<8x128xbf16, #tpu.memory_space<vmem>>, vector<8x128xbf16>
    tpu.vector_store %arg5[%c0_14, %c0_15], %30 {strides = array<i32>} : memref<8x128xbf16, #tpu.memory_space<vmem>>, vector<8x128xbf16>,
    return
  }
  func.func @transform_0(%arg0: i32) -> (i32, i32) {
    %c0_i32 = arith.constant 0 : i32
    %c0_i32_0 = arith.constant 0 : i32
    %c0_i32_1 = arith.constant 0 : i32
    return %c0_i32, %c0_i32_0 : i32, i32
  }
  func.func @transform_1(%arg0: i32) -> (i32, i32) {
    %c0_i32 = arith.constant 0 : i32
    %c0_i32_0 = arith.constant 0 : i32
    return %c0_i32, %arg0 : i32, i32
  }
  func.func @transform_2(%arg0: i32) -> (i32, i32) {
    %c0_i32 = arith.constant 0 : i32
    %c0_i32_0 = arith.constant 0 : i32
    return %c0_i32, %arg0 : i32, i32
  }
  func.func @transform_3(%arg0: i32) -> (i32, i32) {
    %c0_i32 = arith.constant 0 : i32
    %c0_i32_0 = arith.constant 0 : i32
    return %c0_i32, %arg0 : i32, i32
  }
  func.func @transform_4(%arg0: i32) -> (i32, i32) {
    %c0_i32 = arith.constant 0 : i32
    %c0_i32_0 = arith.constant 0 : i32
    return %c0_i32, %arg0 : i32, i32
  }
}

module attributes {stable_mosaic.version = 11 : i64} {
  func.func @_se_kernel(%arg0: i32, %arg1: memref<8x128xbf16, #tpu.memory_space<vmem>>, %arg2: memref<128x128xbf16, #tpu.memory_space<vmem>>, %arg3: memref<128x128xbf16, #tpu.memory_space<vmem>>, %arg4: memref<8x128xf32, #tpu.memory_space<vmem>>) attributes {dimension_semantics = [#tpu.dimension_semantics<arbitrary>], iteration_bounds = array<i64: 1>, scalar_prefetch = 0 : i64, scratch_operands = 0 : i64, tpu.core_type = #tpu.core_type<tc>, window_params = [{pipeline_mode = #tpu.pipeline_mode<synchronous>, transform_indices = @transform_0, window_bounds = array<i64: 8, 128>}, {pipeline_mode = #tpu.pipeline_mode<synchronous>, transform_indices = @transform_1, window_bounds = array<i64: 128, 128>}, {pipeline_mode = #tpu.pipeline_mode<synchronous>, transform_indices = @transform_2, window_bounds = array<i64: 128, 128>}, {pipeline_mode = #tpu.pipeline_mode<synchronous>, transform_indices = @transform_3, window_bounds = array<i64: 8, 128>}]} {
    %c0 = arith.constant 0 : index
    %c0_0 = arith.constant 0 : index
    %0 = vector.load %arg1[%c0, %c0_0] : memref<8x128xbf16, #tpu.memory_space<vmem>>, vector<8x128xbf16>
    %c0_1 = arith.constant 0 : index
    %c0_2 = arith.constant 0 : index
    %1 = vector.load %arg2[%c0_1, %c0_2] : memref<128x128xbf16, #tpu.memory_space<vmem>>, vector<128x128xbf16>
    %cst = arith.constant dense<0.000000e+00> : vector<8x128xf32>
    %2 = tpu.matmul %0, %1, %cst {dimension_numbers = #tpu.dot_dimension_numbers<[1], [0], [0], [1], [0, 0, 1, 1], [], []>} : vector<8x128xbf16>, vector<128x128xbf16>, vector<8x128xf32> -> vector<8x128xf32>
    %cst_3 = arith.constant 0.000000e+00 : f32
    %3 = vector.broadcast %cst_3 : f32 to vector<8x128xf32>
    %4 = arith.maximumf %2, %3 : vector<8x128xf32>
    %5 = arith.truncf %4 : vector<8x128xf32> to vector<8x128xbf16>
    %c0_4 = arith.constant 0 : index
    %c0_5 = arith.constant 0 : index
    %6 = vector.load %arg3[%c0_4, %c0_5] : memref<128x128xbf16, #tpu.memory_space<vmem>>, vector<128x128xbf16>
    %cst_6 = arith.constant dense<0.000000e+00> : vector<8x128xf32>
    %7 = tpu.matmul %5, %6, %cst_6 {dimension_numbers = #tpu.dot_dimension_numbers<[1], [0], [0], [1], [0, 0, 1, 1], [], []>} : vector<8x128xbf16>, vector<128x128xbf16>, vector<8x128xf32> -> vector<8x128xf32>
    %cst_7 = arith.constant 0.000000e+00 : f32
    %8 = vector.broadcast %cst_7 : f32 to vector<8x128xf32>
    %9 = arith.subf %8, %7 : vector<8x128xf32>
    %10 = math.exp %9 : vector<8x128xf32>
    %cst_8 = arith.constant 1.000000e+00 : f32
    %11 = vector.broadcast %cst_8 : f32 to vector<8x128xf32>
    %12 = arith.addf %11, %10 : vector<8x128xf32>
    %cst_9 = arith.constant 1.000000e+00 : f32
    %13 = vector.broadcast %cst_9 : f32 to vector<8x128xf32>
    %14 = arith.divf %13, %12 : vector<8x128xf32>
    %c0_10 = arith.constant 0 : index
    %c0_11 = arith.constant 0 : index
    %15 = vector.load %arg4[%c0_10, %c0_11] : memref<8x128xf32, #tpu.memory_space<vmem>>, vector<8x128xf32>
    tpu.vector_store %arg4[%c0_10, %c0_11], %14 {strides = array<i32>} : memref<8x128xf32, #tpu.memory_space<vmem>>, vector<8x128xf32>,
    return
  }
  func.func @transform_0(%arg0: i32) -> (i32, i32) {
    %c0_i32 = arith.constant 0 : i32
    %c0_i32_0 = arith.constant 0 : i32
    %c0_i32_1 = arith.constant 0 : i32
    return %c0_i32, %c0_i32_0 : i32, i32
  }
  func.func @transform_1(%arg0: i32) -> (i32, i32) {
    %c0_i32 = arith.constant 0 : i32
    %c0_i32_0 = arith.constant 0 : i32
    %c0_i32_1 = arith.constant 0 : i32
    return %c0_i32, %c0_i32_0 : i32, i32
  }
  func.func @transform_2(%arg0: i32) -> (i32, i32) {
    %c0_i32 = arith.constant 0 : i32
    %c0_i32_0 = arith.constant 0 : i32
    %c0_i32_1 = arith.constant 0 : i32
    return %c0_i32, %c0_i32_0 : i32, i32
  }
  func.func @transform_3(%arg0: i32) -> (i32, i32) {
    %c0_i32 = arith.constant 0 : i32
    %c0_i32_0 = arith.constant 0 : i32
    %c0_i32_1 = arith.constant 0 : i32
    return %c0_i32, %c0_i32_0 : i32, i32
  }
}

module attributes {stable_mosaic.version = 11 : i64} {
  func.func @_matmul_fused_kernel(%arg0: i32, %arg1: memref<8x128xbf16, #tpu.memory_space<vmem>>, %arg2: memref<128x128xbf16, #tpu.memory_space<vmem>>, %arg3: memref<1x128xf32, #tpu.memory_space<vmem>>, %arg4: memref<1x128xf32, #tpu.memory_space<vmem>>, %arg5: memref<8x128xbf16, #tpu.memory_space<vmem>>) attributes {dimension_semantics = [#tpu.dimension_semantics<parallel>], iteration_bounds = array<i64: 1>, scalar_prefetch = 0 : i64, scratch_operands = 0 : i64, tpu.core_type = #tpu.core_type<tc>, window_params = [{pipeline_mode = #tpu.pipeline_mode<synchronous>, transform_indices = @transform_0, window_bounds = array<i64: 8, 128>}, {transform_indices = @transform_1, window_bounds = array<i64: 128, 128>}, {transform_indices = @transform_2, window_bounds = array<i64: 1, 128>}, {transform_indices = @transform_3, window_bounds = array<i64: 1, 128>}, {transform_indices = @transform_4, window_bounds = array<i64: 8, 128>}]} {
    %c0 = arith.constant 0 : index
    %c0_0 = arith.constant 0 : index
    %0 = vector.load %arg1[%c0, %c0_0] : memref<8x128xbf16, #tpu.memory_space<vmem>>, vector<8x128xbf16>
    %c0_1 = arith.constant 0 : index
    %c0_2 = arith.constant 0 : index
    %1 = vector.load %arg2[%c0_1, %c0_2] : memref<128x128xbf16, #tpu.memory_space<vmem>>, vector<128x128xbf16>
    %cst = arith.constant dense<0.000000e+00> : vector<8x128xf32>
    %2 = tpu.matmul %0, %1, %cst {dimension_numbers = #tpu.dot_dimension_numbers<[1], [0], [0], [1], [0, 0, 1, 1], [], []>} : vector<8x128xbf16>, vector<128x128xbf16>, vector<8x128xf32> -> vector<8x128xf32>
    %cst_3 = arith.constant dense<0.000000e+00> : vector<128xf32>
    %3 = vector.multi_reduction <add>, %2, %cst_3 [0] : vector<8x128xf32> to vector<128xf32>
    %4 = vector.shape_cast %3 : vector<128xf32> to vector<1x128xf32>
    %cst_4 = arith.constant 1.250000e-01 : f32
    %5 = vector.broadcast %cst_4 : f32 to vector<1x128xf32>
    %6 = arith.mulf %4, %5 : vector<1x128xf32>
    %7 = arith.mulf %2, %2 : vector<8x128xf32>
    %cst_5 = arith.constant dense<0.000000e+00> : vector<128xf32>
    %8 = vector.multi_reduction <add>, %7, %cst_5 [0] : vector<8x128xf32> to vector<128xf32>
    %9 = vector.shape_cast %8 : vector<128xf32> to vector<1x128xf32>
    %cst_6 = arith.constant 1.250000e-01 : f32
    %10 = vector.broadcast %cst_6 : f32 to vector<1x128xf32>
    %11 = arith.mulf %9, %10 : vector<1x128xf32>
    %12 = arith.mulf %6, %6 : vector<1x128xf32>
    %13 = arith.subf %11, %12 : vector<1x128xf32>
    %cst_7 = arith.constant 0.000000e+00 : f32
    %14 = vector.broadcast %cst_7 : f32 to vector<1x128xf32>
    %15 = arith.maximumf %13, %14 : vector<1x128xf32>
    %c0_8 = arith.constant 0 : index
    %c0_9 = arith.constant 0 : index
    %16 = vector.load %arg3[%c0_8, %c0_9] : memref<1x128xf32, #tpu.memory_space<vmem>>, vector<1x128xf32>
    %cst_10 = arith.constant 9.99999974E-6 : f32
    %17 = vector.broadcast %cst_10 : f32 to vector<1x128xf32>
    %18 = arith.addf %15, %17 : vector<1x128xf32>
    %19 = math.rsqrt %18 : vector<1x128xf32>
    %20 = arith.mulf %16, %19 : vector<1x128xf32>
    %c0_11 = arith.constant 0 : index
    %c0_12 = arith.constant 0 : index
    %21 = vector.load %arg4[%c0_11, %c0_12] : memref<1x128xf32, #tpu.memory_space<vmem>>, vector<1x128xf32>
    %22 = arith.mulf %6, %20 : vector<1x128xf32>
    %23 = arith.subf %21, %22 : vector<1x128xf32>
    %24 = vector.broadcast %20 : vector<1x128xf32> to vector<8x128xf32>
    %25 = arith.mulf %2, %24 : vector<8x128xf32>
    %26 = vector.broadcast %23 : vector<1x128xf32> to vector<8x128xf32>
    %27 = arith.addf %25, %26 : vector<8x128xf32>
    %28 = arith.truncf %27 : vector<8x128xf32> to vector<8x128xbf16>
    %c0_13 = arith.constant 0 : index
    %c0_14 = arith.constant 0 : index
    %29 = vector.load %arg5[%c0_13, %c0_14] : memref<8x128xbf16, #tpu.memory_space<vmem>>, vector<8x128xbf16>
    tpu.vector_store %arg5[%c0_13, %c0_14], %28 {strides = array<i32>} : memref<8x128xbf16, #tpu.memory_space<vmem>>, vector<8x128xbf16>,
    return
  }
  func.func @transform_0(%arg0: i32) -> (i32, i32) {
    %c0_i32 = arith.constant 0 : i32
    %c0_i32_0 = arith.constant 0 : i32
    %c0_i32_1 = arith.constant 0 : i32
    return %c0_i32, %c0_i32_0 : i32, i32
  }
  func.func @transform_1(%arg0: i32) -> (i32, i32) {
    %c0_i32 = arith.constant 0 : i32
    %c0_i32_0 = arith.constant 0 : i32
    return %c0_i32, %arg0 : i32, i32
  }
  func.func @transform_2(%arg0: i32) -> (i32, i32) {
    %c0_i32 = arith.constant 0 : i32
    %c0_i32_0 = arith.constant 0 : i32
    return %c0_i32, %arg0 : i32, i32
  }
  func.func @transform_3(%arg0: i32) -> (i32, i32) {
    %c0_i32 = arith.constant 0 : i32
    %c0_i32_0 = arith.constant 0 : i32
    return %c0_i32, %arg0 : i32, i32
  }
  func.func @transform_4(%arg0: i32) -> (i32, i32) {
    %c0_i32 = arith.constant 0 : i32
    %c0_i32_0 = arith.constant 0 : i32
    return %c0_i32, %arg0 : i32, i32
  }
}

module attributes {stable_mosaic.version = 11 : i64} {
  func.func @_dwconv_s1_kernel(%arg0: i32, %arg1: memref<2x4x4x128xbf16, #tpu.memory_space<vmem>>, %arg2: memref<9x128xf32, #tpu.memory_space<vmem>>, %arg3: memref<1x128xf32, #tpu.memory_space<vmem>>, %arg4: memref<1x128xf32, #tpu.memory_space<vmem>>, %arg5: memref<2x2x2x128xbf16, #tpu.memory_space<vmem>>) attributes {dimension_semantics = [#tpu.dimension_semantics<arbitrary>], iteration_bounds = array<i64: 1>, scalar_prefetch = 0 : i64, scratch_operands = 0 : i64, tpu.core_type = #tpu.core_type<tc>, window_params = [{pipeline_mode = #tpu.pipeline_mode<synchronous>, transform_indices = @transform_0, window_bounds = array<i64: 2, 4, 4, 128>}, {pipeline_mode = #tpu.pipeline_mode<synchronous>, transform_indices = @transform_1, window_bounds = array<i64: 9, 128>}, {pipeline_mode = #tpu.pipeline_mode<synchronous>, transform_indices = @transform_2, window_bounds = array<i64: 1, 128>}, {pipeline_mode = #tpu.pipeline_mode<synchronous>, transform_indices = @transform_3, window_bounds = array<i64: 1, 128>}, {pipeline_mode = #tpu.pipeline_mode<synchronous>, transform_indices = @transform_4, window_bounds = array<i64: 2, 2, 2, 128>}]} {
    %c0 = arith.constant 0 : index
    %c0_0 = arith.constant 0 : index
    %0 = vector.load %arg2[%c0, %c0_0] : memref<9x128xf32, #tpu.memory_space<vmem>>, vector<9x128xf32>
    %c0_1 = arith.constant 0 : index
    %c0_2 = arith.constant 0 : index
    %c0_3 = arith.constant 0 : index
    %c0_4 = arith.constant 0 : index
    %1 = vector.load %arg1[%c0_1, %c0_2, %c0_3, %c0_4] : memref<2x4x4x128xbf16, #tpu.memory_space<vmem>>, vector<2x2x2x128xbf16>
    %2 = arith.extf %1 : vector<2x2x2x128xbf16> to vector<2x2x2x128xf32>
    %3 = vector.extract_strided_slice %0 {offsets = [0, 0], sizes = [1, 128], strides = [1, 1]} : vector<9x128xf32> to vector<1x128xf32>
    %4 = vector.shape_cast %3 : vector<1x128xf32> to vector<128xf32>
    %5 = vector.shape_cast %4 : vector<128xf32> to vector<1x1x1x128xf32>
    %6 = vector.broadcast %5 : vector<1x1x1x128xf32> to vector<2x2x2x128xf32>
    %7 = arith.mulf %2, %6 : vector<2x2x2x128xf32>
    %c0_5 = arith.constant 0 : index
    %c0_6 = arith.constant 0 : index
    %c1 = arith.constant 1 : index
    %c0_7 = arith.constant 0 : index
    %8 = vector.load %arg1[%c0_5, %c0_6, %c1, %c0_7] : memref<2x4x4x128xbf16, #tpu.memory_space<vmem>>, vector<2x2x2x128xbf16>
    %9 = arith.extf %8 : vector<2x2x2x128xbf16> to vector<2x2x2x128xf32>
    %10 = vector.extract_strided_slice %0 {offsets = [1, 0], sizes = [1, 128], strides = [1, 1]} : vector<9x128xf32> to vector<1x128xf32>
    %11 = vector.shape_cast %10 : vector<1x128xf32> to vector<128xf32>
    %12 = vector.shape_cast %11 : vector<128xf32> to vector<1x1x1x128xf32>
    %13 = vector.broadcast %12 : vector<1x1x1x128xf32> to vector<2x2x2x128xf32>
    %14 = arith.mulf %9, %13 : vector<2x2x2x128xf32>
    %c0_8 = arith.constant 0 : index
    %c0_9 = arith.constant 0 : index
    %c2 = arith.constant 2 : index
    %c0_10 = arith.constant 0 : index
    %15 = vector.load %arg1[%c0_8, %c0_9, %c2, %c0_10] : memref<2x4x4x128xbf16, #tpu.memory_space<vmem>>, vector<2x2x2x128xbf16>
    %16 = arith.extf %15 : vector<2x2x2x128xbf16> to vector<2x2x2x128xf32>
    %17 = vector.extract_strided_slice %0 {offsets = [2, 0], sizes = [1, 128], strides = [1, 1]} : vector<9x128xf32> to vector<1x128xf32>
    %18 = vector.shape_cast %17 : vector<1x128xf32> to vector<128xf32>
    %19 = vector.shape_cast %18 : vector<128xf32> to vector<1x1x1x128xf32>
    %20 = vector.broadcast %19 : vector<1x1x1x128xf32> to vector<2x2x2x128xf32>
    %21 = arith.mulf %16, %20 : vector<2x2x2x128xf32>
    %c0_11 = arith.constant 0 : index
    %c1_12 = arith.constant 1 : index
    %c0_13 = arith.constant 0 : index
    %c0_14 = arith.constant 0 : index
    %22 = vector.load %arg1[%c0_11, %c1_12, %c0_13, %c0_14] : memref<2x4x4x128xbf16, #tpu.memory_space<vmem>>, vector<2x2x2x128xbf16>
    %23 = arith.extf %22 : vector<2x2x2x128xbf16> to vector<2x2x2x128xf32>
    %24 = vector.extract_strided_slice %0 {offsets = [3, 0], sizes = [1, 128], strides = [1, 1]} : vector<9x128xf32> to vector<1x128xf32>
    %25 = vector.shape_cast %24 : vector<1x128xf32> to vector<128xf32>
    %26 = vector.shape_cast %25 : vector<128xf32> to vector<1x1x1x128xf32>
    %27 = vector.broadcast %26 : vector<1x1x1x128xf32> to vector<2x2x2x128xf32>
    %28 = arith.mulf %23, %27 : vector<2x2x2x128xf32>
    %c0_15 = arith.constant 0 : index
    %c1_16 = arith.constant 1 : index
    %c1_17 = arith.constant 1 : index
    %c0_18 = arith.constant 0 : index
    %29 = vector.load %arg1[%c0_15, %c1_16, %c1_17, %c0_18] : memref<2x4x4x128xbf16, #tpu.memory_space<vmem>>, vector<2x2x2x128xbf16>
    %30 = arith.extf %29 : vector<2x2x2x128xbf16> to vector<2x2x2x128xf32>
    %31 = vector.extract_strided_slice %0 {offsets = [4, 0], sizes = [1, 128], strides = [1, 1]} : vector<9x128xf32> to vector<1x128xf32>
    %32 = vector.shape_cast %31 : vector<1x128xf32> to vector<128xf32>
    %33 = vector.shape_cast %32 : vector<128xf32> to vector<1x1x1x128xf32>
    %34 = vector.broadcast %33 : vector<1x1x1x128xf32> to vector<2x2x2x128xf32>
    %35 = arith.mulf %30, %34 : vector<2x2x2x128xf32>
    %c0_19 = arith.constant 0 : index
    %c1_20 = arith.constant 1 : index
    %c2_21 = arith.constant 2 : index
    %c0_22 = arith.constant 0 : index
    %36 = vector.load %arg1[%c0_19, %c1_20, %c2_21, %c0_22] : memref<2x4x4x128xbf16, #tpu.memory_space<vmem>>, vector<2x2x2x128xbf16>
    %37 = arith.extf %36 : vector<2x2x2x128xbf16> to vector<2x2x2x128xf32>
    %38 = vector.extract_strided_slice %0 {offsets = [5, 0], sizes = [1, 128], strides = [1, 1]} : vector<9x128xf32> to vector<1x128xf32>
    %39 = vector.shape_cast %38 : vector<1x128xf32> to vector<128xf32>
    %40 = vector.shape_cast %39 : vector<128xf32> to vector<1x1x1x128xf32>
    %41 = vector.broadcast %40 : vector<1x1x1x128xf32> to vector<2x2x2x128xf32>
    %42 = arith.mulf %37, %41 : vector<2x2x2x128xf32>
    %c0_23 = arith.constant 0 : index
    %c2_24 = arith.constant 2 : index
    %c0_25 = arith.constant 0 : index
    %c0_26 = arith.constant 0 : index
    %43 = vector.load %arg1[%c0_23, %c2_24, %c0_25, %c0_26] : memref<2x4x4x128xbf16, #tpu.memory_space<vmem>>, vector<2x2x2x128xbf16>
    %44 = arith.extf %43 : vector<2x2x2x128xbf16> to vector<2x2x2x128xf32>
    %45 = vector.extract_strided_slice %0 {offsets = [6, 0], sizes = [1, 128], strides = [1, 1]} : vector<9x128xf32> to vector<1x128xf32>
    %46 = vector.shape_cast %45 : vector<1x128xf32> to vector<128xf32>
    %47 = vector.shape_cast %46 : vector<128xf32> to vector<1x1x1x128xf32>
    %48 = vector.broadcast %47 : vector<1x1x1x128xf32> to vector<2x2x2x128xf32>
    %49 = arith.mulf %44, %48 : vector<2x2x2x128xf32>
    %c0_27 = arith.constant 0 : index
    %c2_28 = arith.constant 2 : index
    %c1_29 = arith.constant 1 : index
    %c0_30 = arith.constant 0 : index
    %50 = vector.load %arg1[%c0_27, %c2_28, %c1_29, %c0_30] : memref<2x4x4x128xbf16, #tpu.memory_space<vmem>>, vector<2x2x2x128xbf16>
    %51 = arith.extf %50 : vector<2x2x2x128xbf16> to vector<2x2x2x128xf32>
    %52 = vector.extract_strided_slice %0 {offsets = [7, 0], sizes = [1, 128], strides = [1, 1]} : vector<9x128xf32> to vector<1x128xf32>
    %53 = vector.shape_cast %52 : vector<1x128xf32> to vector<128xf32>
    %54 = vector.shape_cast %53 : vector<128xf32> to vector<1x1x1x128xf32>
    %55 = vector.broadcast %54 : vector<1x1x1x128xf32> to vector<2x2x2x128xf32>
    %56 = arith.mulf %51, %55 : vector<2x2x2x128xf32>
    %c0_31 = arith.constant 0 : index
    %c2_32 = arith.constant 2 : index
    %c2_33 = arith.constant 2 : index
    %c0_34 = arith.constant 0 : index
    %57 = vector.load %arg1[%c0_31, %c2_32, %c2_33, %c0_34] : memref<2x4x4x128xbf16, #tpu.memory_space<vmem>>, vector<2x2x2x128xbf16>
    %58 = arith.extf %57 : vector<2x2x2x128xbf16> to vector<2x2x2x128xf32>
    %59 = vector.extract_strided_slice %0 {offsets = [8, 0], sizes = [1, 128], strides = [1, 1]} : vector<9x128xf32> to vector<1x128xf32>
    %60 = vector.shape_cast %59 : vector<1x128xf32> to vector<128xf32>
    %61 = vector.shape_cast %60 : vector<128xf32> to vector<1x1x1x128xf32>
    %62 = vector.broadcast %61 : vector<1x1x1x128xf32> to vector<2x2x2x128xf32>
    %63 = arith.mulf %58, %62 : vector<2x2x2x128xf32>
    %64 = arith.addf %7, %14 : vector<2x2x2x128xf32>
    %65 = arith.addf %21, %28 : vector<2x2x2x128xf32>
    %66 = arith.addf %35, %42 : vector<2x2x2x128xf32>
    %67 = arith.addf %49, %56 : vector<2x2x2x128xf32>
    %68 = arith.addf %64, %65 : vector<2x2x2x128xf32>
    %69 = arith.addf %66, %67 : vector<2x2x2x128xf32>
    %70 = arith.addf %68, %69 : vector<2x2x2x128xf32>
    %71 = arith.addf %70, %63 : vector<2x2x2x128xf32>
    %cst = arith.constant dense<0.000000e+00> : vector<2x2x128xf32>
    %72 = vector.multi_reduction <add>, %71, %cst [0] : vector<2x2x2x128xf32> to vector<2x2x128xf32>
    %73 = vector.shape_cast %72 : vector<2x2x128xf32> to vector<1x2x2x128xf32>
    %cst_35 = arith.constant dense<0.000000e+00> : vector<1x2x128xf32>
    %74 = vector.multi_reduction <add>, %73, %cst_35 [1] : vector<1x2x2x128xf32> to vector<1x2x128xf32>
    %75 = vector.shape_cast %74 : vector<1x2x128xf32> to vector<1x1x2x128xf32>
    %cst_36 = arith.constant dense<0.000000e+00> : vector<1x1x128xf32>
    %76 = vector.multi_reduction <add>, %75, %cst_36 [2] : vector<1x1x2x128xf32> to vector<1x1x128xf32>
    %77 = vector.shape_cast %76 : vector<1x1x128xf32> to vector<1x1x1x128xf32>
    %78 = arith.mulf %71, %71 : vector<2x2x2x128xf32>
    %cst_37 = arith.constant dense<0.000000e+00> : vector<2x2x128xf32>
    %79 = vector.multi_reduction <add>, %78, %cst_37 [0] : vector<2x2x2x128xf32> to vector<2x2x128xf32>
    %80 = vector.shape_cast %79 : vector<2x2x128xf32> to vector<1x2x2x128xf32>
    %cst_38 = arith.constant dense<0.000000e+00> : vector<1x2x128xf32>
    %81 = vector.multi_reduction <add>, %80, %cst_38 [1] : vector<1x2x2x128xf32> to vector<1x2x128xf32>
    %82 = vector.shape_cast %81 : vector<1x2x128xf32> to vector<1x1x2x128xf32>
    %cst_39 = arith.constant dense<0.000000e+00> : vector<1x1x128xf32>
    %83 = vector.multi_reduction <add>, %82, %cst_39 [2] : vector<1x1x2x128xf32> to vector<1x1x128xf32>
    %84 = vector.shape_cast %83 : vector<1x1x128xf32> to vector<1x1x1x128xf32>
    %cst_40 = arith.constant 1.250000e-01 : f32
    %85 = vector.broadcast %cst_40 : f32 to vector<1x1x1x128xf32>
    %86 = arith.mulf %77, %85 : vector<1x1x1x128xf32>
    %cst_41 = arith.constant 1.250000e-01 : f32
    %87 = vector.broadcast %cst_41 : f32 to vector<1x1x1x128xf32>
    %88 = arith.mulf %84, %87 : vector<1x1x1x128xf32>
    %89 = arith.mulf %86, %86 : vector<1x1x1x128xf32>
    %90 = arith.subf %88, %89 : vector<1x1x1x128xf32>
    %cst_42 = arith.constant 0.000000e+00 : f32
    %91 = vector.broadcast %cst_42 : f32 to vector<1x1x1x128xf32>
    %92 = arith.maximumf %90, %91 : vector<1x1x1x128xf32>
    %c0_43 = arith.constant 0 : index
    %c0_44 = arith.constant 0 : index
    %93 = vector.load %arg3[%c0_43, %c0_44] : memref<1x128xf32, #tpu.memory_space<vmem>>, vector<1x128xf32>
    %94 = vector.shape_cast %93 : vector<1x128xf32> to vector<1x1x1x128xf32>
    %cst_45 = arith.constant 9.99999974E-6 : f32
    %95 = vector.broadcast %cst_45 : f32 to vector<1x1x1x128xf32>
    %96 = arith.addf %92, %95 : vector<1x1x1x128xf32>
    %97 = math.rsqrt %96 : vector<1x1x1x128xf32>
    %98 = arith.mulf %94, %97 : vector<1x1x1x128xf32>
    %c0_46 = arith.constant 0 : index
    %c0_47 = arith.constant 0 : index
    %99 = vector.load %arg4[%c0_46, %c0_47] : memref<1x128xf32, #tpu.memory_space<vmem>>, vector<1x128xf32>
    %100 = vector.shape_cast %99 : vector<1x128xf32> to vector<1x1x1x128xf32>
    %101 = arith.mulf %86, %98 : vector<1x1x1x128xf32>
    %102 = arith.subf %100, %101 : vector<1x1x1x128xf32>
    %103 = vector.broadcast %98 : vector<1x1x1x128xf32> to vector<2x2x2x128xf32>
    %104 = arith.mulf %71, %103 : vector<2x2x2x128xf32>
    %105 = vector.broadcast %102 : vector<1x1x1x128xf32> to vector<2x2x2x128xf32>
    %106 = arith.addf %104, %105 : vector<2x2x2x128xf32>
    %107 = arith.truncf %106 : vector<2x2x2x128xf32> to vector<2x2x2x128xbf16>
    %c0_48 = arith.constant 0 : index
    %c0_49 = arith.constant 0 : index
    %c0_50 = arith.constant 0 : index
    %c0_51 = arith.constant 0 : index
    %108 = vector.load %arg5[%c0_48, %c0_49, %c0_50, %c0_51] : memref<2x2x2x128xbf16, #tpu.memory_space<vmem>>, vector<2x2x2x128xbf16>
    tpu.vector_store %arg5[%c0_48, %c0_49, %c0_50, %c0_51], %107 {strides = array<i32>} : memref<2x2x2x128xbf16, #tpu.memory_space<vmem>>, vector<2x2x2x128xbf16>,
    return
  }
  func.func @transform_0(%arg0: i32) -> (i32, i32, i32, i32) {
    %c0_i32 = arith.constant 0 : i32
    %c0_i32_0 = arith.constant 0 : i32
    %c0_i32_1 = arith.constant 0 : i32
    %c0_i32_2 = arith.constant 0 : i32
    %c0_i32_3 = arith.constant 0 : i32
    return %c0_i32, %c0_i32_0, %c0_i32_1, %c0_i32_2 : i32, i32, i32, i32
  }
  func.func @transform_1(%arg0: i32) -> (i32, i32) {
    %c0_i32 = arith.constant 0 : i32
    %c0_i32_0 = arith.constant 0 : i32
    %c0_i32_1 = arith.constant 0 : i32
    return %c0_i32, %c0_i32_0 : i32, i32
  }
  func.func @transform_2(%arg0: i32) -> (i32, i32) {
    %c0_i32 = arith.constant 0 : i32
    %c0_i32_0 = arith.constant 0 : i32
    %c0_i32_1 = arith.constant 0 : i32
    return %c0_i32, %c0_i32_0 : i32, i32
  }
  func.func @transform_3(%arg0: i32) -> (i32, i32) {
    %c0_i32 = arith.constant 0 : i32
    %c0_i32_0 = arith.constant 0 : i32
    %c0_i32_1 = arith.constant 0 : i32
    return %c0_i32, %c0_i32_0 : i32, i32
  }
  func.func @transform_4(%arg0: i32) -> (i32, i32, i32, i32) {
    %c0_i32 = arith.constant 0 : i32
    %c0_i32_0 = arith.constant 0 : i32
    %c0_i32_1 = arith.constant 0 : i32
    %c0_i32_2 = arith.constant 0 : i32
    %c0_i32_3 = arith.constant 0 : i32
    return %c0_i32, %c0_i32_0, %c0_i32_1, %c0_i32_2 : i32, i32, i32, i32
  }
}

module attributes {stable_mosaic.version = 11 : i64} {
  func.func @_matmul_fused_kernel(%arg0: i32, %arg1: memref<8x128xbf16, #tpu.memory_space<vmem>>, %arg2: memref<128x256xbf16, #tpu.memory_space<vmem>>, %arg3: memref<1x256xf32, #tpu.memory_space<vmem>>, %arg4: memref<1x256xf32, #tpu.memory_space<vmem>>, %arg5: memref<8x256xbf16, #tpu.memory_space<vmem>>) attributes {dimension_semantics = [#tpu.dimension_semantics<parallel>], iteration_bounds = array<i64: 5>, scalar_prefetch = 0 : i64, scratch_operands = 0 : i64, tpu.core_type = #tpu.core_type<tc>, window_params = [{pipeline_mode = #tpu.pipeline_mode<synchronous>, transform_indices = @transform_0, window_bounds = array<i64: 8, 128>}, {transform_indices = @transform_1, window_bounds = array<i64: 128, 256>}, {transform_indices = @transform_2, window_bounds = array<i64: 1, 256>}, {transform_indices = @transform_3, window_bounds = array<i64: 1, 256>}, {transform_indices = @transform_4, window_bounds = array<i64: 8, 256>}]} {
    %c0 = arith.constant 0 : index
    %c0_0 = arith.constant 0 : index
    %0 = vector.load %arg1[%c0, %c0_0] : memref<8x128xbf16, #tpu.memory_space<vmem>>, vector<8x128xbf16>
    %c0_1 = arith.constant 0 : index
    %c0_2 = arith.constant 0 : index
    %1 = vector.load %arg2[%c0_1, %c0_2] : memref<128x256xbf16, #tpu.memory_space<vmem>>, vector<128x256xbf16>
    %cst = arith.constant dense<0.000000e+00> : vector<8x256xf32>
    %2 = tpu.matmul %0, %1, %cst {dimension_numbers = #tpu.dot_dimension_numbers<[1], [0], [0], [1], [0, 0, 1, 1], [], []>} : vector<8x128xbf16>, vector<128x256xbf16>, vector<8x256xf32> -> vector<8x256xf32>
    %cst_3 = arith.constant dense<0.000000e+00> : vector<256xf32>
    %3 = vector.multi_reduction <add>, %2, %cst_3 [0] : vector<8x256xf32> to vector<256xf32>
    %4 = vector.shape_cast %3 : vector<256xf32> to vector<1x256xf32>
    %cst_4 = arith.constant 5.000000e-01 : f32
    %5 = vector.broadcast %cst_4 : f32 to vector<1x256xf32>
    %6 = arith.mulf %4, %5 : vector<1x256xf32>
    %7 = arith.mulf %2, %2 : vector<8x256xf32>
    %cst_5 = arith.constant dense<0.000000e+00> : vector<256xf32>
    %8 = vector.multi_reduction <add>, %7, %cst_5 [0] : vector<8x256xf32> to vector<256xf32>
    %9 = vector.shape_cast %8 : vector<256xf32> to vector<1x256xf32>
    %cst_6 = arith.constant 5.000000e-01 : f32
    %10 = vector.broadcast %cst_6 : f32 to vector<1x256xf32>
    %11 = arith.mulf %9, %10 : vector<1x256xf32>
    %12 = arith.mulf %6, %6 : vector<1x256xf32>
    %13 = arith.subf %11, %12 : vector<1x256xf32>
    %cst_7 = arith.constant 0.000000e+00 : f32
    %14 = vector.broadcast %cst_7 : f32 to vector<1x256xf32>
    %15 = arith.maximumf %13, %14 : vector<1x256xf32>
    %c0_8 = arith.constant 0 : index
    %c0_9 = arith.constant 0 : index
    %16 = vector.load %arg3[%c0_8, %c0_9] : memref<1x256xf32, #tpu.memory_space<vmem>>, vector<1x256xf32>
    %cst_10 = arith.constant 9.99999974E-6 : f32
    %17 = vector.broadcast %cst_10 : f32 to vector<1x256xf32>
    %18 = arith.addf %15, %17 : vector<1x256xf32>
    %19 = math.rsqrt %18 : vector<1x256xf32>
    %20 = arith.mulf %16, %19 : vector<1x256xf32>
    %c0_11 = arith.constant 0 : index
    %c0_12 = arith.constant 0 : index
    %21 = vector.load %arg4[%c0_11, %c0_12] : memref<1x256xf32, #tpu.memory_space<vmem>>, vector<1x256xf32>
    %22 = arith.mulf %6, %20 : vector<1x256xf32>
    %23 = arith.subf %21, %22 : vector<1x256xf32>
    %24 = vector.broadcast %20 : vector<1x256xf32> to vector<8x256xf32>
    %25 = arith.mulf %2, %24 : vector<8x256xf32>
    %26 = vector.broadcast %23 : vector<1x256xf32> to vector<8x256xf32>
    %27 = arith.addf %25, %26 : vector<8x256xf32>
    %cst_13 = arith.constant 0.000000e+00 : f32
    %28 = vector.broadcast %cst_13 : f32 to vector<8x256xf32>
    %29 = arith.maximumf %27, %28 : vector<8x256xf32>
    %30 = arith.truncf %29 : vector<8x256xf32> to vector<8x256xbf16>
    %c0_14 = arith.constant 0 : index
    %c0_15 = arith.constant 0 : index
    %31 = vector.load %arg5[%c0_14, %c0_15] : memref<8x256xbf16, #tpu.memory_space<vmem>>, vector<8x256xbf16>
    tpu.vector_store %arg5[%c0_14, %c0_15], %30 {strides = array<i32>} : memref<8x256xbf16, #tpu.memory_space<vmem>>, vector<8x256xbf16>,
    return
  }
  func.func @transform_0(%arg0: i32) -> (i32, i32) {
    %c0_i32 = arith.constant 0 : i32
    %c0_i32_0 = arith.constant 0 : i32
    %c0_i32_1 = arith.constant 0 : i32
    return %c0_i32, %c0_i32_0 : i32, i32
  }
  func.func @transform_1(%arg0: i32) -> (i32, i32) {
    %c0_i32 = arith.constant 0 : i32
    %c0_i32_0 = arith.constant 0 : i32
    return %c0_i32, %arg0 : i32, i32
  }
  func.func @transform_2(%arg0: i32) -> (i32, i32) {
    %c0_i32 = arith.constant 0 : i32
    %c0_i32_0 = arith.constant 0 : i32
    return %c0_i32, %arg0 : i32, i32
  }
  func.func @transform_3(%arg0: i32) -> (i32, i32) {
    %c0_i32 = arith.constant 0 : i32
    %c0_i32_0 = arith.constant 0 : i32
    return %c0_i32, %arg0 : i32, i32
  }
  func.func @transform_4(%arg0: i32) -> (i32, i32) {
    %c0_i32 = arith.constant 0 : i32
    %c0_i32_0 = arith.constant 0 : i32
    return %c0_i32, %arg0 : i32, i32
  }
}

module attributes {stable_mosaic.version = 11 : i64} {
  func.func @_matmul_fused_kernel(%arg0: i32, %arg1: memref<8x1280xbf16, #tpu.memory_space<vmem>>, %arg2: memref<1280x128xbf16, #tpu.memory_space<vmem>>, %arg3: memref<1x128xf32, #tpu.memory_space<vmem>>, %arg4: memref<8x128xbf16, #tpu.memory_space<vmem>>) attributes {dimension_semantics = [#tpu.dimension_semantics<parallel>], iteration_bounds = array<i64: 1>, scalar_prefetch = 0 : i64, scratch_operands = 0 : i64, tpu.core_type = #tpu.core_type<tc>, window_params = [{pipeline_mode = #tpu.pipeline_mode<synchronous>, transform_indices = @transform_0, window_bounds = array<i64: 8, 1280>}, {transform_indices = @transform_1, window_bounds = array<i64: 1280, 128>}, {transform_indices = @transform_2, window_bounds = array<i64: 1, 128>}, {transform_indices = @transform_3, window_bounds = array<i64: 8, 128>}]} {
    %c0 = arith.constant 0 : index
    %c0_0 = arith.constant 0 : index
    %0 = vector.load %arg1[%c0, %c0_0] : memref<8x1280xbf16, #tpu.memory_space<vmem>>, vector<8x1280xbf16>
    %c0_1 = arith.constant 0 : index
    %c0_2 = arith.constant 0 : index
    %1 = vector.load %arg2[%c0_1, %c0_2] : memref<1280x128xbf16, #tpu.memory_space<vmem>>, vector<1280x128xbf16>
    %cst = arith.constant dense<0.000000e+00> : vector<8x128xf32>
    %2 = tpu.matmul %0, %1, %cst {dimension_numbers = #tpu.dot_dimension_numbers<[1], [0], [0], [1], [0, 0, 1, 1], [], []>} : vector<8x1280xbf16>, vector<1280x128xbf16>, vector<8x128xf32> -> vector<8x128xf32>
    %c0_3 = arith.constant 0 : index
    %c0_4 = arith.constant 0 : index
    %3 = vector.load %arg3[%c0_3, %c0_4] : memref<1x128xf32, #tpu.memory_space<vmem>>, vector<1x128xf32>
    %4 = vector.broadcast %3 : vector<1x128xf32> to vector<8x128xf32>
    %5 = arith.addf %2, %4 : vector<8x128xf32>
    %6 = arith.truncf %5 : vector<8x128xf32> to vector<8x128xbf16>
    %c0_5 = arith.constant 0 : index
    %c0_6 = arith.constant 0 : index
    %7 = vector.load %arg4[%c0_5, %c0_6] : memref<8x128xbf16, #tpu.memory_space<vmem>>, vector<8x128xbf16>
    tpu.vector_store %arg4[%c0_5, %c0_6], %6 {strides = array<i32>} : memref<8x128xbf16, #tpu.memory_space<vmem>>, vector<8x128xbf16>,
    return
  }
  func.func @transform_0(%arg0: i32) -> (i32, i32) {
    %c0_i32 = arith.constant 0 : i32
    %c0_i32_0 = arith.constant 0 : i32
    %c0_i32_1 = arith.constant 0 : i32
    return %c0_i32, %c0_i32_0 : i32, i32
  }
  func.func @transform_1(%arg0: i32) -> (i32, i32) {
    %c0_i32 = arith.constant 0 : i32
    %c0_i32_0 = arith.constant 0 : i32
    return %c0_i32, %arg0 : i32, i32
  }
  func.func @transform_2(%arg0: i32) -> (i32, i32) {
    %c0_i32 = arith.constant 0 : i32
    %c0_i32_0 = arith.constant 0 : i32
    return %c0_i32, %arg0 : i32, i32
  }
  func.func @transform_3(%arg0: i32) -> (i32, i32) {
    %c0_i32 = arith.constant 0 : i32
    %c0_i32_0 = arith.constant 0 : i32
    return %c0_i32, %arg0 : i32, i32
  }
}

</mosaic_0001>

<llo_original>
// kernel: _lambda_.30
$region0: #{_lambda_.30}
  #allocation0 [shape = 'u32[]', space=smem, size = 0x4, offset = 0x4, fixed_abs, tag = 'smem constant byte address 0x4 - core index']
  #allocation1 [shape = 'u32[72,128]{1,0:T(1,128)}', space=vmem, size = 0x9000, scoped, tag = 'internal scratch']
  %s0 = inlined_call_operand.vmem [shape: bf16[128,128], index: 0, kind: input, shape index: {}]
  %s1 = inlined_call_operand.vmem [shape: bf16[128,128], index: 1, kind: input, shape index: {}]
  %s2 = inlined_call_operand.vmem [shape: f32[1,128], index: 2, kind: input, shape index: {}]
  %s3 = inlined_call_operand.vmem [shape: f32[1,128], index: 3, kind: input, shape index: {}]
  %s4 = inlined_call_operand.vmem [shape: bf16[128,128], index: 4, kind: output, shape index: {}]
  %s5 = sld [smem:[#allocation0]]
  $region26: #{_lambda_.30} parent=0
    _
  %s7 = ssub.s32 1, %s5
  %s8 = scalar_select 0, %s7, %s5
  // Predicated region
  $region2: #{_lambda_.30} parent=0 // pred_check
    _
  $region3: #{_lambda_.30} parent=0 // pred_check_branch
    %10 = sbr.rel (0) target = $region5
  $region4: #{_lambda_.30} parent=0 // pred_region
    _
  $region5: #{_lambda_.30} parent=0 // pred_fallthru
    _
  // Predicated region
  $region6: #{_lambda_.30} parent=0 // pred_check
    _
  $region7: #{_lambda_.30} parent=0 // pred_check_branch
    %12 = sbr.rel (0) target = $region9
  $region8: #{_lambda_.30} parent=0 // pred_region
    _
  $region9: #{_lambda_.30} parent=0 // pred_fallthru
    _
  // Predicated region
  $region10: #{_lambda_.30} parent=0 // pred_check
    _
  $region11: #{_lambda_.30} parent=0 // pred_check_branch
    %14 = sbr.rel (0) target = $region13
  $region12: #{_lambda_.30} parent=0 // pred_region
    _
  $region13: #{_lambda_.30} parent=0 // pred_fallthru
    _
  // Predicated region
  $region14: #{_lambda_.30} parent=0 // pred_check
    _
  $region15: #{_lambda_.30} parent=0 // pred_check_branch
    %16 = sbr.rel (0) target = $region17
  $region16: #{_lambda_.30} parent=0 // pred_region
    _
  $region17: #{_lambda_.30} parent=0 // pred_fallthru
    _
  %v17 = vld [vmem:[%s0] sm:$0xf]
  %v18 = vld [vmem:[%s0 + $0x4] sm:$0xf]
  %v19 = vld [vmem:[%s0 + $0x8] sm:$0xf]
  %v20 = vld [vmem:[%s0 + $0xc] sm:$0xf]
  %v21 = vld [vmem:[%s0 + $0x10] sm:$0xf]
  %v22 = vld [vmem:[%s0 + $0x14] sm:$0xf]
  %v23 = vld [vmem:[%s0 + $0x18] sm:$0xf]
  %v24 = vld [vmem:[%s0 + $0x1c] sm:$0xf]
  %v25 = vld [vmem:[%s0 + $0x20] sm:$0xf]
  %v26 = vld [vmem:[%s0 + $0x24] sm:$0xf]
  %v27 = vld [vmem:[%s0 + $0x28] sm:$0xf]
  %v28 = vld [vmem:[%s0 + $0x2c] sm:$0xf]
  %v29 = vld [vmem:[%s0 + $0x30] sm:$0xf]
  %v30 = vld [vmem:[%s0 + $0x34] sm:$0xf]
  %v31 = vld [vmem:[%s0 + $0x38] sm:$0xf]
  %v32 = vld [vmem:[%s0 + $0x3c] sm:$0xf]
  %v33 = vld [vmem:[%s1] sm:$0xf]
  %v34 = vld [vmem:[%s1 + $0x4] sm:$0xf]
  %v35 = vld [vmem:[%s1 + $0x8] sm:$0xf]
  %v36 = vld [vmem:[%s1 + $0xc] sm:$0xf]
  %v37 = vld [vmem:[%s1 + $0x10] sm:$0xf]
  %v38 = vld [vmem:[%s1 + $0x14] sm:$0xf]
  %v39 = vld [vmem:[%s1 + $0x18] sm:$0xf]
  %v40 = vld [vmem:[%s1 + $0x1c] sm:$0xf]
  %v41 = vld [vmem:[%s1 + $0x20] sm:$0xf]
  %v42 = vld [vmem:[%s1 + $0x24] sm:$0xf]
  %v43 = vld [vmem:[%s1 + $0x28] sm:$0xf]
  %v44 = vld [vmem:[%s1 + $0x2c] sm:$0xf]
  %v45 = vld [vmem:[%s1 + $0x30] sm:$0xf]
  %v46 = vld [vmem:[%s1 + $0x34] sm:$0xf]
  %v47 = vld [vmem:[%s1 + $0x38] sm:$0xf]
  %v48 = vld [vmem:[%s1 + $0x3c] sm:$0xf]
  %v65 = vunpack.c.l.b16 %v17
  %v66 = vunpack.c.l.b16 %v18
  %v67 = vunpack.c.l.b16 %v19
  %v68 = vunpack.c.l.b16 %v20
  %v69 = vunpack.c.l.b16 %v21
  %v70 = vunpack.c.l.b16 %v22
  %v71 = vunpack.c.l.b16 %v23
  %v72 = vunpack.c.l.b16 %v24
  %v73 = vunpack.c.l.b16 %v25
  %v74 = vunpack.c.l.b16 %v26
  %v75 = vunpack.c.l.b16 %v27
  %v76 = vunpack.c.l.b16 %v28
  %v77 = vunpack.c.l.b16 %v29
  %v78 = vunpack.c.l.b16 %v30
  %v79 = vunpack.c.l.b16 %v31
  %v80 = vunpack.c.l.b16 %v32
  %v81 = vpack.c.b16 %v66, %v65
  %v82 = vpack.c.b16 %v68, %v67
  %v83 = vpack.c.b16 %v70, %v69
  %v84 = vpack.c.b16 %v72, %v71
  %v85 = vpack.c.b16 %v74, %v73
  %v86 = vpack.c.b16 %v76, %v75
  %v87 = vpack.c.b16 %v78, %v77
  %v88 = vpack.c.b16 %v80, %v79
  %v113 = vunpack.c.l.b16 %v33
  %v114 = vunpack.c.l.b16 %v34
  %v115 = vunpack.c.l.b16 %v35
  %v116 = vunpack.c.l.b16 %v36
  %v117 = vunpack.c.l.b16 %v37
  %v118 = vunpack.c.l.b16 %v38
  %v119 = vunpack.c.l.b16 %v39
  %v120 = vunpack.c.l.b16 %v40
  %v121 = vunpack.c.l.b16 %v41
  %v122 = vunpack.c.l.b16 %v42
  %v123 = vunpack.c.l.b16 %v43
  %v124 = vunpack.c.l.b16 %v44
  %v125 = vunpack.c.l.b16 %v45
  %v126 = vunpack.c.l.b16 %v46
  %v127 = vunpack.c.l.b16 %v47
  %v128 = vunpack.c.l.b16 %v48
  %v129 = vpack.c.b16 %v114, %v113
  %v130 = vpack.c.b16 %v116, %v115
  %v131 = vpack.c.b16 %v118, %v117
  %v132 = vpack.c.b16 %v120, %v119
  %v133 = vpack.c.b16 %v122, %v121
  %v134 = vpack.c.b16 %v124, %v123
  %v135 = vpack.c.b16 %v126, %v125
  %v136 = vpack.c.b16 %v128, %v127
  %145 = vmatpush.bf16.msra.mxu0 %v136
  %146 = vmatpush.bf16.msra.mxu0 %v135
  %147 = vmatpush.bf16.msra.mxu0 %v134
  %148 = vmatpush.bf16.msra.mxu0 %v133
  %149 = vmatpush.bf16.msra.mxu0 %v132
  %150 = vmatpush.bf16.msra.mxu0 %v131
  %151 = vmatpush.bf16.msra.mxu0 %v130
  %152 = vmatpush.bf16.msra.mxu0 %v129
  %153 = vmatmul.bf16.gmra.mxu0 %v81
  %v154 = vpop.f32.mrf.mxu0
  %v155 = vadd.f32 0.0, %v154
  %v156 = vpop.f32.mrf.mxu0
  %v157 = vadd.f32 0.0, %v156
  %158 = vmatmul.bf16.gmra.mxu0 %v82
  %v159 = vpop.f32.mrf.mxu0
  %v160 = vadd.f32 0.0, %v159
  %v161 = vpop.f32.mrf.mxu0
  %v162 = vadd.f32 0.0, %v161
  %163 = vmatmul.bf16.gmra.mxu0 %v83
  %v164 = vpop.f32.mrf.mxu0
  %v165 = vadd.f32 0.0, %v164
  %v166 = vpop.f32.mrf.mxu0
  %v167 = vadd.f32 0.0, %v166
  %168 = vmatmul.bf16.gmra.mxu0 %v84
  %v169 = vpop.f32.mrf.mxu0
  %v170 = vadd.f32 0.0, %v169
  %v171 = vpop.f32.mrf.mxu0
  %v172 = vadd.f32 0.0, %v171
  %173 = vmatmul.bf16.gmra.mxu0 %v85
  %v174 = vpop.f32.mrf.mxu0
  %v175 = vadd.f32 0.0, %v174
  %v176 = vpop.f32.mrf.mxu0
  %v177 = vadd.f32 0.0, %v176
  %178 = vmatmul.bf16.gmra.mxu0 %v86
  %v179 = vpop.f32.mrf.mxu0
  %v180 = vadd.f32 0.0, %v179
  %v181 = vpop.f32.mrf.mxu0
  %v182 = vadd.f32 0.0, %v181
  %183 = vmatmul.bf16.gmra.mxu0 %v87
  %v184 = vpop.f32.mrf.mxu0
  %v185 = vadd.f32 0.0, %v184
  %v186 = vpop.f32.mrf.mxu0
  %v187 = vadd.f32 0.0, %v186
  %188 = vmatmul.bf16.gmra.mxu0 %v88
  %v189 = vpop.f32.mrf.mxu0
  %v190 = vadd.f32 0.0, %v189
  %v191 = vpop.f32.mrf.mxu0
  %v192 = vadd.f32 0.0, %v191
  %193 = vdwg.mxu0
  %v194 = vadd.f32 %v155, %v157
  %v195 = vadd.f32 %v194, %v160
  %v196 = vadd.f32 %v195, %v162
  %v197 = vadd.f32 %v196, %v165
  %v198 = vadd.f32 %v197, %v167
  %v199 = vadd.f32 %v198, %v170
  %v200 = vadd.f32 %v199, %v172
  %v201 = vadd.f32 %v200, %v175
  %v202 = vadd.f32 %v201, %v177
  %v203 = vadd.f32 %v202, %v180
  %v204 = vadd.f32 %v203, %v182
  %v205 = vadd.f32 %v204, %v185
  %v206 = vadd.f32 %v205, %v187
  %v207 = vadd.f32 %v206, %v190
  %v208 = vadd.f32 %v207, %v192
  %v209 = vrot.slane %v208, 4
  %v210 = vadd.f32 %v208, %v209
  %v211 = vrot.slane %v210, 2
  %v212 = vadd.f32 %v210, %v211
  %v213 = vrot.slane %v212, 1
  %v214 = vadd.f32 %v212, %v213
  %v215 = vmul.f32 %v214, 0.0078125
  %v216 = vmul.f32 %v155, %v155
  %v217 = vmul.f32 %v157, %v157
  %v218 = vmul.f32 %v160, %v160
  %v219 = vmul.f32 %v162, %v162
  %v220 = vmul.f32 %v165, %v165
  %v221 = vmul.f32 %v167, %v167
  %v222 = vmul.f32 %v170, %v170
  %v223 = vmul.f32 %v172, %v172
  %v224 = vmul.f32 %v175, %v175
  %v225 = vmul.f32 %v177, %v177
  %v226 = vmul.f32 %v180, %v180
  %v227 = vmul.f32 %v182, %v182
  %v228 = vmul.f32 %v185, %v185
  %v229 = vmul.f32 %v187, %v187
  %v230 = vmul.f32 %v190, %v190
  %v231 = vmul.f32 %v192, %v192
  %v232 = vadd.f32 %v216, %v217
  %v233 = vadd.f32 %v232, %v218
  %v234 = vadd.f32 %v233, %v219
  %v235 = vadd.f32 %v234, %v220
  %v236 = vadd.f32 %v235, %v221
  %v237 = vadd.f32 %v236, %v222
  %v238 = vadd.f32 %v237, %v223
  %v239 = vadd.f32 %v238, %v224
  %v240 = vadd.f32 %v239, %v225
  %v241 = vadd.f32 %v240, %v226
  %v242 = vadd.f32 %v241, %v227
  %v243 = vadd.f32 %v242, %v228
  %v244 = vadd.f32 %v243, %v229
  %v245 = vadd.f32 %v244, %v230
  %v246 = vadd.f32 %v245, %v231
  %v247 = vrot.slane %v246, 4
  %v248 = vadd.f32 %v246, %v247
  %v249 = vrot.slane %v248, 2
  %v250 = vadd.f32 %v248, %v249
  %v251 = vrot.slane %v250, 1
  %v252 = vadd.f32 %v250, %v251
  %v253 = vmul.f32 %v252, 0.0078125
  %v254 = vmul.f32 %v215, %v215
  %v255 = vsub.f32 %v253, %v254
  %v256 = vmax.f32 %v255, 0.0
  %v257 = vld [vmem:[%s2] sm:$0x1]
  %v258 = vadd.f32 %v256, 1e-05
  %v259 = vrsqrt.pop %v258
  %v260 = vmul.f32 %v259, %v258
  %v261 = vmul.f32 %v260, %v259
  %v262 = vmul.f32 0.5, %v261
  %v263 = vsub.f32 1.5, %v262
  %v264 = vmul.f32 %v259, %v263
  %vm265 = vweird.f32 %v258
  %vm266 = vweird.f32 %v259
  %vm267 = vmor %vm265, %vm266
  %v268 = vsel %vm267, %v259, %v264
  %v269 = vmul.f32 %v257, %v268
  %v270 = vld [vmem:[%s3] sm:$0x1]
  %v271 = vmul.f32 %v215, %v269
  %v272 = vsub.f32 %v270, %v271
  %v274 = vperm.slane %v269, 0
  %v276 = vmul.f32 %v155, %v274
  %v277 = vmul.f32 %v157, %v274
  %v278 = vmul.f32 %v160, %v274
  %v279 = vmul.f32 %v162, %v274
  %v280 = vmul.f32 %v165, %v274
  %v281 = vmul.f32 %v167, %v274
  %v282 = vmul.f32 %v170, %v274
  %v283 = vmul.f32 %v172, %v274
  %v284 = vmul.f32 %v175, %v274
  %v285 = vmul.f32 %v177, %v274
  %v286 = vmul.f32 %v180, %v274
  %v287 = vmul.f32 %v182, %v274
  %v288 = vmul.f32 %v185, %v274
  %v289 = vmul.f32 %v187, %v274
  %v290 = vmul.f32 %v190, %v274
  %v291 = vmul.f32 %v192, %v274
  %v293 = vperm.slane %v272, 0
  %v295 = vadd.f32 %v276, %v293
  %v296 = vadd.f32 %v277, %v293
  %v297 = vadd.f32 %v278, %v293
  %v298 = vadd.f32 %v279, %v293
  %v299 = vadd.f32 %v280, %v293
  %v300 = vadd.f32 %v281, %v293
  %v301 = vadd.f32 %v282, %v293
  %v302 = vadd.f32 %v283, %v293
  %v303 = vadd.f32 %v284, %v293
  %v304 = vadd.f32 %v285, %v293
  %v305 = vadd.f32 %v286, %v293
  %v306 = vadd.f32 %v287, %v293
  %v307 = vadd.f32 %v288, %v293
  %v308 = vadd.f32 %v289, %v293
  %v309 = vadd.f32 %v290, %v293
  %v310 = vadd.f32 %v291, %v293
  %v311 = vpack.c.bf16 %v295, %v295
  %v312 = vpack.c.bf16 %v296, %v296
  %v313 = vpack.c.bf16 %v297, %v297
  %v314 = vpack.c.bf16 %v298, %v298
  %v315 = vpack.c.bf16 %v299, %v299
  %v316 = vpack.c.bf16 %v300, %v300
  %v317 = vpack.c.bf16 %v301, %v301
  %v318 = vpack.c.bf16 %v302, %v302
  %v319 = vpack.c.bf16 %v303, %v303
  %v320 = vpack.c.bf16 %v304, %v304
  %v321 = vpack.c.bf16 %v305, %v305
  %v322 = vpack.c.bf16 %v306, %v306
  %v323 = vpack.c.bf16 %v307, %v307
  %v324 = vpack.c.bf16 %v308, %v308
  %v325 = vpack.c.bf16 %v309, %v309
  %v326 = vpack.c.bf16 %v310, %v310
  %327 = vst [vmem:[%s4] sm:$0xf] %v311
  %328 = vst [vmem:[%s4 + $0x4] sm:$0xf] %v312
  %329 = vst [vmem:[%s4 + $0x8] sm:$0xf] %v313
  %330 = vst [vmem:[%s4 + $0xc] sm:$0xf] %v314
  %331 = vst [vmem:[%s4 + $0x10] sm:$0xf] %v315
  %332 = vst [vmem:[%s4 + $0x14] sm:$0xf] %v316
  %333 = vst [vmem:[%s4 + $0x18] sm:$0xf] %v317
  %334 = vst [vmem:[%s4 + $0x1c] sm:$0xf] %v318
  %335 = vst [vmem:[%s4 + $0x20] sm:$0xf] %v319
  %336 = vst [vmem:[%s4 + $0x24] sm:$0xf] %v320
  %337 = vst [vmem:[%s4 + $0x28] sm:$0xf] %v321
  %338 = vst [vmem:[%s4 + $0x2c] sm:$0xf] %v322
  %339 = vst [vmem:[%s4 + $0x30] sm:$0xf] %v323
  %340 = vst [vmem:[%s4 + $0x34] sm:$0xf] %v324
  %341 = vst [vmem:[%s4 + $0x38] sm:$0xf] %v325
  %342 = vst [vmem:[%s4 + $0x3c] sm:$0xf] %v326
  // Predicated region
  $region18: #{_lambda_.30} parent=0 // pred_check
    _
  $region19: #{_lambda_.30} parent=0 // pred_check_branch
    %344 = sbr.rel (0) target = $region21
  $region20: #{_lambda_.30} parent=0 // pred_region
    _
  $region21: #{_lambda_.30} parent=0 // pred_fallthru
    _
  // Predicated region
  $region22: #{_lambda_.30} parent=0 // pred_check
    _
  $region23: #{_lambda_.30} parent=0 // pred_check_branch
    %346 = sbr.rel (0) target = $region25
  $region24: #{_lambda_.30} parent=0 // pred_region
    _
  $region25: #{_lambda_.30} parent=0 // pred_fallthru
    _

// kernel: _lambda_.27
$region0: #{_lambda_.27}
  #allocation0 [shape = 'u32[]', space=smem, size = 0x4, offset = 0x4, fixed_abs, tag = 'smem constant byte address 0x4 - core index']
  #allocation1 [shape = 'u32[72,128]{1,0:T(1,128)}', space=vmem, size = 0x9000, scoped, tag = 'internal scratch']
  %s0 = inlined_call_operand.vmem [shape: bf16[128,128], index: 0, kind: input, shape index: {}]
  %s1 = inlined_call_operand.vmem [shape: bf16[128,128], index: 1, kind: input, shape index: {}]
  %s2 = inlined_call_operand.vmem [shape: f32[1,128], index: 2, kind: input, shape index: {}]
  %s3 = inlined_call_operand.vmem [shape: f32[1,128], index: 3, kind: input, shape index: {}]
  %s4 = inlined_call_operand.vmem [shape: bf16[128,128], index: 4, kind: output, shape index: {}]
  %s5 = sld [smem:[#allocation0]]
  $region26: #{_lambda_.27} parent=0
    _
  %s7 = ssub.s32 1, %s5
  %s8 = scalar_select 0, %s7, %s5
  // Predicated region
  $region2: #{_lambda_.27} parent=0 // pred_check
    _
  $region3: #{_lambda_.27} parent=0 // pred_check_branch
    %10 = sbr.rel (0) target = $region5
  $region4: #{_lambda_.27} parent=0 // pred_region
    _
  $region5: #{_lambda_.27} parent=0 // pred_fallthru
    _
  // Predicated region
  $region6: #{_lambda_.27} parent=0 // pred_check
    _
  $region7: #{_lambda_.27} parent=0 // pred_check_branch
    %12 = sbr.rel (0) target = $region9
  $region8: #{_lambda_.27} parent=0 // pred_region
    _
  $region9: #{_lambda_.27} parent=0 // pred_fallthru
    _
  // Predicated region
  $region10: #{_lambda_.27} parent=0 // pred_check
    _
  $region11: #{_lambda_.27} parent=0 // pred_check_branch
    %14 = sbr.rel (0) target = $region13
  $region12: #{_lambda_.27} parent=0 // pred_region
    _
  $region13: #{_lambda_.27} parent=0 // pred_fallthru
    _
  // Predicated region
  $region14: #{_lambda_.27} parent=0 // pred_check
    _
  $region15: #{_lambda_.27} parent=0 // pred_check_branch
    %16 = sbr.rel (0) target = $region17
  $region16: #{_lambda_.27} parent=0 // pred_region
    _
  $region17: #{_lambda_.27} parent=0 // pred_fallthru
    _
  %v17 = vld [vmem:[%s0] sm:$0xf]
  %v18 = vld [vmem:[%s0 + $0x4] sm:$0xf]
  %v19 = vld [vmem:[%s0 + $0x8] sm:$0xf]
  %v20 = vld [vmem:[%s0 + $0xc] sm:$0xf]
  %v21 = vld [vmem:[%s0 + $0x10] sm:$0xf]
  %v22 = vld [vmem:[%s0 + $0x14] sm:$0xf]
  %v23 = vld [vmem:[%s0 + $0x18] sm:$0xf]
  %v24 = vld [vmem:[%s0 + $0x1c] sm:$0xf]
  %v25 = vld [vmem:[%s0 + $0x20] sm:$0xf]
  %v26 = vld [vmem:[%s0 + $0x24] sm:$0xf]
  %v27 = vld [vmem:[%s0 + $0x28] sm:$0xf]
  %v28 = vld [vmem:[%s0 + $0x2c] sm:$0xf]
  %v29 = vld [vmem:[%s0 + $0x30] sm:$0xf]
  %v30 = vld [vmem:[%s0 + $0x34] sm:$0xf]
  %v31 = vld [vmem:[%s0 + $0x38] sm:$0xf]
  %v32 = vld [vmem:[%s0 + $0x3c] sm:$0xf]
  %v33 = vld [vmem:[%s1] sm:$0xf]
  %v34 = vld [vmem:[%s1 + $0x4] sm:$0xf]
  %v35 = vld [vmem:[%s1 + $0x8] sm:$0xf]
  %v36 = vld [vmem:[%s1 + $0xc] sm:$0xf]
  %v37 = vld [vmem:[%s1 + $0x10] sm:$0xf]
  %v38 = vld [vmem:[%s1 + $0x14] sm:$0xf]
  %v39 = vld [vmem:[%s1 + $0x18] sm:$0xf]
  %v40 = vld [vmem:[%s1 + $0x1c] sm:$0xf]
  %v41 = vld [vmem:[%s1 + $0x20] sm:$0xf]
  %v42 = vld [vmem:[%s1 + $0x24] sm:$0xf]
  %v43 = vld [vmem:[%s1 + $0x28] sm:$0xf]
  %v44 = vld [vmem:[%s1 + $0x2c] sm:$0xf]
  %v45 = vld [vmem:[%s1 + $0x30] sm:$0xf]
  %v46 = vld [vmem:[%s1 + $0x34] sm:$0xf]
  %v47 = vld [vmem:[%s1 + $0x38] sm:$0xf]
  %v48 = vld [vmem:[%s1 + $0x3c] sm:$0xf]
  %v65 = vunpack.c.l.b16 %v17
  %v66 = vunpack.c.l.b16 %v18
  %v67 = vunpack.c.l.b16 %v19
  %v68 = vunpack.c.l.b16 %v20
  %v69 = vunpack.c.l.b16 %v21
  %v70 = vunpack.c.l.b16 %v22
  %v71 = vunpack.c.l.b16 %v23
  %v72 = vunpack.c.l.b16 %v24
  %v73 = vunpack.c.l.b16 %v25
  %v74 = vunpack.c.l.b16 %v26
  %v75 = vunpack.c.l.b16 %v27
  %v76 = vunpack.c.l.b16 %v28
  %v77 = vunpack.c.l.b16 %v29
  %v78 = vunpack.c.l.b16 %v30
  %v79 = vunpack.c.l.b16 %v31
  %v80 = vunpack.c.l.b16 %v32
  %v81 = vpack.c.b16 %v66, %v65
  %v82 = vpack.c.b16 %v68, %v67
  %v83 = vpack.c.b16 %v70, %v69
  %v84 = vpack.c.b16 %v72, %v71
  %v85 = vpack.c.b16 %v74, %v73
  %v86 = vpack.c.b16 %v76, %v75
  %v87 = vpack.c.b16 %v78, %v77
  %v88 = vpack.c.b16 %v80, %v79
  %v113 = vunpack.c.l.b16 %v33
  %v114 = vunpack.c.l.b16 %v34
  %v115 = vunpack.c.l.b16 %v35
  %v116 = vunpack.c.l.b16 %v36
  %v117 = vunpack.c.l.b16 %v37
  %v118 = vunpack.c.l.b16 %v38
  %v119 = vunpack.c.l.b16 %v39
  %v120 = vunpack.c.l.b16 %v40
  %v121 = vunpack.c.l.b16 %v41
  %v122 = vunpack.c.l.b16 %v42
  %v123 = vunpack.c.l.b16 %v43
  %v124 = vunpack.c.l.b16 %v44
  %v125 = vunpack.c.l.b16 %v45
  %v126 = vunpack.c.l.b16 %v46
  %v127 = vunpack.c.l.b16 %v47
  %v128 = vunpack.c.l.b16 %v48
  %v129 = vpack.c.b16 %v114, %v113
  %v130 = vpack.c.b16 %v116, %v115
  %v131 = vpack.c.b16 %v118, %v117
  %v132 = vpack.c.b16 %v120, %v119
  %v133 = vpack.c.b16 %v122, %v121
  %v134 = vpack.c.b16 %v124, %v123
  %v135 = vpack.c.b16 %v126, %v125
  %v136 = vpack.c.b16 %v128, %v127
  %145 = vmatpush.bf16.msra.mxu0 %v136
  %146 = vmatpush.bf16.msra.mxu0 %v135
  %147 = vmatpush.bf16.msra.mxu0 %v134
  %148 = vmatpush.bf16.msra.mxu0 %v133
  %149 = vmatpush.bf16.msra.mxu0 %v132
  %150 = vmatpush.bf16.msra.mxu0 %v131
  %151 = vmatpush.bf16.msra.mxu0 %v130
  %152 = vmatpush.bf16.msra.mxu0 %v129
  %153 = vmatmul.bf16.gmra.mxu0 %v81
  %v154 = vpop.f32.mrf.mxu0
  %v155 = vadd.f32 0.0, %v154
  %v156 = vpop.f32.mrf.mxu0
  %v157 = vadd.f32 0.0, %v156
  %158 = vmatmul.bf16.gmra.mxu0 %v82
  %v159 = vpop.f32.mrf.mxu0
  %v160 = vadd.f32 0.0, %v159
  %v161 = vpop.f32.mrf.mxu0
  %v162 = vadd.f32 0.0, %v161
  %163 = vmatmul.bf16.gmra.mxu0 %v83
  %v164 = vpop.f32.mrf.mxu0
  %v165 = vadd.f32 0.0, %v164
  %v166 = vpop.f32.mrf.mxu0
  %v167 = vadd.f32 0.0, %v166
  %168 = vmatmul.bf16.gmra.mxu0 %v84
  %v169 = vpop.f32.mrf.mxu0
  %v170 = vadd.f32 0.0, %v169
  %v171 = vpop.f32.mrf.mxu0
  %v172 = vadd.f32 0.0, %v171
  %173 = vmatmul.bf16.gmra.mxu0 %v85
  %v174 = vpop.f32.mrf.mxu0
  %v175 = vadd.f32 0.0, %v174
  %v176 = vpop.f32.mrf.mxu0
  %v177 = vadd.f32 0.0, %v176
  %178 = vmatmul.bf16.gmra.mxu0 %v86
  %v179 = vpop.f32.mrf.mxu0
  %v180 = vadd.f32 0.0, %v179
  %v181 = vpop.f32.mrf.mxu0
  %v182 = vadd.f32 0.0, %v181
  %183 = vmatmul.bf16.gmra.mxu0 %v87
  %v184 = vpop.f32.mrf.mxu0
  %v185 = vadd.f32 0.0, %v184
  %v186 = vpop.f32.mrf.mxu0
  %v187 = vadd.f32 0.0, %v186
  %188 = vmatmul.bf16.gmra.mxu0 %v88
  %v189 = vpop.f32.mrf.mxu0
  %v190 = vadd.f32 0.0, %v189
  %v191 = vpop.f32.mrf.mxu0
  %v192 = vadd.f32 0.0, %v191
  %193 = vdwg.mxu0
  %v194 = vadd.f32 %v155, %v157
  %v195 = vadd.f32 %v194, %v160
  %v196 = vadd.f32 %v195, %v162
  %v197 = vadd.f32 %v196, %v165
  %v198 = vadd.f32 %v197, %v167
  %v199 = vadd.f32 %v198, %v170
  %v200 = vadd.f32 %v199, %v172
  %v201 = vadd.f32 %v200, %v175
  %v202 = vadd.f32 %v201, %v177
  %v203 = vadd.f32 %v202, %v180
  %v204 = vadd.f32 %v203, %v182
  %v205 = vadd.f32 %v204, %v185
  %v206 = vadd.f32 %v205, %v187
  %v207 = vadd.f32 %v206, %v190
  %v208 = vadd.f32 %v207, %v192
  %v209 = vrot.slane %v208, 4
  %v210 = vadd.f32 %v208, %v209
  %v211 = vrot.slane %v210, 2
  %v212 = vadd.f32 %v210, %v211
  %v213 = vrot.slane %v212, 1
  %v214 = vadd.f32 %v212, %v213
  %v215 = vmul.f32 %v214, 0.0078125
  %v216 = vmul.f32 %v155, %v155
  %v217 = vmul.f32 %v157, %v157
  %v218 = vmul.f32 %v160, %v160
  %v219 = vmul.f32 %v162, %v162
  %v220 = vmul.f32 %v165, %v165
  %v221 = vmul.f32 %v167, %v167
  %v222 = vmul.f32 %v170, %v170
  %v223 = vmul.f32 %v172, %v172
  %v224 = vmul.f32 %v175, %v175
  %v225 = vmul.f32 %v177, %v177
  %v226 = vmul.f32 %v180, %v180
  %v227 = vmul.f32 %v182, %v182
  %v228 = vmul.f32 %v185, %v185
  %v229 = vmul.f32 %v187, %v187
  %v230 = vmul.f32 %v190, %v190
  %v231 = vmul.f32 %v192, %v192
  %v232 = vadd.f32 %v216, %v217
  %v233 = vadd.f32 %v232, %v218
  %v234 = vadd.f32 %v233, %v219
  %v235 = vadd.f32 %v234, %v220
  %v236 = vadd.f32 %v235, %v221
  %v237 = vadd.f32 %v236, %v222
  %v238 = vadd.f32 %v237, %v223
  %v239 = vadd.f32 %v238, %v224
  %v240 = vadd.f32 %v239, %v225
  %v241 = vadd.f32 %v240, %v226
  %v242 = vadd.f32 %v241, %v227
  %v243 = vadd.f32 %v242, %v228
  %v244 = vadd.f32 %v243, %v229
  %v245 = vadd.f32 %v244, %v230
  %v246 = vadd.f32 %v245, %v231
  %v247 = vrot.slane %v246, 4
  %v248 = vadd.f32 %v246, %v247
  %v249 = vrot.slane %v248, 2
  %v250 = vadd.f32 %v248, %v249
  %v251 = vrot.slane %v250, 1
  %v252 = vadd.f32 %v250, %v251
  %v253 = vmul.f32 %v252, 0.0078125
  %v254 = vmul.f32 %v215, %v215
  %v255 = vsub.f32 %v253, %v254
  %v256 = vmax.f32 %v255, 0.0
  %v257 = vld [vmem:[%s2] sm:$0x1]
  %v258 = vadd.f32 %v256, 1e-05
  %v259 = vrsqrt.pop %v258
  %v260 = vmul.f32 %v259, %v258
  %v261 = vmul.f32 %v260, %v259
  %v262 = vmul.f32 0.5, %v261
  %v263 = vsub.f32 1.5, %v262
  %v264 = vmul.f32 %v259, %v263
  %vm265 = vweird.f32 %v258
  %vm266 = vweird.f32 %v259
  %vm267 = vmor %vm265, %vm266
  %v268 = vsel %vm267, %v259, %v264
  %v269 = vmul.f32 %v257, %v268
  %v270 = vld [vmem:[%s3] sm:$0x1]
  %v271 = vmul.f32 %v215, %v269
  %v272 = vsub.f32 %v270, %v271
  %v274 = vperm.slane %v269, 0
  %v276 = vmul.f32 %v155, %v274
  %v277 = vmul.f32 %v157, %v274
  %v278 = vmul.f32 %v160, %v274
  %v279 = vmul.f32 %v162, %v274
  %v280 = vmul.f32 %v165, %v274
  %v281 = vmul.f32 %v167, %v274
  %v282 = vmul.f32 %v170, %v274
  %v283 = vmul.f32 %v172, %v274
  %v284 = vmul.f32 %v175, %v274
  %v285 = vmul.f32 %v177, %v274
  %v286 = vmul.f32 %v180, %v274
  %v287 = vmul.f32 %v182, %v274
  %v288 = vmul.f32 %v185, %v274
  %v289 = vmul.f32 %v187, %v274
  %v290 = vmul.f32 %v190, %v274
  %v291 = vmul.f32 %v192, %v274
  %v293 = vperm.slane %v272, 0
  %v295 = vadd.f32 %v276, %v293
  %v296 = vadd.f32 %v277, %v293
  %v297 = vadd.f32 %v278, %v293
  %v298 = vadd.f32 %v279, %v293
  %v299 = vadd.f32 %v280, %v293
  %v300 = vadd.f32 %v281, %v293
  %v301 = vadd.f32 %v282, %v293
  %v302 = vadd.f32 %v283, %v293
  %v303 = vadd.f32 %v284, %v293
  %v304 = vadd.f32 %v285, %v293
  %v305 = vadd.f32 %v286, %v293
  %v306 = vadd.f32 %v287, %v293
  %v307 = vadd.f32 %v288, %v293
  %v308 = vadd.f32 %v289, %v293
  %v309 = vadd.f32 %v290, %v293
  %v310 = vadd.f32 %v291, %v293
  %v311 = vmax.f32 %v295, 0.0
  %v312 = vmax.f32 %v296, 0.0
  %v313 = vmax.f32 %v297, 0.0
  %v314 = vmax.f32 %v298, 0.0
  %v315 = vmax.f32 %v299, 0.0
  %v316 = vmax.f32 %v300, 0.0
  %v317 = vmax.f32 %v301, 0.0
  %v318 = vmax.f32 %v302, 0.0
  %v319 = vmax.f32 %v303, 0.0
  %v320 = vmax.f32 %v304, 0.0
  %v321 = vmax.f32 %v305, 0.0
  %v322 = vmax.f32 %v306, 0.0
  %v323 = vmax.f32 %v307, 0.0
  %v324 = vmax.f32 %v308, 0.0
  %v325 = vmax.f32 %v309, 0.0
  %v326 = vmax.f32 %v310, 0.0
  %v327 = vpack.c.bf16 %v311, %v311
  %v328 = vpack.c.bf16 %v312, %v312
  %v329 = vpack.c.bf16 %v313, %v313
  %v330 = vpack.c.bf16 %v314, %v314
  %v331 = vpack.c.bf16 %v315, %v315
  %v332 = vpack.c.bf16 %v316, %v316
  %v333 = vpack.c.bf16 %v317, %v317
  %v334 = vpack.c.bf16 %v318, %v318
  %v335 = vpack.c.bf16 %v319, %v319
  %v336 = vpack.c.bf16 %v320, %v320
  %v337 = vpack.c.bf16 %v321, %v321
  %v338 = vpack.c.bf16 %v322, %v322
  %v339 = vpack.c.bf16 %v323, %v323
  %v340 = vpack.c.bf16 %v324, %v324
  %v341 = vpack.c.bf16 %v325, %v325
  %v342 = vpack.c.bf16 %v326, %v326
  %343 = vst [vmem:[%s4] sm:$0xf] %v327
  %344 = vst [vmem:[%s4 + $0x4] sm:$0xf] %v328
  %345 = vst [vmem:[%s4 + $0x8] sm:$0xf] %v329
  %346 = vst [vmem:[%s4 + $0xc] sm:$0xf] %v330
  %347 = vst [vmem:[%s4 + $0x10] sm:$0xf] %v331
  %348 = vst [vmem:[%s4 + $0x14] sm:$0xf] %v332
  %349 = vst [vmem:[%s4 + $0x18] sm:$0xf] %v333
  %350 = vst [vmem:[%s4 + $0x1c] sm:$0xf] %v334
  %351 = vst [vmem:[%s4 + $0x20] sm:$0xf] %v335
  %352 = vst [vmem:[%s4 + $0x24] sm:$0xf] %v336
  %353 = vst [vmem:[%s4 + $0x28] sm:$0xf] %v337
  %354 = vst [vmem:[%s4 + $0x2c] sm:$0xf] %v338
  %355 = vst [vmem:[%s4 + $0x30] sm:$0xf] %v339
  %356 = vst [vmem:[%s4 + $0x34] sm:$0xf] %v340
  %357 = vst [vmem:[%s4 + $0x38] sm:$0xf] %v341
  %358 = vst [vmem:[%s4 + $0x3c] sm:$0xf] %v342
  // Predicated region
  $region18: #{_lambda_.27} parent=0 // pred_check
    _
  $region19: #{_lambda_.27} parent=0 // pred_check_branch
    %360 = sbr.rel (0) target = $region21
  $region20: #{_lambda_.27} parent=0 // pred_region
    _
  $region21: #{_lambda_.27} parent=0 // pred_fallthru
    _
  // Predicated region
  $region22: #{_lambda_.27} parent=0 // pred_check
    _
  $region23: #{_lambda_.27} parent=0 // pred_check_branch
    %362 = sbr.rel (0) target = $region25
  $region24: #{_lambda_.27} parent=0 // pred_region
    _
  $region25: #{_lambda_.27} parent=0 // pred_fallthru
    _

// kernel: _lambda_.29
$region0: #{_lambda_.29}
  #allocation0 [shape = 'u32[]', space=smem, size = 0x4, offset = 0x4, fixed_abs, tag = 'smem constant byte address 0x4 - core index']
  #allocation1 [shape = 'u32[72,128]{1,0:T(1,128)}', space=vmem, size = 0x9000, scoped, tag = 'internal scratch']
  %s0 = inlined_call_operand.vmem [shape: bf16[2,10,10,128], index: 0, kind: input, shape index: {}]
  %s1 = inlined_call_operand.vmem [shape: f32[9,128], index: 1, kind: input, shape index: {}]
  %s2 = inlined_call_operand.vmem [shape: f32[1,128], index: 2, kind: input, shape index: {}]
  %s3 = inlined_call_operand.vmem [shape: f32[1,128], index: 3, kind: input, shape index: {}]
  %s4 = inlined_call_operand.vmem [shape: bf16[2,8,8,128], index: 4, kind: output, shape index: {}]
  %s5 = sld [smem:[#allocation0]]
  $region26: #{_lambda_.29} parent=0
    _
  %s7 = ssub.s32 1, %s5
  %s8 = scalar_select 0, %s7, %s5
  // Predicated region
  $region2: #{_lambda_.29} parent=0 // pred_check
    _
  $region3: #{_lambda_.29} parent=0 // pred_check_branch
    %10 = sbr.rel (0) target = $region5
  $region4: #{_lambda_.29} parent=0 // pred_region
    _
  $region5: #{_lambda_.29} parent=0 // pred_fallthru
    _
  // Predicated region
  $region6: #{_lambda_.29} parent=0 // pred_check
    _
  $region7: #{_lambda_.29} parent=0 // pred_check_branch
    %12 = sbr.rel (0) target = $region9
  $region8: #{_lambda_.29} parent=0 // pred_region
    _
  $region9: #{_lambda_.29} parent=0 // pred_fallthru
    _
  // Predicated region
  $region10: #{_lambda_.29} parent=0 // pred_check
    _
  $region11: #{_lambda_.29} parent=0 // pred_check_branch
    %14 = sbr.rel (0) target = $region13
  $region12: #{_lambda_.29} parent=0 // pred_region
    _
  $region13: #{_lambda_.29} parent=0 // pred_fallthru
    _
  // Predicated region
  $region14: #{_lambda_.29} parent=0 // pred_check
    _
  $region15: #{_lambda_.29} parent=0 // pred_check_branch
    %16 = sbr.rel (0) target = $region17
  $region16: #{_lambda_.29} parent=0 // pred_region
    _
  $region17: #{_lambda_.29} parent=0 // pred_fallthru
    _
  %v17 = vld [vmem:[%s1] sm:$0xff]
  %v18 = vld [vmem:[%s1 + $0x8] sm:$0x1]
  %v19 = vld [vmem:[%s0] sm:$0xf]
  %v20 = vld [vmem:[%s0 + $0x8] sm:$0xf]
  %v21 = vld [vmem:[%s0 + $0x10] sm:$0xf]
  %v22 = vld [vmem:[%s0 + $0x18] sm:$0xf]
  %v23 = vld [vmem:[%s0 + $0x20] sm:$0xf]
  %v24 = vld [vmem:[%s0 + $0x28] sm:$0xf]
  %v25 = vld [vmem:[%s0 + $0x30] sm:$0xf]
  %v26 = vld [vmem:[%s0 + $0x38] sm:$0xf]
  %v27 = vld [vmem:[%s0 + $0x50] sm:$0xf]
  %v28 = vld [vmem:[%s0 + $0x58] sm:$0xf]
  %v29 = vld [vmem:[%s0 + $0x60] sm:$0xf]
  %v30 = vld [vmem:[%s0 + $0x68] sm:$0xf]
  %v31 = vld [vmem:[%s0 + $0x70] sm:$0xf]
  %v32 = vld [vmem:[%s0 + $0x78] sm:$0xf]
  %v33 = vld [vmem:[%s0 + $0x80] sm:$0xf]
  %v34 = vld [vmem:[%s0 + $0x88] sm:$0xf]
  %v35 = vunpack.c.l.bf16 %v19
  %v36 = vunpack.c.l.bf16 %v20
  %v37 = vunpack.c.l.bf16 %v21
  %v38 = vunpack.c.l.bf16 %v22
  %v39 = vunpack.c.l.bf16 %v23
  %v40 = vunpack.c.l.bf16 %v24
  %v41 = vunpack.c.l.bf16 %v25
  %v42 = vunpack.c.l.bf16 %v26
  %v43 = vunpack.c.l.bf16 %v27
  %v44 = vunpack.c.l.bf16 %v28
  %v45 = vunpack.c.l.bf16 %v29
  %v46 = vunpack.c.l.bf16 %v30
  %v47 = vunpack.c.l.bf16 %v31
  %v48 = vunpack.c.l.bf16 %v32
  %v49 = vunpack.c.l.bf16 %v33
  %v50 = vunpack.c.l.bf16 %v34
  %v51 = vperm.slane %v17, 0
  %v52 = vmul.f32 %v35, %v51
  %v53 = vmul.f32 %v36, %v51
  %v54 = vmul.f32 %v37, %v51
  %v55 = vmul.f32 %v38, %v51
  %v56 = vmul.f32 %v39, %v51
  %v57 = vmul.f32 %v40, %v51
  %v58 = vmul.f32 %v41, %v51
  %v59 = vmul.f32 %v42, %v51
  %v60 = vmul.f32 %v43, %v51
  %v61 = vmul.f32 %v44, %v51
  %v62 = vmul.f32 %v45, %v51
  %v63 = vmul.f32 %v46, %v51
  %v64 = vmul.f32 %v47, %v51
  %v65 = vmul.f32 %v48, %v51
  %v66 = vmul.f32 %v49, %v51
  %v67 = vmul.f32 %v50, %v51
  %v68 = vld [vmem:[%s0 + $0x4] sm:$0x1]
  %v69 = vld [vmem:[%s0 + $0xc] sm:$0x1]
  %v70 = vld [vmem:[%s0 + $0x14] sm:$0x1]
  %v71 = vld [vmem:[%s0 + $0x1c] sm:$0x1]
  %v72 = vld [vmem:[%s0 + $0x24] sm:$0x1]
  %v73 = vld [vmem:[%s0 + $0x2c] sm:$0x1]
  %v74 = vld [vmem:[%s0 + $0x34] sm:$0x1]
  %v75 = vld [vmem:[%s0 + $0x3c] sm:$0x1]
  %v76 = vld [vmem:[%s0 + $0x54] sm:$0x1]
  %v77 = vld [vmem:[%s0 + $0x5c] sm:$0x1]
  %v78 = vld [vmem:[%s0 + $0x64] sm:$0x1]
  %v79 = vld [vmem:[%s0 + $0x6c] sm:$0x1]
  %v80 = vld [vmem:[%s0 + $0x74] sm:$0x1]
  %v81 = vld [vmem:[%s0 + $0x7c] sm:$0x1]
  %v82 = vld [vmem:[%s0 + $0x84] sm:$0x1]
  %v83 = vld [vmem:[%s0 + $0x8c] sm:$0x1]
  %v84 = vunpack.c.l.bf16 %v68
  %v85 = vunpack.c.l.bf16 %v69
  %v86 = vunpack.c.l.bf16 %v70
  %v87 = vunpack.c.l.bf16 %v71
  %v88 = vunpack.c.l.bf16 %v72
  %v89 = vunpack.c.l.bf16 %v73
  %v90 = vunpack.c.l.bf16 %v74
  %v91 = vunpack.c.l.bf16 %v75
  %v92 = vunpack.c.l.bf16 %v76
  %v93 = vunpack.c.l.bf16 %v77
  %v94 = vunpack.c.l.bf16 %v78
  %v95 = vunpack.c.l.bf16 %v79
  %v96 = vunpack.c.l.bf16 %v80
  %v97 = vunpack.c.l.bf16 %v81
  %v98 = vunpack.c.l.bf16 %v82
  %v99 = vunpack.c.l.bf16 %v83
  %v100 = vperm.slane %v17, 1
  %v101 = vmul.f32 %v35, %v100
  %v102 = vmul.f32 %v84, %v100
  %v103 = vmul.f32 %v36, %v100
  %v104 = vmul.f32 %v85, %v100
  %v105 = vmul.f32 %v37, %v100
  %v106 = vmul.f32 %v86, %v100
  %v107 = vmul.f32 %v38, %v100
  %v108 = vmul.f32 %v87, %v100
  %v109 = vmul.f32 %v39, %v100
  %v110 = vmul.f32 %v88, %v100
  %v111 = vmul.f32 %v40, %v100
  %v112 = vmul.f32 %v89, %v100
  %v113 = vmul.f32 %v41, %v100
  %v114 = vmul.f32 %v90, %v100
  %v115 = vmul.f32 %v42, %v100
  %v116 = vmul.f32 %v91, %v100
  %v117 = vmul.f32 %v43, %v100
  %v118 = vmul.f32 %v92, %v100
  %v119 = vmul.f32 %v44, %v100
  %v120 = vmul.f32 %v93, %v100
  %v121 = vmul.f32 %v45, %v100
  %v122 = vmul.f32 %v94, %v100
  %v123 = vmul.f32 %v46, %v100
  %v124 = vmul.f32 %v95, %v100
  %v125 = vmul.f32 %v47, %v100
  %v126 = vmul.f32 %v96, %v100
  %v127 = vmul.f32 %v48, %v100
  %v128 = vmul.f32 %v97, %v100
  %v129 = vmul.f32 %v49, %v100
  %v130 = vmul.f32 %v98, %v100
  %v131 = vmul.f32 %v50, %v100
  %v132 = vmul.f32 %v99, %v100
  %v133 = vld [vmem:[%s0] sm:$0xe]
  %v134 = vld [vmem:[%s0 + $0x8] sm:$0xe]
  %v135 = vld [vmem:[%s0 + $0x10] sm:$0xe]
  %v136 = vld [vmem:[%s0 + $0x18] sm:$0xe]
  %v137 = vld [vmem:[%s0 + $0x20] sm:$0xe]
  %v138 = vld [vmem:[%s0 + $0x28] sm:$0xe]
  %v139 = vld [vmem:[%s0 + $0x30] sm:$0xe]
  %v140 = vld [vmem:[%s0 + $0x38] sm:$0xe]
  %v141 = vld [vmem:[%s0 + $0x50] sm:$0xe]
  %v142 = vld [vmem:[%s0 + $0x58] sm:$0xe]
  %v143 = vld [vmem:[%s0 + $0x60] sm:$0xe]
  %v144 = vld [vmem:[%s0 + $0x68] sm:$0xe]
  %v145 = vld [vmem:[%s0 + $0x70] sm:$0xe]
  %v146 = vld [vmem:[%s0 + $0x78] sm:$0xe]
  %v147 = vld [vmem:[%s0 + $0x80] sm:$0xe]
  %v148 = vld [vmem:[%s0 + $0x88] sm:$0xe]
  %v149 = vunpack.c.l.bf16 %v133
  %v150 = vunpack.c.l.bf16 %v134
  %v151 = vunpack.c.l.bf16 %v135
  %v152 = vunpack.c.l.bf16 %v136
  %v153 = vunpack.c.l.bf16 %v137
  %v154 = vunpack.c.l.bf16 %v138
  %v155 = vunpack.c.l.bf16 %v139
  %v156 = vunpack.c.l.bf16 %v140
  %v157 = vunpack.c.l.bf16 %v141
  %v158 = vunpack.c.l.bf16 %v142
  %v159 = vunpack.c.l.bf16 %v143
  %v160 = vunpack.c.l.bf16 %v144
  %v161 = vunpack.c.l.bf16 %v145
  %v162 = vunpack.c.l.bf16 %v146
  %v163 = vunpack.c.l.bf16 %v147
  %v164 = vunpack.c.l.bf16 %v148
  %v165 = vperm.slane %v17, 2
  %v166 = vmul.f32 %v149, %v165
  %v167 = vmul.f32 %v84, %v165
  %v168 = vmul.f32 %v150, %v165
  %v169 = vmul.f32 %v85, %v165
  %v170 = vmul.f32 %v151, %v165
  %v171 = vmul.f32 %v86, %v165
  %v172 = vmul.f32 %v152, %v165
  %v173 = vmul.f32 %v87, %v165
  %v174 = vmul.f32 %v153, %v165
  %v175 = vmul.f32 %v88, %v165
  %v176 = vmul.f32 %v154, %v165
  %v177 = vmul.f32 %v89, %v165
  %v178 = vmul.f32 %v155, %v165
  %v179 = vmul.f32 %v90, %v165
  %v180 = vmul.f32 %v156, %v165
  %v181 = vmul.f32 %v91, %v165
  %v182 = vmul.f32 %v157, %v165
  %v183 = vmul.f32 %v92, %v165
  %v184 = vmul.f32 %v158, %v165
  %v185 = vmul.f32 %v93, %v165
  %v186 = vmul.f32 %v159, %v165
  %v187 = vmul.f32 %v94, %v165
  %v188 = vmul.f32 %v160, %v165
  %v189 = vmul.f32 %v95, %v165
  %v190 = vmul.f32 %v161, %v165
  %v191 = vmul.f32 %v96, %v165
  %v192 = vmul.f32 %v162, %v165
  %v193 = vmul.f32 %v97, %v165
  %v194 = vmul.f32 %v163, %v165
  %v195 = vmul.f32 %v98, %v165
  %v196 = vmul.f32 %v164, %v165
  %v197 = vmul.f32 %v99, %v165
  %s198 = scalar_lea.vmem %s0, 8
  %v199 = vld [vmem:[%s198] sm:$0xf]
  %v200 = vld [vmem:[%s198 + $0x8] sm:$0xf]
  %v201 = vld [vmem:[%s198 + $0x10] sm:$0xf]
  %v202 = vld [vmem:[%s198 + $0x18] sm:$0xf]
  %v203 = vld [vmem:[%s198 + $0x20] sm:$0xf]
  %v204 = vld [vmem:[%s198 + $0x28] sm:$0xf]
  %v205 = vld [vmem:[%s198 + $0x30] sm:$0xf]
  %v206 = vld [vmem:[%s198 + $0x38] sm:$0xf]
  %v207 = vld [vmem:[%s198 + $0x50] sm:$0xf]
  %v208 = vld [vmem:[%s198 + $0x58] sm:$0xf]
  %v209 = vld [vmem:[%s198 + $0x60] sm:$0xf]
  %v210 = vld [vmem:[%s198 + $0x68] sm:$0xf]
  %v211 = vld [vmem:[%s198 + $0x70] sm:$0xf]
  %v212 = vld [vmem:[%s198 + $0x78] sm:$0xf]
  %v213 = vld [vmem:[%s198 + $0x80] sm:$0xf]
  %v214 = vld [vmem:[%s198 + $0x88] sm:$0xf]
  %v215 = vunpack.c.l.bf16 %v199
  %v216 = vunpack.c.l.bf16 %v200
  %v217 = vunpack.c.l.bf16 %v201
  %v218 = vunpack.c.l.bf16 %v202
  %v219 = vunpack.c.l.bf16 %v203
  %v220 = vunpack.c.l.bf16 %v204
  %v221 = vunpack.c.l.bf16 %v205
  %v222 = vunpack.c.l.bf16 %v206
  %v223 = vunpack.c.l.bf16 %v207
  %v224 = vunpack.c.l.bf16 %v208
  %v225 = vunpack.c.l.bf16 %v209
  %v226 = vunpack.c.l.bf16 %v210
  %v227 = vunpack.c.l.bf16 %v211
  %v228 = vunpack.c.l.bf16 %v212
  %v229 = vunpack.c.l.bf16 %v213
  %v230 = vunpack.c.l.bf16 %v214
  %v231 = vperm.slane %v17, 3
  %v232 = vmul.f32 %v215, %v231
  %v233 = vmul.f32 %v216, %v231
  %v234 = vmul.f32 %v217, %v231
  %v235 = vmul.f32 %v218, %v231
  %v236 = vmul.f32 %v219, %v231
  %v237 = vmul.f32 %v220, %v231
  %v238 = vmul.f32 %v221, %v231
  %v239 = vmul.f32 %v222, %v231
  %v240 = vmul.f32 %v223, %v231
  %v241 = vmul.f32 %v224, %v231
  %v242 = vmul.f32 %v225, %v231
  %v243 = vmul.f32 %v226, %v231
  %v244 = vmul.f32 %v227, %v231
  %v245 = vmul.f32 %v228, %v231
  %v246 = vmul.f32 %v229, %v231
  %v247 = vmul.f32 %v230, %v231
  %v248 = vld [vmem:[%s198 + $0x4] sm:$0x1]
  %v249 = vld [vmem:[%s198 + $0xc] sm:$0x1]
  %v250 = vld [vmem:[%s198 + $0x14] sm:$0x1]
  %v251 = vld [vmem:[%s198 + $0x1c] sm:$0x1]
  %v252 = vld [vmem:[%s198 + $0x24] sm:$0x1]
  %v253 = vld [vmem:[%s198 + $0x2c] sm:$0x1]
  %v254 = vld [vmem:[%s198 + $0x34] sm:$0x1]
  %v255 = vld [vmem:[%s198 + $0x3c] sm:$0x1]
  %v256 = vld [vmem:[%s198 + $0x54] sm:$0x1]
  %v257 = vld [vmem:[%s198 + $0x5c] sm:$0x1]
  %v258 = vld [vmem:[%s198 + $0x64] sm:$0x1]
  %v259 = vld [vmem:[%s198 + $0x6c] sm:$0x1]
  %v260 = vld [vmem:[%s198 + $0x74] sm:$0x1]
  %v261 = vld [vmem:[%s198 + $0x7c] sm:$0x1]
  %v262 = vld [vmem:[%s198 + $0x84] sm:$0x1]
  %v263 = vld [vmem:[%s198 + $0x8c] sm:$0x1]
  %v264 = vunpack.c.l.bf16 %v248
  %v265 = vunpack.c.l.bf16 %v249
  %v266 = vunpack.c.l.bf16 %v250
  %v267 = vunpack.c.l.bf16 %v251
  %v268 = vunpack.c.l.bf16 %v252
  %v269 = vunpack.c.l.bf16 %v253
  %v270 = vunpack.c.l.bf16 %v254
  %v271 = vunpack.c.l.bf16 %v255
  %v272 = vunpack.c.l.bf16 %v256
  %v273 = vunpack.c.l.bf16 %v257
  %v274 = vunpack.c.l.bf16 %v258
  %v275 = vunpack.c.l.bf16 %v259
  %v276 = vunpack.c.l.bf16 %v260
  %v277 = vunpack.c.l.bf16 %v261
  %v278 = vunpack.c.l.bf16 %v262
  %v279 = vunpack.c.l.bf16 %v263
  %v280 = vperm.slane %v17, 4
  %v281 = vmul.f32 %v215, %v280
  %v282 = vmul.f32 %v264, %v280
  %v283 = vmul.f32 %v216, %v280
  %v284 = vmul.f32 %v265, %v280
  %v285 = vmul.f32 %v217, %v280
  %v286 = vmul.f32 %v266, %v280
  %v287 = vmul.f32 %v218, %v280
  %v288 = vmul.f32 %v267, %v280
  %v289 = vmul.f32 %v219, %v280
  %v290 = vmul.f32 %v268, %v280
  %v291 = vmul.f32 %v220, %v280
  %v292 = vmul.f32 %v269, %v280
  %v293 = vmul.f32 %v221, %v280
  %v294 = vmul.f32 %v270, %v280
  %v295 = vmul.f32 %v222, %v280
  %v296 = vmul.f32 %v271, %v280
  %v297 = vmul.f32 %v223, %v280
  %v298 = vmul.f32 %v272, %v280
  %v299 = vmul.f32 %v224, %v280
  %v300 = vmul.f32 %v273, %v280
  %v301 = vmul.f32 %v225, %v280
  %v302 = vmul.f32 %v274, %v280
  %v303 = vmul.f32 %v226, %v280
  %v304 = vmul.f32 %v275, %v280
  %v305 = vmul.f32 %v227, %v280
  %v306 = vmul.f32 %v276, %v280
  %v307 = vmul.f32 %v228, %v280
  %v308 = vmul.f32 %v277, %v280
  %v309 = vmul.f32 %v229, %v280
  %v310 = vmul.f32 %v278, %v280
  %v311 = vmul.f32 %v230, %v280
  %v312 = vmul.f32 %v279, %v280
  %v313 = vld [vmem:[%s198] sm:$0xe]
  %v314 = vld [vmem:[%s198 + $0x8] sm:$0xe]
  %v315 = vld [vmem:[%s198 + $0x10] sm:$0xe]
  %v316 = vld [vmem:[%s198 + $0x18] sm:$0xe]
  %v317 = vld [vmem:[%s198 + $0x20] sm:$0xe]
  %v318 = vld [vmem:[%s198 + $0x28] sm:$0xe]
  %v319 = vld [vmem:[%s198 + $0x30] sm:$0xe]
  %v320 = vld [vmem:[%s198 + $0x38] sm:$0xe]
  %v321 = vld [vmem:[%s198 + $0x50] sm:$0xe]
  %v322 = vld [vmem:[%s198 + $0x58] sm:$0xe]
  %v323 = vld [vmem:[%s198 + $0x60] sm:$0xe]
  %v324 = vld [vmem:[%s198 + $0x68] sm:$0xe]
  %v325 = vld [vmem:[%s198 + $0x70] sm:$0xe]
  %v326 = vld [vmem:[%s198 + $0x78] sm:$0xe]
  %v327 = vld [vmem:[%s198 + $0x80] sm:$0xe]
  %v328 = vld [vmem:[%s198 + $0x88] sm:$0xe]
  %v329 = vunpack.c.l.bf16 %v313
  %v330 = vunpack.c.l.bf16 %v314
  %v331 = vunpack.c.l.bf16 %v315
  %v332 = vunpack.c.l.bf16 %v316
  %v333 = vunpack.c.l.bf16 %v317
  %v334 = vunpack.c.l.bf16 %v318
  %v335 = vunpack.c.l.bf16 %v319
  %v336 = vunpack.c.l.bf16 %v320
  %v337 = vunpack.c.l.bf16 %v321
  %v338 = vunpack.c.l.bf16 %v322
  %v339 = vunpack.c.l.bf16 %v323
  %v340 = vunpack.c.l.bf16 %v324
  %v341 = vunpack.c.l.bf16 %v325
  %v342 = vunpack.c.l.bf16 %v326
  %v343 = vunpack.c.l.bf16 %v327
  %v344 = vunpack.c.l.bf16 %v328
  %v345 = vperm.slane %v17, 5
  %v346 = vmul.f32 %v329, %v345
  %v347 = vmul.f32 %v264, %v345
  %v348 = vmul.f32 %v330, %v345
  %v349 = vmul.f32 %v265, %v345
  %v350 = vmul.f32 %v331, %v345
  %v351 = vmul.f32 %v266, %v345
  %v352 = vmul.f32 %v332, %v345
  %v353 = vmul.f32 %v267, %v345
  %v354 = vmul.f32 %v333, %v345
  %v355 = vmul.f32 %v268, %v345
  %v356 = vmul.f32 %v334, %v345
  %v357 = vmul.f32 %v269, %v345
  %v358 = vmul.f32 %v335, %v345
  %v359 = vmul.f32 %v270, %v345
  %v360 = vmul.f32 %v336, %v345
  %v361 = vmul.f32 %v271, %v345
  %v362 = vmul.f32 %v337, %v345
  %v363 = vmul.f32 %v272, %v345
  %v364 = vmul.f32 %v338, %v345
  %v365 = vmul.f32 %v273, %v345
  %v366 = vmul.f32 %v339, %v345
  %v367 = vmul.f32 %v274, %v345
  %v368 = vmul.f32 %v340, %v345
  %v369 = vmul.f32 %v275, %v345
  %v370 = vmul.f32 %v341, %v345
  %v371 = vmul.f32 %v276, %v345
  %v372 = vmul.f32 %v342, %v345
  %v373 = vmul.f32 %v277, %v345
  %v374 = vmul.f32 %v343, %v345
  %v375 = vmul.f32 %v278, %v345
  %v376 = vmul.f32 %v344, %v345
  %v377 = vmul.f32 %v279, %v345
  %s378 = scalar_lea.vmem %s0, 16
  %v379 = vld [vmem:[%s378] sm:$0xf]
  %v380 = vld [vmem:[%s378 + $0x8] sm:$0xf]
  %v381 = vld [vmem:[%s378 + $0x10] sm:$0xf]
  %v382 = vld [vmem:[%s378 + $0x18] sm:$0xf]
  %v383 = vld [vmem:[%s378 + $0x20] sm:$0xf]
  %v384 = vld [vmem:[%s378 + $0x28] sm:$0xf]
  %v385 = vld [vmem:[%s378 + $0x30] sm:$0xf]
  %v386 = vld [vmem:[%s378 + $0x38] sm:$0xf]
  %v387 = vld [vmem:[%s378 + $0x50] sm:$0xf]
  %v388 = vld [vmem:[%s378 + $0x58] sm:$0xf]
  %v389 = vld [vmem:[%s378 + $0x60] sm:$0xf]
  %v390 = vld [vmem:[%s378 + $0x68] sm:$0xf]
  %v391 = vld [vmem:[%s378 + $0x70] sm:$0xf]
  %v392 = vld [vmem:[%s378 + $0x78] sm:$0xf]
  %v393 = vld [vmem:[%s378 + $0x80] sm:$0xf]
  %v394 = vld [vmem:[%s378 + $0x88] sm:$0xf]
  %v395 = vunpack.c.l.bf16 %v379
  %v396 = vunpack.c.l.bf16 %v380
  %v397 = vunpack.c.l.bf16 %v381
  %v398 = vunpack.c.l.bf16 %v382
  %v399 = vunpack.c.l.bf16 %v383
  %v400 = vunpack.c.l.bf16 %v384
  %v401 = vunpack.c.l.bf16 %v385
  %v402 = vunpack.c.l.bf16 %v386
  %v403 = vunpack.c.l.bf16 %v387
  %v404 = vunpack.c.l.bf16 %v388
  %v405 = vunpack.c.l.bf16 %v389
  %v406 = vunpack.c.l.bf16 %v390
  %v407 = vunpack.c.l.bf16 %v391
  %v408 = vunpack.c.l.bf16 %v392
  %v409 = vunpack.c.l.bf16 %v393
  %v410 = vunpack.c.l.bf16 %v394
  %v411 = vperm.slane %v17, 6
  %v412 = vmul.f32 %v395, %v411
  %v413 = vmul.f32 %v396, %v411
  %v414 = vmul.f32 %v397, %v411
  %v415 = vmul.f32 %v398, %v411
  %v416 = vmul.f32 %v399, %v411
  %v417 = vmul.f32 %v400, %v411
  %v418 = vmul.f32 %v401, %v411
  %v419 = vmul.f32 %v402, %v411
  %v420 = vmul.f32 %v403, %v411
  %v421 = vmul.f32 %v404, %v411
  %v422 = vmul.f32 %v405, %v411
  %v423 = vmul.f32 %v406, %v411
  %v424 = vmul.f32 %v407, %v411
  %v425 = vmul.f32 %v408, %v411
  %v426 = vmul.f32 %v409, %v411
  %v427 = vmul.f32 %v410, %v411
  %v428 = vld [vmem:[%s378 + $0x4] sm:$0x1]
  %v429 = vld [vmem:[%s378 + $0xc] sm:$0x1]
  %v430 = vld [vmem:[%s378 + $0x14] sm:$0x1]
  %v431 = vld [vmem:[%s378 + $0x1c] sm:$0x1]
  %v432 = vld [vmem:[%s378 + $0x24] sm:$0x1]
  %v433 = vld [vmem:[%s378 + $0x2c] sm:$0x1]
  %v434 = vld [vmem:[%s378 + $0x34] sm:$0x1]
  %v435 = vld [vmem:[%s378 + $0x3c] sm:$0x1]
  %v436 = vld [vmem:[%s378 + $0x54] sm:$0x1]
  %v437 = vld [vmem:[%s378 + $0x5c] sm:$0x1]
  %v438 = vld [vmem:[%s378 + $0x64] sm:$0x1]
  %v439 = vld [vmem:[%s378 + $0x6c] sm:$0x1]
  %v440 = vld [vmem:[%s378 + $0x74] sm:$0x1]
  %v441 = vld [vmem:[%s378 + $0x7c] sm:$0x1]
  %v442 = vld [vmem:[%s378 + $0x84] sm:$0x1]
  %v443 = vld [vmem:[%s378 + $0x8c] sm:$0x1]
  %v444 = vunpack.c.l.bf16 %v428
  %v445 = vunpack.c.l.bf16 %v429
  %v446 = vunpack.c.l.bf16 %v430
  %v447 = vunpack.c.l.bf16 %v431
  %v448 = vunpack.c.l.bf16 %v432
  %v449 = vunpack.c.l.bf16 %v433
  %v450 = vunpack.c.l.bf16 %v434
  %v451 = vunpack.c.l.bf16 %v435
  %v452 = vunpack.c.l.bf16 %v436
  %v453 = vunpack.c.l.bf16 %v437
  %v454 = vunpack.c.l.bf16 %v438
  %v455 = vunpack.c.l.bf16 %v439
  %v456 = vunpack.c.l.bf16 %v440
  %v457 = vunpack.c.l.bf16 %v441
  %v458 = vunpack.c.l.bf16 %v442
  %v459 = vunpack.c.l.bf16 %v443
  %v460 = vperm.slane %v17, 7
  %v461 = vmul.f32 %v395, %v460
  %v462 = vmul.f32 %v444, %v460
  %v463 = vmul.f32 %v396, %v460
  %v464 = vmul.f32 %v445, %v460
  %v465 = vmul.f32 %v397, %v460
  %v466 = vmul.f32 %v446, %v460
  %v467 = vmul.f32 %v398, %v460
  %v468 = vmul.f32 %v447, %v460
  %v469 = vmul.f32 %v399, %v460
  %v470 = vmul.f32 %v448, %v460
  %v471 = vmul.f32 %v400, %v460
  %v472 = vmul.f32 %v449, %v460
  %v473 = vmul.f32 %v401, %v460
  %v474 = vmul.f32 %v450, %v460
  %v475 = vmul.f32 %v402, %v460
  %v476 = vmul.f32 %v451, %v460
  %v477 = vmul.f32 %v403, %v460
  %v478 = vmul.f32 %v452, %v460
  %v479 = vmul.f32 %v404, %v460
  %v480 = vmul.f32 %v453, %v460
  %v481 = vmul.f32 %v405, %v460
  %v482 = vmul.f32 %v454, %v460
  %v483 = vmul.f32 %v406, %v460
  %v484 = vmul.f32 %v455, %v460
  %v485 = vmul.f32 %v407, %v460
  %v486 = vmul.f32 %v456, %v460
  %v487 = vmul.f32 %v408, %v460
  %v488 = vmul.f32 %v457, %v460
  %v489 = vmul.f32 %v409, %v460
  %v490 = vmul.f32 %v458, %v460
  %v491 = vmul.f32 %v410, %v460
  %v492 = vmul.f32 %v459, %v460
  %v493 = vld [vmem:[%s378] sm:$0xe]
  %v494 = vld [vmem:[%s378 + $0x8] sm:$0xe]
  %v495 = vld [vmem:[%s378 + $0x10] sm:$0xe]
  %v496 = vld [vmem:[%s378 + $0x18] sm:$0xe]
  %v497 = vld [vmem:[%s378 + $0x20] sm:$0xe]
  %v498 = vld [vmem:[%s378 + $0x28] sm:$0xe]
  %v499 = vld [vmem:[%s378 + $0x30] sm:$0xe]
  %v500 = vld [vmem:[%s378 + $0x38] sm:$0xe]
  %v501 = vld [vmem:[%s378 + $0x50] sm:$0xe]
  %v502 = vld [vmem:[%s378 + $0x58] sm:$0xe]
  %v503 = vld [vmem:[%s378 + $0x60] sm:$0xe]
  %v504 = vld [vmem:[%s378 + $0x68] sm:$0xe]
  %v505 = vld [vmem:[%s378 + $0x70] sm:$0xe]
  %v506 = vld [vmem:[%s378 + $0x78] sm:$0xe]
  %v507 = vld [vmem:[%s378 + $0x80] sm:$0xe]
  %v508 = vld [vmem:[%s378 + $0x88] sm:$0xe]
  %v509 = vunpack.c.l.bf16 %v493
  %v510 = vunpack.c.l.bf16 %v494
  %v511 = vunpack.c.l.bf16 %v495
  %v512 = vunpack.c.l.bf16 %v496
  %v513 = vunpack.c.l.bf16 %v497
  %v514 = vunpack.c.l.bf16 %v498
  %v515 = vunpack.c.l.bf16 %v499
  %v516 = vunpack.c.l.bf16 %v500
  %v517 = vunpack.c.l.bf16 %v501
  %v518 = vunpack.c.l.bf16 %v502
  %v519 = vunpack.c.l.bf16 %v503
  %v520 = vunpack.c.l.bf16 %v504
  %v521 = vunpack.c.l.bf16 %v505
  %v522 = vunpack.c.l.bf16 %v506
  %v523 = vunpack.c.l.bf16 %v507
  %v524 = vunpack.c.l.bf16 %v508
  %v525 = vperm.slane %v18, 0
  %v526 = vmul.f32 %v509, %v525
  %v527 = vmul.f32 %v444, %v525
  %v528 = vmul.f32 %v510, %v525
  %v529 = vmul.f32 %v445, %v525
  %v530 = vmul.f32 %v511, %v525
  %v531 = vmul.f32 %v446, %v525
  %v532 = vmul.f32 %v512, %v525
  %v533 = vmul.f32 %v447, %v525
  %v534 = vmul.f32 %v513, %v525
  %v535 = vmul.f32 %v448, %v525
  %v536 = vmul.f32 %v514, %v525
  %v537 = vmul.f32 %v449, %v525
  %v538 = vmul.f32 %v515, %v525
  %v539 = vmul.f32 %v450, %v525
  %v540 = vmul.f32 %v516, %v525
  %v541 = vmul.f32 %v451, %v525
  %v542 = vmul.f32 %v517, %v525
  %v543 = vmul.f32 %v452, %v525
  %v544 = vmul.f32 %v518, %v525
  %v545 = vmul.f32 %v453, %v525
  %v546 = vmul.f32 %v519, %v525
  %v547 = vmul.f32 %v454, %v525
  %v548 = vmul.f32 %v520, %v525
  %v549 = vmul.f32 %v455, %v525
  %v550 = vmul.f32 %v521, %v525
  %v551 = vmul.f32 %v456, %v525
  %v552 = vmul.f32 %v522, %v525
  %v553 = vmul.f32 %v457, %v525
  %v554 = vmul.f32 %v523, %v525
  %v555 = vmul.f32 %v458, %v525
  %v556 = vmul.f32 %v524, %v525
  %v557 = vmul.f32 %v459, %v525
  %vm590 = vcmask 1046528
  %v591 = vrot.slane %v101, 1
  %v592 = vrot.slane %v102, 1
  %v593 = vsel %vm590, %v591, %v592
  %v594 = vrot.slane %v103, 1
  %v595 = vrot.slane %v104, 1
  %v596 = vsel %vm590, %v594, %v595
  %v597 = vrot.slane %v105, 1
  %v598 = vrot.slane %v106, 1
  %v599 = vsel %vm590, %v597, %v598
  %v600 = vrot.slane %v107, 1
  %v601 = vrot.slane %v108, 1
  %v602 = vsel %vm590, %v600, %v601
  %v603 = vrot.slane %v109, 1
  %v604 = vrot.slane %v110, 1
  %v605 = vsel %vm590, %v603, %v604
  %v606 = vrot.slane %v111, 1
  %v607 = vrot.slane %v112, 1
  %v608 = vsel %vm590, %v606, %v607
  %v609 = vrot.slane %v113, 1
  %v610 = vrot.slane %v114, 1
  %v611 = vsel %vm590, %v609, %v610
  %v612 = vrot.slane %v115, 1
  %v613 = vrot.slane %v116, 1
  %v614 = vsel %vm590, %v612, %v613
  %v615 = vrot.slane %v117, 1
  %v616 = vrot.slane %v118, 1
  %v617 = vsel %vm590, %v615, %v616
  %v618 = vrot.slane %v119, 1
  %v619 = vrot.slane %v120, 1
  %v620 = vsel %vm590, %v618, %v619
  %v621 = vrot.slane %v121, 1
  %v622 = vrot.slane %v122, 1
  %v623 = vsel %vm590, %v621, %v622
  %v624 = vrot.slane %v123, 1
  %v625 = vrot.slane %v124, 1
  %v626 = vsel %vm590, %v624, %v625
  %v627 = vrot.slane %v125, 1
  %v628 = vrot.slane %v126, 1
  %v629 = vsel %vm590, %v627, %v628
  %v630 = vrot.slane %v127, 1
  %v631 = vrot.slane %v128, 1
  %v632 = vsel %vm590, %v630, %v631
  %v633 = vrot.slane %v129, 1
  %v634 = vrot.slane %v130, 1
  %v635 = vsel %vm590, %v633, %v634
  %v636 = vrot.slane %v131, 1
  %v637 = vrot.slane %v132, 1
  %v638 = vsel %vm590, %v636, %v637
  %v655 = vadd.f32 %v52, %v593
  %v656 = vadd.f32 %v53, %v596
  %v657 = vadd.f32 %v54, %v599
  %v658 = vadd.f32 %v55, %v602
  %v659 = vadd.f32 %v56, %v605
  %v660 = vadd.f32 %v57, %v608
  %v661 = vadd.f32 %v58, %v611
  %v662 = vadd.f32 %v59, %v614
  %v663 = vadd.f32 %v60, %v617
  %v664 = vadd.f32 %v61, %v620
  %v665 = vadd.f32 %v62, %v623
  %v666 = vadd.f32 %v63, %v626
  %v667 = vadd.f32 %v64, %v629
  %v668 = vadd.f32 %v65, %v632
  %v669 = vadd.f32 %v66, %v635
  %v670 = vadd.f32 %v67, %v638
  %v687 = vrot.slane %v232, 6
  %v688 = vrot.slane %v233, 6
  %v689 = vrot.slane %v234, 6
  %v690 = vrot.slane %v235, 6
  %v691 = vrot.slane %v236, 6
  %v692 = vrot.slane %v237, 6
  %v693 = vrot.slane %v238, 6
  %v694 = vrot.slane %v239, 6
  %v695 = vrot.slane %v240, 6
  %v696 = vrot.slane %v241, 6
  %v697 = vrot.slane %v242, 6
  %v698 = vrot.slane %v243, 6
  %v699 = vrot.slane %v244, 6
  %v700 = vrot.slane %v245, 6
  %v701 = vrot.slane %v246, 6
  %v702 = vrot.slane %v247, 6
  %v719 = vadd.f32 %v166, %v687
  %v720 = vadd.f32 %v167, %v687
  %v721 = vadd.f32 %v168, %v688
  %v722 = vadd.f32 %v169, %v688
  %v723 = vadd.f32 %v170, %v689
  %v724 = vadd.f32 %v171, %v689
  %v725 = vadd.f32 %v172, %v690
  %v726 = vadd.f32 %v173, %v690
  %v727 = vadd.f32 %v174, %v691
  %v728 = vadd.f32 %v175, %v691
  %v729 = vadd.f32 %v176, %v692
  %v730 = vadd.f32 %v177, %v692
  %v731 = vadd.f32 %v178, %v693
  %v732 = vadd.f32 %v179, %v693
  %v733 = vadd.f32 %v180, %v694
  %v734 = vadd.f32 %v181, %v694
  %v735 = vadd.f32 %v182, %v695
  %v736 = vadd.f32 %v183, %v695
  %v737 = vadd.f32 %v184, %v696
  %v738 = vadd.f32 %v185, %v696
  %v739 = vadd.f32 %v186, %v697
  %v740 = vadd.f32 %v187, %v697
  %v741 = vadd.f32 %v188, %v698
  %v742 = vadd.f32 %v189, %v698
  %v743 = vadd.f32 %v190, %v699
  %v744 = vadd.f32 %v191, %v699
  %v745 = vadd.f32 %v192, %v700
  %v746 = vadd.f32 %v193, %v700
  %v747 = vadd.f32 %v194, %v701
  %v748 = vadd.f32 %v195, %v701
  %v749 = vadd.f32 %v196, %v702
  %v750 = vadd.f32 %v197, %v702
  %v783 = vrot.slane %v346, 1
  %v784 = vrot.slane %v347, 1
  %v785 = vsel %vm590, %v783, %v784
  %v786 = vrot.slane %v348, 1
  %v787 = vrot.slane %v349, 1
  %v788 = vsel %vm590, %v786, %v787
  %v789 = vrot.slane %v350, 1
  %v790 = vrot.slane %v351, 1
  %v791 = vsel %vm590, %v789, %v790
  %v792 = vrot.slane %v352, 1
  %v793 = vrot.slane %v353, 1
  %v794 = vsel %vm590, %v792, %v793
  %v795 = vrot.slane %v354, 1
  %v796 = vrot.slane %v355, 1
  %v797 = vsel %vm590, %v795, %v796
  %v798 = vrot.slane %v356, 1
  %v799 = vrot.slane %v357, 1
  %v800 = vsel %vm590, %v798, %v799
  %v801 = vrot.slane %v358, 1
  %v802 = vrot.slane %v359, 1
  %v803 = vsel %vm590, %v801, %v802
  %v804 = vrot.slane %v360, 1
  %v805 = vrot.slane %v361, 1
  %v806 = vsel %vm590, %v804, %v805
  %v807 = vrot.slane %v362, 1
  %v808 = vrot.slane %v363, 1
  %v809 = vsel %vm590, %v807, %v808
  %v810 = vrot.slane %v364, 1
  %v811 = vrot.slane %v365, 1
  %v812 = vsel %vm590, %v810, %v811
  %v813 = vrot.slane %v366, 1
  %v814 = vrot.slane %v367, 1
  %v815 = vsel %vm590, %v813, %v814
  %v816 = vrot.slane %v368, 1
  %v817 = vrot.slane %v369, 1
  %v818 = vsel %vm590, %v816, %v817
  %v819 = vrot.slane %v370, 1
  %v820 = vrot.slane %v371, 1
  %v821 = vsel %vm590, %v819, %v820
  %v822 = vrot.slane %v372, 1
  %v823 = vrot.slane %v373, 1
  %v824 = vsel %vm590, %v822, %v823
  %v825 = vrot.slane %v374, 1
  %v826 = vrot.slane %v375, 1
  %v827 = vsel %vm590, %v825, %v826
  %v828 = vrot.slane %v376, 1
  %v829 = vrot.slane %v377, 1
  %v830 = vsel %vm590, %v828, %v829
  %v863 = vadd.f32 %v281, %v785
  %v864 = vadd.f32 %v282, %v784
  %v865 = vadd.f32 %v283, %v788
  %v866 = vadd.f32 %v284, %v787
  %v867 = vadd.f32 %v285, %v791
  %v868 = vadd.f32 %v286, %v790
  %v869 = vadd.f32 %v287, %v794
  %v870 = vadd.f32 %v288, %v793
  %v871 = vadd.f32 %v289, %v797
  %v872 = vadd.f32 %v290, %v796
  %v873 = vadd.f32 %v291, %v800
  %v874 = vadd.f32 %v292, %v799
  %v875 = vadd.f32 %v293, %v803
  %v876 = vadd.f32 %v294, %v802
  %v877 = vadd.f32 %v295, %v806
  %v878 = vadd.f32 %v296, %v805
  %v879 = vadd.f32 %v297, %v809
  %v880 = vadd.f32 %v298, %v808
  %v881 = vadd.f32 %v299, %v812
  %v882 = vadd.f32 %v300, %v811
  %v883 = vadd.f32 %v301, %v815
  %v884 = vadd.f32 %v302, %v814
  %v885 = vadd.f32 %v303, %v818
  %v886 = vadd.f32 %v304, %v817
  %v887 = vadd.f32 %v305, %v821
  %v888 = vadd.f32 %v306, %v820
  %v889 = vadd.f32 %v307, %v824
  %v890 = vadd.f32 %v308, %v823
  %v891 = vadd.f32 %v309, %v827
  %v892 = vadd.f32 %v310, %v826
  %v893 = vadd.f32 %v311, %v830
  %v894 = vadd.f32 %v312, %v829
  %v927 = vrot.slane %v461, 1
  %v928 = vrot.slane %v462, 1
  %v929 = vsel %vm590, %v927, %v928
  %v930 = vrot.slane %v463, 1
  %v931 = vrot.slane %v464, 1
  %v932 = vsel %vm590, %v930, %v931
  %v933 = vrot.slane %v465, 1
  %v934 = vrot.slane %v466, 1
  %v935 = vsel %vm590, %v933, %v934
  %v936 = vrot.slane %v467, 1
  %v937 = vrot.slane %v468, 1
  %v938 = vsel %vm590, %v936, %v937
  %v939 = vrot.slane %v469, 1
  %v940 = vrot.slane %v470, 1
  %v941 = vsel %vm590, %v939, %v940
  %v942 = vrot.slane %v471, 1
  %v943 = vrot.slane %v472, 1
  %v944 = vsel %vm590, %v942, %v943
  %v945 = vrot.slane %v473, 1
  %v946 = vrot.slane %v474, 1
  %v947 = vsel %vm590, %v945, %v946
  %v948 = vrot.slane %v475, 1
  %v949 = vrot.slane %v476, 1
  %v950 = vsel %vm590, %v948, %v949
  %v951 = vrot.slane %v477, 1
  %v952 = vrot.slane %v478, 1
  %v953 = vsel %vm590, %v951, %v952
  %v954 = vrot.slane %v479, 1
  %v955 = vrot.slane %v480, 1
  %v956 = vsel %vm590, %v954, %v955
  %v957 = vrot.slane %v481, 1
  %v958 = vrot.slane %v482, 1
  %v959 = vsel %vm590, %v957, %v958
  %v960 = vrot.slane %v483, 1
  %v961 = vrot.slane %v484, 1
  %v962 = vsel %vm590, %v960, %v961
  %v963 = vrot.slane %v485, 1
  %v964 = vrot.slane %v486, 1
  %v965 = vsel %vm590, %v963, %v964
  %v966 = vrot.slane %v487, 1
  %v967 = vrot.slane %v488, 1
  %v968 = vsel %vm590, %v966, %v967
  %v969 = vrot.slane %v489, 1
  %v970 = vrot.slane %v490, 1
  %v971 = vsel %vm590, %v969, %v970
  %v972 = vrot.slane %v491, 1
  %v973 = vrot.slane %v492, 1
  %v974 = vsel %vm590, %v972, %v973
  %v991 = vadd.f32 %v412, %v929
  %v992 = vadd.f32 %v413, %v932
  %v993 = vadd.f32 %v414, %v935
  %v994 = vadd.f32 %v415, %v938
  %v995 = vadd.f32 %v416, %v941
  %v996 = vadd.f32 %v417, %v944
  %v997 = vadd.f32 %v418, %v947
  %v998 = vadd.f32 %v419, %v950
  %v999 = vadd.f32 %v420, %v953
  %v1000 = vadd.f32 %v421, %v956
  %v1001 = vadd.f32 %v422, %v959
  %v1002 = vadd.f32 %v423, %v962
  %v1003 = vadd.f32 %v424, %v965
  %v1004 = vadd.f32 %v425, %v968
  %v1005 = vadd.f32 %v426, %v971
  %v1006 = vadd.f32 %v427, %v974
  %vm1039 = vcmask 1045504
  %v1040 = vrot.slane %v719, 2
  %v1041 = vrot.slane %v720, 2
  %v1042 = vsel %vm1039, %v1040, %v1041
  %v1043 = vrot.slane %v721, 2
  %v1044 = vrot.slane %v722, 2
  %v1045 = vsel %vm1039, %v1043, %v1044
  %v1046 = vrot.slane %v723, 2
  %v1047 = vrot.slane %v724, 2
  %v1048 = vsel %vm1039, %v1046, %v1047
  %v1049 = vrot.slane %v725, 2
  %v1050 = vrot.slane %v726, 2
  %v1051 = vsel %vm1039, %v1049, %v1050
  %v1052 = vrot.slane %v727, 2
  %v1053 = vrot.slane %v728, 2
  %v1054 = vsel %vm1039, %v1052, %v1053
  %v1055 = vrot.slane %v729, 2
  %v1056 = vrot.slane %v730, 2
  %v1057 = vsel %vm1039, %v1055, %v1056
  %v1058 = vrot.slane %v731, 2
  %v1059 = vrot.slane %v732, 2
  %v1060 = vsel %vm1039, %v1058, %v1059
  %v1061 = vrot.slane %v733, 2
  %v1062 = vrot.slane %v734, 2
  %v1063 = vsel %vm1039, %v1061, %v1062
  %v1064 = vrot.slane %v735, 2
  %v1065 = vrot.slane %v736, 2
  %v1066 = vsel %vm1039, %v1064, %v1065
  %v1067 = vrot.slane %v737, 2
  %v1068 = vrot.slane %v738, 2
  %v1069 = vsel %vm1039, %v1067, %v1068
  %v1070 = vrot.slane %v739, 2
  %v1071 = vrot.slane %v740, 2
  %v1072 = vsel %vm1039, %v1070, %v1071
  %v1073 = vrot.slane %v741, 2
  %v1074 = vrot.slane %v742, 2
  %v1075 = vsel %vm1039, %v1073, %v1074
  %v1076 = vrot.slane %v743, 2
  %v1077 = vrot.slane %v744, 2
  %v1078 = vsel %vm1039, %v1076, %v1077
  %v1079 = vrot.slane %v745, 2
  %v1080 = vrot.slane %v746, 2
  %v1081 = vsel %vm1039, %v1079, %v1080
  %v1082 = vrot.slane %v747, 2
  %v1083 = vrot.slane %v748, 2
  %v1084 = vsel %vm1039, %v1082, %v1083
  %v1085 = vrot.slane %v749, 2
  %v1086 = vrot.slane %v750, 2
  %v1087 = vsel %vm1039, %v1085, %v1086
  %v1104 = vadd.f32 %v655, %v1042
  %v1105 = vadd.f32 %v656, %v1045
  %v1106 = vadd.f32 %v657, %v1048
  %v1107 = vadd.f32 %v658, %v1051
  %v1108 = vadd.f32 %v659, %v1054
  %v1109 = vadd.f32 %v660, %v1057
  %v1110 = vadd.f32 %v661, %v1060
  %v1111 = vadd.f32 %v662, %v1063
  %v1112 = vadd.f32 %v663, %v1066
  %v1113 = vadd.f32 %v664, %v1069
  %v1114 = vadd.f32 %v665, %v1072
  %v1115 = vadd.f32 %v666, %v1075
  %v1116 = vadd.f32 %v667, %v1078
  %v1117 = vadd.f32 %v668, %v1081
  %v1118 = vadd.f32 %v669, %v1084
  %v1119 = vadd.f32 %v670, %v1087
  %v1136 = vrot.slane %v991, 7
  %v1137 = vrot.slane %v992, 7
  %v1138 = vrot.slane %v993, 7
  %v1139 = vrot.slane %v994, 7
  %v1140 = vrot.slane %v995, 7
  %v1141 = vrot.slane %v996, 7
  %v1142 = vrot.slane %v997, 7
  %v1143 = vrot.slane %v998, 7
  %v1144 = vrot.slane %v999, 7
  %v1145 = vrot.slane %v1000, 7
  %v1146 = vrot.slane %v1001, 7
  %v1147 = vrot.slane %v1002, 7
  %v1148 = vrot.slane %v1003, 7
  %v1149 = vrot.slane %v1004, 7
  %v1150 = vrot.slane %v1005, 7
  %v1151 = vrot.slane %v1006, 7
  %v1168 = vadd.f32 %v863, %v1136
  %v1169 = vadd.f32 %v864, %v1136
  %v1170 = vadd.f32 %v865, %v1137
  %v1171 = vadd.f32 %v866, %v1137
  %v1172 = vadd.f32 %v867, %v1138
  %v1173 = vadd.f32 %v868, %v1138
  %v1174 = vadd.f32 %v869, %v1139
  %v1175 = vadd.f32 %v870, %v1139
  %v1176 = vadd.f32 %v871, %v1140
  %v1177 = vadd.f32 %v872, %v1140
  %v1178 = vadd.f32 %v873, %v1141
  %v1179 = vadd.f32 %v874, %v1141
  %v1180 = vadd.f32 %v875, %v1142
  %v1181 = vadd.f32 %v876, %v1142
  %v1182 = vadd.f32 %v877, %v1143
  %v1183 = vadd.f32 %v878, %v1143
  %v1184 = vadd.f32 %v879, %v1144
  %v1185 = vadd.f32 %v880, %v1144
  %v1186 = vadd.f32 %v881, %v1145
  %v1187 = vadd.f32 %v882, %v1145
  %v1188 = vadd.f32 %v883, %v1146
  %v1189 = vadd.f32 %v884, %v1146
  %v1190 = vadd.f32 %v885, %v1147
  %v1191 = vadd.f32 %v886, %v1147
  %v1192 = vadd.f32 %v887, %v1148
  %v1193 = vadd.f32 %v888, %v1148
  %v1194 = vadd.f32 %v889, %v1149
  %v1195 = vadd.f32 %v890, %v1149
  %v1196 = vadd.f32 %v891, %v1150
  %v1197 = vadd.f32 %v892, %v1150
  %v1198 = vadd.f32 %v893, %v1151
  %v1199 = vadd.f32 %v894, %v1151
  %v1232 = vrot.slane %v1168, 1
  %v1233 = vrot.slane %v1169, 1
  %v1234 = vsel %vm590, %v1232, %v1233
  %v1235 = vrot.slane %v1170, 1
  %v1236 = vrot.slane %v1171, 1
  %v1237 = vsel %vm590, %v1235, %v1236
  %v1238 = vrot.slane %v1172, 1
  %v1239 = vrot.slane %v1173, 1
  %v1240 = vsel %vm590, %v1238, %v1239
  %v1241 = vrot.slane %v1174, 1
  %v1242 = vrot.slane %v1175, 1
  %v1243 = vsel %vm590, %v1241, %v1242
  %v1244 = vrot.slane %v1176, 1
  %v1245 = vrot.slane %v1177, 1
  %v1246 = vsel %vm590, %v1244, %v1245
  %v1247 = vrot.slane %v1178, 1
  %v1248 = vrot.slane %v1179, 1
  %v1249 = vsel %vm590, %v1247, %v1248
  %v1250 = vrot.slane %v1180, 1
  %v1251 = vrot.slane %v1181, 1
  %v1252 = vsel %vm590, %v1250, %v1251
  %v1253 = vrot.slane %v1182, 1
  %v1254 = vrot.slane %v1183, 1
  %v1255 = vsel %vm590, %v1253, %v1254
  %v1256 = vrot.slane %v1184, 1
  %v1257 = vrot.slane %v1185, 1
  %v1258 = vsel %vm590, %v1256, %v1257
  %v1259 = vrot.slane %v1186, 1
  %v1260 = vrot.slane %v1187, 1
  %v1261 = vsel %vm590, %v1259, %v1260
  %v1262 = vrot.slane %v1188, 1
  %v1263 = vrot.slane %v1189, 1
  %v1264 = vsel %vm590, %v1262, %v1263
  %v1265 = vrot.slane %v1190, 1
  %v1266 = vrot.slane %v1191, 1
  %v1267 = vsel %vm590, %v1265, %v1266
  %v1268 = vrot.slane %v1192, 1
  %v1269 = vrot.slane %v1193, 1
  %v1270 = vsel %vm590, %v1268, %v1269
  %v1271 = vrot.slane %v1194, 1
  %v1272 = vrot.slane %v1195, 1
  %v1273 = vsel %vm590, %v1271, %v1272
  %v1274 = vrot.slane %v1196, 1
  %v1275 = vrot.slane %v1197, 1
  %v1276 = vsel %vm590, %v1274, %v1275
  %v1277 = vrot.slane %v1198, 1
  %v1278 = vrot.slane %v1199, 1
  %v1279 = vsel %vm590, %v1277, %v1278
  %v1296 = vadd.f32 %v1104, %v1234
  %v1297 = vadd.f32 %v1105, %v1237
  %v1298 = vadd.f32 %v1106, %v1240
  %v1299 = vadd.f32 %v1107, %v1243
  %v1300 = vadd.f32 %v1108, %v1246
  %v1301 = vadd.f32 %v1109, %v1249
  %v1302 = vadd.f32 %v1110, %v1252
  %v1303 = vadd.f32 %v1111, %v1255
  %v1304 = vadd.f32 %v1112, %v1258
  %v1305 = vadd.f32 %v1113, %v1261
  %v1306 = vadd.f32 %v1114, %v1264
  %v1307 = vadd.f32 %v1115, %v1267
  %v1308 = vadd.f32 %v1116, %v1270
  %v1309 = vadd.f32 %v1117, %v1273
  %v1310 = vadd.f32 %v1118, %v1276
  %v1311 = vadd.f32 %v1119, %v1279
  %v1344 = vrot.slane %v526, 2
  %v1345 = vrot.slane %v527, 2
  %v1346 = vsel %vm1039, %v1344, %v1345
  %v1347 = vrot.slane %v528, 2
  %v1348 = vrot.slane %v529, 2
  %v1349 = vsel %vm1039, %v1347, %v1348
  %v1350 = vrot.slane %v530, 2
  %v1351 = vrot.slane %v531, 2
  %v1352 = vsel %vm1039, %v1350, %v1351
  %v1353 = vrot.slane %v532, 2
  %v1354 = vrot.slane %v533, 2
  %v1355 = vsel %vm1039, %v1353, %v1354
  %v1356 = vrot.slane %v534, 2
  %v1357 = vrot.slane %v535, 2
  %v1358 = vsel %vm1039, %v1356, %v1357
  %v1359 = vrot.slane %v536, 2
  %v1360 = vrot.slane %v537, 2
  %v1361 = vsel %vm1039, %v1359, %v1360
  %v1362 = vrot.slane %v538, 2
  %v1363 = vrot.slane %v539, 2
  %v1364 = vsel %vm1039, %v1362, %v1363
  %v1365 = vrot.slane %v540, 2
  %v1366 = vrot.slane %v541, 2
  %v1367 = vsel %vm1039, %v1365, %v1366
  %v1368 = vrot.slane %v542, 2
  %v1369 = vrot.slane %v543, 2
  %v1370 = vsel %vm1039, %v1368, %v1369
  %v1371 = vrot.slane %v544, 2
  %v1372 = vrot.slane %v545, 2
  %v1373 = vsel %vm1039, %v1371, %v1372
  %v1374 = vrot.slane %v546, 2
  %v1375 = vrot.slane %v547, 2
  %v1376 = vsel %vm1039, %v1374, %v1375
  %v1377 = vrot.slane %v548, 2
  %v1378 = vrot.slane %v549, 2
  %v1379 = vsel %vm1039, %v1377, %v1378
  %v1380 = vrot.slane %v550, 2
  %v1381 = vrot.slane %v551, 2
  %v1382 = vsel %vm1039, %v1380, %v1381
  %v1383 = vrot.slane %v552, 2
  %v1384 = vrot.slane %v553, 2
  %v1385 = vsel %vm1039, %v1383, %v1384
  %v1386 = vrot.slane %v554, 2
  %v1387 = vrot.slane %v555, 2
  %v1388 = vsel %vm1039, %v1386, %v1387
  %v1389 = vrot.slane %v556, 2
  %v1390 = vrot.slane %v557, 2
  %v1391 = vsel %vm1039, %v1389, %v1390
  %v1408 = vadd.f32 %v1296, %v1346
  %v1409 = vadd.f32 %v1297, %v1349
  %v1410 = vadd.f32 %v1298, %v1352
  %v1411 = vadd.f32 %v1299, %v1355
  %v1412 = vadd.f32 %v1300, %v1358
  %v1413 = vadd.f32 %v1301, %v1361
  %v1414 = vadd.f32 %v1302, %v1364
  %v1415 = vadd.f32 %v1303, %v1367
  %v1416 = vadd.f32 %v1304, %v1370
  %v1417 = vadd.f32 %v1305, %v1373
  %v1418 = vadd.f32 %v1306, %v1376
  %v1419 = vadd.f32 %v1307, %v1379
  %v1420 = vadd.f32 %v1308, %v1382
  %v1421 = vadd.f32 %v1309, %v1385
  %v1422 = vadd.f32 %v1310, %v1388
  %v1423 = vadd.f32 %v1311, %v1391
  %v1424 = vadd.f32 %v1408, %v1416
  %v1425 = vadd.f32 %v1409, %v1417
  %v1426 = vadd.f32 %v1410, %v1418
  %v1427 = vadd.f32 %v1411, %v1419
  %v1428 = vadd.f32 %v1412, %v1420
  %v1429 = vadd.f32 %v1413, %v1421
  %v1430 = vadd.f32 %v1414, %v1422
  %v1431 = vadd.f32 %v1415, %v1423
  %v1432 = vadd.f32 %v1424, %v1425
  %v1433 = vadd.f32 %v1432, %v1426
  %v1434 = vadd.f32 %v1433, %v1427
  %v1435 = vadd.f32 %v1434, %v1428
  %v1436 = vadd.f32 %v1435, %v1429
  %v1437 = vadd.f32 %v1436, %v1430
  %v1438 = vadd.f32 %v1437, %v1431
  %v1439 = vrot.slane %v1438, 4
  %v1440 = vadd.f32 %v1438, %v1439
  %v1441 = vrot.slane %v1440, 2
  %v1442 = vadd.f32 %v1440, %v1441
  %v1443 = vrot.slane %v1442, 1
  %v1444 = vadd.f32 %v1442, %v1443
  %v1445 = vmul.f32 %v1408, %v1408
  %v1446 = vmul.f32 %v1409, %v1409
  %v1447 = vmul.f32 %v1410, %v1410
  %v1448 = vmul.f32 %v1411, %v1411
  %v1449 = vmul.f32 %v1412, %v1412
  %v1450 = vmul.f32 %v1413, %v1413
  %v1451 = vmul.f32 %v1414, %v1414
  %v1452 = vmul.f32 %v1415, %v1415
  %v1453 = vmul.f32 %v1416, %v1416
  %v1454 = vmul.f32 %v1417, %v1417
  %v1455 = vmul.f32 %v1418, %v1418
  %v1456 = vmul.f32 %v1419, %v1419
  %v1457 = vmul.f32 %v1420, %v1420
  %v1458 = vmul.f32 %v1421, %v1421
  %v1459 = vmul.f32 %v1422, %v1422
  %v1460 = vmul.f32 %v1423, %v1423
  %v1461 = vadd.f32 %v1445, %v1453
  %v1462 = vadd.f32 %v1446, %v1454
  %v1463 = vadd.f32 %v1447, %v1455
  %v1464 = vadd.f32 %v1448, %v1456
  %v1465 = vadd.f32 %v1449, %v1457
  %v1466 = vadd.f32 %v1450, %v1458
  %v1467 = vadd.f32 %v1451, %v1459
  %v1468 = vadd.f32 %v1452, %v1460
  %v1469 = vadd.f32 %v1461, %v1462
  %v1470 = vadd.f32 %v1469, %v1463
  %v1471 = vadd.f32 %v1470, %v1464
  %v1472 = vadd.f32 %v1471, %v1465
  %v1473 = vadd.f32 %v1472, %v1466
  %v1474 = vadd.f32 %v1473, %v1467
  %v1475 = vadd.f32 %v1474, %v1468
  %v1476 = vrot.slane %v1475, 4
  %v1477 = vadd.f32 %v1475, %v1476
  %v1478 = vrot.slane %v1477, 2
  %v1479 = vadd.f32 %v1477, %v1478
  %v1480 = vrot.slane %v1479, 1
  %v1481 = vadd.f32 %v1479, %v1480
  %v1482 = vmul.f32 %v1444, 0.0078125
  %v1483 = vmul.f32 %v1481, 0.0078125
  %v1484 = vmul.f32 %v1482, %v1482
  %v1485 = vsub.f32 %v1483, %v1484
  %v1486 = vmax.f32 %v1485, 0.0
  %v1487 = vld [vmem:[%s2] sm:$0x1]
  %v1488 = vadd.f32 %v1486, 1e-05
  %v1489 = vrsqrt.pop %v1488
  %v1490 = vmul.f32 %v1489, %v1488
  %v1491 = vmul.f32 %v1490, %v1489
  %v1492 = vmul.f32 0.5, %v1491
  %v1493 = vsub.f32 1.5, %v1492
  %v1494 = vmul.f32 %v1489, %v1493
  %vm1495 = vweird.f32 %v1488
  %vm1496 = vweird.f32 %v1489
  %vm1497 = vmor %vm1495, %vm1496
  %v1498 = vsel %vm1497, %v1489, %v1494
  %v1499 = vmul.f32 %v1487, %v1498
  %v1500 = vld [vmem:[%s3] sm:$0x1]
  %v1501 = vmul.f32 %v1482, %v1499
  %v1502 = vsub.f32 %v1500, %v1501
  %v1504 = vperm.slane %v1499, 0
  %v1506 = vmul.f32 %v1408, %v1504
  %v1507 = vmul.f32 %v1409, %v1504
  %v1508 = vmul.f32 %v1410, %v1504
  %v1509 = vmul.f32 %v1411, %v1504
  %v1510 = vmul.f32 %v1412, %v1504
  %v1511 = vmul.f32 %v1413, %v1504
  %v1512 = vmul.f32 %v1414, %v1504
  %v1513 = vmul.f32 %v1415, %v1504
  %v1514 = vmul.f32 %v1416, %v1504
  %v1515 = vmul.f32 %v1417, %v1504
  %v1516 = vmul.f32 %v1418, %v1504
  %v1517 = vmul.f32 %v1419, %v1504
  %v1518 = vmul.f32 %v1420, %v1504
  %v1519 = vmul.f32 %v1421, %v1504
  %v1520 = vmul.f32 %v1422, %v1504
  %v1521 = vmul.f32 %v1423, %v1504
  %v1523 = vperm.slane %v1502, 0
  %v1525 = vadd.f32 %v1506, %v1523
  %v1526 = vadd.f32 %v1507, %v1523
  %v1527 = vadd.f32 %v1508, %v1523
  %v1528 = vadd.f32 %v1509, %v1523
  %v1529 = vadd.f32 %v1510, %v1523
  %v1530 = vadd.f32 %v1511, %v1523
  %v1531 = vadd.f32 %v1512, %v1523
  %v1532 = vadd.f32 %v1513, %v1523
  %v1533 = vadd.f32 %v1514, %v1523
  %v1534 = vadd.f32 %v1515, %v1523
  %v1535 = vadd.f32 %v1516, %v1523
  %v1536 = vadd.f32 %v1517, %v1523
  %v1537 = vadd.f32 %v1518, %v1523
  %v1538 = vadd.f32 %v1519, %v1523
  %v1539 = vadd.f32 %v1520, %v1523
  %v1540 = vadd.f32 %v1521, %v1523
  %v1541 = vmax.f32 %v1525, 0.0
  %v1542 = vmax.f32 %v1526, 0.0
  %v1543 = vmax.f32 %v1527, 0.0
  %v1544 = vmax.f32 %v1528, 0.0
  %v1545 = vmax.f32 %v1529, 0.0
  %v1546 = vmax.f32 %v1530, 0.0
  %v1547 = vmax.f32 %v1531, 0.0
  %v1548 = vmax.f32 %v1532, 0.0
  %v1549 = vmax.f32 %v1533, 0.0
  %v1550 = vmax.f32 %v1534, 0.0
  %v1551 = vmax.f32 %v1535, 0.0
  %v1552 = vmax.f32 %v1536, 0.0
  %v1553 = vmax.f32 %v1537, 0.0
  %v1554 = vmax.f32 %v1538, 0.0
  %v1555 = vmax.f32 %v1539, 0.0
  %v1556 = vmax.f32 %v1540, 0.0
  %v1557 = vpack.c.bf16 %v1541, %v1541
  %v1558 = vpack.c.bf16 %v1542, %v1542
  %v1559 = vpack.c.bf16 %v1543, %v1543
  %v1560 = vpack.c.bf16 %v1544, %v1544
  %v1561 = vpack.c.bf16 %v1545, %v1545
  %v1562 = vpack.c.bf16 %v1546, %v1546
  %v1563 = vpack.c.bf16 %v1547, %v1547
  %v1564 = vpack.c.bf16 %v1548, %v1548
  %v1565 = vpack.c.bf16 %v1549, %v1549
  %v1566 = vpack.c.bf16 %v1550, %v1550
  %v1567 = vpack.c.bf16 %v1551, %v1551
  %v1568 = vpack.c.bf16 %v1552, %v1552
  %v1569 = vpack.c.bf16 %v1553, %v1553
  %v1570 = vpack.c.bf16 %v1554, %v1554
  %v1571 = vpack.c.bf16 %v1555, %v1555
  %v1572 = vpack.c.bf16 %v1556, %v1556
  %1573 = vst [vmem:[%s4] sm:$0xf] %v1557
  %1574 = vst [vmem:[%s4 + $0x4] sm:$0xf] %v1558
  %1575 = vst [vmem:[%s4 + $0x8] sm:$0xf] %v1559
  %1576 = vst [vmem:[%s4 + $0xc] sm:$0xf] %v1560
  %1577 = vst [vmem:[%s4 + $0x10] sm:$0xf] %v1561
  %1578 = vst [vmem:[%s4 + $0x14] sm:$0xf] %v1562
  %1579 = vst [vmem:[%s4 + $0x18] sm:$0xf] %v1563
  %1580 = vst [vmem:[%s4 + $0x1c] sm:$0xf] %v1564
  %1581 = vst [vmem:[%s4 + $0x20] sm:$0xf] %v1565
  %1582 = vst [vmem:[%s4 + $0x24] sm:$0xf] %v1566
  %1583 = vst [vmem:[%s4 + $0x28] sm:$0xf] %v1567
  %1584 = vst [vmem:[%s4 + $0x2c] sm:$0xf] %v1568
  %1585 = vst [vmem:[%s4 + $0x30] sm:$0xf] %v1569
  %1586 = vst [vmem:[%s4 + $0x34] sm:$0xf] %v1570
  %1587 = vst [vmem:[%s4 + $0x38] sm:$0xf] %v1571
  %1588 = vst [vmem:[%s4 + $0x3c] sm:$0xf] %v1572
  // Predicated region
  $region18: #{_lambda_.29} parent=0 // pred_check
    _
  $region19: #{_lambda_.29} parent=0 // pred_check_branch
    %1590 = sbr.rel (0) target = $region21
  $region20: #{_lambda_.29} parent=0 // pred_region
    _
  $region21: #{_lambda_.29} parent=0 // pred_fallthru
    _
  // Predicated region
  $region22: #{_lambda_.29} parent=0 // pred_check
    _
  $region23: #{_lambda_.29} parent=0 // pred_check_branch
    %1592 = sbr.rel (0) target = $region25
  $region24: #{_lambda_.29} parent=0 // pred_region
    _
  $region25: #{_lambda_.29} parent=0 // pred_fallthru
    _

// kernel: _lambda_.31
$region0: #{_lambda_.31}
  #allocation0 [shape = 'u32[]', space=smem, size = 0x4, offset = 0x4, fixed_abs, tag = 'smem constant byte address 0x4 - core index']
  #allocation1 [shape = 'u32[72,128]{1,0:T(1,128)}', space=vmem, size = 0x9000, scoped, tag = 'internal scratch']
  %s0 = inlined_call_operand.vmem [shape: bf16[2,10,10,128], index: 0, kind: input, shape index: {}]
  %s1 = inlined_call_operand.vmem [shape: f32[9,128], index: 1, kind: input, shape index: {}]
  %s2 = inlined_call_operand.vmem [shape: f32[1,128], index: 2, kind: input, shape index: {}]
  %s3 = inlined_call_operand.vmem [shape: f32[1,128], index: 3, kind: input, shape index: {}]
  %s4 = inlined_call_operand.vmem [shape: bf16[2,8,8,128], index: 4, kind: output, shape index: {}]
  %s5 = sld [smem:[#allocation0]]
  $region26: #{_lambda_.31} parent=0
    _
  %s7 = ssub.s32 1, %s5
  %s8 = scalar_select 0, %s7, %s5
  // Predicated region
  $region2: #{_lambda_.31} parent=0 // pred_check
    _
  $region3: #{_lambda_.31} parent=0 // pred_check_branch
    %10 = sbr.rel (0) target = $region5
  $region4: #{_lambda_.31} parent=0 // pred_region
    _
  $region5: #{_lambda_.31} parent=0 // pred_fallthru
    _
  // Predicated region
  $region6: #{_lambda_.31} parent=0 // pred_check
    _
  $region7: #{_lambda_.31} parent=0 // pred_check_branch
    %12 = sbr.rel (0) target = $region9
  $region8: #{_lambda_.31} parent=0 // pred_region
    _
  $region9: #{_lambda_.31} parent=0 // pred_fallthru
    _
  // Predicated region
  $region10: #{_lambda_.31} parent=0 // pred_check
    _
  $region11: #{_lambda_.31} parent=0 // pred_check_branch
    %14 = sbr.rel (0) target = $region13
  $region12: #{_lambda_.31} parent=0 // pred_region
    _
  $region13: #{_lambda_.31} parent=0 // pred_fallthru
    _
  // Predicated region
  $region14: #{_lambda_.31} parent=0 // pred_check
    _
  $region15: #{_lambda_.31} parent=0 // pred_check_branch
    %16 = sbr.rel (0) target = $region17
  $region16: #{_lambda_.31} parent=0 // pred_region
    _
  $region17: #{_lambda_.31} parent=0 // pred_fallthru
    _
  %v17 = vld [vmem:[%s1] sm:$0xff]
  %v18 = vld [vmem:[%s1 + $0x8] sm:$0x1]
  %v19 = vld [vmem:[%s0] sm:$0xf]
  %v20 = vld [vmem:[%s0 + $0x8] sm:$0xf]
  %v21 = vld [vmem:[%s0 + $0x10] sm:$0xf]
  %v22 = vld [vmem:[%s0 + $0x18] sm:$0xf]
  %v23 = vld [vmem:[%s0 + $0x20] sm:$0xf]
  %v24 = vld [vmem:[%s0 + $0x28] sm:$0xf]
  %v25 = vld [vmem:[%s0 + $0x30] sm:$0xf]
  %v26 = vld [vmem:[%s0 + $0x38] sm:$0xf]
  %v27 = vld [vmem:[%s0 + $0x50] sm:$0xf]
  %v28 = vld [vmem:[%s0 + $0x58] sm:$0xf]
  %v29 = vld [vmem:[%s0 + $0x60] sm:$0xf]
  %v30 = vld [vmem:[%s0 + $0x68] sm:$0xf]
  %v31 = vld [vmem:[%s0 + $0x70] sm:$0xf]
  %v32 = vld [vmem:[%s0 + $0x78] sm:$0xf]
  %v33 = vld [vmem:[%s0 + $0x80] sm:$0xf]
  %v34 = vld [vmem:[%s0 + $0x88] sm:$0xf]
  %v35 = vunpack.c.l.bf16 %v19
  %v36 = vunpack.c.l.bf16 %v20
  %v37 = vunpack.c.l.bf16 %v21
  %v38 = vunpack.c.l.bf16 %v22
  %v39 = vunpack.c.l.bf16 %v23
  %v40 = vunpack.c.l.bf16 %v24
  %v41 = vunpack.c.l.bf16 %v25
  %v42 = vunpack.c.l.bf16 %v26
  %v43 = vunpack.c.l.bf16 %v27
  %v44 = vunpack.c.l.bf16 %v28
  %v45 = vunpack.c.l.bf16 %v29
  %v46 = vunpack.c.l.bf16 %v30
  %v47 = vunpack.c.l.bf16 %v31
  %v48 = vunpack.c.l.bf16 %v32
  %v49 = vunpack.c.l.bf16 %v33
  %v50 = vunpack.c.l.bf16 %v34
  %v51 = vperm.slane %v17, 0
  %v52 = vmul.f32 %v35, %v51
  %v53 = vmul.f32 %v36, %v51
  %v54 = vmul.f32 %v37, %v51
  %v55 = vmul.f32 %v38, %v51
  %v56 = vmul.f32 %v39, %v51
  %v57 = vmul.f32 %v40, %v51
  %v58 = vmul.f32 %v41, %v51
  %v59 = vmul.f32 %v42, %v51
  %v60 = vmul.f32 %v43, %v51
  %v61 = vmul.f32 %v44, %v51
  %v62 = vmul.f32 %v45, %v51
  %v63 = vmul.f32 %v46, %v51
  %v64 = vmul.f32 %v47, %v51
  %v65 = vmul.f32 %v48, %v51
  %v66 = vmul.f32 %v49, %v51
  %v67 = vmul.f32 %v50, %v51
  %v68 = vld [vmem:[%s0 + $0x4] sm:$0x1]
  %v69 = vld [vmem:[%s0 + $0xc] sm:$0x1]
  %v70 = vld [vmem:[%s0 + $0x14] sm:$0x1]
  %v71 = vld [vmem:[%s0 + $0x1c] sm:$0x1]
  %v72 = vld [vmem:[%s0 + $0x24] sm:$0x1]
  %v73 = vld [vmem:[%s0 + $0x2c] sm:$0x1]
  %v74 = vld [vmem:[%s0 + $0x34] sm:$0x1]
  %v75 = vld [vmem:[%s0 + $0x3c] sm:$0x1]
  %v76 = vld [vmem:[%s0 + $0x54] sm:$0x1]
  %v77 = vld [vmem:[%s0 + $0x5c] sm:$0x1]
  %v78 = vld [vmem:[%s0 + $0x64] sm:$0x1]
  %v79 = vld [vmem:[%s0 + $0x6c] sm:$0x1]
  %v80 = vld [vmem:[%s0 + $0x74] sm:$0x1]
  %v81 = vld [vmem:[%s0 + $0x7c] sm:$0x1]
  %v82 = vld [vmem:[%s0 + $0x84] sm:$0x1]
  %v83 = vld [vmem:[%s0 + $0x8c] sm:$0x1]
  %v84 = vunpack.c.l.bf16 %v68
  %v85 = vunpack.c.l.bf16 %v69
  %v86 = vunpack.c.l.bf16 %v70
  %v87 = vunpack.c.l.bf16 %v71
  %v88 = vunpack.c.l.bf16 %v72
  %v89 = vunpack.c.l.bf16 %v73
  %v90 = vunpack.c.l.bf16 %v74
  %v91 = vunpack.c.l.bf16 %v75
  %v92 = vunpack.c.l.bf16 %v76
  %v93 = vunpack.c.l.bf16 %v77
  %v94 = vunpack.c.l.bf16 %v78
  %v95 = vunpack.c.l.bf16 %v79
  %v96 = vunpack.c.l.bf16 %v80
  %v97 = vunpack.c.l.bf16 %v81
  %v98 = vunpack.c.l.bf16 %v82
  %v99 = vunpack.c.l.bf16 %v83
  %v100 = vperm.slane %v17, 1
  %v101 = vmul.f32 %v35, %v100
  %v102 = vmul.f32 %v84, %v100
  %v103 = vmul.f32 %v36, %v100
  %v104 = vmul.f32 %v85, %v100
  %v105 = vmul.f32 %v37, %v100
  %v106 = vmul.f32 %v86, %v100
  %v107 = vmul.f32 %v38, %v100
  %v108 = vmul.f32 %v87, %v100
  %v109 = vmul.f32 %v39, %v100
  %v110 = vmul.f32 %v88, %v100
  %v111 = vmul.f32 %v40, %v100
  %v112 = vmul.f32 %v89, %v100
  %v113 = vmul.f32 %v41, %v100
  %v114 = vmul.f32 %v90, %v100
  %v115 = vmul.f32 %v42, %v100
  %v116 = vmul.f32 %v91, %v100
  %v117 = vmul.f32 %v43, %v100
  %v118 = vmul.f32 %v92, %v100
  %v119 = vmul.f32 %v44, %v100
  %v120 = vmul.f32 %v93, %v100
  %v121 = vmul.f32 %v45, %v100
  %v122 = vmul.f32 %v94, %v100
  %v123 = vmul.f32 %v46, %v100
  %v124 = vmul.f32 %v95, %v100
  %v125 = vmul.f32 %v47, %v100
  %v126 = vmul.f32 %v96, %v100
  %v127 = vmul.f32 %v48, %v100
  %v128 = vmul.f32 %v97, %v100
  %v129 = vmul.f32 %v49, %v100
  %v130 = vmul.f32 %v98, %v100
  %v131 = vmul.f32 %v50, %v100
  %v132 = vmul.f32 %v99, %v100
  %v133 = vld [vmem:[%s0] sm:$0xe]
  %v134 = vld [vmem:[%s0 + $0x8] sm:$0xe]
  %v135 = vld [vmem:[%s0 + $0x10] sm:$0xe]
  %v136 = vld [vmem:[%s0 + $0x18] sm:$0xe]
  %v137 = vld [vmem:[%s0 + $0x20] sm:$0xe]
  %v138 = vld [vmem:[%s0 + $0x28] sm:$0xe]
  %v139 = vld [vmem:[%s0 + $0x30] sm:$0xe]
  %v140 = vld [vmem:[%s0 + $0x38] sm:$0xe]
  %v141 = vld [vmem:[%s0 + $0x50] sm:$0xe]
  %v142 = vld [vmem:[%s0 + $0x58] sm:$0xe]
  %v143 = vld [vmem:[%s0 + $0x60] sm:$0xe]
  %v144 = vld [vmem:[%s0 + $0x68] sm:$0xe]
  %v145 = vld [vmem:[%s0 + $0x70] sm:$0xe]
  %v146 = vld [vmem:[%s0 + $0x78] sm:$0xe]
  %v147 = vld [vmem:[%s0 + $0x80] sm:$0xe]
  %v148 = vld [vmem:[%s0 + $0x88] sm:$0xe]
  %v149 = vunpack.c.l.bf16 %v133
  %v150 = vunpack.c.l.bf16 %v134
  %v151 = vunpack.c.l.bf16 %v135
  %v152 = vunpack.c.l.bf16 %v136
  %v153 = vunpack.c.l.bf16 %v137
  %v154 = vunpack.c.l.bf16 %v138
  %v155 = vunpack.c.l.bf16 %v139
  %v156 = vunpack.c.l.bf16 %v140
  %v157 = vunpack.c.l.bf16 %v141
  %v158 = vunpack.c.l.bf16 %v142
  %v159 = vunpack.c.l.bf16 %v143
  %v160 = vunpack.c.l.bf16 %v144
  %v161 = vunpack.c.l.bf16 %v145
  %v162 = vunpack.c.l.bf16 %v146
  %v163 = vunpack.c.l.bf16 %v147
  %v164 = vunpack.c.l.bf16 %v148
  %v165 = vperm.slane %v17, 2
  %v166 = vmul.f32 %v149, %v165
  %v167 = vmul.f32 %v84, %v165
  %v168 = vmul.f32 %v150, %v165
  %v169 = vmul.f32 %v85, %v165
  %v170 = vmul.f32 %v151, %v165
  %v171 = vmul.f32 %v86, %v165
  %v172 = vmul.f32 %v152, %v165
  %v173 = vmul.f32 %v87, %v165
  %v174 = vmul.f32 %v153, %v165
  %v175 = vmul.f32 %v88, %v165
  %v176 = vmul.f32 %v154, %v165
  %v177 = vmul.f32 %v89, %v165
  %v178 = vmul.f32 %v155, %v165
  %v179 = vmul.f32 %v90, %v165
  %v180 = vmul.f32 %v156, %v165
  %v181 = vmul.f32 %v91, %v165
  %v182 = vmul.f32 %v157, %v165
  %v183 = vmul.f32 %v92, %v165
  %v184 = vmul.f32 %v158, %v165
  %v185 = vmul.f32 %v93, %v165
  %v186 = vmul.f32 %v159, %v165
  %v187 = vmul.f32 %v94, %v165
  %v188 = vmul.f32 %v160, %v165
  %v189 = vmul.f32 %v95, %v165
  %v190 = vmul.f32 %v161, %v165
  %v191 = vmul.f32 %v96, %v165
  %v192 = vmul.f32 %v162, %v165
  %v193 = vmul.f32 %v97, %v165
  %v194 = vmul.f32 %v163, %v165
  %v195 = vmul.f32 %v98, %v165
  %v196 = vmul.f32 %v164, %v165
  %v197 = vmul.f32 %v99, %v165
  %s198 = scalar_lea.vmem %s0, 8
  %v199 = vld [vmem:[%s198] sm:$0xf]
  %v200 = vld [vmem:[%s198 + $0x8] sm:$0xf]
  %v201 = vld [vmem:[%s198 + $0x10] sm:$0xf]
  %v202 = vld [vmem:[%s198 + $0x18] sm:$0xf]
  %v203 = vld [vmem:[%s198 + $0x20] sm:$0xf]
  %v204 = vld [vmem:[%s198 + $0x28] sm:$0xf]
  %v205 = vld [vmem:[%s198 + $0x30] sm:$0xf]
  %v206 = vld [vmem:[%s198 + $0x38] sm:$0xf]
  %v207 = vld [vmem:[%s198 + $0x50] sm:$0xf]
  %v208 = vld [vmem:[%s198 + $0x58] sm:$0xf]
  %v209 = vld [vmem:[%s198 + $0x60] sm:$0xf]
  %v210 = vld [vmem:[%s198 + $0x68] sm:$0xf]
  %v211 = vld [vmem:[%s198 + $0x70] sm:$0xf]
  %v212 = vld [vmem:[%s198 + $0x78] sm:$0xf]
  %v213 = vld [vmem:[%s198 + $0x80] sm:$0xf]
  %v214 = vld [vmem:[%s198 + $0x88] sm:$0xf]
  %v215 = vunpack.c.l.bf16 %v199
  %v216 = vunpack.c.l.bf16 %v200
  %v217 = vunpack.c.l.bf16 %v201
  %v218 = vunpack.c.l.bf16 %v202
  %v219 = vunpack.c.l.bf16 %v203
  %v220 = vunpack.c.l.bf16 %v204
  %v221 = vunpack.c.l.bf16 %v205
  %v222 = vunpack.c.l.bf16 %v206
  %v223 = vunpack.c.l.bf16 %v207
  %v224 = vunpack.c.l.bf16 %v208
  %v225 = vunpack.c.l.bf16 %v209
  %v226 = vunpack.c.l.bf16 %v210
  %v227 = vunpack.c.l.bf16 %v211
  %v228 = vunpack.c.l.bf16 %v212
  %v229 = vunpack.c.l.bf16 %v213
  %v230 = vunpack.c.l.bf16 %v214
  %v231 = vperm.slane %v17, 3
  %v232 = vmul.f32 %v215, %v231
  %v233 = vmul.f32 %v216, %v231
  %v234 = vmul.f32 %v217, %v231
  %v235 = vmul.f32 %v218, %v231
  %v236 = vmul.f32 %v219, %v231
  %v237 = vmul.f32 %v220, %v231
  %v238 = vmul.f32 %v221, %v231
  %v239 = vmul.f32 %v222, %v231
  %v240 = vmul.f32 %v223, %v231
  %v241 = vmul.f32 %v224, %v231
  %v242 = vmul.f32 %v225, %v231
  %v243 = vmul.f32 %v226, %v231
  %v244 = vmul.f32 %v227, %v231
  %v245 = vmul.f32 %v228, %v231
  %v246 = vmul.f32 %v229, %v231
  %v247 = vmul.f32 %v230, %v231
  %v248 = vld [vmem:[%s198 + $0x4] sm:$0x1]
  %v249 = vld [vmem:[%s198 + $0xc] sm:$0x1]
  %v250 = vld [vmem:[%s198 + $0x14] sm:$0x1]
  %v251 = vld [vmem:[%s198 + $0x1c] sm:$0x1]
  %v252 = vld [vmem:[%s198 + $0x24] sm:$0x1]
  %v253 = vld [vmem:[%s198 + $0x2c] sm:$0x1]
  %v254 = vld [vmem:[%s198 + $0x34] sm:$0x1]
  %v255 = vld [vmem:[%s198 + $0x3c] sm:$0x1]
  %v256 = vld [vmem:[%s198 + $0x54] sm:$0x1]
  %v257 = vld [vmem:[%s198 + $0x5c] sm:$0x1]
  %v258 = vld [vmem:[%s198 + $0x64] sm:$0x1]
  %v259 = vld [vmem:[%s198 + $0x6c] sm:$0x1]
  %v260 = vld [vmem:[%s198 + $0x74] sm:$0x1]
  %v261 = vld [vmem:[%s198 + $0x7c] sm:$0x1]
  %v262 = vld [vmem:[%s198 + $0x84] sm:$0x1]
  %v263 = vld [vmem:[%s198 + $0x8c] sm:$0x1]
  %v264 = vunpack.c.l.bf16 %v248
  %v265 = vunpack.c.l.bf16 %v249
  %v266 = vunpack.c.l.bf16 %v250
  %v267 = vunpack.c.l.bf16 %v251
  %v268 = vunpack.c.l.bf16 %v252
  %v269 = vunpack.c.l.bf16 %v253
  %v270 = vunpack.c.l.bf16 %v254
  %v271 = vunpack.c.l.bf16 %v255
  %v272 = vunpack.c.l.bf16 %v256
  %v273 = vunpack.c.l.bf16 %v257
  %v274 = vunpack.c.l.bf16 %v258
  %v275 = vunpack.c.l.bf16 %v259
  %v276 = vunpack.c.l.bf16 %v260
  %v277 = vunpack.c.l.bf16 %v261
  %v278 = vunpack.c.l.bf16 %v262
  %v279 = vunpack.c.l.bf16 %v263
  %v280 = vperm.slane %v17, 4
  %v281 = vmul.f32 %v215, %v280
  %v282 = vmul.f32 %v264, %v280
  %v283 = vmul.f32 %v216, %v280
  %v284 = vmul.f32 %v265, %v280
  %v285 = vmul.f32 %v217, %v280
  %v286 = vmul.f32 %v266, %v280
  %v287 = vmul.f32 %v218, %v280
  %v288 = vmul.f32 %v267, %v280
  %v289 = vmul.f32 %v219, %v280
  %v290 = vmul.f32 %v268, %v280
  %v291 = vmul.f32 %v220, %v280
  %v292 = vmul.f32 %v269, %v280
  %v293 = vmul.f32 %v221, %v280
  %v294 = vmul.f32 %v270, %v280
  %v295 = vmul.f32 %v222, %v280
  %v296 = vmul.f32 %v271, %v280
  %v297 = vmul.f32 %v223, %v280
  %v298 = vmul.f32 %v272, %v280
  %v299 = vmul.f32 %v224, %v280
  %v300 = vmul.f32 %v273, %v280
  %v301 = vmul.f32 %v225, %v280
  %v302 = vmul.f32 %v274, %v280
  %v303 = vmul.f32 %v226, %v280
  %v304 = vmul.f32 %v275, %v280
  %v305 = vmul.f32 %v227, %v280
  %v306 = vmul.f32 %v276, %v280
  %v307 = vmul.f32 %v228, %v280
  %v308 = vmul.f32 %v277, %v280
  %v309 = vmul.f32 %v229, %v280
  %v310 = vmul.f32 %v278, %v280
  %v311 = vmul.f32 %v230, %v280
  %v312 = vmul.f32 %v279, %v280
  %v313 = vld [vmem:[%s198] sm:$0xe]
  %v314 = vld [vmem:[%s198 + $0x8] sm:$0xe]
  %v315 = vld [vmem:[%s198 + $0x10] sm:$0xe]
  %v316 = vld [vmem:[%s198 + $0x18] sm:$0xe]
  %v317 = vld [vmem:[%s198 + $0x20] sm:$0xe]
  %v318 = vld [vmem:[%s198 + $0x28] sm:$0xe]
  %v319 = vld [vmem:[%s198 + $0x30] sm:$0xe]
  %v320 = vld [vmem:[%s198 + $0x38] sm:$0xe]
  %v321 = vld [vmem:[%s198 + $0x50] sm:$0xe]
  %v322 = vld [vmem:[%s198 + $0x58] sm:$0xe]
  %v323 = vld [vmem:[%s198 + $0x60] sm:$0xe]
  %v324 = vld [vmem:[%s198 + $0x68] sm:$0xe]
  %v325 = vld [vmem:[%s198 + $0x70] sm:$0xe]
  %v326 = vld [vmem:[%s198 + $0x78] sm:$0xe]
  %v327 = vld [vmem:[%s198 + $0x80] sm:$0xe]
  %v328 = vld [vmem:[%s198 + $0x88] sm:$0xe]
  %v329 = vunpack.c.l.bf16 %v313
  %v330 = vunpack.c.l.bf16 %v314
  %v331 = vunpack.c.l.bf16 %v315
  %v332 = vunpack.c.l.bf16 %v316
  %v333 = vunpack.c.l.bf16 %v317
  %v334 = vunpack.c.l.bf16 %v318
  %v335 = vunpack.c.l.bf16 %v319
  %v336 = vunpack.c.l.bf16 %v320
  %v337 = vunpack.c.l.bf16 %v321
  %v338 = vunpack.c.l.bf16 %v322
  %v339 = vunpack.c.l.bf16 %v323
  %v340 = vunpack.c.l.bf16 %v324
  %v341 = vunpack.c.l.bf16 %v325
  %v342 = vunpack.c.l.bf16 %v326
  %v343 = vunpack.c.l.bf16 %v327
  %v344 = vunpack.c.l.bf16 %v328
  %v345 = vperm.slane %v17, 5
  %v346 = vmul.f32 %v329, %v345
  %v347 = vmul.f32 %v264, %v345
  %v348 = vmul.f32 %v330, %v345
  %v349 = vmul.f32 %v265, %v345
  %v350 = vmul.f32 %v331, %v345
  %v351 = vmul.f32 %v266, %v345
  %v352 = vmul.f32 %v332, %v345
  %v353 = vmul.f32 %v267, %v345
  %v354 = vmul.f32 %v333, %v345
  %v355 = vmul.f32 %v268, %v345
  %v356 = vmul.f32 %v334, %v345
  %v357 = vmul.f32 %v269, %v345
  %v358 = vmul.f32 %v335, %v345
  %v359 = vmul.f32 %v270, %v345
  %v360 = vmul.f32 %v336, %v345
  %v361 = vmul.f32 %v271, %v345
  %v362 = vmul.f32 %v337, %v345
  %v363 = vmul.f32 %v272, %v345
  %v364 = vmul.f32 %v338, %v345
  %v365 = vmul.f32 %v273, %v345
  %v366 = vmul.f32 %v339, %v345
  %v367 = vmul.f32 %v274, %v345
  %v368 = vmul.f32 %v340, %v345
  %v369 = vmul.f32 %v275, %v345
  %v370 = vmul.f32 %v341, %v345
  %v371 = vmul.f32 %v276, %v345
  %v372 = vmul.f32 %v342, %v345
  %v373 = vmul.f32 %v277, %v345
  %v374 = vmul.f32 %v343, %v345
  %v375 = vmul.f32 %v278, %v345
  %v376 = vmul.f32 %v344, %v345
  %v377 = vmul.f32 %v279, %v345
  %s378 = scalar_lea.vmem %s0, 16
  %v379 = vld [vmem:[%s378] sm:$0xf]
  %v380 = vld [vmem:[%s378 + $0x8] sm:$0xf]
  %v381 = vld [vmem:[%s378 + $0x10] sm:$0xf]
  %v382 = vld [vmem:[%s378 + $0x18] sm:$0xf]
  %v383 = vld [vmem:[%s378 + $0x20] sm:$0xf]
  %v384 = vld [vmem:[%s378 + $0x28] sm:$0xf]
  %v385 = vld [vmem:[%s378 + $0x30] sm:$0xf]
  %v386 = vld [vmem:[%s378 + $0x38] sm:$0xf]
  %v387 = vld [vmem:[%s378 + $0x50] sm:$0xf]
  %v388 = vld [vmem:[%s378 + $0x58] sm:$0xf]
  %v389 = vld [vmem:[%s378 + $0x60] sm:$0xf]
  %v390 = vld [vmem:[%s378 + $0x68] sm:$0xf]
  %v391 = vld [vmem:[%s378 + $0x70] sm:$0xf]
  %v392 = vld [vmem:[%s378 + $0x78] sm:$0xf]
  %v393 = vld [vmem:[%s378 + $0x80] sm:$0xf]
  %v394 = vld [vmem:[%s378 + $0x88] sm:$0xf]
  %v395 = vunpack.c.l.bf16 %v379
  %v396 = vunpack.c.l.bf16 %v380
  %v397 = vunpack.c.l.bf16 %v381
  %v398 = vunpack.c.l.bf16 %v382
  %v399 = vunpack.c.l.bf16 %v383
  %v400 = vunpack.c.l.bf16 %v384
  %v401 = vunpack.c.l.bf16 %v385
  %v402 = vunpack.c.l.bf16 %v386
  %v403 = vunpack.c.l.bf16 %v387
  %v404 = vunpack.c.l.bf16 %v388
  %v405 = vunpack.c.l.bf16 %v389
  %v406 = vunpack.c.l.bf16 %v390
  %v407 = vunpack.c.l.bf16 %v391
  %v408 = vunpack.c.l.bf16 %v392
  %v409 = vunpack.c.l.bf16 %v393
  %v410 = vunpack.c.l.bf16 %v394
  %v411 = vperm.slane %v17, 6
  %v412 = vmul.f32 %v395, %v411
  %v413 = vmul.f32 %v396, %v411
  %v414 = vmul.f32 %v397, %v411
  %v415 = vmul.f32 %v398, %v411
  %v416 = vmul.f32 %v399, %v411
  %v417 = vmul.f32 %v400, %v411
  %v418 = vmul.f32 %v401, %v411
  %v419 = vmul.f32 %v402, %v411
  %v420 = vmul.f32 %v403, %v411
  %v421 = vmul.f32 %v404, %v411
  %v422 = vmul.f32 %v405, %v411
  %v423 = vmul.f32 %v406, %v411
  %v424 = vmul.f32 %v407, %v411
  %v425 = vmul.f32 %v408, %v411
  %v426 = vmul.f32 %v409, %v411
  %v427 = vmul.f32 %v410, %v411
  %v428 = vld [vmem:[%s378 + $0x4] sm:$0x1]
  %v429 = vld [vmem:[%s378 + $0xc] sm:$0x1]
  %v430 = vld [vmem:[%s378 + $0x14] sm:$0x1]
  %v431 = vld [vmem:[%s378 + $0x1c] sm:$0x1]
  %v432 = vld [vmem:[%s378 + $0x24] sm:$0x1]
  %v433 = vld [vmem:[%s378 + $0x2c] sm:$0x1]
  %v434 = vld [vmem:[%s378 + $0x34] sm:$0x1]
  %v435 = vld [vmem:[%s378 + $0x3c] sm:$0x1]
  %v436 = vld [vmem:[%s378 + $0x54] sm:$0x1]
  %v437 = vld [vmem:[%s378 + $0x5c] sm:$0x1]
  %v438 = vld [vmem:[%s378 + $0x64] sm:$0x1]
  %v439 = vld [vmem:[%s378 + $0x6c] sm:$0x1]
  %v440 = vld [vmem:[%s378 + $0x74] sm:$0x1]
  %v441 = vld [vmem:[%s378 + $0x7c] sm:$0x1]
  %v442 = vld [vmem:[%s378 + $0x84] sm:$0x1]
  %v443 = vld [vmem:[%s378 + $0x8c] sm:$0x1]
  %v444 = vunpack.c.l.bf16 %v428
  %v445 = vunpack.c.l.bf16 %v429
  %v446 = vunpack.c.l.bf16 %v430
  %v447 = vunpack.c.l.bf16 %v431
  %v448 = vunpack.c.l.bf16 %v432
  %v449 = vunpack.c.l.bf16 %v433
  %v450 = vunpack.c.l.bf16 %v434
  %v451 = vunpack.c.l.bf16 %v435
  %v452 = vunpack.c.l.bf16 %v436
  %v453 = vunpack.c.l.bf16 %v437
  %v454 = vunpack.c.l.bf16 %v438
  %v455 = vunpack.c.l.bf16 %v439
  %v456 = vunpack.c.l.bf16 %v440
  %v457 = vunpack.c.l.bf16 %v441
  %v458 = vunpack.c.l.bf16 %v442
  %v459 = vunpack.c.l.bf16 %v443
  %v460 = vperm.slane %v17, 7
  %v461 = vmul.f32 %v395, %v460
  %v462 = vmul.f32 %v444, %v460
  %v463 = vmul.f32 %v396, %v460
  %v464 = vmul.f32 %v445, %v460
  %v465 = vmul.f32 %v397, %v460
  %v466 = vmul.f32 %v446, %v460
  %v467 = vmul.f32 %v398, %v460
  %v468 = vmul.f32 %v447, %v460
  %v469 = vmul.f32 %v399, %v460
  %v470 = vmul.f32 %v448, %v460
  %v471 = vmul.f32 %v400, %v460
  %v472 = vmul.f32 %v449, %v460
  %v473 = vmul.f32 %v401, %v460
  %v474 = vmul.f32 %v450, %v460
  %v475 = vmul.f32 %v402, %v460
  %v476 = vmul.f32 %v451, %v460
  %v477 = vmul.f32 %v403, %v460
  %v478 = vmul.f32 %v452, %v460
  %v479 = vmul.f32 %v404, %v460
  %v480 = vmul.f32 %v453, %v460
  %v481 = vmul.f32 %v405, %v460
  %v482 = vmul.f32 %v454, %v460
  %v483 = vmul.f32 %v406, %v460
  %v484 = vmul.f32 %v455, %v460
  %v485 = vmul.f32 %v407, %v460
  %v486 = vmul.f32 %v456, %v460
  %v487 = vmul.f32 %v408, %v460
  %v488 = vmul.f32 %v457, %v460
  %v489 = vmul.f32 %v409, %v460
  %v490 = vmul.f32 %v458, %v460
  %v491 = vmul.f32 %v410, %v460
  %v492 = vmul.f32 %v459, %v460
  %v493 = vld [vmem:[%s378] sm:$0xe]
  %v494 = vld [vmem:[%s378 + $0x8] sm:$0xe]
  %v495 = vld [vmem:[%s378 + $0x10] sm:$0xe]
  %v496 = vld [vmem:[%s378 + $0x18] sm:$0xe]
  %v497 = vld [vmem:[%s378 + $0x20] sm:$0xe]
  %v498 = vld [vmem:[%s378 + $0x28] sm:$0xe]
  %v499 = vld [vmem:[%s378 + $0x30] sm:$0xe]
  %v500 = vld [vmem:[%s378 + $0x38] sm:$0xe]
  %v501 = vld [vmem:[%s378 + $0x50] sm:$0xe]
  %v502 = vld [vmem:[%s378 + $0x58] sm:$0xe]
  %v503 = vld [vmem:[%s378 + $0x60] sm:$0xe]
  %v504 = vld [vmem:[%s378 + $0x68] sm:$0xe]
  %v505 = vld [vmem:[%s378 + $0x70] sm:$0xe]
  %v506 = vld [vmem:[%s378 + $0x78] sm:$0xe]
  %v507 = vld [vmem:[%s378 + $0x80] sm:$0xe]
  %v508 = vld [vmem:[%s378 + $0x88] sm:$0xe]
  %v509 = vunpack.c.l.bf16 %v493
  %v510 = vunpack.c.l.bf16 %v494
  %v511 = vunpack.c.l.bf16 %v495
  %v512 = vunpack.c.l.bf16 %v496
  %v513 = vunpack.c.l.bf16 %v497
  %v514 = vunpack.c.l.bf16 %v498
  %v515 = vunpack.c.l.bf16 %v499
  %v516 = vunpack.c.l.bf16 %v500
  %v517 = vunpack.c.l.bf16 %v501
  %v518 = vunpack.c.l.bf16 %v502
  %v519 = vunpack.c.l.bf16 %v503
  %v520 = vunpack.c.l.bf16 %v504
  %v521 = vunpack.c.l.bf16 %v505
  %v522 = vunpack.c.l.bf16 %v506
  %v523 = vunpack.c.l.bf16 %v507
  %v524 = vunpack.c.l.bf16 %v508
  %v525 = vperm.slane %v18, 0
  %v526 = vmul.f32 %v509, %v525
  %v527 = vmul.f32 %v444, %v525
  %v528 = vmul.f32 %v510, %v525
  %v529 = vmul.f32 %v445, %v525
  %v530 = vmul.f32 %v511, %v525
  %v531 = vmul.f32 %v446, %v525
  %v532 = vmul.f32 %v512, %v525
  %v533 = vmul.f32 %v447, %v525
  %v534 = vmul.f32 %v513, %v525
  %v535 = vmul.f32 %v448, %v525
  %v536 = vmul.f32 %v514, %v525
  %v537 = vmul.f32 %v449, %v525
  %v538 = vmul.f32 %v515, %v525
  %v539 = vmul.f32 %v450, %v525
  %v540 = vmul.f32 %v516, %v525
  %v541 = vmul.f32 %v451, %v525
  %v542 = vmul.f32 %v517, %v525
  %v543 = vmul.f32 %v452, %v525
  %v544 = vmul.f32 %v518, %v525
  %v545 = vmul.f32 %v453, %v525
  %v546 = vmul.f32 %v519, %v525
  %v547 = vmul.f32 %v454, %v525
  %v548 = vmul.f32 %v520, %v525
  %v549 = vmul.f32 %v455, %v525
  %v550 = vmul.f32 %v521, %v525
  %v551 = vmul.f32 %v456, %v525
  %v552 = vmul.f32 %v522, %v525
  %v553 = vmul.f32 %v457, %v525
  %v554 = vmul.f32 %v523, %v525
  %v555 = vmul.f32 %v458, %v525
  %v556 = vmul.f32 %v524, %v525
  %v557 = vmul.f32 %v459, %v525
  %vm590 = vcmask 1046528
  %v591 = vrot.slane %v101, 1
  %v592 = vrot.slane %v102, 1
  %v593 = vsel %vm590, %v591, %v592
  %v594 = vrot.slane %v103, 1
  %v595 = vrot.slane %v104, 1
  %v596 = vsel %vm590, %v594, %v595
  %v597 = vrot.slane %v105, 1
  %v598 = vrot.slane %v106, 1
  %v599 = vsel %vm590, %v597, %v598
  %v600 = vrot.slane %v107, 1
  %v601 = vrot.slane %v108, 1
  %v602 = vsel %vm590, %v600, %v601
  %v603 = vrot.slane %v109, 1
  %v604 = vrot.slane %v110, 1
  %v605 = vsel %vm590, %v603, %v604
  %v606 = vrot.slane %v111, 1
  %v607 = vrot.slane %v112, 1
  %v608 = vsel %vm590, %v606, %v607
  %v609 = vrot.slane %v113, 1
  %v610 = vrot.slane %v114, 1
  %v611 = vsel %vm590, %v609, %v610
  %v612 = vrot.slane %v115, 1
  %v613 = vrot.slane %v116, 1
  %v614 = vsel %vm590, %v612, %v613
  %v615 = vrot.slane %v117, 1
  %v616 = vrot.slane %v118, 1
  %v617 = vsel %vm590, %v615, %v616
  %v618 = vrot.slane %v119, 1
  %v619 = vrot.slane %v120, 1
  %v620 = vsel %vm590, %v618, %v619
  %v621 = vrot.slane %v121, 1
  %v622 = vrot.slane %v122, 1
  %v623 = vsel %vm590, %v621, %v622
  %v624 = vrot.slane %v123, 1
  %v625 = vrot.slane %v124, 1
  %v626 = vsel %vm590, %v624, %v625
  %v627 = vrot.slane %v125, 1
  %v628 = vrot.slane %v126, 1
  %v629 = vsel %vm590, %v627, %v628
  %v630 = vrot.slane %v127, 1
  %v631 = vrot.slane %v128, 1
  %v632 = vsel %vm590, %v630, %v631
  %v633 = vrot.slane %v129, 1
  %v634 = vrot.slane %v130, 1
  %v635 = vsel %vm590, %v633, %v634
  %v636 = vrot.slane %v131, 1
  %v637 = vrot.slane %v132, 1
  %v638 = vsel %vm590, %v636, %v637
  %v655 = vadd.f32 %v52, %v593
  %v656 = vadd.f32 %v53, %v596
  %v657 = vadd.f32 %v54, %v599
  %v658 = vadd.f32 %v55, %v602
  %v659 = vadd.f32 %v56, %v605
  %v660 = vadd.f32 %v57, %v608
  %v661 = vadd.f32 %v58, %v611
  %v662 = vadd.f32 %v59, %v614
  %v663 = vadd.f32 %v60, %v617
  %v664 = vadd.f32 %v61, %v620
  %v665 = vadd.f32 %v62, %v623
  %v666 = vadd.f32 %v63, %v626
  %v667 = vadd.f32 %v64, %v629
  %v668 = vadd.f32 %v65, %v632
  %v669 = vadd.f32 %v66, %v635
  %v670 = vadd.f32 %v67, %v638
  %v687 = vrot.slane %v232, 6
  %v688 = vrot.slane %v233, 6
  %v689 = vrot.slane %v234, 6
  %v690 = vrot.slane %v235, 6
  %v691 = vrot.slane %v236, 6
  %v692 = vrot.slane %v237, 6
  %v693 = vrot.slane %v238, 6
  %v694 = vrot.slane %v239, 6
  %v695 = vrot.slane %v240, 6
  %v696 = vrot.slane %v241, 6
  %v697 = vrot.slane %v242, 6
  %v698 = vrot.slane %v243, 6
  %v699 = vrot.slane %v244, 6
  %v700 = vrot.slane %v245, 6
  %v701 = vrot.slane %v246, 6
  %v702 = vrot.slane %v247, 6
  %v719 = vadd.f32 %v166, %v687
  %v720 = vadd.f32 %v167, %v687
  %v721 = vadd.f32 %v168, %v688
  %v722 = vadd.f32 %v169, %v688
  %v723 = vadd.f32 %v170, %v689
  %v724 = vadd.f32 %v171, %v689
  %v725 = vadd.f32 %v172, %v690
  %v726 = vadd.f32 %v173, %v690
  %v727 = vadd.f32 %v174, %v691
  %v728 = vadd.f32 %v175, %v691
  %v729 = vadd.f32 %v176, %v692
  %v730 = vadd.f32 %v177, %v692
  %v731 = vadd.f32 %v178, %v693
  %v732 = vadd.f32 %v179, %v693
  %v733 = vadd.f32 %v180, %v694
  %v734 = vadd.f32 %v181, %v694
  %v735 = vadd.f32 %v182, %v695
  %v736 = vadd.f32 %v183, %v695
  %v737 = vadd.f32 %v184, %v696
  %v738 = vadd.f32 %v185, %v696
  %v739 = vadd.f32 %v186, %v697
  %v740 = vadd.f32 %v187, %v697
  %v741 = vadd.f32 %v188, %v698
  %v742 = vadd.f32 %v189, %v698
  %v743 = vadd.f32 %v190, %v699
  %v744 = vadd.f32 %v191, %v699
  %v745 = vadd.f32 %v192, %v700
  %v746 = vadd.f32 %v193, %v700
  %v747 = vadd.f32 %v194, %v701
  %v748 = vadd.f32 %v195, %v701
  %v749 = vadd.f32 %v196, %v702
  %v750 = vadd.f32 %v197, %v702
  %v783 = vrot.slane %v346, 1
  %v784 = vrot.slane %v347, 1
  %v785 = vsel %vm590, %v783, %v784
  %v786 = vrot.slane %v348, 1
  %v787 = vrot.slane %v349, 1
  %v788 = vsel %vm590, %v786, %v787
  %v789 = vrot.slane %v350, 1
  %v790 = vrot.slane %v351, 1
  %v791 = vsel %vm590, %v789, %v790
  %v792 = vrot.slane %v352, 1
  %v793 = vrot.slane %v353, 1
  %v794 = vsel %vm590, %v792, %v793
  %v795 = vrot.slane %v354, 1
  %v796 = vrot.slane %v355, 1
  %v797 = vsel %vm590, %v795, %v796
  %v798 = vrot.slane %v356, 1
  %v799 = vrot.slane %v357, 1
  %v800 = vsel %vm590, %v798, %v799
  %v801 = vrot.slane %v358, 1
  %v802 = vrot.slane %v359, 1
  %v803 = vsel %vm590, %v801, %v802
  %v804 = vrot.slane %v360, 1
  %v805 = vrot.slane %v361, 1
  %v806 = vsel %vm590, %v804, %v805
  %v807 = vrot.slane %v362, 1
  %v808 = vrot.slane %v363, 1
  %v809 = vsel %vm590, %v807, %v808
  %v810 = vrot.slane %v364, 1
  %v811 = vrot.slane %v365, 1
  %v812 = vsel %vm590, %v810, %v811
  %v813 = vrot.slane %v366, 1
  %v814 = vrot.slane %v367, 1
  %v815 = vsel %vm590, %v813, %v814
  %v816 = vrot.slane %v368, 1
  %v817 = vrot.slane %v369, 1
  %v818 = vsel %vm590, %v816, %v817
  %v819 = vrot.slane %v370, 1
  %v820 = vrot.slane %v371, 1
  %v821 = vsel %vm590, %v819, %v820
  %v822 = vrot.slane %v372, 1
  %v823 = vrot.slane %v373, 1
  %v824 = vsel %vm590, %v822, %v823
  %v825 = vrot.slane %v374, 1
  %v826 = vrot.slane %v375, 1
  %v827 = vsel %vm590, %v825, %v826
  %v828 = vrot.slane %v376, 1
  %v829 = vrot.slane %v377, 1
  %v830 = vsel %vm590, %v828, %v829
  %v863 = vadd.f32 %v281, %v785
  %v864 = vadd.f32 %v282, %v784
  %v865 = vadd.f32 %v283, %v788
  %v866 = vadd.f32 %v284, %v787
  %v867 = vadd.f32 %v285, %v791
  %v868 = vadd.f32 %v286, %v790
  %v869 = vadd.f32 %v287, %v794
  %v870 = vadd.f32 %v288, %v793
  %v871 = vadd.f32 %v289, %v797
  %v872 = vadd.f32 %v290, %v796
  %v873 = vadd.f32 %v291, %v800
  %v874 = vadd.f32 %v292, %v799
  %v875 = vadd.f32 %v293, %v803
  %v876 = vadd.f32 %v294, %v802
  %v877 = vadd.f32 %v295, %v806
  %v878 = vadd.f32 %v296, %v805
  %v879 = vadd.f32 %v297, %v809
  %v880 = vadd.f32 %v298, %v808
  %v881 = vadd.f32 %v299, %v812
  %v882 = vadd.f32 %v300, %v811
  %v883 = vadd.f32 %v301, %v815
  %v884 = vadd.f32 %v302, %v814
  %v885 = vadd.f32 %v303, %v818
  %v886 = vadd.f32 %v304, %v817
  %v887 = vadd.f32 %v305, %v821
  %v888 = vadd.f32 %v306, %v820
  %v889 = vadd.f32 %v307, %v824
  %v890 = vadd.f32 %v308, %v823
  %v891 = vadd.f32 %v309, %v827
  %v892 = vadd.f32 %v310, %v826
  %v893 = vadd.f32 %v311, %v830
  %v894 = vadd.f32 %v312, %v829
  %v927 = vrot.slane %v461, 1
  %v928 = vrot.slane %v462, 1
  %v929 = vsel %vm590, %v927, %v928
  %v930 = vrot.slane %v463, 1
  %v931 = vrot.slane %v464, 1
  %v932 = vsel %vm590, %v930, %v931
  %v933 = vrot.slane %v465, 1
  %v934 = vrot.slane %v466, 1
  %v935 = vsel %vm590, %v933, %v934
  %v936 = vrot.slane %v467, 1
  %v937 = vrot.slane %v468, 1
  %v938 = vsel %vm590, %v936, %v937
  %v939 = vrot.slane %v469, 1
  %v940 = vrot.slane %v470, 1
  %v941 = vsel %vm590, %v939, %v940
  %v942 = vrot.slane %v471, 1
  %v943 = vrot.slane %v472, 1
  %v944 = vsel %vm590, %v942, %v943
  %v945 = vrot.slane %v473, 1
  %v946 = vrot.slane %v474, 1
  %v947 = vsel %vm590, %v945, %v946
  %v948 = vrot.slane %v475, 1
  %v949 = vrot.slane %v476, 1
  %v950 = vsel %vm590, %v948, %v949
  %v951 = vrot.slane %v477, 1
  %v952 = vrot.slane %v478, 1
  %v953 = vsel %vm590, %v951, %v952
  %v954 = vrot.slane %v479, 1
  %v955 = vrot.slane %v480, 1
  %v956 = vsel %vm590, %v954, %v955
  %v957 = vrot.slane %v481, 1
  %v958 = vrot.slane %v482, 1
  %v959 = vsel %vm590, %v957, %v958
  %v960 = vrot.slane %v483, 1
  %v961 = vrot.slane %v484, 1
  %v962 = vsel %vm590, %v960, %v961
  %v963 = vrot.slane %v485, 1
  %v964 = vrot.slane %v486, 1
  %v965 = vsel %vm590, %v963, %v964
  %v966 = vrot.slane %v487, 1
  %v967 = vrot.slane %v488, 1
  %v968 = vsel %vm590, %v966, %v967
  %v969 = vrot.slane %v489, 1
  %v970 = vrot.slane %v490, 1
  %v971 = vsel %vm590, %v969, %v970
  %v972 = vrot.slane %v491, 1
  %v973 = vrot.slane %v492, 1
  %v974 = vsel %vm590, %v972, %v973
  %v991 = vadd.f32 %v412, %v929
  %v992 = vadd.f32 %v413, %v932
  %v993 = vadd.f32 %v414, %v935
  %v994 = vadd.f32 %v415, %v938
  %v995 = vadd.f32 %v416, %v941
  %v996 = vadd.f32 %v417, %v944
  %v997 = vadd.f32 %v418, %v947
  %v998 = vadd.f32 %v419, %v950
  %v999 = vadd.f32 %v420, %v953
  %v1000 = vadd.f32 %v421, %v956
  %v1001 = vadd.f32 %v422, %v959
  %v1002 = vadd.f32 %v423, %v962
  %v1003 = vadd.f32 %v424, %v965
  %v1004 = vadd.f32 %v425, %v968
  %v1005 = vadd.f32 %v426, %v971
  %v1006 = vadd.f32 %v427, %v974
  %vm1039 = vcmask 1045504
  %v1040 = vrot.slane %v719, 2
  %v1041 = vrot.slane %v720, 2
  %v1042 = vsel %vm1039, %v1040, %v1041
  %v1043 = vrot.slane %v721, 2
  %v1044 = vrot.slane %v722, 2
  %v1045 = vsel %vm1039, %v1043, %v1044
  %v1046 = vrot.slane %v723, 2
  %v1047 = vrot.slane %v724, 2
  %v1048 = vsel %vm1039, %v1046, %v1047
  %v1049 = vrot.slane %v725, 2
  %v1050 = vrot.slane %v726, 2
  %v1051 = vsel %vm1039, %v1049, %v1050
  %v1052 = vrot.slane %v727, 2
  %v1053 = vrot.slane %v728, 2
  %v1054 = vsel %vm1039, %v1052, %v1053
  %v1055 = vrot.slane %v729, 2
  %v1056 = vrot.slane %v730, 2
  %v1057 = vsel %vm1039, %v1055, %v1056
  %v1058 = vrot.slane %v731, 2
  %v1059 = vrot.slane %v732, 2
  %v1060 = vsel %vm1039, %v1058, %v1059
  %v1061 = vrot.slane %v733, 2
  %v1062 = vrot.slane %v734, 2
  %v1063 = vsel %vm1039, %v1061, %v1062
  %v1064 = vrot.slane %v735, 2
  %v1065 = vrot.slane %v736, 2
  %v1066 = vsel %vm1039, %v1064, %v1065
  %v1067 = vrot.slane %v737, 2
  %v1068 = vrot.slane %v738, 2
  %v1069 = vsel %vm1039, %v1067, %v1068
  %v1070 = vrot.slane %v739, 2
  %v1071 = vrot.slane %v740, 2
  %v1072 = vsel %vm1039, %v1070, %v1071
  %v1073 = vrot.slane %v741, 2
  %v1074 = vrot.slane %v742, 2
  %v1075 = vsel %vm1039, %v1073, %v1074
  %v1076 = vrot.slane %v743, 2
  %v1077 = vrot.slane %v744, 2
  %v1078 = vsel %vm1039, %v1076, %v1077
  %v1079 = vrot.slane %v745, 2
  %v1080 = vrot.slane %v746, 2
  %v1081 = vsel %vm1039, %v1079, %v1080
  %v1082 = vrot.slane %v747, 2
  %v1083 = vrot.slane %v748, 2
  %v1084 = vsel %vm1039, %v1082, %v1083
  %v1085 = vrot.slane %v749, 2
  %v1086 = vrot.slane %v750, 2
  %v1087 = vsel %vm1039, %v1085, %v1086
  %v1104 = vadd.f32 %v655, %v1042
  %v1105 = vadd.f32 %v656, %v1045
  %v1106 = vadd.f32 %v657, %v1048
  %v1107 = vadd.f32 %v658, %v1051
  %v1108 = vadd.f32 %v659, %v1054
  %v1109 = vadd.f32 %v660, %v1057
  %v1110 = vadd.f32 %v661, %v1060
  %v1111 = vadd.f32 %v662, %v1063
  %v1112 = vadd.f32 %v663, %v1066
  %v1113 = vadd.f32 %v664, %v1069
  %v1114 = vadd.f32 %v665, %v1072
  %v1115 = vadd.f32 %v666, %v1075
  %v1116 = vadd.f32 %v667, %v1078
  %v1117 = vadd.f32 %v668, %v1081
  %v1118 = vadd.f32 %v669, %v1084
  %v1119 = vadd.f32 %v670, %v1087
  %v1136 = vrot.slane %v991, 7
  %v1137 = vrot.slane %v992, 7
  %v1138 = vrot.slane %v993, 7
  %v1139 = vrot.slane %v994, 7
  %v1140 = vrot.slane %v995, 7
  %v1141 = vrot.slane %v996, 7
  %v1142 = vrot.slane %v997, 7
  %v1143 = vrot.slane %v998, 7
  %v1144 = vrot.slane %v999, 7
  %v1145 = vrot.slane %v1000, 7
  %v1146 = vrot.slane %v1001, 7
  %v1147 = vrot.slane %v1002, 7
  %v1148 = vrot.slane %v1003, 7
  %v1149 = vrot.slane %v1004, 7
  %v1150 = vrot.slane %v1005, 7
  %v1151 = vrot.slane %v1006, 7
  %v1168 = vadd.f32 %v863, %v1136
  %v1169 = vadd.f32 %v864, %v1136
  %v1170 = vadd.f32 %v865, %v1137
  %v1171 = vadd.f32 %v866, %v1137
  %v1172 = vadd.f32 %v867, %v1138
  %v1173 = vadd.f32 %v868, %v1138
  %v1174 = vadd.f32 %v869, %v1139
  %v1175 = vadd.f32 %v870, %v1139
  %v1176 = vadd.f32 %v871, %v1140
  %v1177 = vadd.f32 %v872, %v1140
  %v1178 = vadd.f32 %v873, %v1141
  %v1179 = vadd.f32 %v874, %v1141
  %v1180 = vadd.f32 %v875, %v1142
  %v1181 = vadd.f32 %v876, %v1142
  %v1182 = vadd.f32 %v877, %v1143
  %v1183 = vadd.f32 %v878, %v1143
  %v1184 = vadd.f32 %v879, %v1144
  %v1185 = vadd.f32 %v880, %v1144
  %v1186 = vadd.f32 %v881, %v1145
  %v1187 = vadd.f32 %v882, %v1145
  %v1188 = vadd.f32 %v883, %v1146
  %v1189 = vadd.f32 %v884, %v1146
  %v1190 = vadd.f32 %v885, %v1147
  %v1191 = vadd.f32 %v886, %v1147
  %v1192 = vadd.f32 %v887, %v1148
  %v1193 = vadd.f32 %v888, %v1148
  %v1194 = vadd.f32 %v889, %v1149
  %v1195 = vadd.f32 %v890, %v1149
  %v1196 = vadd.f32 %v891, %v1150
  %v1197 = vadd.f32 %v892, %v1150
  %v1198 = vadd.f32 %v893, %v1151
  %v1199 = vadd.f32 %v894, %v1151
  %v1232 = vrot.slane %v1168, 1
  %v1233 = vrot.slane %v1169, 1
  %v1234 = vsel %vm590, %v1232, %v1233
  %v1235 = vrot.slane %v1170, 1
  %v1236 = vrot.slane %v1171, 1
  %v1237 = vsel %vm590, %v1235, %v1236
  %v1238 = vrot.slane %v1172, 1
  %v1239 = vrot.slane %v1173, 1
  %v1240 = vsel %vm590, %v1238, %v1239
  %v1241 = vrot.slane %v1174, 1
  %v1242 = vrot.slane %v1175, 1
  %v1243 = vsel %vm590, %v1241, %v1242
  %v1244 = vrot.slane %v1176, 1
  %v1245 = vrot.slane %v1177, 1
  %v1246 = vsel %vm590, %v1244, %v1245
  %v1247 = vrot.slane %v1178, 1
  %v1248 = vrot.slane %v1179, 1
  %v1249 = vsel %vm590, %v1247, %v1248
  %v1250 = vrot.slane %v1180, 1
  %v1251 = vrot.slane %v1181, 1
  %v1252 = vsel %vm590, %v1250, %v1251
  %v1253 = vrot.slane %v1182, 1
  %v1254 = vrot.slane %v1183, 1
  %v1255 = vsel %vm590, %v1253, %v1254
  %v1256 = vrot.slane %v1184, 1
  %v1257 = vrot.slane %v1185, 1
  %v1258 = vsel %vm590, %v1256, %v1257
  %v1259 = vrot.slane %v1186, 1
  %v1260 = vrot.slane %v1187, 1
  %v1261 = vsel %vm590, %v1259, %v1260
  %v1262 = vrot.slane %v1188, 1
  %v1263 = vrot.slane %v1189, 1
  %v1264 = vsel %vm590, %v1262, %v1263
  %v1265 = vrot.slane %v1190, 1
  %v1266 = vrot.slane %v1191, 1
  %v1267 = vsel %vm590, %v1265, %v1266
  %v1268 = vrot.slane %v1192, 1
  %v1269 = vrot.slane %v1193, 1
  %v1270 = vsel %vm590, %v1268, %v1269
  %v1271 = vrot.slane %v1194, 1
  %v1272 = vrot.slane %v1195, 1
  %v1273 = vsel %vm590, %v1271, %v1272
  %v1274 = vrot.slane %v1196, 1
  %v1275 = vrot.slane %v1197, 1
  %v1276 = vsel %vm590, %v1274, %v1275
  %v1277 = vrot.slane %v1198, 1
  %v1278 = vrot.slane %v1199, 1
  %v1279 = vsel %vm590, %v1277, %v1278
  %v1296 = vadd.f32 %v1104, %v1234
  %v1297 = vadd.f32 %v1105, %v1237
  %v1298 = vadd.f32 %v1106, %v1240
  %v1299 = vadd.f32 %v1107, %v1243
  %v1300 = vadd.f32 %v1108, %v1246
  %v1301 = vadd.f32 %v1109, %v1249
  %v1302 = vadd.f32 %v1110, %v1252
  %v1303 = vadd.f32 %v1111, %v1255
  %v1304 = vadd.f32 %v1112, %v1258
  %v1305 = vadd.f32 %v1113, %v1261
  %v1306 = vadd.f32 %v1114, %v1264
  %v1307 = vadd.f32 %v1115, %v1267
  %v1308 = vadd.f32 %v1116, %v1270
  %v1309 = vadd.f32 %v1117, %v1273
  %v1310 = vadd.f32 %v1118, %v1276
  %v1311 = vadd.f32 %v1119, %v1279
  %v1344 = vrot.slane %v526, 2
  %v1345 = vrot.slane %v527, 2
  %v1346 = vsel %vm1039, %v1344, %v1345
  %v1347 = vrot.slane %v528, 2
  %v1348 = vrot.slane %v529, 2
  %v1349 = vsel %vm1039, %v1347, %v1348
  %v1350 = vrot.slane %v530, 2
  %v1351 = vrot.slane %v531, 2
  %v1352 = vsel %vm1039, %v1350, %v1351
  %v1353 = vrot.slane %v532, 2
  %v1354 = vrot.slane %v533, 2
  %v1355 = vsel %vm1039, %v1353, %v1354
  %v1356 = vrot.slane %v534, 2
  %v1357 = vrot.slane %v535, 2
  %v1358 = vsel %vm1039, %v1356, %v1357
  %v1359 = vrot.slane %v536, 2
  %v1360 = vrot.slane %v537, 2
  %v1361 = vsel %vm1039, %v1359, %v1360
  %v1362 = vrot.slane %v538, 2
  %v1363 = vrot.slane %v539, 2
  %v1364 = vsel %vm1039, %v1362, %v1363
  %v1365 = vrot.slane %v540, 2
  %v1366 = vrot.slane %v541, 2
  %v1367 = vsel %vm1039, %v1365, %v1366
  %v1368 = vrot.slane %v542, 2
  %v1369 = vrot.slane %v543, 2
  %v1370 = vsel %vm1039, %v1368, %v1369
  %v1371 = vrot.slane %v544, 2
  %v1372 = vrot.slane %v545, 2
  %v1373 = vsel %vm1039, %v1371, %v1372
  %v1374 = vrot.slane %v546, 2
  %v1375 = vrot.slane %v547, 2
  %v1376 = vsel %vm1039, %v1374, %v1375
  %v1377 = vrot.slane %v548, 2
  %v1378 = vrot.slane %v549, 2
  %v1379 = vsel %vm1039, %v1377, %v1378
  %v1380 = vrot.slane %v550, 2
  %v1381 = vrot.slane %v551, 2
  %v1382 = vsel %vm1039, %v1380, %v1381
  %v1383 = vrot.slane %v552, 2
  %v1384 = vrot.slane %v553, 2
  %v1385 = vsel %vm1039, %v1383, %v1384
  %v1386 = vrot.slane %v554, 2
  %v1387 = vrot.slane %v555, 2
  %v1388 = vsel %vm1039, %v1386, %v1387
  %v1389 = vrot.slane %v556, 2
  %v1390 = vrot.slane %v557, 2
  %v1391 = vsel %vm1039, %v1389, %v1390
  %v1408 = vadd.f32 %v1296, %v1346
  %v1409 = vadd.f32 %v1297, %v1349
  %v1410 = vadd.f32 %v1298, %v1352
  %v1411 = vadd.f32 %v1299, %v1355
  %v1412 = vadd.f32 %v1300, %v1358
  %v1413 = vadd.f32 %v1301, %v1361
  %v1414 = vadd.f32 %v1302, %v1364
  %v1415 = vadd.f32 %v1303, %v1367
  %v1416 = vadd.f32 %v1304, %v1370
  %v1417 = vadd.f32 %v1305, %v1373
  %v1418 = vadd.f32 %v1306, %v1376
  %v1419 = vadd.f32 %v1307, %v1379
  %v1420 = vadd.f32 %v1308, %v1382
  %v1421 = vadd.f32 %v1309, %v1385
  %v1422 = vadd.f32 %v1310, %v1388
  %v1423 = vadd.f32 %v1311, %v1391
  %v1424 = vadd.f32 %v1408, %v1416
  %v1425 = vadd.f32 %v1409, %v1417
  %v1426 = vadd.f32 %v1410, %v1418
  %v1427 = vadd.f32 %v1411, %v1419
  %v1428 = vadd.f32 %v1412, %v1420
  %v1429 = vadd.f32 %v1413, %v1421
  %v1430 = vadd.f32 %v1414, %v1422
  %v1431 = vadd.f32 %v1415, %v1423
  %v1432 = vadd.f32 %v1424, %v1425
  %v1433 = vadd.f32 %v1432, %v1426
  %v1434 = vadd.f32 %v1433, %v1427
  %v1435 = vadd.f32 %v1434, %v1428
  %v1436 = vadd.f32 %v1435, %v1429
  %v1437 = vadd.f32 %v1436, %v1430
  %v1438 = vadd.f32 %v1437, %v1431
  %v1439 = vrot.slane %v1438, 4
  %v1440 = vadd.f32 %v1438, %v1439
  %v1441 = vrot.slane %v1440, 2
  %v1442 = vadd.f32 %v1440, %v1441
  %v1443 = vrot.slane %v1442, 1
  %v1444 = vadd.f32 %v1442, %v1443
  %v1445 = vmul.f32 %v1408, %v1408
  %v1446 = vmul.f32 %v1409, %v1409
  %v1447 = vmul.f32 %v1410, %v1410
  %v1448 = vmul.f32 %v1411, %v1411
  %v1449 = vmul.f32 %v1412, %v1412
  %v1450 = vmul.f32 %v1413, %v1413
  %v1451 = vmul.f32 %v1414, %v1414
  %v1452 = vmul.f32 %v1415, %v1415
  %v1453 = vmul.f32 %v1416, %v1416
  %v1454 = vmul.f32 %v1417, %v1417
  %v1455 = vmul.f32 %v1418, %v1418
  %v1456 = vmul.f32 %v1419, %v1419
  %v1457 = vmul.f32 %v1420, %v1420
  %v1458 = vmul.f32 %v1421, %v1421
  %v1459 = vmul.f32 %v1422, %v1422
  %v1460 = vmul.f32 %v1423, %v1423
  %v1461 = vadd.f32 %v1445, %v1453
  %v1462 = vadd.f32 %v1446, %v1454
  %v1463 = vadd.f32 %v1447, %v1455
  %v1464 = vadd.f32 %v1448, %v1456
  %v1465 = vadd.f32 %v1449, %v1457
  %v1466 = vadd.f32 %v1450, %v1458
  %v1467 = vadd.f32 %v1451, %v1459
  %v1468 = vadd.f32 %v1452, %v1460
  %v1469 = vadd.f32 %v1461, %v1462
  %v1470 = vadd.f32 %v1469, %v1463
  %v1471 = vadd.f32 %v1470, %v1464
  %v1472 = vadd.f32 %v1471, %v1465
  %v1473 = vadd.f32 %v1472, %v1466
  %v1474 = vadd.f32 %v1473, %v1467
  %v1475 = vadd.f32 %v1474, %v1468
  %v1476 = vrot.slane %v1475, 4
  %v1477 = vadd.f32 %v1475, %v1476
  %v1478 = vrot.slane %v1477, 2
  %v1479 = vadd.f32 %v1477, %v1478
  %v1480 = vrot.slane %v1479, 1
  %v1481 = vadd.f32 %v1479, %v1480
  %v1482 = vmul.f32 %v1444, 0.0078125
  %v1483 = vmul.f32 %v1481, 0.0078125
  %v1484 = vmul.f32 %v1482, %v1482
  %v1485 = vsub.f32 %v1483, %v1484
  %v1486 = vmax.f32 %v1485, 0.0
  %v1487 = vld [vmem:[%s2] sm:$0x1]
  %v1488 = vadd.f32 %v1486, 1e-05
  %v1489 = vrsqrt.pop %v1488
  %v1490 = vmul.f32 %v1489, %v1488
  %v1491 = vmul.f32 %v1490, %v1489
  %v1492 = vmul.f32 0.5, %v1491
  %v1493 = vsub.f32 1.5, %v1492
  %v1494 = vmul.f32 %v1489, %v1493
  %vm1495 = vweird.f32 %v1488
  %vm1496 = vweird.f32 %v1489
  %vm1497 = vmor %vm1495, %vm1496
  %v1498 = vsel %vm1497, %v1489, %v1494
  %v1499 = vmul.f32 %v1487, %v1498
  %v1500 = vld [vmem:[%s3] sm:$0x1]
  %v1501 = vmul.f32 %v1482, %v1499
  %v1502 = vsub.f32 %v1500, %v1501
  %v1504 = vperm.slane %v1499, 0
  %v1506 = vmul.f32 %v1408, %v1504
  %v1507 = vmul.f32 %v1409, %v1504
  %v1508 = vmul.f32 %v1410, %v1504
  %v1509 = vmul.f32 %v1411, %v1504
  %v1510 = vmul.f32 %v1412, %v1504
  %v1511 = vmul.f32 %v1413, %v1504
  %v1512 = vmul.f32 %v1414, %v1504
  %v1513 = vmul.f32 %v1415, %v1504
  %v1514 = vmul.f32 %v1416, %v1504
  %v1515 = vmul.f32 %v1417, %v1504
  %v1516 = vmul.f32 %v1418, %v1504
  %v1517 = vmul.f32 %v1419, %v1504
  %v1518 = vmul.f32 %v1420, %v1504
  %v1519 = vmul.f32 %v1421, %v1504
  %v1520 = vmul.f32 %v1422, %v1504
  %v1521 = vmul.f32 %v1423, %v1504
  %v1523 = vperm.slane %v1502, 0
  %v1525 = vadd.f32 %v1506, %v1523
  %v1526 = vadd.f32 %v1507, %v1523
  %v1527 = vadd.f32 %v1508, %v1523
  %v1528 = vadd.f32 %v1509, %v1523
  %v1529 = vadd.f32 %v1510, %v1523
  %v1530 = vadd.f32 %v1511, %v1523
  %v1531 = vadd.f32 %v1512, %v1523
  %v1532 = vadd.f32 %v1513, %v1523
  %v1533 = vadd.f32 %v1514, %v1523
  %v1534 = vadd.f32 %v1515, %v1523
  %v1535 = vadd.f32 %v1516, %v1523
  %v1536 = vadd.f32 %v1517, %v1523
  %v1537 = vadd.f32 %v1518, %v1523
  %v1538 = vadd.f32 %v1519, %v1523
  %v1539 = vadd.f32 %v1520, %v1523
  %v1540 = vadd.f32 %v1521, %v1523
  %v1541 = vpack.c.bf16 %v1525, %v1525
  %v1542 = vpack.c.bf16 %v1526, %v1526
  %v1543 = vpack.c.bf16 %v1527, %v1527
  %v1544 = vpack.c.bf16 %v1528, %v1528
  %v1545 = vpack.c.bf16 %v1529, %v1529
  %v1546 = vpack.c.bf16 %v1530, %v1530
  %v1547 = vpack.c.bf16 %v1531, %v1531
  %v1548 = vpack.c.bf16 %v1532, %v1532
  %v1549 = vpack.c.bf16 %v1533, %v1533
  %v1550 = vpack.c.bf16 %v1534, %v1534
  %v1551 = vpack.c.bf16 %v1535, %v1535
  %v1552 = vpack.c.bf16 %v1536, %v1536
  %v1553 = vpack.c.bf16 %v1537, %v1537
  %v1554 = vpack.c.bf16 %v1538, %v1538
  %v1555 = vpack.c.bf16 %v1539, %v1539
  %v1556 = vpack.c.bf16 %v1540, %v1540
  %1557 = vst [vmem:[%s4] sm:$0xf] %v1541
  %1558 = vst [vmem:[%s4 + $0x4] sm:$0xf] %v1542
  %1559 = vst [vmem:[%s4 + $0x8] sm:$0xf] %v1543
  %1560 = vst [vmem:[%s4 + $0xc] sm:$0xf] %v1544
  %1561 = vst [vmem:[%s4 + $0x10] sm:$0xf] %v1545
  %1562 = vst [vmem:[%s4 + $0x14] sm:$0xf] %v1546
  %1563 = vst [vmem:[%s4 + $0x18] sm:$0xf] %v1547
  %1564 = vst [vmem:[%s4 + $0x1c] sm:$0xf] %v1548
  %1565 = vst [vmem:[%s4 + $0x20] sm:$0xf] %v1549
  %1566 = vst [vmem:[%s4 + $0x24] sm:$0xf] %v1550
  %1567 = vst [vmem:[%s4 + $0x28] sm:$0xf] %v1551
  %1568 = vst [vmem:[%s4 + $0x2c] sm:$0xf] %v1552
  %1569 = vst [vmem:[%s4 + $0x30] sm:$0xf] %v1553
  %1570 = vst [vmem:[%s4 + $0x34] sm:$0xf] %v1554
  %1571 = vst [vmem:[%s4 + $0x38] sm:$0xf] %v1555
  %1572 = vst [vmem:[%s4 + $0x3c] sm:$0xf] %v1556
  // Predicated region
  $region18: #{_lambda_.31} parent=0 // pred_check
    _
  $region19: #{_lambda_.31} parent=0 // pred_check_branch
    %1574 = sbr.rel (0) target = $region21
  $region20: #{_lambda_.31} parent=0 // pred_region
    _
  $region21: #{_lambda_.31} parent=0 // pred_fallthru
    _
  // Predicated region
  $region22: #{_lambda_.31} parent=0 // pred_check
    _
  $region23: #{_lambda_.31} parent=0 // pred_check_branch
    %1576 = sbr.rel (0) target = $region25
  $region24: #{_lambda_.31} parent=0 // pred_region
    _
  $region25: #{_lambda_.31} parent=0 // pred_fallthru
    _

// kernel: _lambda_.35
$region0: #{_lambda_.35}
  #allocation0 [shape = 'u32[]', space=smem, size = 0x4, offset = 0x4, fixed_abs, tag = 'smem constant byte address 0x4 - core index']
  #allocation1 [shape = 'u32[72,128]{1,0:T(1,128)}', space=vmem, size = 0x9000, scoped, tag = 'internal scratch']
  %s0 = inlined_call_operand.vmem [shape: bf16[32,128], index: 0, kind: input, shape index: {}]
  %s1 = inlined_call_operand.vmem [shape: bf16[128,128], index: 1, kind: input, shape index: {}]
  %s2 = inlined_call_operand.vmem [shape: f32[1,128], index: 2, kind: input, shape index: {}]
  %s3 = inlined_call_operand.vmem [shape: f32[1,128], index: 3, kind: input, shape index: {}]
  %s4 = inlined_call_operand.vmem [shape: bf16[32,128], index: 4, kind: output, shape index: {}]
  %s5 = sld [smem:[#allocation0]]
  $region26: #{_lambda_.35} parent=0
    _
  %s7 = ssub.s32 1, %s5
  %s8 = scalar_select 0, %s7, %s5
  // Predicated region
  $region2: #{_lambda_.35} parent=0 // pred_check
    _
  $region3: #{_lambda_.35} parent=0 // pred_check_branch
    %10 = sbr.rel (0) target = $region5
  $region4: #{_lambda_.35} parent=0 // pred_region
    _
  $region5: #{_lambda_.35} parent=0 // pred_fallthru
    _
  // Predicated region
  $region6: #{_lambda_.35} parent=0 // pred_check
    _
  $region7: #{_lambda_.35} parent=0 // pred_check_branch
    %12 = sbr.rel (0) target = $region9
  $region8: #{_lambda_.35} parent=0 // pred_region
    _
  $region9: #{_lambda_.35} parent=0 // pred_fallthru
    _
  // Predicated region
  $region10: #{_lambda_.35} parent=0 // pred_check
    _
  $region11: #{_lambda_.35} parent=0 // pred_check_branch
    %14 = sbr.rel (0) target = $region13
  $region12: #{_lambda_.35} parent=0 // pred_region
    _
  $region13: #{_lambda_.35} parent=0 // pred_fallthru
    _
  // Predicated region
  $region14: #{_lambda_.35} parent=0 // pred_check
    _
  $region15: #{_lambda_.35} parent=0 // pred_check_branch
    %16 = sbr.rel (0) target = $region17
  $region16: #{_lambda_.35} parent=0 // pred_region
    _
  $region17: #{_lambda_.35} parent=0 // pred_fallthru
    _
  %v17 = vld [vmem:[%s0] sm:$0xf]
  %v18 = vld [vmem:[%s0 + $0x4] sm:$0xf]
  %v19 = vld [vmem:[%s0 + $0x8] sm:$0xf]
  %v20 = vld [vmem:[%s0 + $0xc] sm:$0xf]
  %v21 = vld [vmem:[%s1] sm:$0xf]
  %v22 = vld [vmem:[%s1 + $0x4] sm:$0xf]
  %v23 = vld [vmem:[%s1 + $0x8] sm:$0xf]
  %v24 = vld [vmem:[%s1 + $0xc] sm:$0xf]
  %v25 = vld [vmem:[%s1 + $0x10] sm:$0xf]
  %v26 = vld [vmem:[%s1 + $0x14] sm:$0xf]
  %v27 = vld [vmem:[%s1 + $0x18] sm:$0xf]
  %v28 = vld [vmem:[%s1 + $0x1c] sm:$0xf]
  %v29 = vld [vmem:[%s1 + $0x20] sm:$0xf]
  %v30 = vld [vmem:[%s1 + $0x24] sm:$0xf]
  %v31 = vld [vmem:[%s1 + $0x28] sm:$0xf]
  %v32 = vld [vmem:[%s1 + $0x2c] sm:$0xf]
  %v33 = vld [vmem:[%s1 + $0x30] sm:$0xf]
  %v34 = vld [vmem:[%s1 + $0x34] sm:$0xf]
  %v35 = vld [vmem:[%s1 + $0x38] sm:$0xf]
  %v36 = vld [vmem:[%s1 + $0x3c] sm:$0xf]
  %v41 = vunpack.c.l.b16 %v17
  %v42 = vunpack.c.l.b16 %v18
  %v43 = vunpack.c.l.b16 %v19
  %v44 = vunpack.c.l.b16 %v20
  %v45 = vpack.c.b16 %v42, %v41
  %v46 = vpack.c.b16 %v44, %v43
  %v65 = vunpack.c.l.b16 %v21
  %v66 = vunpack.c.l.b16 %v22
  %v67 = vunpack.c.l.b16 %v23
  %v68 = vunpack.c.l.b16 %v24
  %v69 = vunpack.c.l.b16 %v25
  %v70 = vunpack.c.l.b16 %v26
  %v71 = vunpack.c.l.b16 %v27
  %v72 = vunpack.c.l.b16 %v28
  %v73 = vunpack.c.l.b16 %v29
  %v74 = vunpack.c.l.b16 %v30
  %v75 = vunpack.c.l.b16 %v31
  %v76 = vunpack.c.l.b16 %v32
  %v77 = vunpack.c.l.b16 %v33
  %v78 = vunpack.c.l.b16 %v34
  %v79 = vunpack.c.l.b16 %v35
  %v80 = vunpack.c.l.b16 %v36
  %v81 = vpack.c.b16 %v66, %v65
  %v82 = vpack.c.b16 %v68, %v67
  %v83 = vpack.c.b16 %v70, %v69
  %v84 = vpack.c.b16 %v72, %v71
  %v85 = vpack.c.b16 %v74, %v73
  %v86 = vpack.c.b16 %v76, %v75
  %v87 = vpack.c.b16 %v78, %v77
  %v88 = vpack.c.b16 %v80, %v79
  %97 = vmatpush.bf16.msra.mxu0 %v88
  %98 = vmatpush.bf16.msra.mxu0 %v87
  %99 = vmatpush.bf16.msra.mxu0 %v86
  %100 = vmatpush.bf16.msra.mxu0 %v85
  %101 = vmatpush.bf16.msra.mxu0 %v84
  %102 = vmatpush.bf16.msra.mxu0 %v83
  %103 = vmatpush.bf16.msra.mxu0 %v82
  %104 = vmatpush.bf16.msra.mxu0 %v81
  %105 = vmatmul.bf16.gmra.mxu0 %v45
  %v106 = vpop.f32.mrf.mxu0
  %v107 = vadd.f32 0.0, %v106
  %v108 = vpop.f32.mrf.mxu0
  %v109 = vadd.f32 0.0, %v108
  %110 = vmatmul.bf16.gmra.mxu0 %v46
  %v111 = vpop.f32.mrf.mxu0
  %v112 = vadd.f32 0.0, %v111
  %v113 = vpop.f32.mrf.mxu0
  %v114 = vadd.f32 0.0, %v113
  %115 = vdwg.mxu0
  %v116 = vadd.f32 %v107, %v109
  %v117 = vadd.f32 %v116, %v112
  %v118 = vadd.f32 %v117, %v114
  %v119 = vrot.slane %v118, 4
  %v120 = vadd.f32 %v118, %v119
  %v121 = vrot.slane %v120, 2
  %v122 = vadd.f32 %v120, %v121
  %v123 = vrot.slane %v122, 1
  %v124 = vadd.f32 %v122, %v123
  %v125 = vmul.f32 %v124, 0.03125
  %v126 = vmul.f32 %v107, %v107
  %v127 = vmul.f32 %v109, %v109
  %v128 = vmul.f32 %v112, %v112
  %v129 = vmul.f32 %v114, %v114
  %v130 = vadd.f32 %v126, %v127
  %v131 = vadd.f32 %v130, %v128
  %v132 = vadd.f32 %v131, %v129
  %v133 = vrot.slane %v132, 4
  %v134 = vadd.f32 %v132, %v133
  %v135 = vrot.slane %v134, 2
  %v136 = vadd.f32 %v134, %v135
  %v137 = vrot.slane %v136, 1
  %v138 = vadd.f32 %v136, %v137
  %v139 = vmul.f32 %v138, 0.03125
  %v140 = vmul.f32 %v125, %v125
  %v141 = vsub.f32 %v139, %v140
  %v142 = vmax.f32 %v141, 0.0
  %v143 = vld [vmem:[%s2] sm:$0x1]
  %v144 = vadd.f32 %v142, 1e-05
  %v145 = vrsqrt.pop %v144
  %v146 = vmul.f32 %v145, %v144
  %v147 = vmul.f32 %v146, %v145
  %v148 = vmul.f32 0.5, %v147
  %v149 = vsub.f32 1.5, %v148
  %v150 = vmul.f32 %v145, %v149
  %vm151 = vweird.f32 %v144
  %vm152 = vweird.f32 %v145
  %vm153 = vmor %vm151, %vm152
  %v154 = vsel %vm153, %v145, %v150
  %v155 = vmul.f32 %v143, %v154
  %v156 = vld [vmem:[%s3] sm:$0x1]
  %v157 = vmul.f32 %v125, %v155
  %v158 = vsub.f32 %v156, %v157
  %v160 = vperm.slane %v155, 0
  %v162 = vmul.f32 %v107, %v160
  %v163 = vmul.f32 %v109, %v160
  %v164 = vmul.f32 %v112, %v160
  %v165 = vmul.f32 %v114, %v160
  %v167 = vperm.slane %v158, 0
  %v169 = vadd.f32 %v162, %v167
  %v170 = vadd.f32 %v163, %v167
  %v171 = vadd.f32 %v164, %v167
  %v172 = vadd.f32 %v165, %v167
  %v173 = vmax.f32 %v169, 0.0
  %v174 = vmax.f32 %v170, 0.0
  %v175 = vmax.f32 %v171, 0.0
  %v176 = vmax.f32 %v172, 0.0
  %v177 = vpack.c.bf16 %v173, %v173
  %v178 = vpack.c.bf16 %v174, %v174
  %v179 = vpack.c.bf16 %v175, %v175
  %v180 = vpack.c.bf16 %v176, %v176
  %181 = vst [vmem:[%s4] sm:$0xf] %v177
  %182 = vst [vmem:[%s4 + $0x4] sm:$0xf] %v178
  %183 = vst [vmem:[%s4 + $0x8] sm:$0xf] %v179
  %184 = vst [vmem:[%s4 + $0xc] sm:$0xf] %v180
  // Predicated region
  $region18: #{_lambda_.35} parent=0 // pred_check
    _
  $region19: #{_lambda_.35} parent=0 // pred_check_branch
    %186 = sbr.rel (0) target = $region21
  $region20: #{_lambda_.35} parent=0 // pred_region
    _
  $region21: #{_lambda_.35} parent=0 // pred_fallthru
    _
  // Predicated region
  $region22: #{_lambda_.35} parent=0 // pred_check
    _
  $region23: #{_lambda_.35} parent=0 // pred_check_branch
    %188 = sbr.rel (0) target = $region25
  $region24: #{_lambda_.35} parent=0 // pred_region
    _
  $region25: #{_lambda_.35} parent=0 // pred_fallthru
    _

// kernel: _lambda_.36
$region0: #{_lambda_.36}
  #allocation0 [shape = 'u32[]', space=smem, size = 0x4, offset = 0x4, fixed_abs, tag = 'smem constant byte address 0x4 - core index']
  #allocation1 [shape = 'u32[72,128]{1,0:T(1,128)}', space=vmem, size = 0x9000, scoped, tag = 'internal scratch']
  %s0 = inlined_call_operand.vmem [shape: bf16[32,128], index: 0, kind: input, shape index: {}]
  %s1 = inlined_call_operand.vmem [shape: bf16[128,128], index: 1, kind: input, shape index: {}]
  %s2 = inlined_call_operand.vmem [shape: f32[1,128], index: 2, kind: input, shape index: {}]
  %s3 = inlined_call_operand.vmem [shape: f32[1,128], index: 3, kind: input, shape index: {}]
  %s4 = inlined_call_operand.vmem [shape: bf16[32,128], index: 4, kind: output, shape index: {}]
  %s5 = sld [smem:[#allocation0]]
  $region26: #{_lambda_.36} parent=0
    _
  %s7 = ssub.s32 1, %s5
  %s8 = scalar_select 0, %s7, %s5
  // Predicated region
  $region2: #{_lambda_.36} parent=0 // pred_check
    _
  $region3: #{_lambda_.36} parent=0 // pred_check_branch
    %10 = sbr.rel (0) target = $region5
  $region4: #{_lambda_.36} parent=0 // pred_region
    _
  $region5: #{_lambda_.36} parent=0 // pred_fallthru
    _
  // Predicated region
  $region6: #{_lambda_.36} parent=0 // pred_check
    _
  $region7: #{_lambda_.36} parent=0 // pred_check_branch
    %12 = sbr.rel (0) target = $region9
  $region8: #{_lambda_.36} parent=0 // pred_region
    _
  $region9: #{_lambda_.36} parent=0 // pred_fallthru
    _
  // Predicated region
  $region10: #{_lambda_.36} parent=0 // pred_check
    _
  $region11: #{_lambda_.36} parent=0 // pred_check_branch
    %14 = sbr.rel (0) target = $region13
  $region12: #{_lambda_.36} parent=0 // pred_region
    _
  $region13: #{_lambda_.36} parent=0 // pred_fallthru
    _
  // Predicated region
  $region14: #{_lambda_.36} parent=0 // pred_check
    _
  $region15: #{_lambda_.36} parent=0 // pred_check_branch
    %16 = sbr.rel (0) target = $region17
  $region16: #{_lambda_.36} parent=0 // pred_region
    _
  $region17: #{_lambda_.36} parent=0 // pred_fallthru
    _
  %v17 = vld [vmem:[%s0] sm:$0xf]
  %v18 = vld [vmem:[%s0 + $0x4] sm:$0xf]
  %v19 = vld [vmem:[%s0 + $0x8] sm:$0xf]
  %v20 = vld [vmem:[%s0 + $0xc] sm:$0xf]
  %v21 = vld [vmem:[%s1] sm:$0xf]
  %v22 = vld [vmem:[%s1 + $0x4] sm:$0xf]
  %v23 = vld [vmem:[%s1 + $0x8] sm:$0xf]
  %v24 = vld [vmem:[%s1 + $0xc] sm:$0xf]
  %v25 = vld [vmem:[%s1 + $0x10] sm:$0xf]
  %v26 = vld [vmem:[%s1 + $0x14] sm:$0xf]
  %v27 = vld [vmem:[%s1 + $0x18] sm:$0xf]
  %v28 = vld [vmem:[%s1 + $0x1c] sm:$0xf]
  %v29 = vld [vmem:[%s1 + $0x20] sm:$0xf]
  %v30 = vld [vmem:[%s1 + $0x24] sm:$0xf]
  %v31 = vld [vmem:[%s1 + $0x28] sm:$0xf]
  %v32 = vld [vmem:[%s1 + $0x2c] sm:$0xf]
  %v33 = vld [vmem:[%s1 + $0x30] sm:$0xf]
  %v34 = vld [vmem:[%s1 + $0x34] sm:$0xf]
  %v35 = vld [vmem:[%s1 + $0x38] sm:$0xf]
  %v36 = vld [vmem:[%s1 + $0x3c] sm:$0xf]
  %v41 = vunpack.c.l.b16 %v17
  %v42 = vunpack.c.l.b16 %v18
  %v43 = vunpack.c.l.b16 %v19
  %v44 = vunpack.c.l.b16 %v20
  %v45 = vpack.c.b16 %v42, %v41
  %v46 = vpack.c.b16 %v44, %v43
  %v65 = vunpack.c.l.b16 %v21
  %v66 = vunpack.c.l.b16 %v22
  %v67 = vunpack.c.l.b16 %v23
  %v68 = vunpack.c.l.b16 %v24
  %v69 = vunpack.c.l.b16 %v25
  %v70 = vunpack.c.l.b16 %v26
  %v71 = vunpack.c.l.b16 %v27
  %v72 = vunpack.c.l.b16 %v28
  %v73 = vunpack.c.l.b16 %v29
  %v74 = vunpack.c.l.b16 %v30
  %v75 = vunpack.c.l.b16 %v31
  %v76 = vunpack.c.l.b16 %v32
  %v77 = vunpack.c.l.b16 %v33
  %v78 = vunpack.c.l.b16 %v34
  %v79 = vunpack.c.l.b16 %v35
  %v80 = vunpack.c.l.b16 %v36
  %v81 = vpack.c.b16 %v66, %v65
  %v82 = vpack.c.b16 %v68, %v67
  %v83 = vpack.c.b16 %v70, %v69
  %v84 = vpack.c.b16 %v72, %v71
  %v85 = vpack.c.b16 %v74, %v73
  %v86 = vpack.c.b16 %v76, %v75
  %v87 = vpack.c.b16 %v78, %v77
  %v88 = vpack.c.b16 %v80, %v79
  %97 = vmatpush.bf16.msra.mxu0 %v88
  %98 = vmatpush.bf16.msra.mxu0 %v87
  %99 = vmatpush.bf16.msra.mxu0 %v86
  %100 = vmatpush.bf16.msra.mxu0 %v85
  %101 = vmatpush.bf16.msra.mxu0 %v84
  %102 = vmatpush.bf16.msra.mxu0 %v83
  %103 = vmatpush.bf16.msra.mxu0 %v82
  %104 = vmatpush.bf16.msra.mxu0 %v81
  %105 = vmatmul.bf16.gmra.mxu0 %v45
  %v106 = vpop.f32.mrf.mxu0
  %v107 = vadd.f32 0.0, %v106
  %v108 = vpop.f32.mrf.mxu0
  %v109 = vadd.f32 0.0, %v108
  %110 = vmatmul.bf16.gmra.mxu0 %v46
  %v111 = vpop.f32.mrf.mxu0
  %v112 = vadd.f32 0.0, %v111
  %v113 = vpop.f32.mrf.mxu0
  %v114 = vadd.f32 0.0, %v113
  %115 = vdwg.mxu0
  %v116 = vadd.f32 %v107, %v109
  %v117 = vadd.f32 %v116, %v112
  %v118 = vadd.f32 %v117, %v114
  %v119 = vrot.slane %v118, 4
  %v120 = vadd.f32 %v118, %v119
  %v121 = vrot.slane %v120, 2
  %v122 = vadd.f32 %v120, %v121
  %v123 = vrot.slane %v122, 1
  %v124 = vadd.f32 %v122, %v123
  %v125 = vmul.f32 %v124, 0.03125
  %v126 = vmul.f32 %v107, %v107
  %v127 = vmul.f32 %v109, %v109
  %v128 = vmul.f32 %v112, %v112
  %v129 = vmul.f32 %v114, %v114
  %v130 = vadd.f32 %v126, %v127
  %v131 = vadd.f32 %v130, %v128
  %v132 = vadd.f32 %v131, %v129
  %v133 = vrot.slane %v132, 4
  %v134 = vadd.f32 %v132, %v133
  %v135 = vrot.slane %v134, 2
  %v136 = vadd.f32 %v134, %v135
  %v137 = vrot.slane %v136, 1
  %v138 = vadd.f32 %v136, %v137
  %v139 = vmul.f32 %v138, 0.03125
  %v140 = vmul.f32 %v125, %v125
  %v141 = vsub.f32 %v139, %v140
  %v142 = vmax.f32 %v141, 0.0
  %v143 = vld [vmem:[%s2] sm:$0x1]
  %v144 = vadd.f32 %v142, 1e-05
  %v145 = vrsqrt.pop %v144
  %v146 = vmul.f32 %v145, %v144
  %v147 = vmul.f32 %v146, %v145
  %v148 = vmul.f32 0.5, %v147
  %v149 = vsub.f32 1.5, %v148
  %v150 = vmul.f32 %v145, %v149
  %vm151 = vweird.f32 %v144
  %vm152 = vweird.f32 %v145
  %vm153 = vmor %vm151, %vm152
  %v154 = vsel %vm153, %v145, %v150
  %v155 = vmul.f32 %v143, %v154
  %v156 = vld [vmem:[%s3] sm:$0x1]
  %v157 = vmul.f32 %v125, %v155
  %v158 = vsub.f32 %v156, %v157
  %v160 = vperm.slane %v155, 0
  %v162 = vmul.f32 %v107, %v160
  %v163 = vmul.f32 %v109, %v160
  %v164 = vmul.f32 %v112, %v160
  %v165 = vmul.f32 %v114, %v160
  %v167 = vperm.slane %v158, 0
  %v169 = vadd.f32 %v162, %v167
  %v170 = vadd.f32 %v163, %v167
  %v171 = vadd.f32 %v164, %v167
  %v172 = vadd.f32 %v165, %v167
  %v173 = vpack.c.bf16 %v169, %v169
  %v174 = vpack.c.bf16 %v170, %v170
  %v175 = vpack.c.bf16 %v171, %v171
  %v176 = vpack.c.bf16 %v172, %v172
  %177 = vst [vmem:[%s4] sm:$0xf] %v173
  %178 = vst [vmem:[%s4 + $0x4] sm:$0xf] %v174
  %179 = vst [vmem:[%s4 + $0x8] sm:$0xf] %v175
  %180 = vst [vmem:[%s4 + $0xc] sm:$0xf] %v176
  // Predicated region
  $region18: #{_lambda_.36} parent=0 // pred_check
    _
  $region19: #{_lambda_.36} parent=0 // pred_check_branch
    %182 = sbr.rel (0) target = $region21
  $region20: #{_lambda_.36} parent=0 // pred_region
    _
  $region21: #{_lambda_.36} parent=0 // pred_fallthru
    _
  // Predicated region
  $region22: #{_lambda_.36} parent=0 // pred_check
    _
  $region23: #{_lambda_.36} parent=0 // pred_check_branch
    %184 = sbr.rel (0) target = $region25
  $region24: #{_lambda_.36} parent=0 // pred_region
    _
  $region25: #{_lambda_.36} parent=0 // pred_fallthru
    _

// kernel: _lambda_.34
$region0: #{_lambda_.34}
  #allocation0 [shape = 'u32[]', space=smem, size = 0x4, offset = 0x4, fixed_abs, tag = 'smem constant byte address 0x4 - core index']
  #allocation1 [shape = 'u32[72,128]{1,0:T(1,128)}', space=vmem, size = 0x9000, scoped, tag = 'internal scratch']
  %s0 = inlined_call_operand.vmem [shape: bf16[2,5,5,128], index: 0, kind: input, shape index: {}]
  %s1 = inlined_call_operand.vmem [shape: bf16[2,5,5,128], index: 1, kind: input, shape index: {}]
  %s2 = inlined_call_operand.vmem [shape: bf16[2,5,5,128], index: 2, kind: input, shape index: {}]
  %s3 = inlined_call_operand.vmem [shape: bf16[2,5,5,128], index: 3, kind: input, shape index: {}]
  %s4 = inlined_call_operand.vmem [shape: f32[9,128], index: 4, kind: input, shape index: {}]
  %s5 = inlined_call_operand.vmem [shape: f32[1,128], index: 5, kind: input, shape index: {}]
  %s6 = inlined_call_operand.vmem [shape: f32[1,128], index: 6, kind: input, shape index: {}]
  %s7 = inlined_call_operand.vmem [shape: bf16[2,4,4,128], index: 7, kind: output, shape index: {}]
  %s8 = sld [smem:[#allocation0]]
  $region38: #{_lambda_.34} parent=0
    _
  %s10 = ssub.s32 1, %s8
  %s11 = scalar_select 0, %s10, %s8
  // Predicated region
  $region2: #{_lambda_.34} parent=0 // pred_check
    _
  $region3: #{_lambda_.34} parent=0 // pred_check_branch
    %13 = sbr.rel (0) target = $region5
  $region4: #{_lambda_.34} parent=0 // pred_region
    _
  $region5: #{_lambda_.34} parent=0 // pred_fallthru
    _
  // Predicated region
  $region6: #{_lambda_.34} parent=0 // pred_check
    _
  $region7: #{_lambda_.34} parent=0 // pred_check_branch
    %15 = sbr.rel (0) target = $region9
  $region8: #{_lambda_.34} parent=0 // pred_region
    _
  $region9: #{_lambda_.34} parent=0 // pred_fallthru
    _
  // Predicated region
  $region10: #{_lambda_.34} parent=0 // pred_check
    _
  $region11: #{_lambda_.34} parent=0 // pred_check_branch
    %17 = sbr.rel (0) target = $region13
  $region12: #{_lambda_.34} parent=0 // pred_region
    _
  $region13: #{_lambda_.34} parent=0 // pred_fallthru
    _
  // Predicated region
  $region14: #{_lambda_.34} parent=0 // pred_check
    _
  $region15: #{_lambda_.34} parent=0 // pred_check_branch
    %19 = sbr.rel (0) target = $region17
  $region16: #{_lambda_.34} parent=0 // pred_region
    _
  $region17: #{_lambda_.34} parent=0 // pred_fallthru
    _
  // Predicated region
  $region18: #{_lambda_.34} parent=0 // pred_check
    _
  $region19: #{_lambda_.34} parent=0 // pred_check_branch
    %21 = sbr.rel (0) target = $region21
  $region20: #{_lambda_.34} parent=0 // pred_region
    _
  $region21: #{_lambda_.34} parent=0 // pred_fallthru
    _
  // Predicated region
  $region22: #{_lambda_.34} parent=0 // pred_check
    _
  $region23: #{_lambda_.34} parent=0 // pred_check_branch
    %23 = sbr.rel (0) target = $region25
  $region24: #{_lambda_.34} parent=0 // pred_region
    _
  $region25: #{_lambda_.34} parent=0 // pred_fallthru
    _
  // Predicated region
  $region26: #{_lambda_.34} parent=0 // pred_check
    _
  $region27: #{_lambda_.34} parent=0 // pred_check_branch
    %25 = sbr.rel (0) target = $region29
  $region28: #{_lambda_.34} parent=0 // pred_region
    _
  $region29: #{_lambda_.34} parent=0 // pred_fallthru
    _
  %v26 = vld [vmem:[%s4] sm:$0xff]
  %v27 = vld [vmem:[%s4 + $0x8] sm:$0x1]
  %v28 = vld [vmem:[%s0] sm:$0x3]
  %v29 = vld [vmem:[%s0 + $0x4] sm:$0x3]
  %v30 = vld [vmem:[%s0 + $0x8] sm:$0x3]
  %v31 = vld [vmem:[%s0 + $0xc] sm:$0x3]
  %v32 = vld [vmem:[%s0 + $0x14] sm:$0x3]
  %v33 = vld [vmem:[%s0 + $0x18] sm:$0x3]
  %v34 = vld [vmem:[%s0 + $0x1c] sm:$0x3]
  %v35 = vld [vmem:[%s0 + $0x20] sm:$0x3]
  %v36 = vunpack.c.l.bf16 %v28
  %v37 = vunpack.c.l.bf16 %v29
  %v38 = vunpack.c.l.bf16 %v30
  %v39 = vunpack.c.l.bf16 %v31
  %v40 = vunpack.c.l.bf16 %v32
  %v41 = vunpack.c.l.bf16 %v33
  %v42 = vunpack.c.l.bf16 %v34
  %v43 = vunpack.c.l.bf16 %v35
  %v44 = vperm.slane %v26, 0
  %v45 = vmul.f32 %v36, %v44
  %v46 = vmul.f32 %v37, %v44
  %v47 = vmul.f32 %v38, %v44
  %v48 = vmul.f32 %v39, %v44
  %v49 = vmul.f32 %v40, %v44
  %v50 = vmul.f32 %v41, %v44
  %v51 = vmul.f32 %v42, %v44
  %v52 = vmul.f32 %v43, %v44
  %v53 = vld [vmem:[%s1] sm:$0x3]
  %v54 = vld [vmem:[%s1 + $0x4] sm:$0x3]
  %v55 = vld [vmem:[%s1 + $0x8] sm:$0x3]
  %v56 = vld [vmem:[%s1 + $0xc] sm:$0x3]
  %v57 = vld [vmem:[%s1 + $0x14] sm:$0x3]
  %v58 = vld [vmem:[%s1 + $0x18] sm:$0x3]
  %v59 = vld [vmem:[%s1 + $0x1c] sm:$0x3]
  %v60 = vld [vmem:[%s1 + $0x20] sm:$0x3]
  %v61 = vunpack.c.l.bf16 %v53
  %v62 = vunpack.c.l.bf16 %v54
  %v63 = vunpack.c.l.bf16 %v55
  %v64 = vunpack.c.l.bf16 %v56
  %v65 = vunpack.c.l.bf16 %v57
  %v66 = vunpack.c.l.bf16 %v58
  %v67 = vunpack.c.l.bf16 %v59
  %v68 = vunpack.c.l.bf16 %v60
  %v69 = vperm.slane %v26, 1
  %v70 = vmul.f32 %v61, %v69
  %v71 = vmul.f32 %v62, %v69
  %v72 = vmul.f32 %v63, %v69
  %v73 = vmul.f32 %v64, %v69
  %v74 = vmul.f32 %v65, %v69
  %v75 = vmul.f32 %v66, %v69
  %v76 = vmul.f32 %v67, %v69
  %v77 = vmul.f32 %v68, %v69
  %v78 = vld [vmem:[%s0] sm:$0x7]
  %v79 = vld [vmem:[%s0 + $0x4] sm:$0x7]
  %v80 = vld [vmem:[%s0 + $0x8] sm:$0x7]
  %v81 = vld [vmem:[%s0 + $0xc] sm:$0x7]
  %v82 = vld [vmem:[%s0 + $0x14] sm:$0x7]
  %v83 = vld [vmem:[%s0 + $0x18] sm:$0x7]
  %v84 = vld [vmem:[%s0 + $0x1c] sm:$0x7]
  %v85 = vld [vmem:[%s0 + $0x20] sm:$0x7]
  %v86 = vunpack.c.l.bf16 %v78
  %v87 = vunpack.c.l.bf16 %v79
  %v88 = vunpack.c.l.bf16 %v80
  %v89 = vunpack.c.l.bf16 %v81
  %v90 = vunpack.c.l.bf16 %v82
  %v91 = vunpack.c.l.bf16 %v83
  %v92 = vunpack.c.l.bf16 %v84
  %v93 = vunpack.c.l.bf16 %v85
  %v94 = vperm.slane %v26, 2
  %v95 = vmul.f32 %v86, %v94
  %v96 = vmul.f32 %v87, %v94
  %v97 = vmul.f32 %v88, %v94
  %v98 = vmul.f32 %v89, %v94
  %v99 = vmul.f32 %v90, %v94
  %v100 = vmul.f32 %v91, %v94
  %v101 = vmul.f32 %v92, %v94
  %v102 = vmul.f32 %v93, %v94
  %v103 = vld [vmem:[%s2] sm:$0x3]
  %v104 = vld [vmem:[%s2 + $0x4] sm:$0x3]
  %v105 = vld [vmem:[%s2 + $0x8] sm:$0x3]
  %v106 = vld [vmem:[%s2 + $0xc] sm:$0x3]
  %v107 = vld [vmem:[%s2 + $0x14] sm:$0x3]
  %v108 = vld [vmem:[%s2 + $0x18] sm:$0x3]
  %v109 = vld [vmem:[%s2 + $0x1c] sm:$0x3]
  %v110 = vld [vmem:[%s2 + $0x20] sm:$0x3]
  %v111 = vunpack.c.l.bf16 %v103
  %v112 = vunpack.c.l.bf16 %v104
  %v113 = vunpack.c.l.bf16 %v105
  %v114 = vunpack.c.l.bf16 %v106
  %v115 = vunpack.c.l.bf16 %v107
  %v116 = vunpack.c.l.bf16 %v108
  %v117 = vunpack.c.l.bf16 %v109
  %v118 = vunpack.c.l.bf16 %v110
  %v119 = vperm.slane %v26, 3
  %v120 = vmul.f32 %v111, %v119
  %v121 = vmul.f32 %v112, %v119
  %v122 = vmul.f32 %v113, %v119
  %v123 = vmul.f32 %v114, %v119
  %v124 = vmul.f32 %v115, %v119
  %v125 = vmul.f32 %v116, %v119
  %v126 = vmul.f32 %v117, %v119
  %v127 = vmul.f32 %v118, %v119
  %v128 = vld [vmem:[%s3] sm:$0x3]
  %v129 = vld [vmem:[%s3 + $0x4] sm:$0x3]
  %v130 = vld [vmem:[%s3 + $0x8] sm:$0x3]
  %v131 = vld [vmem:[%s3 + $0xc] sm:$0x3]
  %v132 = vld [vmem:[%s3 + $0x14] sm:$0x3]
  %v133 = vld [vmem:[%s3 + $0x18] sm:$0x3]
  %v134 = vld [vmem:[%s3 + $0x1c] sm:$0x3]
  %v135 = vld [vmem:[%s3 + $0x20] sm:$0x3]
  %v136 = vunpack.c.l.bf16 %v128
  %v137 = vunpack.c.l.bf16 %v129
  %v138 = vunpack.c.l.bf16 %v130
  %v139 = vunpack.c.l.bf16 %v131
  %v140 = vunpack.c.l.bf16 %v132
  %v141 = vunpack.c.l.bf16 %v133
  %v142 = vunpack.c.l.bf16 %v134
  %v143 = vunpack.c.l.bf16 %v135
  %v144 = vperm.slane %v26, 4
  %v145 = vmul.f32 %v136, %v144
  %v146 = vmul.f32 %v137, %v144
  %v147 = vmul.f32 %v138, %v144
  %v148 = vmul.f32 %v139, %v144
  %v149 = vmul.f32 %v140, %v144
  %v150 = vmul.f32 %v141, %v144
  %v151 = vmul.f32 %v142, %v144
  %v152 = vmul.f32 %v143, %v144
  %v153 = vld [vmem:[%s2] sm:$0x7]
  %v154 = vld [vmem:[%s2 + $0x4] sm:$0x7]
  %v155 = vld [vmem:[%s2 + $0x8] sm:$0x7]
  %v156 = vld [vmem:[%s2 + $0xc] sm:$0x7]
  %v157 = vld [vmem:[%s2 + $0x14] sm:$0x7]
  %v158 = vld [vmem:[%s2 + $0x18] sm:$0x7]
  %v159 = vld [vmem:[%s2 + $0x1c] sm:$0x7]
  %v160 = vld [vmem:[%s2 + $0x20] sm:$0x7]
  %v161 = vunpack.c.l.bf16 %v153
  %v162 = vunpack.c.l.bf16 %v154
  %v163 = vunpack.c.l.bf16 %v155
  %v164 = vunpack.c.l.bf16 %v156
  %v165 = vunpack.c.l.bf16 %v157
  %v166 = vunpack.c.l.bf16 %v158
  %v167 = vunpack.c.l.bf16 %v159
  %v168 = vunpack.c.l.bf16 %v160
  %v169 = vperm.slane %v26, 5
  %v170 = vmul.f32 %v161, %v169
  %v171 = vmul.f32 %v162, %v169
  %v172 = vmul.f32 %v163, %v169
  %v173 = vmul.f32 %v164, %v169
  %v174 = vmul.f32 %v165, %v169
  %v175 = vmul.f32 %v166, %v169
  %v176 = vmul.f32 %v167, %v169
  %v177 = vmul.f32 %v168, %v169
  %s178 = scalar_lea.vmem %s0, 4
  %v179 = vld [vmem:[%s178] sm:$0x3]
  %v180 = vld [vmem:[%s178 + $0x4] sm:$0x3]
  %v181 = vld [vmem:[%s178 + $0x8] sm:$0x3]
  %v182 = vld [vmem:[%s178 + $0xc] sm:$0x3]
  %v183 = vld [vmem:[%s178 + $0x14] sm:$0x3]
  %v184 = vld [vmem:[%s178 + $0x18] sm:$0x3]
  %v185 = vld [vmem:[%s178 + $0x1c] sm:$0x3]
  %v186 = vld [vmem:[%s178 + $0x20] sm:$0x3]
  %v187 = vunpack.c.l.bf16 %v179
  %v188 = vunpack.c.l.bf16 %v180
  %v189 = vunpack.c.l.bf16 %v181
  %v190 = vunpack.c.l.bf16 %v182
  %v191 = vunpack.c.l.bf16 %v183
  %v192 = vunpack.c.l.bf16 %v184
  %v193 = vunpack.c.l.bf16 %v185
  %v194 = vunpack.c.l.bf16 %v186
  %v195 = vperm.slane %v26, 6
  %v196 = vmul.f32 %v187, %v195
  %v197 = vmul.f32 %v188, %v195
  %v198 = vmul.f32 %v189, %v195
  %v199 = vmul.f32 %v190, %v195
  %v200 = vmul.f32 %v191, %v195
  %v201 = vmul.f32 %v192, %v195
  %v202 = vmul.f32 %v193, %v195
  %v203 = vmul.f32 %v194, %v195
  %s204 = scalar_lea.vmem %s1, 4
  %v205 = vld [vmem:[%s204] sm:$0x3]
  %v206 = vld [vmem:[%s204 + $0x4] sm:$0x3]
  %v207 = vld [vmem:[%s204 + $0x8] sm:$0x3]
  %v208 = vld [vmem:[%s204 + $0xc] sm:$0x3]
  %v209 = vld [vmem:[%s204 + $0x14] sm:$0x3]
  %v210 = vld [vmem:[%s204 + $0x18] sm:$0x3]
  %v211 = vld [vmem:[%s204 + $0x1c] sm:$0x3]
  %v212 = vld [vmem:[%s204 + $0x20] sm:$0x3]
  %v213 = vunpack.c.l.bf16 %v205
  %v214 = vunpack.c.l.bf16 %v206
  %v215 = vunpack.c.l.bf16 %v207
  %v216 = vunpack.c.l.bf16 %v208
  %v217 = vunpack.c.l.bf16 %v209
  %v218 = vunpack.c.l.bf16 %v210
  %v219 = vunpack.c.l.bf16 %v211
  %v220 = vunpack.c.l.bf16 %v212
  %v221 = vperm.slane %v26, 7
  %v222 = vmul.f32 %v213, %v221
  %v223 = vmul.f32 %v214, %v221
  %v224 = vmul.f32 %v215, %v221
  %v225 = vmul.f32 %v216, %v221
  %v226 = vmul.f32 %v217, %v221
  %v227 = vmul.f32 %v218, %v221
  %v228 = vmul.f32 %v219, %v221
  %v229 = vmul.f32 %v220, %v221
  %v230 = vld [vmem:[%s178] sm:$0x7]
  %v231 = vld [vmem:[%s178 + $0x4] sm:$0x7]
  %v232 = vld [vmem:[%s178 + $0x8] sm:$0x7]
  %v233 = vld [vmem:[%s178 + $0xc] sm:$0x7]
  %v234 = vld [vmem:[%s178 + $0x14] sm:$0x7]
  %v235 = vld [vmem:[%s178 + $0x18] sm:$0x7]
  %v236 = vld [vmem:[%s178 + $0x1c] sm:$0x7]
  %v237 = vld [vmem:[%s178 + $0x20] sm:$0x7]
  %v238 = vunpack.c.l.bf16 %v230
  %v239 = vunpack.c.l.bf16 %v231
  %v240 = vunpack.c.l.bf16 %v232
  %v241 = vunpack.c.l.bf16 %v233
  %v242 = vunpack.c.l.bf16 %v234
  %v243 = vunpack.c.l.bf16 %v235
  %v244 = vunpack.c.l.bf16 %v236
  %v245 = vunpack.c.l.bf16 %v237
  %v246 = vperm.slane %v27, 0
  %v247 = vmul.f32 %v238, %v246
  %v248 = vmul.f32 %v239, %v246
  %v249 = vmul.f32 %v240, %v246
  %v250 = vmul.f32 %v241, %v246
  %v251 = vmul.f32 %v242, %v246
  %v252 = vmul.f32 %v243, %v246
  %v253 = vmul.f32 %v244, %v246
  %v254 = vmul.f32 %v245, %v246
  %v255 = vadd.f32 %v45, %v70
  %v256 = vadd.f32 %v46, %v71
  %v257 = vadd.f32 %v47, %v72
  %v258 = vadd.f32 %v48, %v73
  %v259 = vadd.f32 %v49, %v74
  %v260 = vadd.f32 %v50, %v75
  %v261 = vadd.f32 %v51, %v76
  %v262 = vadd.f32 %v52, %v77
  %v271 = vrot.slane %v120, 7
  %v272 = vrot.slane %v121, 7
  %v273 = vrot.slane %v122, 7
  %v274 = vrot.slane %v123, 7
  %v275 = vrot.slane %v124, 7
  %v276 = vrot.slane %v125, 7
  %v277 = vrot.slane %v126, 7
  %v278 = vrot.slane %v127, 7
  %v287 = vadd.f32 %v95, %v271
  %v288 = vadd.f32 %v96, %v272
  %v289 = vadd.f32 %v97, %v273
  %v290 = vadd.f32 %v98, %v274
  %v291 = vadd.f32 %v99, %v275
  %v292 = vadd.f32 %v100, %v276
  %v293 = vadd.f32 %v101, %v277
  %v294 = vadd.f32 %v102, %v278
  %v303 = vrot.slane %v170, 1
  %v304 = vrot.slane %v171, 1
  %v305 = vrot.slane %v172, 1
  %v306 = vrot.slane %v173, 1
  %v307 = vrot.slane %v174, 1
  %v308 = vrot.slane %v175, 1
  %v309 = vrot.slane %v176, 1
  %v310 = vrot.slane %v177, 1
  %v319 = vadd.f32 %v145, %v303
  %v320 = vadd.f32 %v146, %v304
  %v321 = vadd.f32 %v147, %v305
  %v322 = vadd.f32 %v148, %v306
  %v323 = vadd.f32 %v149, %v307
  %v324 = vadd.f32 %v150, %v308
  %v325 = vadd.f32 %v151, %v309
  %v326 = vadd.f32 %v152, %v310
  %v327 = vadd.f32 %v196, %v222
  %v328 = vadd.f32 %v197, %v223
  %v329 = vadd.f32 %v198, %v224
  %v330 = vadd.f32 %v199, %v225
  %v331 = vadd.f32 %v200, %v226
  %v332 = vadd.f32 %v201, %v227
  %v333 = vadd.f32 %v202, %v228
  %v334 = vadd.f32 %v203, %v229
  %v343 = vrot.slane %v287, 1
  %v344 = vrot.slane %v288, 1
  %v345 = vrot.slane %v289, 1
  %v346 = vrot.slane %v290, 1
  %v347 = vrot.slane %v291, 1
  %v348 = vrot.slane %v292, 1
  %v349 = vrot.slane %v293, 1
  %v350 = vrot.slane %v294, 1
  %v359 = vadd.f32 %v255, %v343
  %v360 = vadd.f32 %v256, %v344
  %v361 = vadd.f32 %v257, %v345
  %v362 = vadd.f32 %v258, %v346
  %v363 = vadd.f32 %v259, %v347
  %v364 = vadd.f32 %v260, %v348
  %v365 = vadd.f32 %v261, %v349
  %v366 = vadd.f32 %v262, %v350
  %v367 = vadd.f32 %v319, %v327
  %v368 = vadd.f32 %v320, %v328
  %v369 = vadd.f32 %v321, %v329
  %v370 = vadd.f32 %v322, %v330
  %v371 = vadd.f32 %v323, %v331
  %v372 = vadd.f32 %v324, %v332
  %v373 = vadd.f32 %v325, %v333
  %v374 = vadd.f32 %v326, %v334
  %v375 = vadd.f32 %v359, %v367
  %v376 = vadd.f32 %v360, %v368
  %v377 = vadd.f32 %v361, %v369
  %v378 = vadd.f32 %v362, %v370
  %v379 = vadd.f32 %v363, %v371
  %v380 = vadd.f32 %v364, %v372
  %v381 = vadd.f32 %v365, %v373
  %v382 = vadd.f32 %v366, %v374
  %v391 = vrot.slane %v247, 1
  %v392 = vrot.slane %v248, 1
  %v393 = vrot.slane %v249, 1
  %v394 = vrot.slane %v250, 1
  %v395 = vrot.slane %v251, 1
  %v396 = vrot.slane %v252, 1
  %v397 = vrot.slane %v253, 1
  %v398 = vrot.slane %v254, 1
  %v407 = vadd.f32 %v375, %v391
  %v408 = vadd.f32 %v376, %v392
  %v409 = vadd.f32 %v377, %v393
  %v410 = vadd.f32 %v378, %v394
  %v411 = vadd.f32 %v379, %v395
  %v412 = vadd.f32 %v380, %v396
  %v413 = vadd.f32 %v381, %v397
  %v414 = vadd.f32 %v382, %v398
  %vm415 = vcmask 1043456
  %v416 = vsel %vm415, %v407, 0.0
  %v417 = vsel %vm415, %v411, 0.0
  %v418 = vadd.f32 %v416, %v417
  %v419 = vsel %vm415, %v408, 0.0
  %v420 = vsel %vm415, %v412, 0.0
  %v421 = vadd.f32 %v419, %v420
  %v422 = vsel %vm415, %v409, 0.0
  %v423 = vsel %vm415, %v413, 0.0
  %v424 = vadd.f32 %v422, %v423
  %v425 = vsel %vm415, %v410, 0.0
  %v426 = vsel %vm415, %v414, 0.0
  %v427 = vadd.f32 %v425, %v426
  %v428 = vsel %vm415, %v418, 0.0
  %v429 = vsel %vm415, %v421, 0.0
  %v430 = vadd.f32 %v428, %v429
  %v431 = vsel %vm415, %v424, 0.0
  %v432 = vadd.f32 %v430, %v431
  %v433 = vsel %vm415, %v427, 0.0
  %v434 = vadd.f32 %v432, %v433
  %v435 = vsel %vm415, %v434, 0.0
  %v436 = vrot.slane %v435, 4
  %v437 = vadd.f32 %v435, %v436
  %v438 = vrot.slane %v437, 2
  %v439 = vadd.f32 %v437, %v438
  %v440 = vrot.slane %v439, 1
  %v441 = vadd.f32 %v439, %v440
  %v442 = vmul.f32 %v407, %v407
  %v443 = vmul.f32 %v408, %v408
  %v444 = vmul.f32 %v409, %v409
  %v445 = vmul.f32 %v410, %v410
  %v446 = vmul.f32 %v411, %v411
  %v447 = vmul.f32 %v412, %v412
  %v448 = vmul.f32 %v413, %v413
  %v449 = vmul.f32 %v414, %v414
  %v450 = vsel %vm415, %v442, 0.0
  %v451 = vsel %vm415, %v446, 0.0
  %v452 = vadd.f32 %v450, %v451
  %v453 = vsel %vm415, %v443, 0.0
  %v454 = vsel %vm415, %v447, 0.0
  %v455 = vadd.f32 %v453, %v454
  %v456 = vsel %vm415, %v444, 0.0
  %v457 = vsel %vm415, %v448, 0.0
  %v458 = vadd.f32 %v456, %v457
  %v459 = vsel %vm415, %v445, 0.0
  %v460 = vsel %vm415, %v449, 0.0
  %v461 = vadd.f32 %v459, %v460
  %v462 = vsel %vm415, %v452, 0.0
  %v463 = vsel %vm415, %v455, 0.0
  %v464 = vadd.f32 %v462, %v463
  %v465 = vsel %vm415, %v458, 0.0
  %v466 = vadd.f32 %v464, %v465
  %v467 = vsel %vm415, %v461, 0.0
  %v468 = vadd.f32 %v466, %v467
  %v469 = vsel %vm415, %v468, 0.0
  %v470 = vrot.slane %v469, 4
  %v471 = vadd.f32 %v469, %v470
  %v472 = vrot.slane %v471, 2
  %v473 = vadd.f32 %v471, %v472
  %v474 = vrot.slane %v473, 1
  %v475 = vadd.f32 %v473, %v474
  %v476 = vmul.f32 %v441, 0.03125
  %v477 = vmul.f32 %v475, 0.03125
  %v478 = vmul.f32 %v476, %v476
  %v479 = vsub.f32 %v477, %v478
  %v480 = vmax.f32 %v479, 0.0
  %v481 = vld [vmem:[%s5] sm:$0x1]
  %v482 = vadd.f32 %v480, 1e-05
  %v483 = vrsqrt.pop %v482
  %v484 = vmul.f32 %v483, %v482
  %v485 = vmul.f32 %v484, %v483
  %v486 = vmul.f32 0.5, %v485
  %v487 = vsub.f32 1.5, %v486
  %v488 = vmul.f32 %v483, %v487
  %vm489 = vweird.f32 %v482
  %vm490 = vweird.f32 %v483
  %vm491 = vmor %vm489, %vm490
  %v492 = vsel %vm491, %v483, %v488
  %v493 = vmul.f32 %v481, %v492
  %v494 = vld [vmem:[%s6] sm:$0x1]
  %v495 = vmul.f32 %v476, %v493
  %v496 = vsub.f32 %v494, %v495
  %v498 = vperm.slane %v493, 0
  %v500 = vmul.f32 %v407, %v498
  %v501 = vmul.f32 %v408, %v498
  %v502 = vmul.f32 %v409, %v498
  %v503 = vmul.f32 %v410, %v498
  %v504 = vmul.f32 %v411, %v498
  %v505 = vmul.f32 %v412, %v498
  %v506 = vmul.f32 %v413, %v498
  %v507 = vmul.f32 %v414, %v498
  %v509 = vperm.slane %v496, 0
  %v511 = vadd.f32 %v500, %v509
  %v512 = vadd.f32 %v501, %v509
  %v513 = vadd.f32 %v502, %v509
  %v514 = vadd.f32 %v503, %v509
  %v515 = vadd.f32 %v504, %v509
  %v516 = vadd.f32 %v505, %v509
  %v517 = vadd.f32 %v506, %v509
  %v518 = vadd.f32 %v507, %v509
  %v519 = vmax.f32 %v511, 0.0
  %v520 = vmax.f32 %v512, 0.0
  %v521 = vmax.f32 %v513, 0.0
  %v522 = vmax.f32 %v514, 0.0
  %v523 = vmax.f32 %v515, 0.0
  %v524 = vmax.f32 %v516, 0.0
  %v525 = vmax.f32 %v517, 0.0
  %v526 = vmax.f32 %v518, 0.0
  %v527 = vpack.c.bf16 %v519, %v519
  %v528 = vpack.c.bf16 %v520, %v520
  %v529 = vpack.c.bf16 %v521, %v521
  %v530 = vpack.c.bf16 %v522, %v522
  %v531 = vpack.c.bf16 %v523, %v523
  %v532 = vpack.c.bf16 %v524, %v524
  %v533 = vpack.c.bf16 %v525, %v525
  %v534 = vpack.c.bf16 %v526, %v526
  %535 = vst [vmem:[%s7] sm:$0x3] %v527
  %536 = vst [vmem:[%s7 + $0x2] sm:$0x3] %v528
  %537 = vst [vmem:[%s7 + $0x4] sm:$0x3] %v529
  %538 = vst [vmem:[%s7 + $0x6] sm:$0x3] %v530
  %539 = vst [vmem:[%s7 + $0x8] sm:$0x3] %v531
  %540 = vst [vmem:[%s7 + $0xa] sm:$0x3] %v532
  %541 = vst [vmem:[%s7 + $0xc] sm:$0x3] %v533
  %542 = vst [vmem:[%s7 + $0xe] sm:$0x3] %v534
  // Predicated region
  $region30: #{_lambda_.34} parent=0 // pred_check
    _
  $region31: #{_lambda_.34} parent=0 // pred_check_branch
    %544 = sbr.rel (0) target = $region33
  $region32: #{_lambda_.34} parent=0 // pred_region
    _
  $region33: #{_lambda_.34} parent=0 // pred_fallthru
    _
  // Predicated region
  $region34: #{_lambda_.34} parent=0 // pred_check
    _
  $region35: #{_lambda_.34} parent=0 // pred_check_branch
    %546 = sbr.rel (0) target = $region37
  $region36: #{_lambda_.34} parent=0 // pred_region
    _
  $region37: #{_lambda_.34} parent=0 // pred_fallthru
    _

// kernel: _lambda_.37
$region0: #{_lambda_.37}
  #allocation0 [shape = 'u32[]', space=smem, size = 0x4, offset = 0x4, fixed_abs, tag = 'smem constant byte address 0x4 - core index']
  #allocation1 [shape = 'u32[72,128]{1,0:T(1,128)}', space=vmem, size = 0x9000, scoped, tag = 'internal scratch']
  %s0 = inlined_call_operand.vmem [shape: bf16[2,6,6,128], index: 0, kind: input, shape index: {}]
  %s1 = inlined_call_operand.vmem [shape: f32[9,128], index: 1, kind: input, shape index: {}]
  %s2 = inlined_call_operand.vmem [shape: f32[1,128], index: 2, kind: input, shape index: {}]
  %s3 = inlined_call_operand.vmem [shape: f32[1,128], index: 3, kind: input, shape index: {}]
  %s4 = inlined_call_operand.vmem [shape: bf16[2,4,4,128], index: 4, kind: output, shape index: {}]
  %s5 = sld [smem:[#allocation0]]
  $region26: #{_lambda_.37} parent=0
    _
  %s7 = ssub.s32 1, %s5
  %s8 = scalar_select 0, %s7, %s5
  // Predicated region
  $region2: #{_lambda_.37} parent=0 // pred_check
    _
  $region3: #{_lambda_.37} parent=0 // pred_check_branch
    %10 = sbr.rel (0) target = $region5
  $region4: #{_lambda_.37} parent=0 // pred_region
    _
  $region5: #{_lambda_.37} parent=0 // pred_fallthru
    _
  // Predicated region
  $region6: #{_lambda_.37} parent=0 // pred_check
    _
  $region7: #{_lambda_.37} parent=0 // pred_check_branch
    %12 = sbr.rel (0) target = $region9
  $region8: #{_lambda_.37} parent=0 // pred_region
    _
  $region9: #{_lambda_.37} parent=0 // pred_fallthru
    _
  // Predicated region
  $region10: #{_lambda_.37} parent=0 // pred_check
    _
  $region11: #{_lambda_.37} parent=0 // pred_check_branch
    %14 = sbr.rel (0) target = $region13
  $region12: #{_lambda_.37} parent=0 // pred_region
    _
  $region13: #{_lambda_.37} parent=0 // pred_fallthru
    _
  // Predicated region
  $region14: #{_lambda_.37} parent=0 // pred_check
    _
  $region15: #{_lambda_.37} parent=0 // pred_check_branch
    %16 = sbr.rel (0) target = $region17
  $region16: #{_lambda_.37} parent=0 // pred_region
    _
  $region17: #{_lambda_.37} parent=0 // pred_fallthru
    _
  %v17 = vld [vmem:[%s1] sm:$0xff]
  %v18 = vld [vmem:[%s1 + $0x8] sm:$0x1]
  %v19 = vld [vmem:[%s0] sm:$0x3]
  %v20 = vld [vmem:[%s0 + $0x4] sm:$0x3]
  %v21 = vld [vmem:[%s0 + $0x8] sm:$0x3]
  %v22 = vld [vmem:[%s0 + $0xc] sm:$0x3]
  %v23 = vld [vmem:[%s0 + $0x18] sm:$0x3]
  %v24 = vld [vmem:[%s0 + $0x1c] sm:$0x3]
  %v25 = vld [vmem:[%s0 + $0x20] sm:$0x3]
  %v26 = vld [vmem:[%s0 + $0x24] sm:$0x3]
  %v27 = vunpack.c.l.bf16 %v19
  %v28 = vunpack.c.l.bf16 %v20
  %v29 = vunpack.c.l.bf16 %v21
  %v30 = vunpack.c.l.bf16 %v22
  %v31 = vunpack.c.l.bf16 %v23
  %v32 = vunpack.c.l.bf16 %v24
  %v33 = vunpack.c.l.bf16 %v25
  %v34 = vunpack.c.l.bf16 %v26
  %v35 = vperm.slane %v17, 0
  %v36 = vmul.f32 %v27, %v35
  %v37 = vmul.f32 %v28, %v35
  %v38 = vmul.f32 %v29, %v35
  %v39 = vmul.f32 %v30, %v35
  %v40 = vmul.f32 %v31, %v35
  %v41 = vmul.f32 %v32, %v35
  %v42 = vmul.f32 %v33, %v35
  %v43 = vmul.f32 %v34, %v35
  %v44 = vld [vmem:[%s0] sm:$0x7]
  %v45 = vld [vmem:[%s0 + $0x4] sm:$0x7]
  %v46 = vld [vmem:[%s0 + $0x8] sm:$0x7]
  %v47 = vld [vmem:[%s0 + $0xc] sm:$0x7]
  %v48 = vld [vmem:[%s0 + $0x18] sm:$0x7]
  %v49 = vld [vmem:[%s0 + $0x1c] sm:$0x7]
  %v50 = vld [vmem:[%s0 + $0x20] sm:$0x7]
  %v51 = vld [vmem:[%s0 + $0x24] sm:$0x7]
  %v52 = vunpack.c.l.bf16 %v44
  %v53 = vunpack.c.l.bf16 %v45
  %v54 = vunpack.c.l.bf16 %v46
  %v55 = vunpack.c.l.bf16 %v47
  %v56 = vunpack.c.l.bf16 %v48
  %v57 = vunpack.c.l.bf16 %v49
  %v58 = vunpack.c.l.bf16 %v50
  %v59 = vunpack.c.l.bf16 %v51
  %v60 = vperm.slane %v17, 1
  %v61 = vmul.f32 %v52, %v60
  %v62 = vmul.f32 %v53, %v60
  %v63 = vmul.f32 %v54, %v60
  %v64 = vmul.f32 %v55, %v60
  %v65 = vmul.f32 %v56, %v60
  %v66 = vmul.f32 %v57, %v60
  %v67 = vmul.f32 %v58, %v60
  %v68 = vmul.f32 %v59, %v60
  %v69 = vld [vmem:[%s0] sm:$0x6]
  %v70 = vld [vmem:[%s0 + $0x4] sm:$0x6]
  %v71 = vld [vmem:[%s0 + $0x8] sm:$0x6]
  %v72 = vld [vmem:[%s0 + $0xc] sm:$0x6]
  %v73 = vld [vmem:[%s0 + $0x18] sm:$0x6]
  %v74 = vld [vmem:[%s0 + $0x1c] sm:$0x6]
  %v75 = vld [vmem:[%s0 + $0x20] sm:$0x6]
  %v76 = vld [vmem:[%s0 + $0x24] sm:$0x6]
  %v77 = vunpack.c.l.bf16 %v69
  %v78 = vunpack.c.l.bf16 %v70
  %v79 = vunpack.c.l.bf16 %v71
  %v80 = vunpack.c.l.bf16 %v72
  %v81 = vunpack.c.l.bf16 %v73
  %v82 = vunpack.c.l.bf16 %v74
  %v83 = vunpack.c.l.bf16 %v75
  %v84 = vunpack.c.l.bf16 %v76
  %v85 = vperm.slane %v17, 2
  %v86 = vmul.f32 %v77, %v85
  %v87 = vmul.f32 %v78, %v85
  %v88 = vmul.f32 %v79, %v85
  %v89 = vmul.f32 %v80, %v85
  %v90 = vmul.f32 %v81, %v85
  %v91 = vmul.f32 %v82, %v85
  %v92 = vmul.f32 %v83, %v85
  %v93 = vmul.f32 %v84, %v85
  %s94 = scalar_lea.vmem %s0, 4
  %v95 = vld [vmem:[%s94] sm:$0x3]
  %v96 = vld [vmem:[%s94 + $0x4] sm:$0x3]
  %v97 = vld [vmem:[%s94 + $0x8] sm:$0x3]
  %v98 = vld [vmem:[%s94 + $0xc] sm:$0x3]
  %v99 = vld [vmem:[%s94 + $0x18] sm:$0x3]
  %v100 = vld [vmem:[%s94 + $0x1c] sm:$0x3]
  %v101 = vld [vmem:[%s94 + $0x20] sm:$0x3]
  %v102 = vld [vmem:[%s94 + $0x24] sm:$0x3]
  %v103 = vunpack.c.l.bf16 %v95
  %v104 = vunpack.c.l.bf16 %v96
  %v105 = vunpack.c.l.bf16 %v97
  %v106 = vunpack.c.l.bf16 %v98
  %v107 = vunpack.c.l.bf16 %v99
  %v108 = vunpack.c.l.bf16 %v100
  %v109 = vunpack.c.l.bf16 %v101
  %v110 = vunpack.c.l.bf16 %v102
  %v111 = vperm.slane %v17, 3
  %v112 = vmul.f32 %v103, %v111
  %v113 = vmul.f32 %v104, %v111
  %v114 = vmul.f32 %v105, %v111
  %v115 = vmul.f32 %v106, %v111
  %v116 = vmul.f32 %v107, %v111
  %v117 = vmul.f32 %v108, %v111
  %v118 = vmul.f32 %v109, %v111
  %v119 = vmul.f32 %v110, %v111
  %v120 = vld [vmem:[%s94] sm:$0x7]
  %v121 = vld [vmem:[%s94 + $0x4] sm:$0x7]
  %v122 = vld [vmem:[%s94 + $0x8] sm:$0x7]
  %v123 = vld [vmem:[%s94 + $0xc] sm:$0x7]
  %v124 = vld [vmem:[%s94 + $0x18] sm:$0x7]
  %v125 = vld [vmem:[%s94 + $0x1c] sm:$0x7]
  %v126 = vld [vmem:[%s94 + $0x20] sm:$0x7]
  %v127 = vld [vmem:[%s94 + $0x24] sm:$0x7]
  %v128 = vunpack.c.l.bf16 %v120
  %v129 = vunpack.c.l.bf16 %v121
  %v130 = vunpack.c.l.bf16 %v122
  %v131 = vunpack.c.l.bf16 %v123
  %v132 = vunpack.c.l.bf16 %v124
  %v133 = vunpack.c.l.bf16 %v125
  %v134 = vunpack.c.l.bf16 %v126
  %v135 = vunpack.c.l.bf16 %v127
  %v136 = vperm.slane %v17, 4
  %v137 = vmul.f32 %v128, %v136
  %v138 = vmul.f32 %v129, %v136
  %v139 = vmul.f32 %v130, %v136
  %v140 = vmul.f32 %v131, %v136
  %v141 = vmul.f32 %v132, %v136
  %v142 = vmul.f32 %v133, %v136
  %v143 = vmul.f32 %v134, %v136
  %v144 = vmul.f32 %v135, %v136
  %v145 = vld [vmem:[%s94] sm:$0x6]
  %v146 = vld [vmem:[%s94 + $0x4] sm:$0x6]
  %v147 = vld [vmem:[%s94 + $0x8] sm:$0x6]
  %v148 = vld [vmem:[%s94 + $0xc] sm:$0x6]
  %v149 = vld [vmem:[%s94 + $0x18] sm:$0x6]
  %v150 = vld [vmem:[%s94 + $0x1c] sm:$0x6]
  %v151 = vld [vmem:[%s94 + $0x20] sm:$0x6]
  %v152 = vld [vmem:[%s94 + $0x24] sm:$0x6]
  %v153 = vunpack.c.l.bf16 %v145
  %v154 = vunpack.c.l.bf16 %v146
  %v155 = vunpack.c.l.bf16 %v147
  %v156 = vunpack.c.l.bf16 %v148
  %v157 = vunpack.c.l.bf16 %v149
  %v158 = vunpack.c.l.bf16 %v150
  %v159 = vunpack.c.l.bf16 %v151
  %v160 = vunpack.c.l.bf16 %v152
  %v161 = vperm.slane %v17, 5
  %v162 = vmul.f32 %v153, %v161
  %v163 = vmul.f32 %v154, %v161
  %v164 = vmul.f32 %v155, %v161
  %v165 = vmul.f32 %v156, %v161
  %v166 = vmul.f32 %v157, %v161
  %v167 = vmul.f32 %v158, %v161
  %v168 = vmul.f32 %v159, %v161
  %v169 = vmul.f32 %v160, %v161
  %s170 = scalar_lea.vmem %s0, 8
  %v171 = vld [vmem:[%s170] sm:$0x3]
  %v172 = vld [vmem:[%s170 + $0x4] sm:$0x3]
  %v173 = vld [vmem:[%s170 + $0x8] sm:$0x3]
  %v174 = vld [vmem:[%s170 + $0xc] sm:$0x3]
  %v175 = vld [vmem:[%s170 + $0x18] sm:$0x3]
  %v176 = vld [vmem:[%s170 + $0x1c] sm:$0x3]
  %v177 = vld [vmem:[%s170 + $0x20] sm:$0x3]
  %v178 = vld [vmem:[%s170 + $0x24] sm:$0x3]
  %v179 = vunpack.c.l.bf16 %v171
  %v180 = vunpack.c.l.bf16 %v172
  %v181 = vunpack.c.l.bf16 %v173
  %v182 = vunpack.c.l.bf16 %v174
  %v183 = vunpack.c.l.bf16 %v175
  %v184 = vunpack.c.l.bf16 %v176
  %v185 = vunpack.c.l.bf16 %v177
  %v186 = vunpack.c.l.bf16 %v178
  %v187 = vperm.slane %v17, 6
  %v188 = vmul.f32 %v179, %v187
  %v189 = vmul.f32 %v180, %v187
  %v190 = vmul.f32 %v181, %v187
  %v191 = vmul.f32 %v182, %v187
  %v192 = vmul.f32 %v183, %v187
  %v193 = vmul.f32 %v184, %v187
  %v194 = vmul.f32 %v185, %v187
  %v195 = vmul.f32 %v186, %v187
  %v196 = vld [vmem:[%s170] sm:$0x7]
  %v197 = vld [vmem:[%s170 + $0x4] sm:$0x7]
  %v198 = vld [vmem:[%s170 + $0x8] sm:$0x7]
  %v199 = vld [vmem:[%s170 + $0xc] sm:$0x7]
  %v200 = vld [vmem:[%s170 + $0x18] sm:$0x7]
  %v201 = vld [vmem:[%s170 + $0x1c] sm:$0x7]
  %v202 = vld [vmem:[%s170 + $0x20] sm:$0x7]
  %v203 = vld [vmem:[%s170 + $0x24] sm:$0x7]
  %v204 = vunpack.c.l.bf16 %v196
  %v205 = vunpack.c.l.bf16 %v197
  %v206 = vunpack.c.l.bf16 %v198
  %v207 = vunpack.c.l.bf16 %v199
  %v208 = vunpack.c.l.bf16 %v200
  %v209 = vunpack.c.l.bf16 %v201
  %v210 = vunpack.c.l.bf16 %v202
  %v211 = vunpack.c.l.bf16 %v203
  %v212 = vperm.slane %v17, 7
  %v213 = vmul.f32 %v204, %v212
  %v214 = vmul.f32 %v205, %v212
  %v215 = vmul.f32 %v206, %v212
  %v216 = vmul.f32 %v207, %v212
  %v217 = vmul.f32 %v208, %v212
  %v218 = vmul.f32 %v209, %v212
  %v219 = vmul.f32 %v210, %v212
  %v220 = vmul.f32 %v211, %v212
  %v221 = vld [vmem:[%s170] sm:$0x6]
  %v222 = vld [vmem:[%s170 + $0x4] sm:$0x6]
  %v223 = vld [vmem:[%s170 + $0x8] sm:$0x6]
  %v224 = vld [vmem:[%s170 + $0xc] sm:$0x6]
  %v225 = vld [vmem:[%s170 + $0x18] sm:$0x6]
  %v226 = vld [vmem:[%s170 + $0x1c] sm:$0x6]
  %v227 = vld [vmem:[%s170 + $0x20] sm:$0x6]
  %v228 = vld [vmem:[%s170 + $0x24] sm:$0x6]
  %v229 = vunpack.c.l.bf16 %v221
  %v230 = vunpack.c.l.bf16 %v222
  %v231 = vunpack.c.l.bf16 %v223
  %v232 = vunpack.c.l.bf16 %v224
  %v233 = vunpack.c.l.bf16 %v225
  %v234 = vunpack.c.l.bf16 %v226
  %v235 = vunpack.c.l.bf16 %v227
  %v236 = vunpack.c.l.bf16 %v228
  %v237 = vperm.slane %v18, 0
  %v238 = vmul.f32 %v229, %v237
  %v239 = vmul.f32 %v230, %v237
  %v240 = vmul.f32 %v231, %v237
  %v241 = vmul.f32 %v232, %v237
  %v242 = vmul.f32 %v233, %v237
  %v243 = vmul.f32 %v234, %v237
  %v244 = vmul.f32 %v235, %v237
  %v245 = vmul.f32 %v236, %v237
  %v254 = vrot.slane %v61, 1
  %v255 = vrot.slane %v62, 1
  %v256 = vrot.slane %v63, 1
  %v257 = vrot.slane %v64, 1
  %v258 = vrot.slane %v65, 1
  %v259 = vrot.slane %v66, 1
  %v260 = vrot.slane %v67, 1
  %v261 = vrot.slane %v68, 1
  %v270 = vadd.f32 %v36, %v254
  %v271 = vadd.f32 %v37, %v255
  %v272 = vadd.f32 %v38, %v256
  %v273 = vadd.f32 %v39, %v257
  %v274 = vadd.f32 %v40, %v258
  %v275 = vadd.f32 %v41, %v259
  %v276 = vadd.f32 %v42, %v260
  %v277 = vadd.f32 %v43, %v261
  %v286 = vrot.slane %v112, 6
  %v287 = vrot.slane %v113, 6
  %v288 = vrot.slane %v114, 6
  %v289 = vrot.slane %v115, 6
  %v290 = vrot.slane %v116, 6
  %v291 = vrot.slane %v117, 6
  %v292 = vrot.slane %v118, 6
  %v293 = vrot.slane %v119, 6
  %v302 = vadd.f32 %v86, %v286
  %v303 = vadd.f32 %v87, %v287
  %v304 = vadd.f32 %v88, %v288
  %v305 = vadd.f32 %v89, %v289
  %v306 = vadd.f32 %v90, %v290
  %v307 = vadd.f32 %v91, %v291
  %v308 = vadd.f32 %v92, %v292
  %v309 = vadd.f32 %v93, %v293
  %v318 = vrot.slane %v162, 1
  %v319 = vrot.slane %v163, 1
  %v320 = vrot.slane %v164, 1
  %v321 = vrot.slane %v165, 1
  %v322 = vrot.slane %v166, 1
  %v323 = vrot.slane %v167, 1
  %v324 = vrot.slane %v168, 1
  %v325 = vrot.slane %v169, 1
  %v334 = vadd.f32 %v137, %v318
  %v335 = vadd.f32 %v138, %v319
  %v336 = vadd.f32 %v139, %v320
  %v337 = vadd.f32 %v140, %v321
  %v338 = vadd.f32 %v141, %v322
  %v339 = vadd.f32 %v142, %v323
  %v340 = vadd.f32 %v143, %v324
  %v341 = vadd.f32 %v144, %v325
  %v350 = vrot.slane %v213, 1
  %v351 = vrot.slane %v214, 1
  %v352 = vrot.slane %v215, 1
  %v353 = vrot.slane %v216, 1
  %v354 = vrot.slane %v217, 1
  %v355 = vrot.slane %v218, 1
  %v356 = vrot.slane %v219, 1
  %v357 = vrot.slane %v220, 1
  %v366 = vadd.f32 %v188, %v350
  %v367 = vadd.f32 %v189, %v351
  %v368 = vadd.f32 %v190, %v352
  %v369 = vadd.f32 %v191, %v353
  %v370 = vadd.f32 %v192, %v354
  %v371 = vadd.f32 %v193, %v355
  %v372 = vadd.f32 %v194, %v356
  %v373 = vadd.f32 %v195, %v357
  %v382 = vrot.slane %v302, 2
  %v383 = vrot.slane %v303, 2
  %v384 = vrot.slane %v304, 2
  %v385 = vrot.slane %v305, 2
  %v386 = vrot.slane %v306, 2
  %v387 = vrot.slane %v307, 2
  %v388 = vrot.slane %v308, 2
  %v389 = vrot.slane %v309, 2
  %v398 = vadd.f32 %v270, %v382
  %v399 = vadd.f32 %v271, %v383
  %v400 = vadd.f32 %v272, %v384
  %v401 = vadd.f32 %v273, %v385
  %v402 = vadd.f32 %v274, %v386
  %v403 = vadd.f32 %v275, %v387
  %v404 = vadd.f32 %v276, %v388
  %v405 = vadd.f32 %v277, %v389
  %v414 = vrot.slane %v366, 7
  %v415 = vrot.slane %v367, 7
  %v416 = vrot.slane %v368, 7
  %v417 = vrot.slane %v369, 7
  %v418 = vrot.slane %v370, 7
  %v419 = vrot.slane %v371, 7
  %v420 = vrot.slane %v372, 7
  %v421 = vrot.slane %v373, 7
  %v430 = vadd.f32 %v334, %v414
  %v431 = vadd.f32 %v335, %v415
  %v432 = vadd.f32 %v336, %v416
  %v433 = vadd.f32 %v337, %v417
  %v434 = vadd.f32 %v338, %v418
  %v435 = vadd.f32 %v339, %v419
  %v436 = vadd.f32 %v340, %v420
  %v437 = vadd.f32 %v341, %v421
  %v446 = vrot.slane %v430, 1
  %v447 = vrot.slane %v431, 1
  %v448 = vrot.slane %v432, 1
  %v449 = vrot.slane %v433, 1
  %v450 = vrot.slane %v434, 1
  %v451 = vrot.slane %v435, 1
  %v452 = vrot.slane %v436, 1
  %v453 = vrot.slane %v437, 1
  %v462 = vadd.f32 %v398, %v446
  %v463 = vadd.f32 %v399, %v447
  %v464 = vadd.f32 %v400, %v448
  %v465 = vadd.f32 %v401, %v449
  %v466 = vadd.f32 %v402, %v450
  %v467 = vadd.f32 %v403, %v451
  %v468 = vadd.f32 %v404, %v452
  %v469 = vadd.f32 %v405, %v453
  %v478 = vrot.slane %v238, 2
  %v479 = vrot.slane %v239, 2
  %v480 = vrot.slane %v240, 2
  %v481 = vrot.slane %v241, 2
  %v482 = vrot.slane %v242, 2
  %v483 = vrot.slane %v243, 2
  %v484 = vrot.slane %v244, 2
  %v485 = vrot.slane %v245, 2
  %v494 = vadd.f32 %v462, %v478
  %v495 = vadd.f32 %v463, %v479
  %v496 = vadd.f32 %v464, %v480
  %v497 = vadd.f32 %v465, %v481
  %v498 = vadd.f32 %v466, %v482
  %v499 = vadd.f32 %v467, %v483
  %v500 = vadd.f32 %v468, %v484
  %v501 = vadd.f32 %v469, %v485
  %vm502 = vcmask 1043456
  %v503 = vsel %vm502, %v494, 0.0
  %v504 = vsel %vm502, %v498, 0.0
  %v505 = vadd.f32 %v503, %v504
  %v506 = vsel %vm502, %v495, 0.0
  %v507 = vsel %vm502, %v499, 0.0
  %v508 = vadd.f32 %v506, %v507
  %v509 = vsel %vm502, %v496, 0.0
  %v510 = vsel %vm502, %v500, 0.0
  %v511 = vadd.f32 %v509, %v510
  %v512 = vsel %vm502, %v497, 0.0
  %v513 = vsel %vm502, %v501, 0.0
  %v514 = vadd.f32 %v512, %v513
  %v515 = vsel %vm502, %v505, 0.0
  %v516 = vsel %vm502, %v508, 0.0
  %v517 = vadd.f32 %v515, %v516
  %v518 = vsel %vm502, %v511, 0.0
  %v519 = vadd.f32 %v517, %v518
  %v520 = vsel %vm502, %v514, 0.0
  %v521 = vadd.f32 %v519, %v520
  %v522 = vsel %vm502, %v521, 0.0
  %v523 = vrot.slane %v522, 4
  %v524 = vadd.f32 %v522, %v523
  %v525 = vrot.slane %v524, 2
  %v526 = vadd.f32 %v524, %v525
  %v527 = vrot.slane %v526, 1
  %v528 = vadd.f32 %v526, %v527
  %v529 = vmul.f32 %v494, %v494
  %v530 = vmul.f32 %v495, %v495
  %v531 = vmul.f32 %v496, %v496
  %v532 = vmul.f32 %v497, %v497
  %v533 = vmul.f32 %v498, %v498
  %v534 = vmul.f32 %v499, %v499
  %v535 = vmul.f32 %v500, %v500
  %v536 = vmul.f32 %v501, %v501
  %v537 = vsel %vm502, %v529, 0.0
  %v538 = vsel %vm502, %v533, 0.0
  %v539 = vadd.f32 %v537, %v538
  %v540 = vsel %vm502, %v530, 0.0
  %v541 = vsel %vm502, %v534, 0.0
  %v542 = vadd.f32 %v540, %v541
  %v543 = vsel %vm502, %v531, 0.0
  %v544 = vsel %vm502, %v535, 0.0
  %v545 = vadd.f32 %v543, %v544
  %v546 = vsel %vm502, %v532, 0.0
  %v547 = vsel %vm502, %v536, 0.0
  %v548 = vadd.f32 %v546, %v547
  %v549 = vsel %vm502, %v539, 0.0
  %v550 = vsel %vm502, %v542, 0.0
  %v551 = vadd.f32 %v549, %v550
  %v552 = vsel %vm502, %v545, 0.0
  %v553 = vadd.f32 %v551, %v552
  %v554 = vsel %vm502, %v548, 0.0
  %v555 = vadd.f32 %v553, %v554
  %v556 = vsel %vm502, %v555, 0.0
  %v557 = vrot.slane %v556, 4
  %v558 = vadd.f32 %v556, %v557
  %v559 = vrot.slane %v558, 2
  %v560 = vadd.f32 %v558, %v559
  %v561 = vrot.slane %v560, 1
  %v562 = vadd.f32 %v560, %v561
  %v563 = vmul.f32 %v528, 0.03125
  %v564 = vmul.f32 %v562, 0.03125
  %v565 = vmul.f32 %v563, %v563
  %v566 = vsub.f32 %v564, %v565
  %v567 = vmax.f32 %v566, 0.0
  %v568 = vld [vmem:[%s2] sm:$0x1]
  %v569 = vadd.f32 %v567, 1e-05
  %v570 = vrsqrt.pop %v569
  %v571 = vmul.f32 %v570, %v569
  %v572 = vmul.f32 %v571, %v570
  %v573 = vmul.f32 0.5, %v572
  %v574 = vsub.f32 1.5, %v573
  %v575 = vmul.f32 %v570, %v574
  %vm576 = vweird.f32 %v569
  %vm577 = vweird.f32 %v570
  %vm578 = vmor %vm576, %vm577
  %v579 = vsel %vm578, %v570, %v575
  %v580 = vmul.f32 %v568, %v579
  %v581 = vld [vmem:[%s3] sm:$0x1]
  %v582 = vmul.f32 %v563, %v580
  %v583 = vsub.f32 %v581, %v582
  %v585 = vperm.slane %v580, 0
  %v587 = vmul.f32 %v494, %v585
  %v588 = vmul.f32 %v495, %v585
  %v589 = vmul.f32 %v496, %v585
  %v590 = vmul.f32 %v497, %v585
  %v591 = vmul.f32 %v498, %v585
  %v592 = vmul.f32 %v499, %v585
  %v593 = vmul.f32 %v500, %v585
  %v594 = vmul.f32 %v501, %v585
  %v596 = vperm.slane %v583, 0
  %v598 = vadd.f32 %v587, %v596
  %v599 = vadd.f32 %v588, %v596
  %v600 = vadd.f32 %v589, %v596
  %v601 = vadd.f32 %v590, %v596
  %v602 = vadd.f32 %v591, %v596
  %v603 = vadd.f32 %v592, %v596
  %v604 = vadd.f32 %v593, %v596
  %v605 = vadd.f32 %v594, %v596
  %v606 = vpack.c.bf16 %v598, %v598
  %v607 = vpack.c.bf16 %v599, %v599
  %v608 = vpack.c.bf16 %v600, %v600
  %v609 = vpack.c.bf16 %v601, %v601
  %v610 = vpack.c.bf16 %v602, %v602
  %v611 = vpack.c.bf16 %v603, %v603
  %v612 = vpack.c.bf16 %v604, %v604
  %v613 = vpack.c.bf16 %v605, %v605
  %614 = vst [vmem:[%s4] sm:$0x3] %v606
  %615 = vst [vmem:[%s4 + $0x2] sm:$0x3] %v607
  %616 = vst [vmem:[%s4 + $0x4] sm:$0x3] %v608
  %617 = vst [vmem:[%s4 + $0x6] sm:$0x3] %v609
  %618 = vst [vmem:[%s4 + $0x8] sm:$0x3] %v610
  %619 = vst [vmem:[%s4 + $0xa] sm:$0x3] %v611
  %620 = vst [vmem:[%s4 + $0xc] sm:$0x3] %v612
  %621 = vst [vmem:[%s4 + $0xe] sm:$0x3] %v613
  // Predicated region
  $region18: #{_lambda_.37} parent=0 // pred_check
    _
  $region19: #{_lambda_.37} parent=0 // pred_check_branch
    %623 = sbr.rel (0) target = $region21
  $region20: #{_lambda_.37} parent=0 // pred_region
    _
  $region21: #{_lambda_.37} parent=0 // pred_fallthru
    _
  // Predicated region
  $region22: #{_lambda_.37} parent=0 // pred_check
    _
  $region23: #{_lambda_.37} parent=0 // pred_check_branch
    %625 = sbr.rel (0) target = $region25
  $region24: #{_lambda_.37} parent=0 // pred_region
    _
  $region25: #{_lambda_.37} parent=0 // pred_fallthru
    _

// kernel: _lambda_.42
$region0: #{_lambda_.42}
  #allocation0 [shape = 'u32[]', space=smem, size = 0x4, offset = 0x4, fixed_abs, tag = 'smem constant byte address 0x4 - core index']
  #allocation1 [shape = 'u32[72,128]{1,0:T(1,128)}', space=vmem, size = 0x9000, scoped, tag = 'internal scratch']
  %s0 = inlined_call_operand.vmem [shape: bf16[2,6,6,128], index: 0, kind: input, shape index: {}]
  %s1 = inlined_call_operand.vmem [shape: f32[9,128], index: 1, kind: input, shape index: {}]
  %s2 = inlined_call_operand.vmem [shape: f32[1,128], index: 2, kind: input, shape index: {}]
  %s3 = inlined_call_operand.vmem [shape: f32[1,128], index: 3, kind: input, shape index: {}]
  %s4 = inlined_call_operand.vmem [shape: bf16[2,4,4,128], index: 4, kind: output, shape index: {}]
  %s5 = sld [smem:[#allocation0]]
  $region26: #{_lambda_.42} parent=0
    _
  %s7 = ssub.s32 1, %s5
  %s8 = scalar_select 0, %s7, %s5
  // Predicated region
  $region2: #{_lambda_.42} parent=0 // pred_check
    _
  $region3: #{_lambda_.42} parent=0 // pred_check_branch
    %10 = sbr.rel (0) target = $region5
  $region4: #{_lambda_.42} parent=0 // pred_region
    _
  $region5: #{_lambda_.42} parent=0 // pred_fallthru
    _
  // Predicated region
  $region6: #{_lambda_.42} parent=0 // pred_check
    _
  $region7: #{_lambda_.42} parent=0 // pred_check_branch
    %12 = sbr.rel (0) target = $region9
  $region8: #{_lambda_.42} parent=0 // pred_region
    _
  $region9: #{_lambda_.42} parent=0 // pred_fallthru
    _
  // Predicated region
  $region10: #{_lambda_.42} parent=0 // pred_check
    _
  $region11: #{_lambda_.42} parent=0 // pred_check_branch
    %14 = sbr.rel (0) target = $region13
  $region12: #{_lambda_.42} parent=0 // pred_region
    _
  $region13: #{_lambda_.42} parent=0 // pred_fallthru
    _
  // Predicated region
  $region14: #{_lambda_.42} parent=0 // pred_check
    _
  $region15: #{_lambda_.42} parent=0 // pred_check_branch
    %16 = sbr.rel (0) target = $region17
  $region16: #{_lambda_.42} parent=0 // pred_region
    _
  $region17: #{_lambda_.42} parent=0 // pred_fallthru
    _
  %v17 = vld [vmem:[%s1] sm:$0xff]
  %v18 = vld [vmem:[%s1 + $0x8] sm:$0x1]
  %v19 = vld [vmem:[%s0] sm:$0x3]
  %v20 = vld [vmem:[%s0 + $0x4] sm:$0x3]
  %v21 = vld [vmem:[%s0 + $0x8] sm:$0x3]
  %v22 = vld [vmem:[%s0 + $0xc] sm:$0x3]
  %v23 = vld [vmem:[%s0 + $0x18] sm:$0x3]
  %v24 = vld [vmem:[%s0 + $0x1c] sm:$0x3]
  %v25 = vld [vmem:[%s0 + $0x20] sm:$0x3]
  %v26 = vld [vmem:[%s0 + $0x24] sm:$0x3]
  %v27 = vunpack.c.l.bf16 %v19
  %v28 = vunpack.c.l.bf16 %v20
  %v29 = vunpack.c.l.bf16 %v21
  %v30 = vunpack.c.l.bf16 %v22
  %v31 = vunpack.c.l.bf16 %v23
  %v32 = vunpack.c.l.bf16 %v24
  %v33 = vunpack.c.l.bf16 %v25
  %v34 = vunpack.c.l.bf16 %v26
  %v35 = vperm.slane %v17, 0
  %v36 = vmul.f32 %v27, %v35
  %v37 = vmul.f32 %v28, %v35
  %v38 = vmul.f32 %v29, %v35
  %v39 = vmul.f32 %v30, %v35
  %v40 = vmul.f32 %v31, %v35
  %v41 = vmul.f32 %v32, %v35
  %v42 = vmul.f32 %v33, %v35
  %v43 = vmul.f32 %v34, %v35
  %v44 = vld [vmem:[%s0] sm:$0x7]
  %v45 = vld [vmem:[%s0 + $0x4] sm:$0x7]
  %v46 = vld [vmem:[%s0 + $0x8] sm:$0x7]
  %v47 = vld [vmem:[%s0 + $0xc] sm:$0x7]
  %v48 = vld [vmem:[%s0 + $0x18] sm:$0x7]
  %v49 = vld [vmem:[%s0 + $0x1c] sm:$0x7]
  %v50 = vld [vmem:[%s0 + $0x20] sm:$0x7]
  %v51 = vld [vmem:[%s0 + $0x24] sm:$0x7]
  %v52 = vunpack.c.l.bf16 %v44
  %v53 = vunpack.c.l.bf16 %v45
  %v54 = vunpack.c.l.bf16 %v46
  %v55 = vunpack.c.l.bf16 %v47
  %v56 = vunpack.c.l.bf16 %v48
  %v57 = vunpack.c.l.bf16 %v49
  %v58 = vunpack.c.l.bf16 %v50
  %v59 = vunpack.c.l.bf16 %v51
  %v60 = vperm.slane %v17, 1
  %v61 = vmul.f32 %v52, %v60
  %v62 = vmul.f32 %v53, %v60
  %v63 = vmul.f32 %v54, %v60
  %v64 = vmul.f32 %v55, %v60
  %v65 = vmul.f32 %v56, %v60
  %v66 = vmul.f32 %v57, %v60
  %v67 = vmul.f32 %v58, %v60
  %v68 = vmul.f32 %v59, %v60
  %v69 = vld [vmem:[%s0] sm:$0x6]
  %v70 = vld [vmem:[%s0 + $0x4] sm:$0x6]
  %v71 = vld [vmem:[%s0 + $0x8] sm:$0x6]
  %v72 = vld [vmem:[%s0 + $0xc] sm:$0x6]
  %v73 = vld [vmem:[%s0 + $0x18] sm:$0x6]
  %v74 = vld [vmem:[%s0 + $0x1c] sm:$0x6]
  %v75 = vld [vmem:[%s0 + $0x20] sm:$0x6]
  %v76 = vld [vmem:[%s0 + $0x24] sm:$0x6]
  %v77 = vunpack.c.l.bf16 %v69
  %v78 = vunpack.c.l.bf16 %v70
  %v79 = vunpack.c.l.bf16 %v71
  %v80 = vunpack.c.l.bf16 %v72
  %v81 = vunpack.c.l.bf16 %v73
  %v82 = vunpack.c.l.bf16 %v74
  %v83 = vunpack.c.l.bf16 %v75
  %v84 = vunpack.c.l.bf16 %v76
  %v85 = vperm.slane %v17, 2
  %v86 = vmul.f32 %v77, %v85
  %v87 = vmul.f32 %v78, %v85
  %v88 = vmul.f32 %v79, %v85
  %v89 = vmul.f32 %v80, %v85
  %v90 = vmul.f32 %v81, %v85
  %v91 = vmul.f32 %v82, %v85
  %v92 = vmul.f32 %v83, %v85
  %v93 = vmul.f32 %v84, %v85
  %s94 = scalar_lea.vmem %s0, 4
  %v95 = vld [vmem:[%s94] sm:$0x3]
  %v96 = vld [vmem:[%s94 + $0x4] sm:$0x3]
  %v97 = vld [vmem:[%s94 + $0x8] sm:$0x3]
  %v98 = vld [vmem:[%s94 + $0xc] sm:$0x3]
  %v99 = vld [vmem:[%s94 + $0x18] sm:$0x3]
  %v100 = vld [vmem:[%s94 + $0x1c] sm:$0x3]
  %v101 = vld [vmem:[%s94 + $0x20] sm:$0x3]
  %v102 = vld [vmem:[%s94 + $0x24] sm:$0x3]
  %v103 = vunpack.c.l.bf16 %v95
  %v104 = vunpack.c.l.bf16 %v96
  %v105 = vunpack.c.l.bf16 %v97
  %v106 = vunpack.c.l.bf16 %v98
  %v107 = vunpack.c.l.bf16 %v99
  %v108 = vunpack.c.l.bf16 %v100
  %v109 = vunpack.c.l.bf16 %v101
  %v110 = vunpack.c.l.bf16 %v102
  %v111 = vperm.slane %v17, 3
  %v112 = vmul.f32 %v103, %v111
  %v113 = vmul.f32 %v104, %v111
  %v114 = vmul.f32 %v105, %v111
  %v115 = vmul.f32 %v106, %v111
  %v116 = vmul.f32 %v107, %v111
  %v117 = vmul.f32 %v108, %v111
  %v118 = vmul.f32 %v109, %v111
  %v119 = vmul.f32 %v110, %v111
  %v120 = vld [vmem:[%s94] sm:$0x7]
  %v121 = vld [vmem:[%s94 + $0x4] sm:$0x7]
  %v122 = vld [vmem:[%s94 + $0x8] sm:$0x7]
  %v123 = vld [vmem:[%s94 + $0xc] sm:$0x7]
  %v124 = vld [vmem:[%s94 + $0x18] sm:$0x7]
  %v125 = vld [vmem:[%s94 + $0x1c] sm:$0x7]
  %v126 = vld [vmem:[%s94 + $0x20] sm:$0x7]
  %v127 = vld [vmem:[%s94 + $0x24] sm:$0x7]
  %v128 = vunpack.c.l.bf16 %v120
  %v129 = vunpack.c.l.bf16 %v121
  %v130 = vunpack.c.l.bf16 %v122
  %v131 = vunpack.c.l.bf16 %v123
  %v132 = vunpack.c.l.bf16 %v124
  %v133 = vunpack.c.l.bf16 %v125
  %v134 = vunpack.c.l.bf16 %v126
  %v135 = vunpack.c.l.bf16 %v127
  %v136 = vperm.slane %v17, 4
  %v137 = vmul.f32 %v128, %v136
  %v138 = vmul.f32 %v129, %v136
  %v139 = vmul.f32 %v130, %v136
  %v140 = vmul.f32 %v131, %v136
  %v141 = vmul.f32 %v132, %v136
  %v142 = vmul.f32 %v133, %v136
  %v143 = vmul.f32 %v134, %v136
  %v144 = vmul.f32 %v135, %v136
  %v145 = vld [vmem:[%s94] sm:$0x6]
  %v146 = vld [vmem:[%s94 + $0x4] sm:$0x6]
  %v147 = vld [vmem:[%s94 + $0x8] sm:$0x6]
  %v148 = vld [vmem:[%s94 + $0xc] sm:$0x6]
  %v149 = vld [vmem:[%s94 + $0x18] sm:$0x6]
  %v150 = vld [vmem:[%s94 + $0x1c] sm:$0x6]
  %v151 = vld [vmem:[%s94 + $0x20] sm:$0x6]
  %v152 = vld [vmem:[%s94 + $0x24] sm:$0x6]
  %v153 = vunpack.c.l.bf16 %v145
  %v154 = vunpack.c.l.bf16 %v146
  %v155 = vunpack.c.l.bf16 %v147
  %v156 = vunpack.c.l.bf16 %v148
  %v157 = vunpack.c.l.bf16 %v149
  %v158 = vunpack.c.l.bf16 %v150
  %v159 = vunpack.c.l.bf16 %v151
  %v160 = vunpack.c.l.bf16 %v152
  %v161 = vperm.slane %v17, 5
  %v162 = vmul.f32 %v153, %v161
  %v163 = vmul.f32 %v154, %v161
  %v164 = vmul.f32 %v155, %v161
  %v165 = vmul.f32 %v156, %v161
  %v166 = vmul.f32 %v157, %v161
  %v167 = vmul.f32 %v158, %v161
  %v168 = vmul.f32 %v159, %v161
  %v169 = vmul.f32 %v160, %v161
  %s170 = scalar_lea.vmem %s0, 8
  %v171 = vld [vmem:[%s170] sm:$0x3]
  %v172 = vld [vmem:[%s170 + $0x4] sm:$0x3]
  %v173 = vld [vmem:[%s170 + $0x8] sm:$0x3]
  %v174 = vld [vmem:[%s170 + $0xc] sm:$0x3]
  %v175 = vld [vmem:[%s170 + $0x18] sm:$0x3]
  %v176 = vld [vmem:[%s170 + $0x1c] sm:$0x3]
  %v177 = vld [vmem:[%s170 + $0x20] sm:$0x3]
  %v178 = vld [vmem:[%s170 + $0x24] sm:$0x3]
  %v179 = vunpack.c.l.bf16 %v171
  %v180 = vunpack.c.l.bf16 %v172
  %v181 = vunpack.c.l.bf16 %v173
  %v182 = vunpack.c.l.bf16 %v174
  %v183 = vunpack.c.l.bf16 %v175
  %v184 = vunpack.c.l.bf16 %v176
  %v185 = vunpack.c.l.bf16 %v177
  %v186 = vunpack.c.l.bf16 %v178
  %v187 = vperm.slane %v17, 6
  %v188 = vmul.f32 %v179, %v187
  %v189 = vmul.f32 %v180, %v187
  %v190 = vmul.f32 %v181, %v187
  %v191 = vmul.f32 %v182, %v187
  %v192 = vmul.f32 %v183, %v187
  %v193 = vmul.f32 %v184, %v187
  %v194 = vmul.f32 %v185, %v187
  %v195 = vmul.f32 %v186, %v187
  %v196 = vld [vmem:[%s170] sm:$0x7]
  %v197 = vld [vmem:[%s170 + $0x4] sm:$0x7]
  %v198 = vld [vmem:[%s170 + $0x8] sm:$0x7]
  %v199 = vld [vmem:[%s170 + $0xc] sm:$0x7]
  %v200 = vld [vmem:[%s170 + $0x18] sm:$0x7]
  %v201 = vld [vmem:[%s170 + $0x1c] sm:$0x7]
  %v202 = vld [vmem:[%s170 + $0x20] sm:$0x7]
  %v203 = vld [vmem:[%s170 + $0x24] sm:$0x7]
  %v204 = vunpack.c.l.bf16 %v196
  %v205 = vunpack.c.l.bf16 %v197
  %v206 = vunpack.c.l.bf16 %v198
  %v207 = vunpack.c.l.bf16 %v199
  %v208 = vunpack.c.l.bf16 %v200
  %v209 = vunpack.c.l.bf16 %v201
  %v210 = vunpack.c.l.bf16 %v202
  %v211 = vunpack.c.l.bf16 %v203
  %v212 = vperm.slane %v17, 7
  %v213 = vmul.f32 %v204, %v212
  %v214 = vmul.f32 %v205, %v212
  %v215 = vmul.f32 %v206, %v212
  %v216 = vmul.f32 %v207, %v212
  %v217 = vmul.f32 %v208, %v212
  %v218 = vmul.f32 %v209, %v212
  %v219 = vmul.f32 %v210, %v212
  %v220 = vmul.f32 %v211, %v212
  %v221 = vld [vmem:[%s170] sm:$0x6]
  %v222 = vld [vmem:[%s170 + $0x4] sm:$0x6]
  %v223 = vld [vmem:[%s170 + $0x8] sm:$0x6]
  %v224 = vld [vmem:[%s170 + $0xc] sm:$0x6]
  %v225 = vld [vmem:[%s170 + $0x18] sm:$0x6]
  %v226 = vld [vmem:[%s170 + $0x1c] sm:$0x6]
  %v227 = vld [vmem:[%s170 + $0x20] sm:$0x6]
  %v228 = vld [vmem:[%s170 + $0x24] sm:$0x6]
  %v229 = vunpack.c.l.bf16 %v221
  %v230 = vunpack.c.l.bf16 %v222
  %v231 = vunpack.c.l.bf16 %v223
  %v232 = vunpack.c.l.bf16 %v224
  %v233 = vunpack.c.l.bf16 %v225
  %v234 = vunpack.c.l.bf16 %v226
  %v235 = vunpack.c.l.bf16 %v227
  %v236 = vunpack.c.l.bf16 %v228
  %v237 = vperm.slane %v18, 0
  %v238 = vmul.f32 %v229, %v237
  %v239 = vmul.f32 %v230, %v237
  %v240 = vmul.f32 %v231, %v237
  %v241 = vmul.f32 %v232, %v237
  %v242 = vmul.f32 %v233, %v237
  %v243 = vmul.f32 %v234, %v237
  %v244 = vmul.f32 %v235, %v237
  %v245 = vmul.f32 %v236, %v237
  %v254 = vrot.slane %v61, 1
  %v255 = vrot.slane %v62, 1
  %v256 = vrot.slane %v63, 1
  %v257 = vrot.slane %v64, 1
  %v258 = vrot.slane %v65, 1
  %v259 = vrot.slane %v66, 1
  %v260 = vrot.slane %v67, 1
  %v261 = vrot.slane %v68, 1
  %v270 = vadd.f32 %v36, %v254
  %v271 = vadd.f32 %v37, %v255
  %v272 = vadd.f32 %v38, %v256
  %v273 = vadd.f32 %v39, %v257
  %v274 = vadd.f32 %v40, %v258
  %v275 = vadd.f32 %v41, %v259
  %v276 = vadd.f32 %v42, %v260
  %v277 = vadd.f32 %v43, %v261
  %v286 = vrot.slane %v112, 6
  %v287 = vrot.slane %v113, 6
  %v288 = vrot.slane %v114, 6
  %v289 = vrot.slane %v115, 6
  %v290 = vrot.slane %v116, 6
  %v291 = vrot.slane %v117, 6
  %v292 = vrot.slane %v118, 6
  %v293 = vrot.slane %v119, 6
  %v302 = vadd.f32 %v86, %v286
  %v303 = vadd.f32 %v87, %v287
  %v304 = vadd.f32 %v88, %v288
  %v305 = vadd.f32 %v89, %v289
  %v306 = vadd.f32 %v90, %v290
  %v307 = vadd.f32 %v91, %v291
  %v308 = vadd.f32 %v92, %v292
  %v309 = vadd.f32 %v93, %v293
  %v318 = vrot.slane %v162, 1
  %v319 = vrot.slane %v163, 1
  %v320 = vrot.slane %v164, 1
  %v321 = vrot.slane %v165, 1
  %v322 = vrot.slane %v166, 1
  %v323 = vrot.slane %v167, 1
  %v324 = vrot.slane %v168, 1
  %v325 = vrot.slane %v169, 1
  %v334 = vadd.f32 %v137, %v318
  %v335 = vadd.f32 %v138, %v319
  %v336 = vadd.f32 %v139, %v320
  %v337 = vadd.f32 %v140, %v321
  %v338 = vadd.f32 %v141, %v322
  %v339 = vadd.f32 %v142, %v323
  %v340 = vadd.f32 %v143, %v324
  %v341 = vadd.f32 %v144, %v325
  %v350 = vrot.slane %v213, 1
  %v351 = vrot.slane %v214, 1
  %v352 = vrot.slane %v215, 1
  %v353 = vrot.slane %v216, 1
  %v354 = vrot.slane %v217, 1
  %v355 = vrot.slane %v218, 1
  %v356 = vrot.slane %v219, 1
  %v357 = vrot.slane %v220, 1
  %v366 = vadd.f32 %v188, %v350
  %v367 = vadd.f32 %v189, %v351
  %v368 = vadd.f32 %v190, %v352
  %v369 = vadd.f32 %v191, %v353
  %v370 = vadd.f32 %v192, %v354
  %v371 = vadd.f32 %v193, %v355
  %v372 = vadd.f32 %v194, %v356
  %v373 = vadd.f32 %v195, %v357
  %v382 = vrot.slane %v302, 2
  %v383 = vrot.slane %v303, 2
  %v384 = vrot.slane %v304, 2
  %v385 = vrot.slane %v305, 2
  %v386 = vrot.slane %v306, 2
  %v387 = vrot.slane %v307, 2
  %v388 = vrot.slane %v308, 2
  %v389 = vrot.slane %v309, 2
  %v398 = vadd.f32 %v270, %v382
  %v399 = vadd.f32 %v271, %v383
  %v400 = vadd.f32 %v272, %v384
  %v401 = vadd.f32 %v273, %v385
  %v402 = vadd.f32 %v274, %v386
  %v403 = vadd.f32 %v275, %v387
  %v404 = vadd.f32 %v276, %v388
  %v405 = vadd.f32 %v277, %v389
  %v414 = vrot.slane %v366, 7
  %v415 = vrot.slane %v367, 7
  %v416 = vrot.slane %v368, 7
  %v417 = vrot.slane %v369, 7
  %v418 = vrot.slane %v370, 7
  %v419 = vrot.slane %v371, 7
  %v420 = vrot.slane %v372, 7
  %v421 = vrot.slane %v373, 7
  %v430 = vadd.f32 %v334, %v414
  %v431 = vadd.f32 %v335, %v415
  %v432 = vadd.f32 %v336, %v416
  %v433 = vadd.f32 %v337, %v417
  %v434 = vadd.f32 %v338, %v418
  %v435 = vadd.f32 %v339, %v419
  %v436 = vadd.f32 %v340, %v420
  %v437 = vadd.f32 %v341, %v421
  %v446 = vrot.slane %v430, 1
  %v447 = vrot.slane %v431, 1
  %v448 = vrot.slane %v432, 1
  %v449 = vrot.slane %v433, 1
  %v450 = vrot.slane %v434, 1
  %v451 = vrot.slane %v435, 1
  %v452 = vrot.slane %v436, 1
  %v453 = vrot.slane %v437, 1
  %v462 = vadd.f32 %v398, %v446
  %v463 = vadd.f32 %v399, %v447
  %v464 = vadd.f32 %v400, %v448
  %v465 = vadd.f32 %v401, %v449
  %v466 = vadd.f32 %v402, %v450
  %v467 = vadd.f32 %v403, %v451
  %v468 = vadd.f32 %v404, %v452
  %v469 = vadd.f32 %v405, %v453
  %v478 = vrot.slane %v238, 2
  %v479 = vrot.slane %v239, 2
  %v480 = vrot.slane %v240, 2
  %v481 = vrot.slane %v241, 2
  %v482 = vrot.slane %v242, 2
  %v483 = vrot.slane %v243, 2
  %v484 = vrot.slane %v244, 2
  %v485 = vrot.slane %v245, 2
  %v494 = vadd.f32 %v462, %v478
  %v495 = vadd.f32 %v463, %v479
  %v496 = vadd.f32 %v464, %v480
  %v497 = vadd.f32 %v465, %v481
  %v498 = vadd.f32 %v466, %v482
  %v499 = vadd.f32 %v467, %v483
  %v500 = vadd.f32 %v468, %v484
  %v501 = vadd.f32 %v469, %v485
  %vm502 = vcmask 1043456
  %v503 = vsel %vm502, %v494, 0.0
  %v504 = vsel %vm502, %v498, 0.0
  %v505 = vadd.f32 %v503, %v504
  %v506 = vsel %vm502, %v495, 0.0
  %v507 = vsel %vm502, %v499, 0.0
  %v508 = vadd.f32 %v506, %v507
  %v509 = vsel %vm502, %v496, 0.0
  %v510 = vsel %vm502, %v500, 0.0
  %v511 = vadd.f32 %v509, %v510
  %v512 = vsel %vm502, %v497, 0.0
  %v513 = vsel %vm502, %v501, 0.0
  %v514 = vadd.f32 %v512, %v513
  %v515 = vsel %vm502, %v505, 0.0
  %v516 = vsel %vm502, %v508, 0.0
  %v517 = vadd.f32 %v515, %v516
  %v518 = vsel %vm502, %v511, 0.0
  %v519 = vadd.f32 %v517, %v518
  %v520 = vsel %vm502, %v514, 0.0
  %v521 = vadd.f32 %v519, %v520
  %v522 = vsel %vm502, %v521, 0.0
  %v523 = vrot.slane %v522, 4
  %v524 = vadd.f32 %v522, %v523
  %v525 = vrot.slane %v524, 2
  %v526 = vadd.f32 %v524, %v525
  %v527 = vrot.slane %v526, 1
  %v528 = vadd.f32 %v526, %v527
  %v529 = vmul.f32 %v494, %v494
  %v530 = vmul.f32 %v495, %v495
  %v531 = vmul.f32 %v496, %v496
  %v532 = vmul.f32 %v497, %v497
  %v533 = vmul.f32 %v498, %v498
  %v534 = vmul.f32 %v499, %v499
  %v535 = vmul.f32 %v500, %v500
  %v536 = vmul.f32 %v501, %v501
  %v537 = vsel %vm502, %v529, 0.0
  %v538 = vsel %vm502, %v533, 0.0
  %v539 = vadd.f32 %v537, %v538
  %v540 = vsel %vm502, %v530, 0.0
  %v541 = vsel %vm502, %v534, 0.0
  %v542 = vadd.f32 %v540, %v541
  %v543 = vsel %vm502, %v531, 0.0
  %v544 = vsel %vm502, %v535, 0.0
  %v545 = vadd.f32 %v543, %v544
  %v546 = vsel %vm502, %v532, 0.0
  %v547 = vsel %vm502, %v536, 0.0
  %v548 = vadd.f32 %v546, %v547
  %v549 = vsel %vm502, %v539, 0.0
  %v550 = vsel %vm502, %v542, 0.0
  %v551 = vadd.f32 %v549, %v550
  %v552 = vsel %vm502, %v545, 0.0
  %v553 = vadd.f32 %v551, %v552
  %v554 = vsel %vm502, %v548, 0.0
  %v555 = vadd.f32 %v553, %v554
  %v556 = vsel %vm502, %v555, 0.0
  %v557 = vrot.slane %v556, 4
  %v558 = vadd.f32 %v556, %v557
  %v559 = vrot.slane %v558, 2
  %v560 = vadd.f32 %v558, %v559
  %v561 = vrot.slane %v560, 1
  %v562 = vadd.f32 %v560, %v561
  %v563 = vmul.f32 %v528, 0.03125
  %v564 = vmul.f32 %v562, 0.03125
  %v565 = vmul.f32 %v563, %v563
  %v566 = vsub.f32 %v564, %v565
  %v567 = vmax.f32 %v566, 0.0
  %v568 = vld [vmem:[%s2] sm:$0x1]
  %v569 = vadd.f32 %v567, 1e-05
  %v570 = vrsqrt.pop %v569
  %v571 = vmul.f32 %v570, %v569
  %v572 = vmul.f32 %v571, %v570
  %v573 = vmul.f32 0.5, %v572
  %v574 = vsub.f32 1.5, %v573
  %v575 = vmul.f32 %v570, %v574
  %vm576 = vweird.f32 %v569
  %vm577 = vweird.f32 %v570
  %vm578 = vmor %vm576, %vm577
  %v579 = vsel %vm578, %v570, %v575
  %v580 = vmul.f32 %v568, %v579
  %v581 = vld [vmem:[%s3] sm:$0x1]
  %v582 = vmul.f32 %v563, %v580
  %v583 = vsub.f32 %v581, %v582
  %v585 = vperm.slane %v580, 0
  %v587 = vmul.f32 %v494, %v585
  %v588 = vmul.f32 %v495, %v585
  %v589 = vmul.f32 %v496, %v585
  %v590 = vmul.f32 %v497, %v585
  %v591 = vmul.f32 %v498, %v585
  %v592 = vmul.f32 %v499, %v585
  %v593 = vmul.f32 %v500, %v585
  %v594 = vmul.f32 %v501, %v585
  %v596 = vperm.slane %v583, 0
  %v598 = vadd.f32 %v587, %v596
  %v599 = vadd.f32 %v588, %v596
  %v600 = vadd.f32 %v589, %v596
  %v601 = vadd.f32 %v590, %v596
  %v602 = vadd.f32 %v591, %v596
  %v603 = vadd.f32 %v592, %v596
  %v604 = vadd.f32 %v593, %v596
  %v605 = vadd.f32 %v594, %v596
  %v606 = vmax.f32 %v598, 0.0
  %v607 = vmax.f32 %v599, 0.0
  %v608 = vmax.f32 %v600, 0.0
  %v609 = vmax.f32 %v601, 0.0
  %v610 = vmax.f32 %v602, 0.0
  %v611 = vmax.f32 %v603, 0.0
  %v612 = vmax.f32 %v604, 0.0
  %v613 = vmax.f32 %v605, 0.0
  %v614 = vpack.c.bf16 %v606, %v606
  %v615 = vpack.c.bf16 %v607, %v607
  %v616 = vpack.c.bf16 %v608, %v608
  %v617 = vpack.c.bf16 %v609, %v609
  %v618 = vpack.c.bf16 %v610, %v610
  %v619 = vpack.c.bf16 %v611, %v611
  %v620 = vpack.c.bf16 %v612, %v612
  %v621 = vpack.c.bf16 %v613, %v613
  %622 = vst [vmem:[%s4] sm:$0x3] %v614
  %623 = vst [vmem:[%s4 + $0x2] sm:$0x3] %v615
  %624 = vst [vmem:[%s4 + $0x4] sm:$0x3] %v616
  %625 = vst [vmem:[%s4 + $0x6] sm:$0x3] %v617
  %626 = vst [vmem:[%s4 + $0x8] sm:$0x3] %v618
  %627 = vst [vmem:[%s4 + $0xa] sm:$0x3] %v619
  %628 = vst [vmem:[%s4 + $0xc] sm:$0x3] %v620
  %629 = vst [vmem:[%s4 + $0xe] sm:$0x3] %v621
  // Predicated region
  $region18: #{_lambda_.42} parent=0 // pred_check
    _
  $region19: #{_lambda_.42} parent=0 // pred_check_branch
    %631 = sbr.rel (0) target = $region21
  $region20: #{_lambda_.42} parent=0 // pred_region
    _
  $region21: #{_lambda_.42} parent=0 // pred_fallthru
    _
  // Predicated region
  $region22: #{_lambda_.42} parent=0 // pred_check
    _
  $region23: #{_lambda_.42} parent=0 // pred_check_branch
    %633 = sbr.rel (0) target = $region25
  $region24: #{_lambda_.42} parent=0 // pred_region
    _
  $region25: #{_lambda_.42} parent=0 // pred_fallthru
    _

// kernel: _lambda_.44
$region0: #{_lambda_.44}
  #allocation0 [shape = 'u32[]', space=smem, size = 0x4, offset = 0x4, fixed_abs, tag = 'smem constant byte address 0x4 - core index']
  #allocation1 [shape = 'u32[72,128]{1,0:T(1,128)}', space=vmem, size = 0x9000, scoped, tag = 'internal scratch']
  %s0 = inlined_call_operand.vmem [shape: bf16[8,128], index: 0, kind: input, shape index: {}]
  %s1 = inlined_call_operand.vmem [shape: bf16[128,128], index: 1, kind: input, shape index: {}]
  %s2 = inlined_call_operand.vmem [shape: f32[1,128], index: 2, kind: input, shape index: {}]
  %s3 = inlined_call_operand.vmem [shape: f32[1,128], index: 3, kind: input, shape index: {}]
  %s4 = inlined_call_operand.vmem [shape: bf16[8,128], index: 4, kind: output, shape index: {}]
  %s5 = sld [smem:[#allocation0]]
  $region26: #{_lambda_.44} parent=0
    _
  %s7 = ssub.s32 1, %s5
  %s8 = scalar_select 0, %s7, %s5
  // Predicated region
  $region2: #{_lambda_.44} parent=0 // pred_check
    _
  $region3: #{_lambda_.44} parent=0 // pred_check_branch
    %10 = sbr.rel (0) target = $region5
  $region4: #{_lambda_.44} parent=0 // pred_region
    _
  $region5: #{_lambda_.44} parent=0 // pred_fallthru
    _
  // Predicated region
  $region6: #{_lambda_.44} parent=0 // pred_check
    _
  $region7: #{_lambda_.44} parent=0 // pred_check_branch
    %12 = sbr.rel (0) target = $region9
  $region8: #{_lambda_.44} parent=0 // pred_region
    _
  $region9: #{_lambda_.44} parent=0 // pred_fallthru
    _
  // Predicated region
  $region10: #{_lambda_.44} parent=0 // pred_check
    _
  $region11: #{_lambda_.44} parent=0 // pred_check_branch
    %14 = sbr.rel (0) target = $region13
  $region12: #{_lambda_.44} parent=0 // pred_region
    _
  $region13: #{_lambda_.44} parent=0 // pred_fallthru
    _
  // Predicated region
  $region14: #{_lambda_.44} parent=0 // pred_check
    _
  $region15: #{_lambda_.44} parent=0 // pred_check_branch
    %16 = sbr.rel (0) target = $region17
  $region16: #{_lambda_.44} parent=0 // pred_region
    _
  $region17: #{_lambda_.44} parent=0 // pred_fallthru
    _
  %v17 = vld [vmem:[%s0] sm:$0xf]
  %v18 = vld [vmem:[%s1] sm:$0xf]
  %v19 = vld [vmem:[%s1 + $0x4] sm:$0xf]
  %v20 = vld [vmem:[%s1 + $0x8] sm:$0xf]
  %v21 = vld [vmem:[%s1 + $0xc] sm:$0xf]
  %v22 = vld [vmem:[%s1 + $0x10] sm:$0xf]
  %v23 = vld [vmem:[%s1 + $0x14] sm:$0xf]
  %v24 = vld [vmem:[%s1 + $0x18] sm:$0xf]
  %v25 = vld [vmem:[%s1 + $0x1c] sm:$0xf]
  %v26 = vld [vmem:[%s1 + $0x20] sm:$0xf]
  %v27 = vld [vmem:[%s1 + $0x24] sm:$0xf]
  %v28 = vld [vmem:[%s1 + $0x28] sm:$0xf]
  %v29 = vld [vmem:[%s1 + $0x2c] sm:$0xf]
  %v30 = vld [vmem:[%s1 + $0x30] sm:$0xf]
  %v31 = vld [vmem:[%s1 + $0x34] sm:$0xf]
  %v32 = vld [vmem:[%s1 + $0x38] sm:$0xf]
  %v33 = vld [vmem:[%s1 + $0x3c] sm:$0xf]
  %v50 = vunpack.c.l.b16 %v18
  %v51 = vunpack.c.l.b16 %v19
  %v52 = vunpack.c.l.b16 %v20
  %v53 = vunpack.c.l.b16 %v21
  %v54 = vunpack.c.l.b16 %v22
  %v55 = vunpack.c.l.b16 %v23
  %v56 = vunpack.c.l.b16 %v24
  %v57 = vunpack.c.l.b16 %v25
  %v58 = vunpack.c.l.b16 %v26
  %v59 = vunpack.c.l.b16 %v27
  %v60 = vunpack.c.l.b16 %v28
  %v61 = vunpack.c.l.b16 %v29
  %v62 = vunpack.c.l.b16 %v30
  %v63 = vunpack.c.l.b16 %v31
  %v64 = vunpack.c.l.b16 %v32
  %v65 = vunpack.c.l.b16 %v33
  %v66 = vpack.c.b16 %v51, %v50
  %v67 = vpack.c.b16 %v53, %v52
  %v68 = vpack.c.b16 %v55, %v54
  %v69 = vpack.c.b16 %v57, %v56
  %v70 = vpack.c.b16 %v59, %v58
  %v71 = vpack.c.b16 %v61, %v60
  %v72 = vpack.c.b16 %v63, %v62
  %v73 = vpack.c.b16 %v65, %v64
  %82 = vmatpush.bf16.msra.mxu0 %v73
  %83 = vmatpush.bf16.msra.mxu0 %v72
  %84 = vmatpush.bf16.msra.mxu0 %v71
  %85 = vmatpush.bf16.msra.mxu0 %v70
  %86 = vmatpush.bf16.msra.mxu0 %v69
  %87 = vmatpush.bf16.msra.mxu0 %v68
  %88 = vmatpush.bf16.msra.mxu0 %v67
  %89 = vmatpush.bf16.msra.mxu0 %v66
  %90 = vmatmul.bf16.gmra.mxu0 %v17
  %v91 = vpop.f32.mrf.mxu0
  %v92 = vadd.f32 0.0, %v91
  %v93 = vpop.f32.mrf.mxu0
  %94 = vdwg.mxu0
  %v95 = vrot.slane %v92, 4
  %v96 = vadd.f32 %v92, %v95
  %v97 = vrot.slane %v96, 2
  %v98 = vadd.f32 %v96, %v97
  %v99 = vrot.slane %v98, 1
  %v100 = vadd.f32 %v98, %v99
  %v101 = vmul.f32 %v100, 0.125
  %v102 = vmul.f32 %v92, %v92
  %v103 = vrot.slane %v102, 4
  %v104 = vadd.f32 %v102, %v103
  %v105 = vrot.slane %v104, 2
  %v106 = vadd.f32 %v104, %v105
  %v107 = vrot.slane %v106, 1
  %v108 = vadd.f32 %v106, %v107
  %v109 = vmul.f32 %v108, 0.125
  %v110 = vmul.f32 %v101, %v101
  %v111 = vsub.f32 %v109, %v110
  %v112 = vmax.f32 %v111, 0.0
  %v113 = vld [vmem:[%s2] sm:$0x1]
  %v114 = vadd.f32 %v112, 1e-05
  %v115 = vrsqrt.pop %v114
  %v116 = vmul.f32 %v115, %v114
  %v117 = vmul.f32 %v116, %v115
  %v118 = vmul.f32 0.5, %v117
  %v119 = vsub.f32 1.5, %v118
  %v120 = vmul.f32 %v115, %v119
  %vm121 = vweird.f32 %v114
  %vm122 = vweird.f32 %v115
  %vm123 = vmor %vm121, %vm122
  %v124 = vsel %vm123, %v115, %v120
  %v125 = vmul.f32 %v113, %v124
  %v126 = vld [vmem:[%s3] sm:$0x1]
  %v127 = vmul.f32 %v101, %v125
  %v128 = vsub.f32 %v126, %v127
  %v130 = vperm.slane %v125, 0
  %v132 = vmul.f32 %v92, %v130
  %v134 = vperm.slane %v128, 0
  %v136 = vadd.f32 %v132, %v134
  %v137 = vmax.f32 %v136, 0.0
  %v138 = vpack.c.bf16 %v137, %v137
  %139 = vst [vmem:[%s4] sm:$0xf] %v138
  // Predicated region
  $region18: #{_lambda_.44} parent=0 // pred_check
    _
  $region19: #{_lambda_.44} parent=0 // pred_check_branch
    %141 = sbr.rel (0) target = $region21
  $region20: #{_lambda_.44} parent=0 // pred_region
    _
  $region21: #{_lambda_.44} parent=0 // pred_fallthru
    _
  // Predicated region
  $region22: #{_lambda_.44} parent=0 // pred_check
    _
  $region23: #{_lambda_.44} parent=0 // pred_check_branch
    %143 = sbr.rel (0) target = $region25
  $region24: #{_lambda_.44} parent=0 // pred_region
    _
  $region25: #{_lambda_.44} parent=0 // pred_fallthru
    _

// kernel: _lambda_.43
$region0: #{_lambda_.43}
  #allocation0 [shape = 'u32[]', space=smem, size = 0x4, offset = 0x4, fixed_abs, tag = 'smem constant byte address 0x4 - core index']
  #allocation1 [shape = 'u32[72,128]{1,0:T(1,128)}', space=vmem, size = 0x9000, scoped, tag = 'internal scratch']
  %s0 = inlined_call_operand.vmem [shape: bf16[2,3,3,128], index: 0, kind: input, shape index: {}]
  %s1 = inlined_call_operand.vmem [shape: bf16[2,3,3,128], index: 1, kind: input, shape index: {}]
  %s2 = inlined_call_operand.vmem [shape: bf16[2,3,3,128], index: 2, kind: input, shape index: {}]
  %s3 = inlined_call_operand.vmem [shape: bf16[2,3,3,128], index: 3, kind: input, shape index: {}]
  %s4 = inlined_call_operand.vmem [shape: f32[9,128], index: 4, kind: input, shape index: {}]
  %s5 = inlined_call_operand.vmem [shape: f32[1,128], index: 5, kind: input, shape index: {}]
  %s6 = inlined_call_operand.vmem [shape: f32[1,128], index: 6, kind: input, shape index: {}]
  %s7 = inlined_call_operand.vmem [shape: bf16[2,2,2,128], index: 7, kind: output, shape index: {}]
  %s8 = sld [smem:[#allocation0]]
  $region38: #{_lambda_.43} parent=0
    _
  %s10 = ssub.s32 1, %s8
  %s11 = scalar_select 0, %s10, %s8
  // Predicated region
  $region2: #{_lambda_.43} parent=0 // pred_check
    _
  $region3: #{_lambda_.43} parent=0 // pred_check_branch
    %13 = sbr.rel (0) target = $region5
  $region4: #{_lambda_.43} parent=0 // pred_region
    _
  $region5: #{_lambda_.43} parent=0 // pred_fallthru
    _
  // Predicated region
  $region6: #{_lambda_.43} parent=0 // pred_check
    _
  $region7: #{_lambda_.43} parent=0 // pred_check_branch
    %15 = sbr.rel (0) target = $region9
  $region8: #{_lambda_.43} parent=0 // pred_region
    _
  $region9: #{_lambda_.43} parent=0 // pred_fallthru
    _
  // Predicated region
  $region10: #{_lambda_.43} parent=0 // pred_check
    _
  $region11: #{_lambda_.43} parent=0 // pred_check_branch
    %17 = sbr.rel (0) target = $region13
  $region12: #{_lambda_.43} parent=0 // pred_region
    _
  $region13: #{_lambda_.43} parent=0 // pred_fallthru
    _
  // Predicated region
  $region14: #{_lambda_.43} parent=0 // pred_check
    _
  $region15: #{_lambda_.43} parent=0 // pred_check_branch
    %19 = sbr.rel (0) target = $region17
  $region16: #{_lambda_.43} parent=0 // pred_region
    _
  $region17: #{_lambda_.43} parent=0 // pred_fallthru
    _
  // Predicated region
  $region18: #{_lambda_.43} parent=0 // pred_check
    _
  $region19: #{_lambda_.43} parent=0 // pred_check_branch
    %21 = sbr.rel (0) target = $region21
  $region20: #{_lambda_.43} parent=0 // pred_region
    _
  $region21: #{_lambda_.43} parent=0 // pred_fallthru
    _
  // Predicated region
  $region22: #{_lambda_.43} parent=0 // pred_check
    _
  $region23: #{_lambda_.43} parent=0 // pred_check_branch
    %23 = sbr.rel (0) target = $region25
  $region24: #{_lambda_.43} parent=0 // pred_region
    _
  $region25: #{_lambda_.43} parent=0 // pred_fallthru
    _
  // Predicated region
  $region26: #{_lambda_.43} parent=0 // pred_check
    _
  $region27: #{_lambda_.43} parent=0 // pred_check_branch
    %25 = sbr.rel (0) target = $region29
  $region28: #{_lambda_.43} parent=0 // pred_region
    _
  $region29: #{_lambda_.43} parent=0 // pred_fallthru
    _
  %v26 = vld [vmem:[%s4] sm:$0xff]
  %v27 = vld [vmem:[%s4 + $0x8] sm:$0x1]
  %v28 = vld [vmem:[%s0] sm:$0x1]
  %v29 = vld [vmem:[%s0 + $0x2] sm:$0x1]
  %v30 = vld [vmem:[%s0 + $0x6] sm:$0x1]
  %v31 = vld [vmem:[%s0 + $0x8] sm:$0x1]
  %v32 = vunpack.c.l.bf16 %v28
  %v33 = vunpack.c.l.bf16 %v29
  %v34 = vunpack.c.l.bf16 %v30
  %v35 = vunpack.c.l.bf16 %v31
  %v36 = vperm.slane %v26, 0
  %v37 = vmul.f32 %v32, %v36
  %v38 = vmul.f32 %v33, %v36
  %v39 = vmul.f32 %v34, %v36
  %v40 = vmul.f32 %v35, %v36
  %v41 = vld [vmem:[%s1] sm:$0x1]
  %v42 = vld [vmem:[%s1 + $0x2] sm:$0x1]
  %v43 = vld [vmem:[%s1 + $0x6] sm:$0x1]
  %v44 = vld [vmem:[%s1 + $0x8] sm:$0x1]
  %v45 = vunpack.c.l.bf16 %v41
  %v46 = vunpack.c.l.bf16 %v42
  %v47 = vunpack.c.l.bf16 %v43
  %v48 = vunpack.c.l.bf16 %v44
  %v49 = vperm.slane %v26, 1
  %v50 = vmul.f32 %v45, %v49
  %v51 = vmul.f32 %v46, %v49
  %v52 = vmul.f32 %v47, %v49
  %v53 = vmul.f32 %v48, %v49
  %v54 = vld [vmem:[%s0] sm:$0x3]
  %v55 = vld [vmem:[%s0 + $0x2] sm:$0x3]
  %v56 = vld [vmem:[%s0 + $0x6] sm:$0x3]
  %v57 = vld [vmem:[%s0 + $0x8] sm:$0x3]
  %v58 = vunpack.c.l.bf16 %v54
  %v59 = vunpack.c.l.bf16 %v55
  %v60 = vunpack.c.l.bf16 %v56
  %v61 = vunpack.c.l.bf16 %v57
  %v62 = vperm.slane %v26, 2
  %v63 = vmul.f32 %v58, %v62
  %v64 = vmul.f32 %v59, %v62
  %v65 = vmul.f32 %v60, %v62
  %v66 = vmul.f32 %v61, %v62
  %v67 = vld [vmem:[%s2] sm:$0x1]
  %v68 = vld [vmem:[%s2 + $0x2] sm:$0x1]
  %v69 = vld [vmem:[%s2 + $0x6] sm:$0x1]
  %v70 = vld [vmem:[%s2 + $0x8] sm:$0x1]
  %v71 = vunpack.c.l.bf16 %v67
  %v72 = vunpack.c.l.bf16 %v68
  %v73 = vunpack.c.l.bf16 %v69
  %v74 = vunpack.c.l.bf16 %v70
  %v75 = vperm.slane %v26, 3
  %v76 = vmul.f32 %v71, %v75
  %v77 = vmul.f32 %v72, %v75
  %v78 = vmul.f32 %v73, %v75
  %v79 = vmul.f32 %v74, %v75
  %v80 = vld [vmem:[%s3] sm:$0x1]
  %v81 = vld [vmem:[%s3 + $0x2] sm:$0x1]
  %v82 = vld [vmem:[%s3 + $0x6] sm:$0x1]
  %v83 = vld [vmem:[%s3 + $0x8] sm:$0x1]
  %v84 = vunpack.c.l.bf16 %v80
  %v85 = vunpack.c.l.bf16 %v81
  %v86 = vunpack.c.l.bf16 %v82
  %v87 = vunpack.c.l.bf16 %v83
  %v88 = vperm.slane %v26, 4
  %v89 = vmul.f32 %v84, %v88
  %v90 = vmul.f32 %v85, %v88
  %v91 = vmul.f32 %v86, %v88
  %v92 = vmul.f32 %v87, %v88
  %v93 = vld [vmem:[%s2] sm:$0x3]
  %v94 = vld [vmem:[%s2 + $0x2] sm:$0x3]
  %v95 = vld [vmem:[%s2 + $0x6] sm:$0x3]
  %v96 = vld [vmem:[%s2 + $0x8] sm:$0x3]
  %v97 = vunpack.c.l.bf16 %v93
  %v98 = vunpack.c.l.bf16 %v94
  %v99 = vunpack.c.l.bf16 %v95
  %v100 = vunpack.c.l.bf16 %v96
  %v101 = vperm.slane %v26, 5
  %v102 = vmul.f32 %v97, %v101
  %v103 = vmul.f32 %v98, %v101
  %v104 = vmul.f32 %v99, %v101
  %v105 = vmul.f32 %v100, %v101
  %s106 = scalar_lea.vmem %s0, 2
  %v107 = vld [vmem:[%s106] sm:$0x1]
  %v108 = vld [vmem:[%s106 + $0x2] sm:$0x1]
  %v109 = vld [vmem:[%s106 + $0x6] sm:$0x1]
  %v110 = vld [vmem:[%s106 + $0x8] sm:$0x1]
  %v111 = vunpack.c.l.bf16 %v107
  %v112 = vunpack.c.l.bf16 %v108
  %v113 = vunpack.c.l.bf16 %v109
  %v114 = vunpack.c.l.bf16 %v110
  %v115 = vperm.slane %v26, 6
  %v116 = vmul.f32 %v111, %v115
  %v117 = vmul.f32 %v112, %v115
  %v118 = vmul.f32 %v113, %v115
  %v119 = vmul.f32 %v114, %v115
  %s120 = scalar_lea.vmem %s1, 2
  %v121 = vld [vmem:[%s120] sm:$0x1]
  %v122 = vld [vmem:[%s120 + $0x2] sm:$0x1]
  %v123 = vld [vmem:[%s120 + $0x6] sm:$0x1]
  %v124 = vld [vmem:[%s120 + $0x8] sm:$0x1]
  %v125 = vunpack.c.l.bf16 %v121
  %v126 = vunpack.c.l.bf16 %v122
  %v127 = vunpack.c.l.bf16 %v123
  %v128 = vunpack.c.l.bf16 %v124
  %v129 = vperm.slane %v26, 7
  %v130 = vmul.f32 %v125, %v129
  %v131 = vmul.f32 %v126, %v129
  %v132 = vmul.f32 %v127, %v129
  %v133 = vmul.f32 %v128, %v129
  %v134 = vld [vmem:[%s106] sm:$0x3]
  %v135 = vld [vmem:[%s106 + $0x2] sm:$0x3]
  %v136 = vld [vmem:[%s106 + $0x6] sm:$0x3]
  %v137 = vld [vmem:[%s106 + $0x8] sm:$0x3]
  %v138 = vunpack.c.l.bf16 %v134
  %v139 = vunpack.c.l.bf16 %v135
  %v140 = vunpack.c.l.bf16 %v136
  %v141 = vunpack.c.l.bf16 %v137
  %v142 = vperm.slane %v27, 0
  %v143 = vmul.f32 %v138, %v142
  %v144 = vmul.f32 %v139, %v142
  %v145 = vmul.f32 %v140, %v142
  %v146 = vmul.f32 %v141, %v142
  %v147 = vadd.f32 %v37, %v50
  %v148 = vadd.f32 %v38, %v51
  %v149 = vadd.f32 %v39, %v52
  %v150 = vadd.f32 %v40, %v53
  %v155 = vrot.slane %v76, 7
  %v156 = vrot.slane %v77, 7
  %v157 = vrot.slane %v78, 7
  %v158 = vrot.slane %v79, 7
  %v163 = vadd.f32 %v63, %v155
  %v164 = vadd.f32 %v64, %v156
  %v165 = vadd.f32 %v65, %v157
  %v166 = vadd.f32 %v66, %v158
  %v171 = vrot.slane %v102, 5
  %v172 = vrot.slane %v171, 4
  %v173 = vrot.slane %v103, 5
  %v174 = vrot.slane %v173, 4
  %v175 = vrot.slane %v104, 5
  %v176 = vrot.slane %v175, 4
  %v177 = vrot.slane %v105, 5
  %v178 = vrot.slane %v177, 4
  %v183 = vadd.f32 %v89, %v172
  %v184 = vadd.f32 %v90, %v174
  %v185 = vadd.f32 %v91, %v176
  %v186 = vadd.f32 %v92, %v178
  %v187 = vadd.f32 %v116, %v130
  %v188 = vadd.f32 %v117, %v131
  %v189 = vadd.f32 %v118, %v132
  %v190 = vadd.f32 %v119, %v133
  %v195 = vrot.slane %v163, 5
  %v196 = vrot.slane %v195, 4
  %v197 = vrot.slane %v164, 5
  %v198 = vrot.slane %v197, 4
  %v199 = vrot.slane %v165, 5
  %v200 = vrot.slane %v199, 4
  %v201 = vrot.slane %v166, 5
  %v202 = vrot.slane %v201, 4
  %v207 = vadd.f32 %v147, %v196
  %v208 = vadd.f32 %v148, %v198
  %v209 = vadd.f32 %v149, %v200
  %v210 = vadd.f32 %v150, %v202
  %v211 = vadd.f32 %v183, %v187
  %v212 = vadd.f32 %v184, %v188
  %v213 = vadd.f32 %v185, %v189
  %v214 = vadd.f32 %v186, %v190
  %v215 = vadd.f32 %v207, %v211
  %v216 = vadd.f32 %v208, %v212
  %v217 = vadd.f32 %v209, %v213
  %v218 = vadd.f32 %v210, %v214
  %v223 = vrot.slane %v143, 5
  %v224 = vrot.slane %v223, 4
  %v225 = vrot.slane %v144, 5
  %v226 = vrot.slane %v225, 4
  %v227 = vrot.slane %v145, 5
  %v228 = vrot.slane %v227, 4
  %v229 = vrot.slane %v146, 5
  %v230 = vrot.slane %v229, 4
  %v235 = vadd.f32 %v215, %v224
  %v236 = vadd.f32 %v216, %v226
  %v237 = vadd.f32 %v217, %v228
  %v238 = vadd.f32 %v218, %v230
  %vm239 = vcmask 1041408
  %v240 = vsel %vm239, %v235, 0.0
  %v241 = vsel %vm239, %v237, 0.0
  %v242 = vadd.f32 %v240, %v241
  %v243 = vsel %vm239, %v236, 0.0
  %v244 = vsel %vm239, %v238, 0.0
  %v245 = vadd.f32 %v243, %v244
  %v246 = vsel %vm239, %v242, 0.0
  %v247 = vsel %vm239, %v245, 0.0
  %v248 = vadd.f32 %v246, %v247
  %v249 = vsel %vm239, %v248, 0.0
  %v250 = vrot.slane %v249, 4
  %v251 = vadd.f32 %v249, %v250
  %v252 = vrot.slane %v251, 2
  %v253 = vadd.f32 %v251, %v252
  %v254 = vrot.slane %v253, 1
  %v255 = vadd.f32 %v253, %v254
  %v256 = vmul.f32 %v235, %v235
  %v257 = vmul.f32 %v236, %v236
  %v258 = vmul.f32 %v237, %v237
  %v259 = vmul.f32 %v238, %v238
  %v260 = vsel %vm239, %v256, 0.0
  %v261 = vsel %vm239, %v258, 0.0
  %v262 = vadd.f32 %v260, %v261
  %v263 = vsel %vm239, %v257, 0.0
  %v264 = vsel %vm239, %v259, 0.0
  %v265 = vadd.f32 %v263, %v264
  %v266 = vsel %vm239, %v262, 0.0
  %v267 = vsel %vm239, %v265, 0.0
  %v268 = vadd.f32 %v266, %v267
  %v269 = vsel %vm239, %v268, 0.0
  %v270 = vrot.slane %v269, 4
  %v271 = vadd.f32 %v269, %v270
  %v272 = vrot.slane %v271, 2
  %v273 = vadd.f32 %v271, %v272
  %v274 = vrot.slane %v273, 1
  %v275 = vadd.f32 %v273, %v274
  %v276 = vmul.f32 %v255, 0.125
  %v277 = vmul.f32 %v275, 0.125
  %v278 = vmul.f32 %v276, %v276
  %v279 = vsub.f32 %v277, %v278
  %v280 = vmax.f32 %v279, 0.0
  %v281 = vld [vmem:[%s5] sm:$0x1]
  %v282 = vadd.f32 %v280, 1e-05
  %v283 = vrsqrt.pop %v282
  %v284 = vmul.f32 %v283, %v282
  %v285 = vmul.f32 %v284, %v283
  %v286 = vmul.f32 0.5, %v285
  %v287 = vsub.f32 1.5, %v286
  %v288 = vmul.f32 %v283, %v287
  %vm289 = vweird.f32 %v282
  %vm290 = vweird.f32 %v283
  %vm291 = vmor %vm289, %vm290
  %v292 = vsel %vm291, %v283, %v288
  %v293 = vmul.f32 %v281, %v292
  %v294 = vld [vmem:[%s6] sm:$0x1]
  %v295 = vmul.f32 %v276, %v293
  %v296 = vsub.f32 %v294, %v295
  %v298 = vperm.slane %v293, 0
  %v300 = vmul.f32 %v235, %v298
  %v301 = vmul.f32 %v236, %v298
  %v302 = vmul.f32 %v237, %v298
  %v303 = vmul.f32 %v238, %v298
  %v305 = vperm.slane %v296, 0
  %v307 = vadd.f32 %v300, %v305
  %v308 = vadd.f32 %v301, %v305
  %v309 = vadd.f32 %v302, %v305
  %v310 = vadd.f32 %v303, %v305
  %v311 = vmax.f32 %v307, 0.0
  %v312 = vmax.f32 %v308, 0.0
  %v313 = vmax.f32 %v309, 0.0
  %v314 = vmax.f32 %v310, 0.0
  %v315 = vpack.c.bf16 %v311, %v311
  %v316 = vpack.c.bf16 %v312, %v312
  %v317 = vpack.c.bf16 %v313, %v313
  %v318 = vpack.c.bf16 %v314, %v314
  %319 = vst [vmem:[%s7] sm:$0x1] %v315
  %320 = vst [vmem:[%s7 + $0x1] sm:$0x1] %v316
  %321 = vst [vmem:[%s7 + $0x2] sm:$0x1] %v317
  %322 = vst [vmem:[%s7 + $0x3] sm:$0x1] %v318
  // Predicated region
  $region30: #{_lambda_.43} parent=0 // pred_check
    _
  $region31: #{_lambda_.43} parent=0 // pred_check_branch
    %324 = sbr.rel (0) target = $region33
  $region32: #{_lambda_.43} parent=0 // pred_region
    _
  $region33: #{_lambda_.43} parent=0 // pred_fallthru
    _
  // Predicated region
  $region34: #{_lambda_.43} parent=0 // pred_check
    _
  $region35: #{_lambda_.43} parent=0 // pred_check_branch
    %326 = sbr.rel (0) target = $region37
  $region36: #{_lambda_.43} parent=0 // pred_region
    _
  $region37: #{_lambda_.43} parent=0 // pred_fallthru
    _

// kernel: _lambda_.45
$region0: #{_lambda_.45}
  #allocation0 [shape = 'u32[]', space=smem, size = 0x4, offset = 0x4, fixed_abs, tag = 'smem constant byte address 0x4 - core index']
  #allocation1 [shape = 'u32[72,128]{1,0:T(1,128)}', space=vmem, size = 0x9000, scoped, tag = 'internal scratch']
  %s0 = inlined_call_operand.vmem [shape: bf16[8,128], index: 0, kind: input, shape index: {}]
  %s1 = inlined_call_operand.vmem [shape: bf16[128,128], index: 1, kind: input, shape index: {}]
  %s2 = inlined_call_operand.vmem [shape: bf16[128,128], index: 2, kind: input, shape index: {}]
  %s3 = inlined_call_operand.vmem [shape: f32[8,128], index: 3, kind: output, shape index: {}]
  %s4 = sld [smem:[#allocation0]]
  $region22: #{_lambda_.45} parent=0
    _
  %s6 = ssub.s32 1, %s4
  %s7 = scalar_select 0, %s6, %s4
  // Predicated region
  $region2: #{_lambda_.45} parent=0 // pred_check
    _
  $region3: #{_lambda_.45} parent=0 // pred_check_branch
    %9 = sbr.rel (0) target = $region5
  $region4: #{_lambda_.45} parent=0 // pred_region
    _
  $region5: #{_lambda_.45} parent=0 // pred_fallthru
    _
  // Predicated region
  $region6: #{_lambda_.45} parent=0 // pred_check
    _
  $region7: #{_lambda_.45} parent=0 // pred_check_branch
    %11 = sbr.rel (0) target = $region9
  $region8: #{_lambda_.45} parent=0 // pred_region
    _
  $region9: #{_lambda_.45} parent=0 // pred_fallthru
    _
  // Predicated region
  $region10: #{_lambda_.45} parent=0 // pred_check
    _
  $region11: #{_lambda_.45} parent=0 // pred_check_branch
    %13 = sbr.rel (0) target = $region13
  $region12: #{_lambda_.45} parent=0 // pred_region
    _
  $region13: #{_lambda_.45} parent=0 // pred_fallthru
    _
  %v14 = vld [vmem:[%s0] sm:$0xf]
  %v15 = vld [vmem:[%s1] sm:$0xf]
  %v16 = vld [vmem:[%s1 + $0x4] sm:$0xf]
  %v17 = vld [vmem:[%s1 + $0x8] sm:$0xf]
  %v18 = vld [vmem:[%s1 + $0xc] sm:$0xf]
  %v19 = vld [vmem:[%s1 + $0x10] sm:$0xf]
  %v20 = vld [vmem:[%s1 + $0x14] sm:$0xf]
  %v21 = vld [vmem:[%s1 + $0x18] sm:$0xf]
  %v22 = vld [vmem:[%s1 + $0x1c] sm:$0xf]
  %v23 = vld [vmem:[%s1 + $0x20] sm:$0xf]
  %v24 = vld [vmem:[%s1 + $0x24] sm:$0xf]
  %v25 = vld [vmem:[%s1 + $0x28] sm:$0xf]
  %v26 = vld [vmem:[%s1 + $0x2c] sm:$0xf]
  %v27 = vld [vmem:[%s1 + $0x30] sm:$0xf]
  %v28 = vld [vmem:[%s1 + $0x34] sm:$0xf]
  %v29 = vld [vmem:[%s1 + $0x38] sm:$0xf]
  %v30 = vld [vmem:[%s1 + $0x3c] sm:$0xf]
  %v47 = vunpack.c.l.b16 %v15
  %v48 = vunpack.c.l.b16 %v16
  %v49 = vunpack.c.l.b16 %v17
  %v50 = vunpack.c.l.b16 %v18
  %v51 = vunpack.c.l.b16 %v19
  %v52 = vunpack.c.l.b16 %v20
  %v53 = vunpack.c.l.b16 %v21
  %v54 = vunpack.c.l.b16 %v22
  %v55 = vunpack.c.l.b16 %v23
  %v56 = vunpack.c.l.b16 %v24
  %v57 = vunpack.c.l.b16 %v25
  %v58 = vunpack.c.l.b16 %v26
  %v59 = vunpack.c.l.b16 %v27
  %v60 = vunpack.c.l.b16 %v28
  %v61 = vunpack.c.l.b16 %v29
  %v62 = vunpack.c.l.b16 %v30
  %v63 = vpack.c.b16 %v48, %v47
  %v64 = vpack.c.b16 %v50, %v49
  %v65 = vpack.c.b16 %v52, %v51
  %v66 = vpack.c.b16 %v54, %v53
  %v67 = vpack.c.b16 %v56, %v55
  %v68 = vpack.c.b16 %v58, %v57
  %v69 = vpack.c.b16 %v60, %v59
  %v70 = vpack.c.b16 %v62, %v61
  %79 = vmatpush.bf16.msra.mxu0 %v70
  %80 = vmatpush.bf16.msra.mxu0 %v69
  %81 = vmatpush.bf16.msra.mxu0 %v68
  %82 = vmatpush.bf16.msra.mxu0 %v67
  %83 = vmatpush.bf16.msra.mxu0 %v66
  %84 = vmatpush.bf16.msra.mxu0 %v65
  %85 = vmatpush.bf16.msra.mxu0 %v64
  %86 = vmatpush.bf16.msra.mxu0 %v63
  %87 = vmatmul.bf16.gmra.mxu0 %v14
  %v88 = vpop.f32.mrf.mxu0
  %v89 = vadd.f32 0.0, %v88
  %v90 = vpop.f32.mrf.mxu0
  %91 = vdwg.mxu0
  %v92 = vmax.f32 %v89, 0.0
  %v93 = vpack.c.bf16 %v92, %v92
  %v94 = vld [vmem:[%s2] sm:$0xf]
  %v95 = vld [vmem:[%s2 + $0x4] sm:$0xf]
  %v96 = vld [vmem:[%s2 + $0x8] sm:$0xf]
  %v97 = vld [vmem:[%s2 + $0xc] sm:$0xf]
  %v98 = vld [vmem:[%s2 + $0x10] sm:$0xf]
  %v99 = vld [vmem:[%s2 + $0x14] sm:$0xf]
  %v100 = vld [vmem:[%s2 + $0x18] sm:$0xf]
  %v101 = vld [vmem:[%s2 + $0x1c] sm:$0xf]
  %v102 = vld [vmem:[%s2 + $0x20] sm:$0xf]
  %v103 = vld [vmem:[%s2 + $0x24] sm:$0xf]
  %v104 = vld [vmem:[%s2 + $0x28] sm:$0xf]
  %v105 = vld [vmem:[%s2 + $0x2c] sm:$0xf]
  %v106 = vld [vmem:[%s2 + $0x30] sm:$0xf]
  %v107 = vld [vmem:[%s2 + $0x34] sm:$0xf]
  %v108 = vld [vmem:[%s2 + $0x38] sm:$0xf]
  %v109 = vld [vmem:[%s2 + $0x3c] sm:$0xf]
  %v126 = vunpack.c.l.b16 %v94
  %v127 = vunpack.c.l.b16 %v95
  %v128 = vunpack.c.l.b16 %v96
  %v129 = vunpack.c.l.b16 %v97
  %v130 = vunpack.c.l.b16 %v98
  %v131 = vunpack.c.l.b16 %v99
  %v132 = vunpack.c.l.b16 %v100
  %v133 = vunpack.c.l.b16 %v101
  %v134 = vunpack.c.l.b16 %v102
  %v135 = vunpack.c.l.b16 %v103
  %v136 = vunpack.c.l.b16 %v104
  %v137 = vunpack.c.l.b16 %v105
  %v138 = vunpack.c.l.b16 %v106
  %v139 = vunpack.c.l.b16 %v107
  %v140 = vunpack.c.l.b16 %v108
  %v141 = vunpack.c.l.b16 %v109
  %v142 = vpack.c.b16 %v127, %v126
  %v143 = vpack.c.b16 %v129, %v128
  %v144 = vpack.c.b16 %v131, %v130
  %v145 = vpack.c.b16 %v133, %v132
  %v146 = vpack.c.b16 %v135, %v134
  %v147 = vpack.c.b16 %v137, %v136
  %v148 = vpack.c.b16 %v139, %v138
  %v149 = vpack.c.b16 %v141, %v140
  %158 = vmatpush.bf16.msra.mxu0 %v149
  %159 = vmatpush.bf16.msra.mxu0 %v148
  %160 = vmatpush.bf16.msra.mxu0 %v147
  %161 = vmatpush.bf16.msra.mxu0 %v146
  %162 = vmatpush.bf16.msra.mxu0 %v145
  %163 = vmatpush.bf16.msra.mxu0 %v144
  %164 = vmatpush.bf16.msra.mxu0 %v143
  %165 = vmatpush.bf16.msra.mxu0 %v142
  %166 = vmatmul.bf16.gmra.mxu0 %v93
  %v167 = vpop.f32.mrf.mxu0
  %v168 = vadd.f32 0.0, %v167
  %v169 = vpop.f32.mrf.mxu0
  %170 = vdwg.mxu0
  %v171 = vsub.f32 0.0, %v168
  %v172 = vmul.f32 %v171, 1.442695
  %v173 = vpow.pop %v172
  %v174 = vadd.f32 %v173, 1.0
  %v175 = vrcp.pop %v174
  %v176 = vmul.f32 %v174, %v175
  %v177 = vsub.f32 1.0, %v176
  %v178 = vmul.f32 %v175, %v177
  %v179 = vadd.f32 %v175, %v178
  %vm180 = vweird.f32 %v174
  %vm181 = vweird.f32 %v175
  %vm182 = vmor %vm180, %vm181
  %v183 = vsel %vm182, %v175, %v179
  %v184 = vand.u32 2147483647, %v174
  %vm185 = vcmp.eq.f32.partialorder %v184, 8.507059e+37
  %v186 = vand.u32 %v174, 2147483648
  %v187 = vor.u32 1.1754944e-38, %v186
  %v188 = vsel %vm185, %v187, %v183
  %v189 = vmul.f32 1.0, %v188
  %190 = vst [vmem:[%s3] sm:$0xff] %v189
  // Predicated region
  $region14: #{_lambda_.45} parent=0 // pred_check
    _
  $region15: #{_lambda_.45} parent=0 // pred_check_branch
    %192 = sbr.rel (0) target = $region17
  $region16: #{_lambda_.45} parent=0 // pred_region
    _
  $region17: #{_lambda_.45} parent=0 // pred_fallthru
    _
  // Predicated region
  $region18: #{_lambda_.45} parent=0 // pred_check
    _
  $region19: #{_lambda_.45} parent=0 // pred_check_branch
    %194 = sbr.rel (0) target = $region21
  $region20: #{_lambda_.45} parent=0 // pred_region
    _
  $region21: #{_lambda_.45} parent=0 // pred_fallthru
    _

// kernel: mul.0
$region0: #{mul.0}
  #allocation0 [shape = 's32[1]{0}', space=sflag, size = 0x4, scoped, tag = 'scoped memory for mul.0']
  %s0 = inlined_call_operand.vmem [shape: bf16[8,128], index: 0, kind: input, shape index: {}]
  %s1 = inlined_call_operand.vmem [shape: bf16[8,128], index: 1, kind: input, shape index: {}]
  %s2 = inlined_call_operand.vmem [shape: bf16[8,128], index: 2, kind: output, shape index: {}]
  %v3 = vld [vmem:[%s0] sm:$0xf]
  %v4 = vunpack.c.l.bf16 %v3
  %v5 = vunpack.c.h.bf16 %v3
  %v6 = vld [vmem:[%s1] sm:$0xf]
  %v7 = vunpack.c.l.bf16 %v6
  %v8 = vunpack.c.h.bf16 %v6
  %9 = xla_tuple %v4, %v7
  %10 = xla_tuple %9
  %v11 = vmul.f32 %v4, %v7
  %12 = xla_tuple %v11
  %v13 = vpack.c.bf16 0.0, %v11
  %14 = vst [vmem:[%s2] sm:$0xf] %v13

// kernel: _lambda_.46
$region0: #{_lambda_.46}
  #allocation0 [shape = 'u32[]', space=smem, size = 0x4, offset = 0x4, fixed_abs, tag = 'smem constant byte address 0x4 - core index']
  #allocation1 [shape = 'u32[72,128]{1,0:T(1,128)}', space=vmem, size = 0x9000, scoped, tag = 'internal scratch']
  %s0 = inlined_call_operand.vmem [shape: bf16[8,128], index: 0, kind: input, shape index: {}]
  %s1 = inlined_call_operand.vmem [shape: bf16[128,128], index: 1, kind: input, shape index: {}]
  %s2 = inlined_call_operand.vmem [shape: f32[1,128], index: 2, kind: input, shape index: {}]
  %s3 = inlined_call_operand.vmem [shape: f32[1,128], index: 3, kind: input, shape index: {}]
  %s4 = inlined_call_operand.vmem [shape: bf16[8,128], index: 4, kind: output, shape index: {}]
  %s5 = sld [smem:[#allocation0]]
  $region26: #{_lambda_.46} parent=0
    _
  %s7 = ssub.s32 1, %s5
  %s8 = scalar_select 0, %s7, %s5
  // Predicated region
  $region2: #{_lambda_.46} parent=0 // pred_check
    _
  $region3: #{_lambda_.46} parent=0 // pred_check_branch
    %10 = sbr.rel (0) target = $region5
  $region4: #{_lambda_.46} parent=0 // pred_region
    _
  $region5: #{_lambda_.46} parent=0 // pred_fallthru
    _
  // Predicated region
  $region6: #{_lambda_.46} parent=0 // pred_check
    _
  $region7: #{_lambda_.46} parent=0 // pred_check_branch
    %12 = sbr.rel (0) target = $region9
  $region8: #{_lambda_.46} parent=0 // pred_region
    _
  $region9: #{_lambda_.46} parent=0 // pred_fallthru
    _
  // Predicated region
  $region10: #{_lambda_.46} parent=0 // pred_check
    _
  $region11: #{_lambda_.46} parent=0 // pred_check_branch
    %14 = sbr.rel (0) target = $region13
  $region12: #{_lambda_.46} parent=0 // pred_region
    _
  $region13: #{_lambda_.46} parent=0 // pred_fallthru
    _
  // Predicated region
  $region14: #{_lambda_.46} parent=0 // pred_check
    _
  $region15: #{_lambda_.46} parent=0 // pred_check_branch
    %16 = sbr.rel (0) target = $region17
  $region16: #{_lambda_.46} parent=0 // pred_region
    _
  $region17: #{_lambda_.46} parent=0 // pred_fallthru
    _
  %v17 = vld [vmem:[%s0] sm:$0xf]
  %v18 = vld [vmem:[%s1] sm:$0xf]
  %v19 = vld [vmem:[%s1 + $0x4] sm:$0xf]
  %v20 = vld [vmem:[%s1 + $0x8] sm:$0xf]
  %v21 = vld [vmem:[%s1 + $0xc] sm:$0xf]
  %v22 = vld [vmem:[%s1 + $0x10] sm:$0xf]
  %v23 = vld [vmem:[%s1 + $0x14] sm:$0xf]
  %v24 = vld [vmem:[%s1 + $0x18] sm:$0xf]
  %v25 = vld [vmem:[%s1 + $0x1c] sm:$0xf]
  %v26 = vld [vmem:[%s1 + $0x20] sm:$0xf]
  %v27 = vld [vmem:[%s1 + $0x24] sm:$0xf]
  %v28 = vld [vmem:[%s1 + $0x28] sm:$0xf]
  %v29 = vld [vmem:[%s1 + $0x2c] sm:$0xf]
  %v30 = vld [vmem:[%s1 + $0x30] sm:$0xf]
  %v31 = vld [vmem:[%s1 + $0x34] sm:$0xf]
  %v32 = vld [vmem:[%s1 + $0x38] sm:$0xf]
  %v33 = vld [vmem:[%s1 + $0x3c] sm:$0xf]
  %v50 = vunpack.c.l.b16 %v18
  %v51 = vunpack.c.l.b16 %v19
  %v52 = vunpack.c.l.b16 %v20
  %v53 = vunpack.c.l.b16 %v21
  %v54 = vunpack.c.l.b16 %v22
  %v55 = vunpack.c.l.b16 %v23
  %v56 = vunpack.c.l.b16 %v24
  %v57 = vunpack.c.l.b16 %v25
  %v58 = vunpack.c.l.b16 %v26
  %v59 = vunpack.c.l.b16 %v27
  %v60 = vunpack.c.l.b16 %v28
  %v61 = vunpack.c.l.b16 %v29
  %v62 = vunpack.c.l.b16 %v30
  %v63 = vunpack.c.l.b16 %v31
  %v64 = vunpack.c.l.b16 %v32
  %v65 = vunpack.c.l.b16 %v33
  %v66 = vpack.c.b16 %v51, %v50
  %v67 = vpack.c.b16 %v53, %v52
  %v68 = vpack.c.b16 %v55, %v54
  %v69 = vpack.c.b16 %v57, %v56
  %v70 = vpack.c.b16 %v59, %v58
  %v71 = vpack.c.b16 %v61, %v60
  %v72 = vpack.c.b16 %v63, %v62
  %v73 = vpack.c.b16 %v65, %v64
  %82 = vmatpush.bf16.msra.mxu0 %v73
  %83 = vmatpush.bf16.msra.mxu0 %v72
  %84 = vmatpush.bf16.msra.mxu0 %v71
  %85 = vmatpush.bf16.msra.mxu0 %v70
  %86 = vmatpush.bf16.msra.mxu0 %v69
  %87 = vmatpush.bf16.msra.mxu0 %v68
  %88 = vmatpush.bf16.msra.mxu0 %v67
  %89 = vmatpush.bf16.msra.mxu0 %v66
  %90 = vmatmul.bf16.gmra.mxu0 %v17
  %v91 = vpop.f32.mrf.mxu0
  %v92 = vadd.f32 0.0, %v91
  %v93 = vpop.f32.mrf.mxu0
  %94 = vdwg.mxu0
  %v95 = vrot.slane %v92, 4
  %v96 = vadd.f32 %v92, %v95
  %v97 = vrot.slane %v96, 2
  %v98 = vadd.f32 %v96, %v97
  %v99 = vrot.slane %v98, 1
  %v100 = vadd.f32 %v98, %v99
  %v101 = vmul.f32 %v100, 0.125
  %v102 = vmul.f32 %v92, %v92
  %v103 = vrot.slane %v102, 4
  %v104 = vadd.f32 %v102, %v103
  %v105 = vrot.slane %v104, 2
  %v106 = vadd.f32 %v104, %v105
  %v107 = vrot.slane %v106, 1
  %v108 = vadd.f32 %v106, %v107
  %v109 = vmul.f32 %v108, 0.125
  %v110 = vmul.f32 %v101, %v101
  %v111 = vsub.f32 %v109, %v110
  %v112 = vmax.f32 %v111, 0.0
  %v113 = vld [vmem:[%s2] sm:$0x1]
  %v114 = vadd.f32 %v112, 1e-05
  %v115 = vrsqrt.pop %v114
  %v116 = vmul.f32 %v115, %v114
  %v117 = vmul.f32 %v116, %v115
  %v118 = vmul.f32 0.5, %v117
  %v119 = vsub.f32 1.5, %v118
  %v120 = vmul.f32 %v115, %v119
  %vm121 = vweird.f32 %v114
  %vm122 = vweird.f32 %v115
  %vm123 = vmor %vm121, %vm122
  %v124 = vsel %vm123, %v115, %v120
  %v125 = vmul.f32 %v113, %v124
  %v126 = vld [vmem:[%s3] sm:$0x1]
  %v127 = vmul.f32 %v101, %v125
  %v128 = vsub.f32 %v126, %v127
  %v130 = vperm.slane %v125, 0
  %v132 = vmul.f32 %v92, %v130
  %v134 = vperm.slane %v128, 0
  %v136 = vadd.f32 %v132, %v134
  %v137 = vpack.c.bf16 %v136, %v136
  %138 = vst [vmem:[%s4] sm:$0xf] %v137
  // Predicated region
  $region18: #{_lambda_.46} parent=0 // pred_check
    _
  $region19: #{_lambda_.46} parent=0 // pred_check_branch
    %140 = sbr.rel (0) target = $region21
  $region20: #{_lambda_.46} parent=0 // pred_region
    _
  $region21: #{_lambda_.46} parent=0 // pred_fallthru
    _
  // Predicated region
  $region22: #{_lambda_.46} parent=0 // pred_check
    _
  $region23: #{_lambda_.46} parent=0 // pred_check_branch
    %142 = sbr.rel (0) target = $region25
  $region24: #{_lambda_.46} parent=0 // pred_region
    _
  $region25: #{_lambda_.46} parent=0 // pred_fallthru
    _

// kernel: _lambda_.52
$region0: #{_lambda_.52}
  #allocation0 [shape = 'u32[]', space=smem, size = 0x4, offset = 0x4, fixed_abs, tag = 'smem constant byte address 0x4 - core index']
  #allocation1 [shape = 'u32[72,128]{1,0:T(1,128)}', space=vmem, size = 0x9000, scoped, tag = 'internal scratch']
  %s0 = inlined_call_operand.vmem [shape: bf16[8,128], index: 0, kind: input, shape index: {}]
  %s1 = inlined_call_operand.vmem [shape: bf16[128,1280], index: 1, kind: input, shape index: {}]
  %s2 = inlined_call_operand.vmem [shape: f32[1,1280], index: 2, kind: input, shape index: {}]
  %s3 = inlined_call_operand.vmem [shape: f32[1,1280], index: 3, kind: input, shape index: {}]
  %s4 = inlined_call_operand.vmem [shape: bf16[8,1280], index: 4, kind: output, shape index: {}]
  %s5 = sld [smem:[#allocation0]]
  $region87: #{_lambda_.52} parent=0
    _
  %s7 = ssub.s32 1, %s5
  %s8 = scalar_select 0, %s7, %s5
  $region1: #{_lambda_.52} parent=0
    #allocation2 [shape = 'u8[131072]{0}', space=vmem, size = 0x20000, scoped, tag = 'input window, operand 1']
    loop: start=0, step=1, limit=7
    $region2: #{_lambda_.52} parent=1 // loop_pre_header
      _
    $region3: #{_lambda_.52} parent=1 // loop_header
      %s10 = sphi 0, %s14
      %p11 = scmp.ge.s32.totalorder %s10, 7
      %s18 = sphi 0, %s18
      %s20 = sphi 0, %s18
      %s21 = sphi 0, %s20
      %s35 = sphi 0, %s21
      %s41 = sphi 0, %s43
      %s44 = sphi 0, %s41
      %s45 = sphi 0, %s44
      %s61 = sphi 0, %s45
      %s67 = sphi 0, %s69
      %s70 = sphi 0, %s67
      %s71 = sphi 0, %s70
      %s87 = sphi 0, %s71
      %s93 = sphi 0, %s95
      %s96 = sphi 0, %s93
      %s97 = sphi 0, %s96
      %s113 = sphi 0, %s97
      %s119 = sphi 0, %s121
      %s122 = sphi 0, %s119
      %s123 = sphi 0, %s122
      %s139 = sphi 0, %s123
    $region4: #{_lambda_.52} parent=1 // loop_header_branch
      %13 = sbr.rel (%p11) target = $region8
    $region5: #{_lambda_.52} parent=1 // loop_body
      %s15 = ssub.s32 %s10, 1
      %s16 = ssub.s32 %s10, 2
      %s17 = sadd.s32 %s10, 1
      %s19 = sadd.s32 %s18, 1
      %p22 = scmp.eq.s32.totalorder %s10, 4
      %p23 = scmp.ne.s32.totalorder %s18, %s20
      %p24 = scmp.eq.s32.totalorder %s10, 0
      %p25 = por %p23, %p24
      %p26 = scmp.ne.s32.totalorder %s18, %s20
      %p27 = scmp.eq.s32.totalorder %s15, 4
      %p28 = por %p26, %p27
      %p29 = scmp.ne.s32.totalorder %s20, %s21
      %p30 = scmp.eq.s32.totalorder %s15, 0
      %p31 = por %p29, %p30
      %p32 = scmp.ne.s32.totalorder %s20, %s21
      %p33 = scmp.eq.s32.totalorder %s16, 4
      %p34 = por %p32, %p33
      %p36 = scmp.ne.s32.totalorder %s21, %s35
      %p37 = scmp.eq.s32.totalorder %s16, 0
      %p38 = por %p36, %p37
      %s39 = ssub.s32 %s10, %s17
      %p40 = scmp.eq.s32.totalorder %s39, 0
      %s42 = sadd.s32 %s41, 1
      %s43 = scalar_select %p40, %s41, %s42
      %p46 = pneg %p40
      %p47 = scmp.eq.s32.totalorder %s10, 4
      %p48 = por %p46, %p47
      %p49 = scmp.ne.s32.totalorder %s41, %s44
      %p50 = scmp.eq.s32.totalorder %s10, 0
      %p51 = por %p49, %p50
      %p52 = scmp.ne.s32.totalorder %s41, %s44
      %p53 = scmp.eq.s32.totalorder %s15, 4
      %p54 = por %p52, %p53
      %p55 = scmp.ne.s32.totalorder %s44, %s45
      %p56 = scmp.eq.s32.totalorder %s15, 0
      %p57 = por %p55, %p56
      %p58 = scmp.ne.s32.totalorder %s44, %s45
      %p59 = scmp.eq.s32.totalorder %s16, 4
      %p60 = por %p58, %p59
      %p62 = scmp.ne.s32.totalorder %s45, %s61
      %p63 = scmp.eq.s32.totalorder %s16, 0
      %p64 = por %p62, %p63
      %s65 = ssub.s32 %s10, %s17
      %p66 = scmp.eq.s32.totalorder %s65, 0
      %s68 = sadd.s32 %s67, 1
      %s69 = scalar_select %p66, %s67, %s68
      %p72 = pneg %p66
      %p73 = scmp.eq.s32.totalorder %s10, 4
      %p74 = por %p72, %p73
      %p75 = scmp.ne.s32.totalorder %s67, %s70
      %p76 = scmp.eq.s32.totalorder %s10, 0
      %p77 = por %p75, %p76
      %p78 = scmp.ne.s32.totalorder %s67, %s70
      %p79 = scmp.eq.s32.totalorder %s15, 4
      %p80 = por %p78, %p79
      %p81 = scmp.ne.s32.totalorder %s70, %s71
      %p82 = scmp.eq.s32.totalorder %s15, 0
      %p83 = por %p81, %p82
      %p84 = scmp.ne.s32.totalorder %s70, %s71
      %p85 = scmp.eq.s32.totalorder %s16, 4
      %p86 = por %p84, %p85
      %p88 = scmp.ne.s32.totalorder %s71, %s87
      %p89 = scmp.eq.s32.totalorder %s16, 0
      %p90 = por %p88, %p89
      %s91 = ssub.s32 %s10, %s17
      %p92 = scmp.eq.s32.totalorder %s91, 0
      %s94 = sadd.s32 %s93, 1
      %s95 = scalar_select %p92, %s93, %s94
      %p98 = pneg %p92
      %p99 = scmp.eq.s32.totalorder %s10, 4
      %p100 = por %p98, %p99
      %p101 = scmp.ne.s32.totalorder %s93, %s96
      %p102 = scmp.eq.s32.totalorder %s10, 0
      %p103 = por %p101, %p102
      %p104 = scmp.ne.s32.totalorder %s93, %s96
      %p105 = scmp.eq.s32.totalorder %s15, 4
      %p106 = por %p104, %p105
      %p107 = scmp.ne.s32.totalorder %s96, %s97
      %p108 = scmp.eq.s32.totalorder %s15, 0
      %p109 = por %p107, %p108
      %p110 = scmp.ne.s32.totalorder %s96, %s97
      %p111 = scmp.eq.s32.totalorder %s16, 4
      %p112 = por %p110, %p111
      %p114 = scmp.ne.s32.totalorder %s97, %s113
      %p115 = scmp.eq.s32.totalorder %s16, 0
      %p116 = por %p114, %p115
      %s117 = ssub.s32 %s10, %s17
      %p118 = scmp.eq.s32.totalorder %s117, 0
      %s120 = sadd.s32 %s119, 1
      %s121 = scalar_select %p118, %s119, %s120
      %p124 = pneg %p118
      %p125 = scmp.eq.s32.totalorder %s10, 4
      %p126 = por %p124, %p125
      %p127 = scmp.ne.s32.totalorder %s119, %s122
      %p128 = scmp.eq.s32.totalorder %s10, 0
      %p129 = por %p127, %p128
      %p130 = scmp.ne.s32.totalorder %s119, %s122
      %p131 = scmp.eq.s32.totalorder %s15, 4
      %p132 = por %p130, %p131
      %p133 = scmp.ne.s32.totalorder %s122, %s123
      %p134 = scmp.eq.s32.totalorder %s15, 0
      %p135 = por %p133, %p134
      %p136 = scmp.ne.s32.totalorder %s122, %s123
      %p137 = scmp.eq.s32.totalorder %s16, 4
      %p138 = por %p136, %p137
      %p140 = scmp.ne.s32.totalorder %s123, %s139
      %p141 = scmp.eq.s32.totalorder %s16, 0
      %p142 = por %p140, %p141
      %p143 = scmp.le.s32.totalorder 1, %s10
      %p144 = scmp.lt.s32.totalorder %s10, 6
      %p145 = pnand %p143, %p144
      %p146 = pneg %p145
      // Predicated region
      $region9: #{_lambda_.52} parent=5 // pred_check
        _
      $region10: #{_lambda_.52} parent=5 // pred_check_branch
        %148 = sbr.rel (%p145) target = $region12
      $region11: #{_lambda_.52} parent=5 // pred_region
        %s149 = ssub.s32 %s10, 1
        // Predicated region
        $region13: #{_lambda_.52} parent=11 // pred_check
          %p150 = pneg %p31
        $region14: #{_lambda_.52} parent=11 // pred_check_branch
          %152 = sbr.rel (%p150) target = $region16
        $region15: #{_lambda_.52} parent=11 // pred_region
          _
        $region16: #{_lambda_.52} parent=11 // pred_fallthru
          _
      $region12: #{_lambda_.52} parent=5 // pred_fallthru
        _
      %p153 = scmp.lt.s32.totalorder %s10, 5
      // Predicated region
      $region17: #{_lambda_.52} parent=5 // pred_check
        %p154 = pneg %p153
      $region18: #{_lambda_.52} parent=5 // pred_check_branch
        %156 = sbr.rel (%p154) target = $region20
      $region19: #{_lambda_.52} parent=5 // pred_region
        // Predicated region
        $region21: #{_lambda_.52} parent=19 // pred_check
          %p157 = pneg %p51
        $region22: #{_lambda_.52} parent=19 // pred_check_branch
          %159 = sbr.rel (%p157) target = $region24
        $region23: #{_lambda_.52} parent=19 // pred_region
          %s160 = sand.u32 %s41, 1
          %s161 = sand.u32 %s41, 1
          %s162 = smul.addr %s161, 128
          %s163 = scalar_lea.vmem [#allocation2], %s162
          %s164 = smul.u32 2, %s10
          %s165 = smul.addr %s164, 4
          %s166 = scalar_lea.vmem %s1, %s165
          // Predicated region
          $region25: #{_lambda_.52} parent=23 // pred_check
            _
          $region26: #{_lambda_.52} parent=23 // pred_check_branch
            %168 = sbr.rel (0) target = $region28
          $region27: #{_lambda_.52} parent=23 // pred_region
            // Predicated region
            $region29: #{_lambda_.52} parent=27 // pred_check
              _
            $region30: #{_lambda_.52} parent=27 // pred_check_branch
              %170 = sbr.rel (0) target = $region32
            $region31: #{_lambda_.52} parent=27 // pred_region
              // Predicated region
              $region44: #{_lambda_.52} parent=31 // pred_check
                _
              $region45: #{_lambda_.52} parent=31 // pred_check_branch
                %216 = sbr.rel (0) target = $region47
              $region46: #{_lambda_.52} parent=31 // pred_region
                loop: start=0, step=1, limit=1
                $region48: #{_lambda_.52} parent=46 // loop_pre_header
                  _
                $region49: #{_lambda_.52} parent=46 // loop_header
                  %s218 = sphi 0, %s222
                  %p219 = scmp.ge.s32.totalorder %s218, 1
                  %s223 = sphi %s166, %s166
                  %s224 = sphi %s163, %s163
                $region50: #{_lambda_.52} parent=46 // loop_header_branch
                  %221 = sbr.rel (%p219) target = $region54
                $region51: #{_lambda_.52} parent=46 // loop_body
                  %v225 = vld [vmem:[%s223] sm:$0xff]
                  %226 = vst [vmem:[%s224] sm:$0xff] %v225
                  %v227 = vld [vmem:[%s223 + $0x28] sm:$0xff]
                  %228 = vst [vmem:[%s224 + $0x8] sm:$0xff] %v227
                  %v229 = vld [vmem:[%s223 + $0x50] sm:$0xff]
                  %230 = vst [vmem:[%s224 + $0x10] sm:$0xff] %v229
                  %v231 = vld [vmem:[%s223 + $0x78] sm:$0xff]
                  %232 = vst [vmem:[%s224 + $0x18] sm:$0xff] %v231
                  %v233 = vld [vmem:[%s223 + $0xa0] sm:$0xff]
                  %234 = vst [vmem:[%s224 + $0x20] sm:$0xff] %v233
                  %v235 = vld [vmem:[%s223 + $0xc8] sm:$0xff]
                  %236 = vst [vmem:[%s224 + $0x28] sm:$0xff] %v235
                  %v237 = vld [vmem:[%s223 + $0xf0] sm:$0xff]
                  %238 = vst [vmem:[%s224 + $0x30] sm:$0xff] %v237
                  %v239 = vld [vmem:[%s223 + $0x118] sm:$0xff]
                  %240 = vst [vmem:[%s224 + $0x38] sm:$0xff] %v239
                  %v241 = vld [vmem:[%s223 + $0x140] sm:$0xff]
                  %242 = vst [vmem:[%s224 + $0x40] sm:$0xff] %v241
                  %v243 = vld [vmem:[%s223 + $0x168] sm:$0xff]
                  %244 = vst [vmem:[%s224 + $0x48] sm:$0xff] %v243
                  %v245 = vld [vmem:[%s223 + $0x190] sm:$0xff]
                  %246 = vst [vmem:[%s224 + $0x50] sm:$0xff] %v245
                  %v247 = vld [vmem:[%s223 + $0x1b8] sm:$0xff]
                  %248 = vst [vmem:[%s224 + $0x58] sm:$0xff] %v247
                  %v249 = vld [vmem:[%s223 + $0x1e0] sm:$0xff]
                  %250 = vst [vmem:[%s224 + $0x60] sm:$0xff] %v249
                  %v251 = vld [vmem:[%s223 + $0x208] sm:$0xff]
                  %252 = vst [vmem:[%s224 + $0x68] sm:$0xff] %v251
                  %v253 = vld [vmem:[%s223 + $0x230] sm:$0xff]
                  %254 = vst [vmem:[%s224 + $0x70] sm:$0xff] %v253
                  %v255 = vld [vmem:[%s223 + $0x258] sm:$0xff]
                  %256 = vst [vmem:[%s224 + $0x78] sm:$0xff] %v255
                $region52: #{_lambda_.52} parent=46 // loop_footer
                  %s222 = sadd.s32 1, %s218
                $region53: #{_lambda_.52} parent=46 // loop_footer_branch
                  %217 = sbr.rel target = $region49
                $region54: #{_lambda_.52} parent=46 // loop_exit
                  _
              $region47: #{_lambda_.52} parent=31 // pred_fallthru
                _
              // Predicated region
              $region55: #{_lambda_.52} parent=31 // pred_check
                _
              $region56: #{_lambda_.52} parent=31 // pred_check_branch
                %258 = sbr.rel target = $region58
              $region57: #{_lambda_.52} parent=31 // pred_region
                _
              $region58: #{_lambda_.52} parent=31 // pred_fallthru
                _
            $region32: #{_lambda_.52} parent=27 // pred_fallthru
              _
            // Predicated region
            $region33: #{_lambda_.52} parent=27 // pred_check
              _
            $region34: #{_lambda_.52} parent=27 // pred_check_branch
              %172 = sbr.rel target = $region36
            $region35: #{_lambda_.52} parent=27 // pred_region
              %s174 = ssub.s32 256, 1
              loop: start=0, step=1, limit=1
              $region37: #{_lambda_.52} parent=35 // loop_pre_header
                _
              $region38: #{_lambda_.52} parent=35 // loop_header
                %s176 = sphi 0, %s180
                %p177 = scmp.ge.s32.totalorder %s176, 1
                %s181 = sphi %s166, %s166
                %s182 = sphi %s163, %s163
              $region39: #{_lambda_.52} parent=35 // loop_header_branch
                %179 = sbr.rel (%p177) target = $region43
              $region40: #{_lambda_.52} parent=35 // loop_body
                %v183 = vld [vmem:[%s181] sm:%s174]
                %184 = vst [vmem:[%s182] sm:%s174] %v183
                %v185 = vld [vmem:[%s181 + $0x28] sm:%s174]
                %186 = vst [vmem:[%s182 + $0x8] sm:%s174] %v185
                %v187 = vld [vmem:[%s181 + $0x50] sm:%s174]
                %188 = vst [vmem:[%s182 + $0x10] sm:%s174] %v187
                %v189 = vld [vmem:[%s181 + $0x78] sm:%s174]
                %190 = vst [vmem:[%s182 + $0x18] sm:%s174] %v189
                %v191 = vld [vmem:[%s181 + $0xa0] sm:%s174]
                %192 = vst [vmem:[%s182 + $0x20] sm:%s174] %v191
                %v193 = vld [vmem:[%s181 + $0xc8] sm:%s174]
                %194 = vst [vmem:[%s182 + $0x28] sm:%s174] %v193
                %v195 = vld [vmem:[%s181 + $0xf0] sm:%s174]
                %196 = vst [vmem:[%s182 + $0x30] sm:%s174] %v195
                %v197 = vld [vmem:[%s181 + $0x118] sm:%s174]
                %198 = vst [vmem:[%s182 + $0x38] sm:%s174] %v197
                %v199 = vld [vmem:[%s181 + $0x140] sm:%s174]
                %200 = vst [vmem:[%s182 + $0x40] sm:%s174] %v199
                %v201 = vld [vmem:[%s181 + $0x168] sm:%s174]
                %202 = vst [vmem:[%s182 + $0x48] sm:%s174] %v201
                %v203 = vld [vmem:[%s181 + $0x190] sm:%s174]
                %204 = vst [vmem:[%s182 + $0x50] sm:%s174] %v203
                %v205 = vld [vmem:[%s181 + $0x1b8] sm:%s174]
                %206 = vst [vmem:[%s182 + $0x58] sm:%s174] %v205
                %v207 = vld [vmem:[%s181 + $0x1e0] sm:%s174]
                %208 = vst [vmem:[%s182 + $0x60] sm:%s174] %v207
                %v209 = vld [vmem:[%s181 + $0x208] sm:%s174]
                %210 = vst [vmem:[%s182 + $0x68] sm:%s174] %v209
                %v211 = vld [vmem:[%s181 + $0x230] sm:%s174]
                %212 = vst [vmem:[%s182 + $0x70] sm:%s174] %v211
                %v213 = vld [vmem:[%s181 + $0x258] sm:%s174]
                %214 = vst [vmem:[%s182 + $0x78] sm:%s174] %v213
              $region41: #{_lambda_.52} parent=35 // loop_footer
                %s180 = sadd.s32 1, %s176
              $region42: #{_lambda_.52} parent=35 // loop_footer_branch
                %175 = sbr.rel target = $region38
              $region43: #{_lambda_.52} parent=35 // loop_exit
                _
            $region36: #{_lambda_.52} parent=27 // pred_fallthru
              _
          $region28: #{_lambda_.52} parent=23 // pred_fallthru
            _
          %259 = vnop
        $region24: #{_lambda_.52} parent=19 // pred_fallthru
          _
        // Predicated region
        $region59: #{_lambda_.52} parent=19 // pred_check
          %p260 = pneg %p77
        $region60: #{_lambda_.52} parent=19 // pred_check_branch
          %262 = sbr.rel (%p260) target = $region62
        $region61: #{_lambda_.52} parent=19 // pred_region
          %s263 = smul.u32 2, %s10
          %p264 = scmp.lt.s32.totalorder %s263, 9
          %s265 = scalar_select %p264, %s263, 9
          %s266 = scalar_lea.vmem %s2, %s265
          %s267 = smul.u32 2, %s10
        $region62: #{_lambda_.52} parent=19 // pred_fallthru
          _
        // Predicated region
        $region63: #{_lambda_.52} parent=19 // pred_check
          %p268 = pneg %p103
        $region64: #{_lambda_.52} parent=19 // pred_check_branch
          %270 = sbr.rel (%p268) target = $region66
        $region65: #{_lambda_.52} parent=19 // pred_region
          %s271 = smul.u32 2, %s10
          %p272 = scmp.lt.s32.totalorder %s271, 9
          %s273 = scalar_select %p272, %s271, 9
          %s274 = scalar_lea.vmem %s3, %s273
          %s275 = smul.u32 2, %s10
        $region66: #{_lambda_.52} parent=19 // pred_fallthru
          _
      $region20: #{_lambda_.52} parent=5 // pred_fallthru
        _
      %p276 = scmp.le.s32.totalorder 1, %s10
      %p277 = scmp.lt.s32.totalorder %s10, 6
      %p278 = pnand %p276, %p277
      %p279 = pneg %p278
      // Predicated region
      $region67: #{_lambda_.52} parent=5 // pred_check
        _
      $region68: #{_lambda_.52} parent=5 // pred_check_branch
        %281 = sbr.rel (%p278) target = $region70
      $region69: #{_lambda_.52} parent=5 // pred_region
        %s282 = ssub.s32 %s10, 1
        %s283 = sand.u32 %s44, 1
        %s284 = sand.u32 %s44, 1
        %s285 = smul.addr %s284, 128
        %s286 = scalar_lea.vmem [#allocation2], %s285
        // Predicated region
        $region71: #{_lambda_.52} parent=69 // pred_check
          %p287 = pneg %p57
        $region72: #{_lambda_.52} parent=69 // pred_check_branch
          %289 = sbr.rel (%p287) target = $region74
        $region73: #{_lambda_.52} parent=69 // pred_region
          _
        $region74: #{_lambda_.52} parent=69 // pred_fallthru
          _
        %p290 = pneg %p31
        %p291 = pneg %p28
        %s292 = sand.u32 %s44, 1
        %s293 = sand.u32 %s44, 1
        %s294 = smul.addr %s293, 128
        %s295 = scalar_lea.vmem [#allocation2], %s294
        %p296 = pneg %p57
        %p297 = pneg %p54
        %s298 = smul.u32 2, %s15
        %p299 = scmp.lt.s32.totalorder %s298, 9
        %s300 = scalar_select %p299, %s298, 9
        %s301 = scalar_lea.vmem %s2, %s300
        %p302 = pneg %p83
        %p303 = pneg %p80
        %s304 = smul.u32 2, %s15
        %p305 = scmp.lt.s32.totalorder %s304, 9
        %s306 = scalar_select %p305, %s304, 9
        %s307 = scalar_lea.vmem %s3, %s306
        %p308 = pneg %p109
        %p309 = pneg %p106
        %p310 = pneg %p135
        %p311 = pneg %p132
        %s312 = smul.u32 2, %s15
        %p313 = scmp.lt.s32.totalorder %s312, 9
        %s314 = scalar_select %p313, %s312, 9
        %s315 = smul.addr %s314, 4
        %s316 = scalar_lea.vmem %s4, %s315
        %s317 = smul.u32 2, %s15
        %s318 = smul.u32 2, %s15
        %p319 = scmp.lt.s32.totalorder %s318, 9
        %s320 = scalar_select %p319, %s318, 9
        %s321 = scalar_lea.vmem %s2, %s320
        %s322 = smul.u32 2, %s15
        %s323 = smul.u32 2, %s15
        %p324 = scmp.lt.s32.totalorder %s323, 9
        %s325 = scalar_select %p324, %s323, 9
        %s326 = scalar_lea.vmem %s3, %s325
        %s327 = smul.u32 2, %s15
        %s328 = smul.u32 2, %s15
        %p329 = scmp.lt.s32.totalorder %s328, 9
        %s330 = scalar_select %p329, %s328, 9
        %s331 = smul.addr %s330, 4
        %s332 = scalar_lea.vmem %s4, %s331
        %s333 = smul.u32 2, %s15
        %v334 = vld [vmem:[%s0] sm:$0xf]
        %v335 = vld [vmem:[%s286] sm:$0xff]
        %v336 = vld [vmem:[%s286 + $0x8] sm:$0xff]
        %v337 = vld [vmem:[%s286 + $0x10] sm:$0xff]
        %v338 = vld [vmem:[%s286 + $0x18] sm:$0xff]
        %v339 = vld [vmem:[%s286 + $0x20] sm:$0xff]
        %v340 = vld [vmem:[%s286 + $0x28] sm:$0xff]
        %v341 = vld [vmem:[%s286 + $0x30] sm:$0xff]
        %v342 = vld [vmem:[%s286 + $0x38] sm:$0xff]
        %v343 = vld [vmem:[%s286 + $0x40] sm:$0xff]
        %v344 = vld [vmem:[%s286 + $0x48] sm:$0xff]
        %v345 = vld [vmem:[%s286 + $0x50] sm:$0xff]
        %v346 = vld [vmem:[%s286 + $0x58] sm:$0xff]
        %v347 = vld [vmem:[%s286 + $0x60] sm:$0xff]
        %v348 = vld [vmem:[%s286 + $0x68] sm:$0xff]
        %v349 = vld [vmem:[%s286 + $0x70] sm:$0xff]
        %v350 = vld [vmem:[%s286 + $0x78] sm:$0xff]
        %v367 = vunpack.c.l.b16 %v335
        %v368 = vunpack.c.h.b16 %v335
        %v369 = vunpack.c.l.b16 %v336
        %v370 = vunpack.c.h.b16 %v336
        %v371 = vunpack.c.l.b16 %v337
        %v372 = vunpack.c.h.b16 %v337
        %v373 = vunpack.c.l.b16 %v338
        %v374 = vunpack.c.h.b16 %v338
        %v375 = vunpack.c.l.b16 %v339
        %v376 = vunpack.c.h.b16 %v339
        %v377 = vunpack.c.l.b16 %v340
        %v378 = vunpack.c.h.b16 %v340
        %v379 = vunpack.c.l.b16 %v341
        %v380 = vunpack.c.h.b16 %v341
        %v381 = vunpack.c.l.b16 %v342
        %v382 = vunpack.c.h.b16 %v342
        %v383 = vunpack.c.l.b16 %v343
        %v384 = vunpack.c.h.b16 %v343
        %v385 = vunpack.c.l.b16 %v344
        %v386 = vunpack.c.h.b16 %v344
        %v387 = vunpack.c.l.b16 %v345
        %v388 = vunpack.c.h.b16 %v345
        %v389 = vunpack.c.l.b16 %v346
        %v390 = vunpack.c.h.b16 %v346
        %v391 = vunpack.c.l.b16 %v347
        %v392 = vunpack.c.h.b16 %v347
        %v393 = vunpack.c.l.b16 %v348
        %v394 = vunpack.c.h.b16 %v348
        %v395 = vunpack.c.l.b16 %v349
        %v396 = vunpack.c.h.b16 %v349
        %v397 = vunpack.c.l.b16 %v350
        %v398 = vunpack.c.h.b16 %v350
        %v399 = vpack.c.b16 %v369, %v367
        %v400 = vpack.c.b16 %v370, %v368
        %v401 = vpack.c.b16 %v373, %v371
        %v402 = vpack.c.b16 %v374, %v372
        %v403 = vpack.c.b16 %v377, %v375
        %v404 = vpack.c.b16 %v378, %v376
        %v405 = vpack.c.b16 %v381, %v379
        %v406 = vpack.c.b16 %v382, %v380
        %v407 = vpack.c.b16 %v385, %v383
        %v408 = vpack.c.b16 %v386, %v384
        %v409 = vpack.c.b16 %v389, %v387
        %v410 = vpack.c.b16 %v390, %v388
        %v411 = vpack.c.b16 %v393, %v391
        %v412 = vpack.c.b16 %v394, %v392
        %v413 = vpack.c.b16 %v397, %v395
        %v414 = vpack.c.b16 %v398, %v396
        %431 = vmatpush.bf16.msra.mxu0 %v413
        %432 = vmatpush.bf16.msra.mxu0 %v411
        %433 = vmatpush.bf16.msra.mxu0 %v409
        %434 = vmatpush.bf16.msra.mxu0 %v407
        %435 = vmatpush.bf16.msra.mxu0 %v405
        %436 = vmatpush.bf16.msra.mxu0 %v403
        %437 = vmatpush.bf16.msra.mxu0 %v401
        %438 = vmatpush.bf16.msra.mxu0 %v399
        %439 = vmatmul.bf16.gmra.mxu0 %v334
        %v440 = vpop.f32.mrf.mxu0
        %v441 = vadd.f32 0.0, %v440
        %v442 = vpop.f32.mrf.mxu0
        %443 = vdwg.mxu0
        %444 = vmatpush.bf16.msra.mxu0 %v414
        %445 = vmatpush.bf16.msra.mxu0 %v412
        %446 = vmatpush.bf16.msra.mxu0 %v410
        %447 = vmatpush.bf16.msra.mxu0 %v408
        %448 = vmatpush.bf16.msra.mxu0 %v406
        %449 = vmatpush.bf16.msra.mxu0 %v404
        %450 = vmatpush.bf16.msra.mxu0 %v402
        %451 = vmatpush.bf16.msra.mxu0 %v400
        %452 = vmatmul.bf16.gmra.mxu0 %v334
        %v453 = vpop.f32.mrf.mxu0
        %v454 = vadd.f32 0.0, %v453
        %v455 = vpop.f32.mrf.mxu0
        %456 = vdwg.mxu0
        %v457 = vrot.slane %v441, 4
        %v458 = vadd.f32 %v441, %v457
        %v459 = vrot.slane %v458, 2
        %v460 = vadd.f32 %v458, %v459
        %v461 = vrot.slane %v460, 1
        %v462 = vadd.f32 %v460, %v461
        %v463 = vrot.slane %v454, 4
        %v464 = vadd.f32 %v454, %v463
        %v465 = vrot.slane %v464, 2
        %v466 = vadd.f32 %v464, %v465
        %v467 = vrot.slane %v466, 1
        %v468 = vadd.f32 %v466, %v467
        %v469 = vmul.f32 %v462, 0.5
        %v470 = vmul.f32 %v468, 0.5
        %v471 = vmul.f32 %v441, %v441
        %v472 = vmul.f32 %v454, %v454
        %v473 = vrot.slane %v471, 4
        %v474 = vadd.f32 %v471, %v473
        %v475 = vrot.slane %v474, 2
        %v476 = vadd.f32 %v474, %v475
        %v477 = vrot.slane %v476, 1
        %v478 = vadd.f32 %v476, %v477
        %v479 = vrot.slane %v472, 4
        %v480 = vadd.f32 %v472, %v479
        %v481 = vrot.slane %v480, 2
        %v482 = vadd.f32 %v480, %v481
        %v483 = vrot.slane %v482, 1
        %v484 = vadd.f32 %v482, %v483
        %v485 = vmul.f32 %v478, 0.5
        %v486 = vmul.f32 %v484, 0.5
        %v487 = vmul.f32 %v469, %v469
        %v488 = vmul.f32 %v470, %v470
        %v489 = vsub.f32 %v485, %v487
        %v490 = vsub.f32 %v486, %v488
        %v491 = vmax.f32 %v489, 0.0
        %v492 = vmax.f32 %v490, 0.0
        %v493 = vld [vmem:[%s321] sm:$0x3]
        %v494 = vadd.f32 %v491, 1e-05
        %v495 = vadd.f32 %v492, 1e-05
        %v496 = vrsqrt.pop %v494
        %v497 = vmul.f32 %v496, %v494
        %v498 = vmul.f32 %v497, %v496
        %v499 = vmul.f32 0.5, %v498
        %v500 = vsub.f32 1.5, %v499
        %v501 = vmul.f32 %v496, %v500
        %vm502 = vweird.f32 %v494
        %vm503 = vweird.f32 %v496
        %vm504 = vmor %vm502, %vm503
        %v505 = vsel %vm504, %v496, %v501
        %v506 = vrsqrt.pop %v495
        %v507 = vmul.f32 %v506, %v495
        %v508 = vmul.f32 %v507, %v506
        %v509 = vmul.f32 0.5, %v508
        %v510 = vsub.f32 1.5, %v509
        %v511 = vmul.f32 %v506, %v510
        %vm512 = vweird.f32 %v495
        %vm513 = vweird.f32 %v506
        %vm514 = vmor %vm512, %vm513
        %v515 = vsel %vm514, %v506, %v511
        %v518 = vrot.slane %v515, 7
        %vm519 = vcmask 1040384
        %v520 = vsel %vm519, %v505, %v518
        %v522 = vmul.f32 %v493, %v520
        %v523 = vld [vmem:[%s326] sm:$0x3]
        %v525 = vperm.slane %v522, 0
        %v526 = vperm.slane %v522, 1
        %v529 = vmul.f32 %v469, %v525
        %v530 = vmul.f32 %v470, %v526
        %v533 = vrot.slane %v530, 7
        %v534 = vsel %vm519, %v529, %v533
        %v536 = vsub.f32 %v523, %v534
        %v537 = vmul.f32 %v441, %v525
        %v538 = vmul.f32 %v454, %v526
        %v540 = vperm.slane %v536, 0
        %v541 = vperm.slane %v536, 1
        %v544 = vadd.f32 %v537, %v540
        %v545 = vadd.f32 %v538, %v541
        %v546 = vmax.f32 %v544, 0.0
        %v547 = vmax.f32 %v545, 0.0
        %v548 = vpack.c.bf16 %v547, %v546
        %549 = vst [vmem:[%s332] sm:$0xff] %v548
        %s550 = smul.u32 2, %s15
        %p551 = scmp.lt.s32.totalorder %s550, 9
        %s552 = scalar_select %p551, %s550, 9
        %s553 = smul.addr %s552, 4
        %s554 = scalar_lea.vmem %s4, %s553
        // Predicated region
        $region75: #{_lambda_.52} parent=69 // pred_check
          %p555 = pneg %p132
        $region76: #{_lambda_.52} parent=69 // pred_check_branch
          %557 = sbr.rel (%p555) target = $region78
        $region77: #{_lambda_.52} parent=69 // pred_region
          %s558 = smul.u32 2, %s15
        $region78: #{_lambda_.52} parent=69 // pred_fallthru
          _
      $region70: #{_lambda_.52} parent=5 // pred_fallthru
        _
      %p559 = scmp.le.s32.totalorder 2, %s10
      // Predicated region
      $region79: #{_lambda_.52} parent=5 // pred_check
        %p560 = pneg %p559
      $region80: #{_lambda_.52} parent=5 // pred_check_branch
        %562 = sbr.rel (%p560) target = $region82
      $region81: #{_lambda_.52} parent=5 // pred_region
        %s563 = ssub.s32 %s10, 2
        // Predicated region
        $region83: #{_lambda_.52} parent=81 // pred_check
          %p564 = pneg %p138
        $region84: #{_lambda_.52} parent=81 // pred_check_branch
          %566 = sbr.rel (%p564) target = $region86
        $region85: #{_lambda_.52} parent=81 // pred_region
          %s567 = smul.u32 2, %s16
          %p568 = scmp.lt.s32.totalorder %s567, 9
          %s569 = scalar_select %p568, %s567, 9
          %s570 = smul.addr %s569, 4
          %s571 = scalar_lea.vmem %s4, %s570
        $region86: #{_lambda_.52} parent=81 // pred_fallthru
          _
      $region82: #{_lambda_.52} parent=5 // pred_fallthru
        _
    $region6: #{_lambda_.52} parent=1 // loop_footer
      %s14 = sadd.s32 1, %s10
    $region7: #{_lambda_.52} parent=1 // loop_footer_branch
      %9 = sbr.rel target = $region3
    $region8: #{_lambda_.52} parent=1 // loop_exit
      _

// kernel: _lambda_.47
$region0: #{_lambda_.47}
  #allocation0 [shape = 'u32[]', space=smem, size = 0x4, offset = 0x4, fixed_abs, tag = 'smem constant byte address 0x4 - core index']
  #allocation1 [shape = 'u32[72,128]{1,0:T(1,128)}', space=vmem, size = 0x9000, scoped, tag = 'internal scratch']
  %s0 = inlined_call_operand.vmem [shape: bf16[2,4,4,128], index: 0, kind: input, shape index: {}]
  %s1 = inlined_call_operand.vmem [shape: f32[9,128], index: 1, kind: input, shape index: {}]
  %s2 = inlined_call_operand.vmem [shape: f32[1,128], index: 2, kind: input, shape index: {}]
  %s3 = inlined_call_operand.vmem [shape: f32[1,128], index: 3, kind: input, shape index: {}]
  %s4 = inlined_call_operand.vmem [shape: bf16[2,2,2,128], index: 4, kind: output, shape index: {}]
  %s5 = sld [smem:[#allocation0]]
  $region26: #{_lambda_.47} parent=0
    _
  %s7 = ssub.s32 1, %s5
  %s8 = scalar_select 0, %s7, %s5
  // Predicated region
  $region2: #{_lambda_.47} parent=0 // pred_check
    _
  $region3: #{_lambda_.47} parent=0 // pred_check_branch
    %10 = sbr.rel (0) target = $region5
  $region4: #{_lambda_.47} parent=0 // pred_region
    _
  $region5: #{_lambda_.47} parent=0 // pred_fallthru
    _
  // Predicated region
  $region6: #{_lambda_.47} parent=0 // pred_check
    _
  $region7: #{_lambda_.47} parent=0 // pred_check_branch
    %12 = sbr.rel (0) target = $region9
  $region8: #{_lambda_.47} parent=0 // pred_region
    _
  $region9: #{_lambda_.47} parent=0 // pred_fallthru
    _
  // Predicated region
  $region10: #{_lambda_.47} parent=0 // pred_check
    _
  $region11: #{_lambda_.47} parent=0 // pred_check_branch
    %14 = sbr.rel (0) target = $region13
  $region12: #{_lambda_.47} parent=0 // pred_region
    _
  $region13: #{_lambda_.47} parent=0 // pred_fallthru
    _
  // Predicated region
  $region14: #{_lambda_.47} parent=0 // pred_check
    _
  $region15: #{_lambda_.47} parent=0 // pred_check_branch
    %16 = sbr.rel (0) target = $region17
  $region16: #{_lambda_.47} parent=0 // pred_region
    _
  $region17: #{_lambda_.47} parent=0 // pred_fallthru
    _
  %v17 = vld [vmem:[%s1] sm:$0xff]
  %v18 = vld [vmem:[%s1 + $0x8] sm:$0x1]
  %v19 = vld [vmem:[%s0] sm:$0x1]
  %v20 = vld [vmem:[%s0 + $0x2] sm:$0x1]
  %v21 = vld [vmem:[%s0 + $0x8] sm:$0x1]
  %v22 = vld [vmem:[%s0 + $0xa] sm:$0x1]
  %v23 = vunpack.c.l.bf16 %v19
  %v24 = vunpack.c.l.bf16 %v20
  %v25 = vunpack.c.l.bf16 %v21
  %v26 = vunpack.c.l.bf16 %v22
  %v27 = vperm.slane %v17, 0
  %v28 = vmul.f32 %v23, %v27
  %v29 = vmul.f32 %v24, %v27
  %v30 = vmul.f32 %v25, %v27
  %v31 = vmul.f32 %v26, %v27
  %v32 = vld [vmem:[%s0] sm:$0x3]
  %v33 = vld [vmem:[%s0 + $0x2] sm:$0x3]
  %v34 = vld [vmem:[%s0 + $0x8] sm:$0x3]
  %v35 = vld [vmem:[%s0 + $0xa] sm:$0x3]
  %v36 = vunpack.c.l.bf16 %v32
  %v37 = vunpack.c.l.bf16 %v33
  %v38 = vunpack.c.l.bf16 %v34
  %v39 = vunpack.c.l.bf16 %v35
  %v40 = vperm.slane %v17, 1
  %v41 = vmul.f32 %v36, %v40
  %v42 = vmul.f32 %v37, %v40
  %v43 = vmul.f32 %v38, %v40
  %v44 = vmul.f32 %v39, %v40
  %v45 = vld [vmem:[%s0] sm:$0x2]
  %v46 = vld [vmem:[%s0 + $0x2] sm:$0x2]
  %v47 = vld [vmem:[%s0 + $0x8] sm:$0x2]
  %v48 = vld [vmem:[%s0 + $0xa] sm:$0x2]
  %v49 = vunpack.c.l.bf16 %v45
  %v50 = vunpack.c.l.bf16 %v46
  %v51 = vunpack.c.l.bf16 %v47
  %v52 = vunpack.c.l.bf16 %v48
  %v53 = vperm.slane %v17, 2
  %v54 = vmul.f32 %v49, %v53
  %v55 = vmul.f32 %v50, %v53
  %v56 = vmul.f32 %v51, %v53
  %v57 = vmul.f32 %v52, %v53
  %s58 = scalar_lea.vmem %s0, 2
  %v59 = vld [vmem:[%s58] sm:$0x1]
  %v60 = vld [vmem:[%s58 + $0x2] sm:$0x1]
  %v61 = vld [vmem:[%s58 + $0x8] sm:$0x1]
  %v62 = vld [vmem:[%s58 + $0xa] sm:$0x1]
  %v63 = vunpack.c.l.bf16 %v59
  %v64 = vunpack.c.l.bf16 %v60
  %v65 = vunpack.c.l.bf16 %v61
  %v66 = vunpack.c.l.bf16 %v62
  %v67 = vperm.slane %v17, 3
  %v68 = vmul.f32 %v63, %v67
  %v69 = vmul.f32 %v64, %v67
  %v70 = vmul.f32 %v65, %v67
  %v71 = vmul.f32 %v66, %v67
  %v72 = vld [vmem:[%s58] sm:$0x3]
  %v73 = vld [vmem:[%s58 + $0x2] sm:$0x3]
  %v74 = vld [vmem:[%s58 + $0x8] sm:$0x3]
  %v75 = vld [vmem:[%s58 + $0xa] sm:$0x3]
  %v76 = vunpack.c.l.bf16 %v72
  %v77 = vunpack.c.l.bf16 %v73
  %v78 = vunpack.c.l.bf16 %v74
  %v79 = vunpack.c.l.bf16 %v75
  %v80 = vperm.slane %v17, 4
  %v81 = vmul.f32 %v76, %v80
  %v82 = vmul.f32 %v77, %v80
  %v83 = vmul.f32 %v78, %v80
  %v84 = vmul.f32 %v79, %v80
  %v85 = vld [vmem:[%s58] sm:$0x2]
  %v86 = vld [vmem:[%s58 + $0x2] sm:$0x2]
  %v87 = vld [vmem:[%s58 + $0x8] sm:$0x2]
  %v88 = vld [vmem:[%s58 + $0xa] sm:$0x2]
  %v89 = vunpack.c.l.bf16 %v85
  %v90 = vunpack.c.l.bf16 %v86
  %v91 = vunpack.c.l.bf16 %v87
  %v92 = vunpack.c.l.bf16 %v88
  %v93 = vperm.slane %v17, 5
  %v94 = vmul.f32 %v89, %v93
  %v95 = vmul.f32 %v90, %v93
  %v96 = vmul.f32 %v91, %v93
  %v97 = vmul.f32 %v92, %v93
  %s98 = scalar_lea.vmem %s0, 4
  %v99 = vld [vmem:[%s98] sm:$0x1]
  %v100 = vld [vmem:[%s98 + $0x2] sm:$0x1]
  %v101 = vld [vmem:[%s98 + $0x8] sm:$0x1]
  %v102 = vld [vmem:[%s98 + $0xa] sm:$0x1]
  %v103 = vunpack.c.l.bf16 %v99
  %v104 = vunpack.c.l.bf16 %v100
  %v105 = vunpack.c.l.bf16 %v101
  %v106 = vunpack.c.l.bf16 %v102
  %v107 = vperm.slane %v17, 6
  %v108 = vmul.f32 %v103, %v107
  %v109 = vmul.f32 %v104, %v107
  %v110 = vmul.f32 %v105, %v107
  %v111 = vmul.f32 %v106, %v107
  %v112 = vld [vmem:[%s98] sm:$0x3]
  %v113 = vld [vmem:[%s98 + $0x2] sm:$0x3]
  %v114 = vld [vmem:[%s98 + $0x8] sm:$0x3]
  %v115 = vld [vmem:[%s98 + $0xa] sm:$0x3]
  %v116 = vunpack.c.l.bf16 %v112
  %v117 = vunpack.c.l.bf16 %v113
  %v118 = vunpack.c.l.bf16 %v114
  %v119 = vunpack.c.l.bf16 %v115
  %v120 = vperm.slane %v17, 7
  %v121 = vmul.f32 %v116, %v120
  %v122 = vmul.f32 %v117, %v120
  %v123 = vmul.f32 %v118, %v120
  %v124 = vmul.f32 %v119, %v120
  %v125 = vld [vmem:[%s98] sm:$0x2]
  %v126 = vld [vmem:[%s98 + $0x2] sm:$0x2]
  %v127 = vld [vmem:[%s98 + $0x8] sm:$0x2]
  %v128 = vld [vmem:[%s98 + $0xa] sm:$0x2]
  %v129 = vunpack.c.l.bf16 %v125
  %v130 = vunpack.c.l.bf16 %v126
  %v131 = vunpack.c.l.bf16 %v127
  %v132 = vunpack.c.l.bf16 %v128
  %v133 = vperm.slane %v18, 0
  %v134 = vmul.f32 %v129, %v133
  %v135 = vmul.f32 %v130, %v133
  %v136 = vmul.f32 %v131, %v133
  %v137 = vmul.f32 %v132, %v133
  %v142 = vrot.slane %v41, 5
  %v143 = vrot.slane %v142, 4
  %v144 = vrot.slane %v42, 5
  %v145 = vrot.slane %v144, 4
  %v146 = vrot.slane %v43, 5
  %v147 = vrot.slane %v146, 4
  %v148 = vrot.slane %v44, 5
  %v149 = vrot.slane %v148, 4
  %v154 = vadd.f32 %v28, %v143
  %v155 = vadd.f32 %v29, %v145
  %v156 = vadd.f32 %v30, %v147
  %v157 = vadd.f32 %v31, %v149
  %v162 = vrot.slane %v68, 6
  %v163 = vrot.slane %v69, 6
  %v164 = vrot.slane %v70, 6
  %v165 = vrot.slane %v71, 6
  %v170 = vadd.f32 %v54, %v162
  %v171 = vadd.f32 %v55, %v163
  %v172 = vadd.f32 %v56, %v164
  %v173 = vadd.f32 %v57, %v165
  %v178 = vrot.slane %v94, 5
  %v179 = vrot.slane %v178, 4
  %v180 = vrot.slane %v95, 5
  %v181 = vrot.slane %v180, 4
  %v182 = vrot.slane %v96, 5
  %v183 = vrot.slane %v182, 4
  %v184 = vrot.slane %v97, 5
  %v185 = vrot.slane %v184, 4
  %v190 = vadd.f32 %v81, %v179
  %v191 = vadd.f32 %v82, %v181
  %v192 = vadd.f32 %v83, %v183
  %v193 = vadd.f32 %v84, %v185
  %v198 = vrot.slane %v121, 5
  %v199 = vrot.slane %v198, 4
  %v200 = vrot.slane %v122, 5
  %v201 = vrot.slane %v200, 4
  %v202 = vrot.slane %v123, 5
  %v203 = vrot.slane %v202, 4
  %v204 = vrot.slane %v124, 5
  %v205 = vrot.slane %v204, 4
  %v210 = vadd.f32 %v108, %v199
  %v211 = vadd.f32 %v109, %v201
  %v212 = vadd.f32 %v110, %v203
  %v213 = vadd.f32 %v111, %v205
  %v218 = vrot.slane %v170, 6
  %v219 = vrot.slane %v218, 4
  %v220 = vrot.slane %v171, 6
  %v221 = vrot.slane %v220, 4
  %v222 = vrot.slane %v172, 6
  %v223 = vrot.slane %v222, 4
  %v224 = vrot.slane %v173, 6
  %v225 = vrot.slane %v224, 4
  %v230 = vadd.f32 %v154, %v219
  %v231 = vadd.f32 %v155, %v221
  %v232 = vadd.f32 %v156, %v223
  %v233 = vadd.f32 %v157, %v225
  %v238 = vrot.slane %v210, 7
  %v239 = vrot.slane %v211, 7
  %v240 = vrot.slane %v212, 7
  %v241 = vrot.slane %v213, 7
  %v246 = vadd.f32 %v190, %v238
  %v247 = vadd.f32 %v191, %v239
  %v248 = vadd.f32 %v192, %v240
  %v249 = vadd.f32 %v193, %v241
  %v254 = vrot.slane %v246, 5
  %v255 = vrot.slane %v254, 4
  %v256 = vrot.slane %v247, 5
  %v257 = vrot.slane %v256, 4
  %v258 = vrot.slane %v248, 5
  %v259 = vrot.slane %v258, 4
  %v260 = vrot.slane %v249, 5
  %v261 = vrot.slane %v260, 4
  %v266 = vadd.f32 %v230, %v255
  %v267 = vadd.f32 %v231, %v257
  %v268 = vadd.f32 %v232, %v259
  %v269 = vadd.f32 %v233, %v261
  %v274 = vrot.slane %v134, 6
  %v275 = vrot.slane %v274, 4
  %v276 = vrot.slane %v135, 6
  %v277 = vrot.slane %v276, 4
  %v278 = vrot.slane %v136, 6
  %v279 = vrot.slane %v278, 4
  %v280 = vrot.slane %v137, 6
  %v281 = vrot.slane %v280, 4
  %v286 = vadd.f32 %v266, %v275
  %v287 = vadd.f32 %v267, %v277
  %v288 = vadd.f32 %v268, %v279
  %v289 = vadd.f32 %v269, %v281
  %vm290 = vcmask 1041408
  %v291 = vsel %vm290, %v286, 0.0
  %v292 = vsel %vm290, %v288, 0.0
  %v293 = vadd.f32 %v291, %v292
  %v294 = vsel %vm290, %v287, 0.0
  %v295 = vsel %vm290, %v289, 0.0
  %v296 = vadd.f32 %v294, %v295
  %v297 = vsel %vm290, %v293, 0.0
  %v298 = vsel %vm290, %v296, 0.0
  %v299 = vadd.f32 %v297, %v298
  %v300 = vsel %vm290, %v299, 0.0
  %v301 = vrot.slane %v300, 4
  %v302 = vadd.f32 %v300, %v301
  %v303 = vrot.slane %v302, 2
  %v304 = vadd.f32 %v302, %v303
  %v305 = vrot.slane %v304, 1
  %v306 = vadd.f32 %v304, %v305
  %v307 = vmul.f32 %v286, %v286
  %v308 = vmul.f32 %v287, %v287
  %v309 = vmul.f32 %v288, %v288
  %v310 = vmul.f32 %v289, %v289
  %v311 = vsel %vm290, %v307, 0.0
  %v312 = vsel %vm290, %v309, 0.0
  %v313 = vadd.f32 %v311, %v312
  %v314 = vsel %vm290, %v308, 0.0
  %v315 = vsel %vm290, %v310, 0.0
  %v316 = vadd.f32 %v314, %v315
  %v317 = vsel %vm290, %v313, 0.0
  %v318 = vsel %vm290, %v316, 0.0
  %v319 = vadd.f32 %v317, %v318
  %v320 = vsel %vm290, %v319, 0.0
  %v321 = vrot.slane %v320, 4
  %v322 = vadd.f32 %v320, %v321
  %v323 = vrot.slane %v322, 2
  %v324 = vadd.f32 %v322, %v323
  %v325 = vrot.slane %v324, 1
  %v326 = vadd.f32 %v324, %v325
  %v327 = vmul.f32 %v306, 0.125
  %v328 = vmul.f32 %v326, 0.125
  %v329 = vmul.f32 %v327, %v327
  %v330 = vsub.f32 %v328, %v329
  %v331 = vmax.f32 %v330, 0.0
  %v332 = vld [vmem:[%s2] sm:$0x1]
  %v333 = vadd.f32 %v331, 1e-05
  %v334 = vrsqrt.pop %v333
  %v335 = vmul.f32 %v334, %v333
  %v336 = vmul.f32 %v335, %v334
  %v337 = vmul.f32 0.5, %v336
  %v338 = vsub.f32 1.5, %v337
  %v339 = vmul.f32 %v334, %v338
  %vm340 = vweird.f32 %v333
  %vm341 = vweird.f32 %v334
  %vm342 = vmor %vm340, %vm341
  %v343 = vsel %vm342, %v334, %v339
  %v344 = vmul.f32 %v332, %v343
  %v345 = vld [vmem:[%s3] sm:$0x1]
  %v346 = vmul.f32 %v327, %v344
  %v347 = vsub.f32 %v345, %v346
  %v349 = vperm.slane %v344, 0
  %v351 = vmul.f32 %v286, %v349
  %v352 = vmul.f32 %v287, %v349
  %v353 = vmul.f32 %v288, %v349
  %v354 = vmul.f32 %v289, %v349
  %v356 = vperm.slane %v347, 0
  %v358 = vadd.f32 %v351, %v356
  %v359 = vadd.f32 %v352, %v356
  %v360 = vadd.f32 %v353, %v356
  %v361 = vadd.f32 %v354, %v356
  %v362 = vpack.c.bf16 %v358, %v358
  %v363 = vpack.c.bf16 %v359, %v359
  %v364 = vpack.c.bf16 %v360, %v360
  %v365 = vpack.c.bf16 %v361, %v361
  %366 = vst [vmem:[%s4] sm:$0x1] %v362
  %367 = vst [vmem:[%s4 + $0x1] sm:$0x1] %v363
  %368 = vst [vmem:[%s4 + $0x2] sm:$0x1] %v364
  %369 = vst [vmem:[%s4 + $0x3] sm:$0x1] %v365
  // Predicated region
  $region18: #{_lambda_.47} parent=0 // pred_check
    _
  $region19: #{_lambda_.47} parent=0 // pred_check_branch
    %371 = sbr.rel (0) target = $region21
  $region20: #{_lambda_.47} parent=0 // pred_region
    _
  $region21: #{_lambda_.47} parent=0 // pred_fallthru
    _
  // Predicated region
  $region22: #{_lambda_.47} parent=0 // pred_check
    _
  $region23: #{_lambda_.47} parent=0 // pred_check_branch
    %373 = sbr.rel (0) target = $region25
  $region24: #{_lambda_.47} parent=0 // pred_region
    _
  $region25: #{_lambda_.47} parent=0 // pred_fallthru
    _

// kernel: _lambda_.53
$region0: #{_lambda_.53}
  #allocation0 [shape = 'u32[]', space=smem, size = 0x4, offset = 0x4, fixed_abs, tag = 'smem constant byte address 0x4 - core index']
  #allocation1 [shape = 'u32[72,128]{1,0:T(1,128)}', space=vmem, size = 0x9000, scoped, tag = 'internal scratch']
  %s0 = inlined_call_operand.vmem [shape: bf16[8,1280], index: 0, kind: input, shape index: {}]
  %s1 = inlined_call_operand.vmem [shape: bf16[1280,128], index: 1, kind: input, shape index: {}]
  %s2 = inlined_call_operand.vmem [shape: f32[1,128], index: 2, kind: input, shape index: {}]
  %s3 = inlined_call_operand.vmem [shape: bf16[8,128], index: 3, kind: output, shape index: {}]
  %s4 = sld [smem:[#allocation0]]
  $region22: #{_lambda_.53} parent=0
    _
  %s6 = ssub.s32 1, %s4
  %s7 = scalar_select 0, %s6, %s4
  // Predicated region
  $region2: #{_lambda_.53} parent=0 // pred_check
    _
  $region3: #{_lambda_.53} parent=0 // pred_check_branch
    %9 = sbr.rel (0) target = $region5
  $region4: #{_lambda_.53} parent=0 // pred_region
    _
  $region5: #{_lambda_.53} parent=0 // pred_fallthru
    _
  // Predicated region
  $region6: #{_lambda_.53} parent=0 // pred_check
    _
  $region7: #{_lambda_.53} parent=0 // pred_check_branch
    %11 = sbr.rel (0) target = $region9
  $region8: #{_lambda_.53} parent=0 // pred_region
    _
  $region9: #{_lambda_.53} parent=0 // pred_fallthru
    _
  // Predicated region
  $region10: #{_lambda_.53} parent=0 // pred_check
    _
  $region11: #{_lambda_.53} parent=0 // pred_check_branch
    %13 = sbr.rel (0) target = $region13
  $region12: #{_lambda_.53} parent=0 // pred_region
    _
  $region13: #{_lambda_.53} parent=0 // pred_fallthru
    _
  %v14 = vld [vmem:[%s0] sm:$0xff]
  %v15 = vld [vmem:[%s0 + $0x8] sm:$0xff]
  %v16 = vld [vmem:[%s0 + $0x10] sm:$0xff]
  %v17 = vld [vmem:[%s0 + $0x18] sm:$0xff]
  %v18 = vld [vmem:[%s0 + $0x20] sm:$0xff]
  %v19 = vld [vmem:[%s1] sm:$0xf]
  %v20 = vld [vmem:[%s1 + $0x4] sm:$0xf]
  %v21 = vld [vmem:[%s1 + $0x8] sm:$0xf]
  %v22 = vld [vmem:[%s1 + $0xc] sm:$0xf]
  %v23 = vld [vmem:[%s1 + $0x10] sm:$0xf]
  %v24 = vld [vmem:[%s1 + $0x14] sm:$0xf]
  %v25 = vld [vmem:[%s1 + $0x18] sm:$0xf]
  %v26 = vld [vmem:[%s1 + $0x1c] sm:$0xf]
  %v27 = vld [vmem:[%s1 + $0x20] sm:$0xf]
  %v28 = vld [vmem:[%s1 + $0x24] sm:$0xf]
  %v29 = vld [vmem:[%s1 + $0x28] sm:$0xf]
  %v30 = vld [vmem:[%s1 + $0x2c] sm:$0xf]
  %v31 = vld [vmem:[%s1 + $0x30] sm:$0xf]
  %v32 = vld [vmem:[%s1 + $0x34] sm:$0xf]
  %v33 = vld [vmem:[%s1 + $0x38] sm:$0xf]
  %v34 = vld [vmem:[%s1 + $0x3c] sm:$0xf]
  %v35 = vld [vmem:[%s1 + $0x40] sm:$0xf]
  %v36 = vld [vmem:[%s1 + $0x44] sm:$0xf]
  %v37 = vld [vmem:[%s1 + $0x48] sm:$0xf]
  %v38 = vld [vmem:[%s1 + $0x4c] sm:$0xf]
  %v39 = vld [vmem:[%s1 + $0x50] sm:$0xf]
  %v40 = vld [vmem:[%s1 + $0x54] sm:$0xf]
  %v41 = vld [vmem:[%s1 + $0x58] sm:$0xf]
  %v42 = vld [vmem:[%s1 + $0x5c] sm:$0xf]
  %v43 = vld [vmem:[%s1 + $0x60] sm:$0xf]
  %v44 = vld [vmem:[%s1 + $0x64] sm:$0xf]
  %v45 = vld [vmem:[%s1 + $0x68] sm:$0xf]
  %v46 = vld [vmem:[%s1 + $0x6c] sm:$0xf]
  %v47 = vld [vmem:[%s1 + $0x70] sm:$0xf]
  %v48 = vld [vmem:[%s1 + $0x74] sm:$0xf]
  %v49 = vld [vmem:[%s1 + $0x78] sm:$0xf]
  %v50 = vld [vmem:[%s1 + $0x7c] sm:$0xf]
  %v51 = vld [vmem:[%s1 + $0x80] sm:$0xf]
  %v52 = vld [vmem:[%s1 + $0x84] sm:$0xf]
  %v53 = vld [vmem:[%s1 + $0x88] sm:$0xf]
  %v54 = vld [vmem:[%s1 + $0x8c] sm:$0xf]
  %v55 = vld [vmem:[%s1 + $0x90] sm:$0xf]
  %v56 = vld [vmem:[%s1 + $0x94] sm:$0xf]
  %v57 = vld [vmem:[%s1 + $0x98] sm:$0xf]
  %v58 = vld [vmem:[%s1 + $0x9c] sm:$0xf]
  %v59 = vld [vmem:[%s1 + $0xa0] sm:$0xf]
  %v60 = vld [vmem:[%s1 + $0xa4] sm:$0xf]
  %v61 = vld [vmem:[%s1 + $0xa8] sm:$0xf]
  %v62 = vld [vmem:[%s1 + $0xac] sm:$0xf]
  %v63 = vld [vmem:[%s1 + $0xb0] sm:$0xf]
  %v64 = vld [vmem:[%s1 + $0xb4] sm:$0xf]
  %v65 = vld [vmem:[%s1 + $0xb8] sm:$0xf]
  %v66 = vld [vmem:[%s1 + $0xbc] sm:$0xf]
  %v67 = vld [vmem:[%s1 + $0xc0] sm:$0xf]
  %v68 = vld [vmem:[%s1 + $0xc4] sm:$0xf]
  %v69 = vld [vmem:[%s1 + $0xc8] sm:$0xf]
  %v70 = vld [vmem:[%s1 + $0xcc] sm:$0xf]
  %v71 = vld [vmem:[%s1 + $0xd0] sm:$0xf]
  %v72 = vld [vmem:[%s1 + $0xd4] sm:$0xf]
  %v73 = vld [vmem:[%s1 + $0xd8] sm:$0xf]
  %v74 = vld [vmem:[%s1 + $0xdc] sm:$0xf]
  %v75 = vld [vmem:[%s1 + $0xe0] sm:$0xf]
  %v76 = vld [vmem:[%s1 + $0xe4] sm:$0xf]
  %v77 = vld [vmem:[%s1 + $0xe8] sm:$0xf]
  %v78 = vld [vmem:[%s1 + $0xec] sm:$0xf]
  %v79 = vld [vmem:[%s1 + $0xf0] sm:$0xf]
  %v80 = vld [vmem:[%s1 + $0xf4] sm:$0xf]
  %v81 = vld [vmem:[%s1 + $0xf8] sm:$0xf]
  %v82 = vld [vmem:[%s1 + $0xfc] sm:$0xf]
  %v83 = vld [vmem:[%s1 + $0x100] sm:$0xf]
  %v84 = vld [vmem:[%s1 + $0x104] sm:$0xf]
  %v85 = vld [vmem:[%s1 + $0x108] sm:$0xf]
  %v86 = vld [vmem:[%s1 + $0x10c] sm:$0xf]
  %v87 = vld [vmem:[%s1 + $0x110] sm:$0xf]
  %v88 = vld [vmem:[%s1 + $0x114] sm:$0xf]
  %v89 = vld [vmem:[%s1 + $0x118] sm:$0xf]
  %v90 = vld [vmem:[%s1 + $0x11c] sm:$0xf]
  %v91 = vld [vmem:[%s1 + $0x120] sm:$0xf]
  %v92 = vld [vmem:[%s1 + $0x124] sm:$0xf]
  %v93 = vld [vmem:[%s1 + $0x128] sm:$0xf]
  %v94 = vld [vmem:[%s1 + $0x12c] sm:$0xf]
  %v95 = vld [vmem:[%s1 + $0x130] sm:$0xf]
  %v96 = vld [vmem:[%s1 + $0x134] sm:$0xf]
  %v97 = vld [vmem:[%s1 + $0x138] sm:$0xf]
  %v98 = vld [vmem:[%s1 + $0x13c] sm:$0xf]
  %v99 = vld [vmem:[%s1 + $0x140] sm:$0xf]
  %v100 = vld [vmem:[%s1 + $0x144] sm:$0xf]
  %v101 = vld [vmem:[%s1 + $0x148] sm:$0xf]
  %v102 = vld [vmem:[%s1 + $0x14c] sm:$0xf]
  %v103 = vld [vmem:[%s1 + $0x150] sm:$0xf]
  %v104 = vld [vmem:[%s1 + $0x154] sm:$0xf]
  %v105 = vld [vmem:[%s1 + $0x158] sm:$0xf]
  %v106 = vld [vmem:[%s1 + $0x15c] sm:$0xf]
  %v107 = vld [vmem:[%s1 + $0x160] sm:$0xf]
  %v108 = vld [vmem:[%s1 + $0x164] sm:$0xf]
  %v109 = vld [vmem:[%s1 + $0x168] sm:$0xf]
  %v110 = vld [vmem:[%s1 + $0x16c] sm:$0xf]
  %v111 = vld [vmem:[%s1 + $0x170] sm:$0xf]
  %v112 = vld [vmem:[%s1 + $0x174] sm:$0xf]
  %v113 = vld [vmem:[%s1 + $0x178] sm:$0xf]
  %v114 = vld [vmem:[%s1 + $0x17c] sm:$0xf]
  %v115 = vld [vmem:[%s1 + $0x180] sm:$0xf]
  %v116 = vld [vmem:[%s1 + $0x184] sm:$0xf]
  %v117 = vld [vmem:[%s1 + $0x188] sm:$0xf]
  %v118 = vld [vmem:[%s1 + $0x18c] sm:$0xf]
  %v119 = vld [vmem:[%s1 + $0x190] sm:$0xf]
  %v120 = vld [vmem:[%s1 + $0x194] sm:$0xf]
  %v121 = vld [vmem:[%s1 + $0x198] sm:$0xf]
  %v122 = vld [vmem:[%s1 + $0x19c] sm:$0xf]
  %v123 = vld [vmem:[%s1 + $0x1a0] sm:$0xf]
  %v124 = vld [vmem:[%s1 + $0x1a4] sm:$0xf]
  %v125 = vld [vmem:[%s1 + $0x1a8] sm:$0xf]
  %v126 = vld [vmem:[%s1 + $0x1ac] sm:$0xf]
  %v127 = vld [vmem:[%s1 + $0x1b0] sm:$0xf]
  %v128 = vld [vmem:[%s1 + $0x1b4] sm:$0xf]
  %v129 = vld [vmem:[%s1 + $0x1b8] sm:$0xf]
  %v130 = vld [vmem:[%s1 + $0x1bc] sm:$0xf]
  %v131 = vld [vmem:[%s1 + $0x1c0] sm:$0xf]
  %v132 = vld [vmem:[%s1 + $0x1c4] sm:$0xf]
  %v133 = vld [vmem:[%s1 + $0x1c8] sm:$0xf]
  %v134 = vld [vmem:[%s1 + $0x1cc] sm:$0xf]
  %v135 = vld [vmem:[%s1 + $0x1d0] sm:$0xf]
  %v136 = vld [vmem:[%s1 + $0x1d4] sm:$0xf]
  %v137 = vld [vmem:[%s1 + $0x1d8] sm:$0xf]
  %v138 = vld [vmem:[%s1 + $0x1dc] sm:$0xf]
  %v139 = vld [vmem:[%s1 + $0x1e0] sm:$0xf]
  %v140 = vld [vmem:[%s1 + $0x1e4] sm:$0xf]
  %v141 = vld [vmem:[%s1 + $0x1e8] sm:$0xf]
  %v142 = vld [vmem:[%s1 + $0x1ec] sm:$0xf]
  %v143 = vld [vmem:[%s1 + $0x1f0] sm:$0xf]
  %v144 = vld [vmem:[%s1 + $0x1f4] sm:$0xf]
  %v145 = vld [vmem:[%s1 + $0x1f8] sm:$0xf]
  %v146 = vld [vmem:[%s1 + $0x1fc] sm:$0xf]
  %v147 = vld [vmem:[%s1 + $0x200] sm:$0xf]
  %v148 = vld [vmem:[%s1 + $0x204] sm:$0xf]
  %v149 = vld [vmem:[%s1 + $0x208] sm:$0xf]
  %v150 = vld [vmem:[%s1 + $0x20c] sm:$0xf]
  %v151 = vld [vmem:[%s1 + $0x210] sm:$0xf]
  %v152 = vld [vmem:[%s1 + $0x214] sm:$0xf]
  %v153 = vld [vmem:[%s1 + $0x218] sm:$0xf]
  %v154 = vld [vmem:[%s1 + $0x21c] sm:$0xf]
  %v155 = vld [vmem:[%s1 + $0x220] sm:$0xf]
  %v156 = vld [vmem:[%s1 + $0x224] sm:$0xf]
  %v157 = vld [vmem:[%s1 + $0x228] sm:$0xf]
  %v158 = vld [vmem:[%s1 + $0x22c] sm:$0xf]
  %v159 = vld [vmem:[%s1 + $0x230] sm:$0xf]
  %v160 = vld [vmem:[%s1 + $0x234] sm:$0xf]
  %v161 = vld [vmem:[%s1 + $0x238] sm:$0xf]
  %v162 = vld [vmem:[%s1 + $0x23c] sm:$0xf]
  %v163 = vld [vmem:[%s1 + $0x240] sm:$0xf]
  %v164 = vld [vmem:[%s1 + $0x244] sm:$0xf]
  %v165 = vld [vmem:[%s1 + $0x248] sm:$0xf]
  %v166 = vld [vmem:[%s1 + $0x24c] sm:$0xf]
  %v167 = vld [vmem:[%s1 + $0x250] sm:$0xf]
  %v168 = vld [vmem:[%s1 + $0x254] sm:$0xf]
  %v169 = vld [vmem:[%s1 + $0x258] sm:$0xf]
  %v170 = vld [vmem:[%s1 + $0x25c] sm:$0xf]
  %v171 = vld [vmem:[%s1 + $0x260] sm:$0xf]
  %v172 = vld [vmem:[%s1 + $0x264] sm:$0xf]
  %v173 = vld [vmem:[%s1 + $0x268] sm:$0xf]
  %v174 = vld [vmem:[%s1 + $0x26c] sm:$0xf]
  %v175 = vld [vmem:[%s1 + $0x270] sm:$0xf]
  %v176 = vld [vmem:[%s1 + $0x274] sm:$0xf]
  %v177 = vld [vmem:[%s1 + $0x278] sm:$0xf]
  %v178 = vld [vmem:[%s1 + $0x27c] sm:$0xf]
  %v179 = vld [vmem:[%s2] sm:$0x1]
  %v181 = vperm.slane %v179, 0
  %v188 = vunpack.c.l.b16 %v14
  %v189 = vunpack.c.h.b16 %v14
  %v190 = vunpack.c.l.b16 %v15
  %v191 = vunpack.c.h.b16 %v15
  %v192 = vunpack.c.l.b16 %v16
  %v193 = vunpack.c.h.b16 %v16
  %v194 = vunpack.c.l.b16 %v17
  %v195 = vunpack.c.h.b16 %v17
  %v196 = vunpack.c.l.b16 %v18
  %v197 = vunpack.c.h.b16 %v18
  %v198 = vpack.c.b16 %v188, %v188
  %v199 = vpack.c.b16 %v189, %v189
  %v200 = vpack.c.b16 %v190, %v190
  %v201 = vpack.c.b16 %v191, %v191
  %v202 = vpack.c.b16 %v192, %v192
  %v203 = vpack.c.b16 %v193, %v193
  %v204 = vpack.c.b16 %v194, %v194
  %v205 = vpack.c.b16 %v195, %v195
  %v206 = vpack.c.b16 %v196, %v196
  %v207 = vpack.c.b16 %v197, %v197
  %v378 = vunpack.c.l.b16 %v19
  %v379 = vunpack.c.l.b16 %v20
  %v380 = vunpack.c.l.b16 %v21
  %v381 = vunpack.c.l.b16 %v22
  %v382 = vunpack.c.l.b16 %v23
  %v383 = vunpack.c.l.b16 %v24
  %v384 = vunpack.c.l.b16 %v25
  %v385 = vunpack.c.l.b16 %v26
  %v386 = vunpack.c.l.b16 %v27
  %v387 = vunpack.c.l.b16 %v28
  %v388 = vunpack.c.l.b16 %v29
  %v389 = vunpack.c.l.b16 %v30
  %v390 = vunpack.c.l.b16 %v31
  %v391 = vunpack.c.l.b16 %v32
  %v392 = vunpack.c.l.b16 %v33
  %v393 = vunpack.c.l.b16 %v34
  %v394 = vunpack.c.l.b16 %v35
  %v395 = vunpack.c.l.b16 %v36
  %v396 = vunpack.c.l.b16 %v37
  %v397 = vunpack.c.l.b16 %v38
  %v398 = vunpack.c.l.b16 %v39
  %v399 = vunpack.c.l.b16 %v40
  %v400 = vunpack.c.l.b16 %v41
  %v401 = vunpack.c.l.b16 %v42
  %v402 = vunpack.c.l.b16 %v43
  %v403 = vunpack.c.l.b16 %v44
  %v404 = vunpack.c.l.b16 %v45
  %v405 = vunpack.c.l.b16 %v46
  %v406 = vunpack.c.l.b16 %v47
  %v407 = vunpack.c.l.b16 %v48
  %v408 = vunpack.c.l.b16 %v49
  %v409 = vunpack.c.l.b16 %v50
  %v410 = vunpack.c.l.b16 %v51
  %v411 = vunpack.c.l.b16 %v52
  %v412 = vunpack.c.l.b16 %v53
  %v413 = vunpack.c.l.b16 %v54
  %v414 = vunpack.c.l.b16 %v55
  %v415 = vunpack.c.l.b16 %v56
  %v416 = vunpack.c.l.b16 %v57
  %v417 = vunpack.c.l.b16 %v58
  %v418 = vunpack.c.l.b16 %v59
  %v419 = vunpack.c.l.b16 %v60
  %v420 = vunpack.c.l.b16 %v61
  %v421 = vunpack.c.l.b16 %v62
  %v422 = vunpack.c.l.b16 %v63
  %v423 = vunpack.c.l.b16 %v64
  %v424 = vunpack.c.l.b16 %v65
  %v425 = vunpack.c.l.b16 %v66
  %v426 = vunpack.c.l.b16 %v67
  %v427 = vunpack.c.l.b16 %v68
  %v428 = vunpack.c.l.b16 %v69
  %v429 = vunpack.c.l.b16 %v70
  %v430 = vunpack.c.l.b16 %v71
  %v431 = vunpack.c.l.b16 %v72
  %v432 = vunpack.c.l.b16 %v73
  %v433 = vunpack.c.l.b16 %v74
  %v434 = vunpack.c.l.b16 %v75
  %v435 = vunpack.c.l.b16 %v76
  %v436 = vunpack.c.l.b16 %v77
  %v437 = vunpack.c.l.b16 %v78
  %v438 = vunpack.c.l.b16 %v79
  %v439 = vunpack.c.l.b16 %v80
  %v440 = vunpack.c.l.b16 %v81
  %v441 = vunpack.c.l.b16 %v82
  %v442 = vunpack.c.l.b16 %v83
  %v443 = vunpack.c.l.b16 %v84
  %v444 = vunpack.c.l.b16 %v85
  %v445 = vunpack.c.l.b16 %v86
  %v446 = vunpack.c.l.b16 %v87
  %v447 = vunpack.c.l.b16 %v88
  %v448 = vunpack.c.l.b16 %v89
  %v449 = vunpack.c.l.b16 %v90
  %v450 = vunpack.c.l.b16 %v91
  %v451 = vunpack.c.l.b16 %v92
  %v452 = vunpack.c.l.b16 %v93
  %v453 = vunpack.c.l.b16 %v94
  %v454 = vunpack.c.l.b16 %v95
  %v455 = vunpack.c.l.b16 %v96
  %v456 = vunpack.c.l.b16 %v97
  %v457 = vunpack.c.l.b16 %v98
  %v458 = vunpack.c.l.b16 %v99
  %v459 = vunpack.c.l.b16 %v100
  %v460 = vunpack.c.l.b16 %v101
  %v461 = vunpack.c.l.b16 %v102
  %v462 = vunpack.c.l.b16 %v103
  %v463 = vunpack.c.l.b16 %v104
  %v464 = vunpack.c.l.b16 %v105
  %v465 = vunpack.c.l.b16 %v106
  %v466 = vunpack.c.l.b16 %v107
  %v467 = vunpack.c.l.b16 %v108
  %v468 = vunpack.c.l.b16 %v109
  %v469 = vunpack.c.l.b16 %v110
  %v470 = vunpack.c.l.b16 %v111
  %v471 = vunpack.c.l.b16 %v112
  %v472 = vunpack.c.l.b16 %v113
  %v473 = vunpack.c.l.b16 %v114
  %v474 = vunpack.c.l.b16 %v115
  %v475 = vunpack.c.l.b16 %v116
  %v476 = vunpack.c.l.b16 %v117
  %v477 = vunpack.c.l.b16 %v118
  %v478 = vunpack.c.l.b16 %v119
  %v479 = vunpack.c.l.b16 %v120
  %v480 = vunpack.c.l.b16 %v121
  %v481 = vunpack.c.l.b16 %v122
  %v482 = vunpack.c.l.b16 %v123
  %v483 = vunpack.c.l.b16 %v124
  %v484 = vunpack.c.l.b16 %v125
  %v485 = vunpack.c.l.b16 %v126
  %v486 = vunpack.c.l.b16 %v127
  %v487 = vunpack.c.l.b16 %v128
  %v488 = vunpack.c.l.b16 %v129
  %v489 = vunpack.c.l.b16 %v130
  %v490 = vunpack.c.l.b16 %v131
  %v491 = vunpack.c.l.b16 %v132
  %v492 = vunpack.c.l.b16 %v133
  %v493 = vunpack.c.l.b16 %v134
  %v494 = vunpack.c.l.b16 %v135
  %v495 = vunpack.c.l.b16 %v136
  %v496 = vunpack.c.l.b16 %v137
  %v497 = vunpack.c.l.b16 %v138
  %v498 = vunpack.c.l.b16 %v139
  %v499 = vunpack.c.l.b16 %v140
  %v500 = vunpack.c.l.b16 %v141
  %v501 = vunpack.c.l.b16 %v142
  %v502 = vunpack.c.l.b16 %v143
  %v503 = vunpack.c.l.b16 %v144
  %v504 = vunpack.c.l.b16 %v145
  %v505 = vunpack.c.l.b16 %v146
  %v506 = vunpack.c.l.b16 %v147
  %v507 = vunpack.c.l.b16 %v148
  %v508 = vunpack.c.l.b16 %v149
  %v509 = vunpack.c.l.b16 %v150
  %v510 = vunpack.c.l.b16 %v151
  %v511 = vunpack.c.l.b16 %v152
  %v512 = vunpack.c.l.b16 %v153
  %v513 = vunpack.c.l.b16 %v154
  %v514 = vunpack.c.l.b16 %v155
  %v515 = vunpack.c.l.b16 %v156
  %v516 = vunpack.c.l.b16 %v157
  %v517 = vunpack.c.l.b16 %v158
  %v518 = vunpack.c.l.b16 %v159
  %v519 = vunpack.c.l.b16 %v160
  %v520 = vunpack.c.l.b16 %v161
  %v521 = vunpack.c.l.b16 %v162
  %v522 = vunpack.c.l.b16 %v163
  %v523 = vunpack.c.l.b16 %v164
  %v524 = vunpack.c.l.b16 %v165
  %v525 = vunpack.c.l.b16 %v166
  %v526 = vunpack.c.l.b16 %v167
  %v527 = vunpack.c.l.b16 %v168
  %v528 = vunpack.c.l.b16 %v169
  %v529 = vunpack.c.l.b16 %v170
  %v530 = vunpack.c.l.b16 %v171
  %v531 = vunpack.c.l.b16 %v172
  %v532 = vunpack.c.l.b16 %v173
  %v533 = vunpack.c.l.b16 %v174
  %v534 = vunpack.c.l.b16 %v175
  %v535 = vunpack.c.l.b16 %v176
  %v536 = vunpack.c.l.b16 %v177
  %v537 = vunpack.c.l.b16 %v178
  %v538 = vpack.c.b16 %v379, %v378
  %v539 = vpack.c.b16 %v381, %v380
  %v540 = vpack.c.b16 %v383, %v382
  %v541 = vpack.c.b16 %v385, %v384
  %v542 = vpack.c.b16 %v387, %v386
  %v543 = vpack.c.b16 %v389, %v388
  %v544 = vpack.c.b16 %v391, %v390
  %v545 = vpack.c.b16 %v393, %v392
  %v546 = vpack.c.b16 %v395, %v394
  %v547 = vpack.c.b16 %v397, %v396
  %v548 = vpack.c.b16 %v399, %v398
  %v549 = vpack.c.b16 %v401, %v400
  %v550 = vpack.c.b16 %v403, %v402
  %v551 = vpack.c.b16 %v405, %v404
  %v552 = vpack.c.b16 %v407, %v406
  %v553 = vpack.c.b16 %v409, %v408
  %v554 = vpack.c.b16 %v411, %v410
  %v555 = vpack.c.b16 %v413, %v412
  %v556 = vpack.c.b16 %v415, %v414
  %v557 = vpack.c.b16 %v417, %v416
  %v558 = vpack.c.b16 %v419, %v418
  %v559 = vpack.c.b16 %v421, %v420
  %v560 = vpack.c.b16 %v423, %v422
  %v561 = vpack.c.b16 %v425, %v424
  %v562 = vpack.c.b16 %v427, %v426
  %v563 = vpack.c.b16 %v429, %v428
  %v564 = vpack.c.b16 %v431, %v430
  %v565 = vpack.c.b16 %v433, %v432
  %v566 = vpack.c.b16 %v435, %v434
  %v567 = vpack.c.b16 %v437, %v436
  %v568 = vpack.c.b16 %v439, %v438
  %v569 = vpack.c.b16 %v441, %v440
  %v570 = vpack.c.b16 %v443, %v442
  %v571 = vpack.c.b16 %v445, %v444
  %v572 = vpack.c.b16 %v447, %v446
  %v573 = vpack.c.b16 %v449, %v448
  %v574 = vpack.c.b16 %v451, %v450
  %v575 = vpack.c.b16 %v453, %v452
  %v576 = vpack.c.b16 %v455, %v454
  %v577 = vpack.c.b16 %v457, %v456
  %v578 = vpack.c.b16 %v459, %v458
  %v579 = vpack.c.b16 %v461, %v460
  %v580 = vpack.c.b16 %v463, %v462
  %v581 = vpack.c.b16 %v465, %v464
  %v582 = vpack.c.b16 %v467, %v466
  %v583 = vpack.c.b16 %v469, %v468
  %v584 = vpack.c.b16 %v471, %v470
  %v585 = vpack.c.b16 %v473, %v472
  %v586 = vpack.c.b16 %v475, %v474
  %v587 = vpack.c.b16 %v477, %v476
  %v588 = vpack.c.b16 %v479, %v478
  %v589 = vpack.c.b16 %v481, %v480
  %v590 = vpack.c.b16 %v483, %v482
  %v591 = vpack.c.b16 %v485, %v484
  %v592 = vpack.c.b16 %v487, %v486
  %v593 = vpack.c.b16 %v489, %v488
  %v594 = vpack.c.b16 %v491, %v490
  %v595 = vpack.c.b16 %v493, %v492
  %v596 = vpack.c.b16 %v495, %v494
  %v597 = vpack.c.b16 %v497, %v496
  %v598 = vpack.c.b16 %v499, %v498
  %v599 = vpack.c.b16 %v501, %v500
  %v600 = vpack.c.b16 %v503, %v502
  %v601 = vpack.c.b16 %v505, %v504
  %v602 = vpack.c.b16 %v507, %v506
  %v603 = vpack.c.b16 %v509, %v508
  %v604 = vpack.c.b16 %v511, %v510
  %v605 = vpack.c.b16 %v513, %v512
  %v606 = vpack.c.b16 %v515, %v514
  %v607 = vpack.c.b16 %v517, %v516
  %v608 = vpack.c.b16 %v519, %v518
  %v609 = vpack.c.b16 %v521, %v520
  %v610 = vpack.c.b16 %v523, %v522
  %v611 = vpack.c.b16 %v525, %v524
  %v612 = vpack.c.b16 %v527, %v526
  %v613 = vpack.c.b16 %v529, %v528
  %v614 = vpack.c.b16 %v531, %v530
  %v615 = vpack.c.b16 %v533, %v532
  %v616 = vpack.c.b16 %v535, %v534
  %v617 = vpack.c.b16 %v537, %v536
  %698 = vmatpush.bf16.msra.mxu0 %v545
  %699 = vmatpush.bf16.msra.mxu0 %v544
  %700 = vmatpush.bf16.msra.mxu0 %v543
  %701 = vmatpush.bf16.msra.mxu0 %v542
  %702 = vmatpush.bf16.msra.mxu0 %v541
  %703 = vmatpush.bf16.msra.mxu0 %v540
  %704 = vmatpush.bf16.msra.mxu0 %v539
  %705 = vmatpush.bf16.msra.mxu0 %v538
  %706 = vmatmul.bf16.gmra.mxu0 %v198
  %v707 = vpop.f32.mrf.mxu0
  %v708 = vadd.f32 %v181, %v707
  %v709 = vpop.f32.mrf.mxu0
  %710 = vdwg.mxu0
  %711 = vmatpush.bf16.msra.mxu0 %v553
  %712 = vmatpush.bf16.msra.mxu0 %v552
  %713 = vmatpush.bf16.msra.mxu0 %v551
  %714 = vmatpush.bf16.msra.mxu0 %v550
  %715 = vmatpush.bf16.msra.mxu0 %v549
  %716 = vmatpush.bf16.msra.mxu0 %v548
  %717 = vmatpush.bf16.msra.mxu0 %v547
  %718 = vmatpush.bf16.msra.mxu0 %v546
  %719 = vmatmul.bf16.gmra.mxu0 %v199
  %v720 = vpop.f32.mrf.mxu0
  %v721 = vadd.f32 %v708, %v720
  %v722 = vpop.f32.mrf.mxu0
  %723 = vdwg.mxu0
  %724 = vmatpush.bf16.msra.mxu0 %v561
  %725 = vmatpush.bf16.msra.mxu0 %v560
  %726 = vmatpush.bf16.msra.mxu0 %v559
  %727 = vmatpush.bf16.msra.mxu0 %v558
  %728 = vmatpush.bf16.msra.mxu0 %v557
  %729 = vmatpush.bf16.msra.mxu0 %v556
  %730 = vmatpush.bf16.msra.mxu0 %v555
  %731 = vmatpush.bf16.msra.mxu0 %v554
  %732 = vmatmul.bf16.gmra.mxu0 %v200
  %v733 = vpop.f32.mrf.mxu0
  %v734 = vadd.f32 %v721, %v733
  %v735 = vpop.f32.mrf.mxu0
  %736 = vdwg.mxu0
  %737 = vmatpush.bf16.msra.mxu0 %v569
  %738 = vmatpush.bf16.msra.mxu0 %v568
  %739 = vmatpush.bf16.msra.mxu0 %v567
  %740 = vmatpush.bf16.msra.mxu0 %v566
  %741 = vmatpush.bf16.msra.mxu0 %v565
  %742 = vmatpush.bf16.msra.mxu0 %v564
  %743 = vmatpush.bf16.msra.mxu0 %v563
  %744 = vmatpush.bf16.msra.mxu0 %v562
  %745 = vmatmul.bf16.gmra.mxu0 %v201
  %v746 = vpop.f32.mrf.mxu0
  %v747 = vadd.f32 %v734, %v746
  %v748 = vpop.f32.mrf.mxu0
  %749 = vdwg.mxu0
  %750 = vmatpush.bf16.msra.mxu0 %v577
  %751 = vmatpush.bf16.msra.mxu0 %v576
  %752 = vmatpush.bf16.msra.mxu0 %v575
  %753 = vmatpush.bf16.msra.mxu0 %v574
  %754 = vmatpush.bf16.msra.mxu0 %v573
  %755 = vmatpush.bf16.msra.mxu0 %v572
  %756 = vmatpush.bf16.msra.mxu0 %v571
  %757 = vmatpush.bf16.msra.mxu0 %v570
  %758 = vmatmul.bf16.gmra.mxu0 %v202
  %v759 = vpop.f32.mrf.mxu0
  %v760 = vadd.f32 %v747, %v759
  %v761 = vpop.f32.mrf.mxu0
  %762 = vdwg.mxu0
  %763 = vmatpush.bf16.msra.mxu0 %v585
  %764 = vmatpush.bf16.msra.mxu0 %v584
  %765 = vmatpush.bf16.msra.mxu0 %v583
  %766 = vmatpush.bf16.msra.mxu0 %v582
  %767 = vmatpush.bf16.msra.mxu0 %v581
  %768 = vmatpush.bf16.msra.mxu0 %v580
  %769 = vmatpush.bf16.msra.mxu0 %v579
  %770 = vmatpush.bf16.msra.mxu0 %v578
  %771 = vmatmul.bf16.gmra.mxu0 %v203
  %v772 = vpop.f32.mrf.mxu0
  %v773 = vadd.f32 %v760, %v772
  %v774 = vpop.f32.mrf.mxu0
  %775 = vdwg.mxu0
  %776 = vmatpush.bf16.msra.mxu0 %v593
  %777 = vmatpush.bf16.msra.mxu0 %v592
  %778 = vmatpush.bf16.msra.mxu0 %v591
  %779 = vmatpush.bf16.msra.mxu0 %v590
  %780 = vmatpush.bf16.msra.mxu0 %v589
  %781 = vmatpush.bf16.msra.mxu0 %v588
  %782 = vmatpush.bf16.msra.mxu0 %v587
  %783 = vmatpush.bf16.msra.mxu0 %v586
  %784 = vmatmul.bf16.gmra.mxu0 %v204
  %v785 = vpop.f32.mrf.mxu0
  %v786 = vadd.f32 %v773, %v785
  %v787 = vpop.f32.mrf.mxu0
  %788 = vdwg.mxu0
  %789 = vmatpush.bf16.msra.mxu0 %v601
  %790 = vmatpush.bf16.msra.mxu0 %v600
  %791 = vmatpush.bf16.msra.mxu0 %v599
  %792 = vmatpush.bf16.msra.mxu0 %v598
  %793 = vmatpush.bf16.msra.mxu0 %v597
  %794 = vmatpush.bf16.msra.mxu0 %v596
  %795 = vmatpush.bf16.msra.mxu0 %v595
  %796 = vmatpush.bf16.msra.mxu0 %v594
  %797 = vmatmul.bf16.gmra.mxu0 %v205
  %v798 = vpop.f32.mrf.mxu0
  %v799 = vadd.f32 %v786, %v798
  %v800 = vpop.f32.mrf.mxu0
  %801 = vdwg.mxu0
  %802 = vmatpush.bf16.msra.mxu0 %v609
  %803 = vmatpush.bf16.msra.mxu0 %v608
  %804 = vmatpush.bf16.msra.mxu0 %v607
  %805 = vmatpush.bf16.msra.mxu0 %v606
  %806 = vmatpush.bf16.msra.mxu0 %v605
  %807 = vmatpush.bf16.msra.mxu0 %v604
  %808 = vmatpush.bf16.msra.mxu0 %v603
  %809 = vmatpush.bf16.msra.mxu0 %v602
  %810 = vmatmul.bf16.gmra.mxu0 %v206
  %v811 = vpop.f32.mrf.mxu0
  %v812 = vadd.f32 %v799, %v811
  %v813 = vpop.f32.mrf.mxu0
  %814 = vdwg.mxu0
  %815 = vmatpush.bf16.msra.mxu0 %v617
  %816 = vmatpush.bf16.msra.mxu0 %v616
  %817 = vmatpush.bf16.msra.mxu0 %v615
  %818 = vmatpush.bf16.msra.mxu0 %v614
  %819 = vmatpush.bf16.msra.mxu0 %v613
  %820 = vmatpush.bf16.msra.mxu0 %v612
  %821 = vmatpush.bf16.msra.mxu0 %v611
  %822 = vmatpush.bf16.msra.mxu0 %v610
  %823 = vmatmul.bf16.gmra.mxu0 %v207
  %v824 = vpop.f32.mrf.mxu0
  %v825 = vadd.f32 %v812, %v824
  %v826 = vpop.f32.mrf.mxu0
  %827 = vdwg.mxu0
  %v828 = vpack.c.bf16 %v825, %v825
  %829 = vst [vmem:[%s3] sm:$0xf] %v828
  // Predicated region
  $region14: #{_lambda_.53} parent=0 // pred_check
    _
  $region15: #{_lambda_.53} parent=0 // pred_check_branch
    %831 = sbr.rel (0) target = $region17
  $region16: #{_lambda_.53} parent=0 // pred_region
    _
  $region17: #{_lambda_.53} parent=0 // pred_fallthru
    _
  // Predicated region
  $region18: #{_lambda_.53} parent=0 // pred_check
    _
  $region19: #{_lambda_.53} parent=0 // pred_check_branch
    %833 = sbr.rel (0) target = $region21
  $region20: #{_lambda_.53} parent=0 // pred_region
    _
  $region21: #{_lambda_.53} parent=0 // pred_fallthru
    _

</llo_original>
